<compile_context>
chip_gen: v6e
topology: v6e:2x2x1
jax: 0.10.0
libtpu: 0.0.40
codegen_flags: <defaults>
</compile_context>

<pallas_src>
import jax
import jax.numpy as jnp
from jax import lax
from jax.experimental import pallas as pl
from jax.experimental.pallas import tpu as pltpu


def _round_up(x, m):
    return ((x + m - 1) // m) * m


# ---------------------------------------------------------------------------
# Fused forward kernel: gather + interacting layers + DNN + final logit.
# ---------------------------------------------------------------------------
def _make_fused_kernel(*, tb, num_fields, emb_dim, vtot, num_att_layers,
                       num_dnn_layers):
    F, E = num_fields, emb_dim

    def kernel(*refs):
        (ids_ref, table_ref, dense_ref, wint_ref,
         w0d_ref, w0s_ref, b0_ref) = refs[:7]
        dnn_rest = refs[7:7 + 2 * (num_dnn_layers - 1)]
        wfa_ref, wfd_ref, o_ref = refs[7 + 2 * (num_dnn_layers - 1):]

        f32 = jnp.float32

        # ---- Embedding gather as a one-hot matmul (runs on the MXU). ----
        iota = lax.broadcasted_iota(jnp.int32, (tb, F, vtot), 2)
        onehot = (ids_ref[...] == iota).astype(f32)            # (TB, F, Vtot)
        emb = jnp.einsum('bfv,ve->bfe', onehot, table_ref[...],
                         preferred_element_type=f32)           # (TB, F, E)

        # ---- Interacting (2-head self-attention) layers. ----
        x = emb
        for l in range(num_att_layers):
            # One packed projection matmul per layer.  Columns:
            #   [Wq(head0)|Wq(head1)|Wk(head0)|Wk(head1)|Wv(head0)|Wv(head1)|W_Res]
            # each E wide; q/k/v blocks are head-masked so heads never need to
            # be lane-sliced out of the activations.
            proj = jnp.einsum('bfe,eo->bfo', x, wint_ref[l],
                              preferred_element_type=f32)      # (TB, F, 7E)
            out = proj[:, :, 6 * E:7 * E]                      # residual term
            for h in range(2):
                q = proj[:, :, (0 + h) * E:(1 + h) * E]
                k = proj[:, :, (2 + h) * E:(3 + h) * E]
                v = proj[:, :, (4 + h) * E:(5 + h) * E]
                s = jnp.einsum('bik,bjk->bij', q, k,
                               preferred_element_type=f32)     # (TB, F, F)
                m = jnp.max(s, axis=-1, keepdims=True)
                e = jnp.exp(s - m)
                p = e * pl.reciprocal(
                    jnp.sum(e, axis=-1, keepdims=True), approx=True)
                # v is head-masked, so summing the two heads == lane concat.
                out = out + jnp.einsum('bij,bjk->bik', p, v,
                                       preferred_element_type=f32)
            x = jnp.maximum(out, 0.0)                          # (TB, F, E)

        # ---- DNN tower.  Dropout(0.8) = identity in eval mode. ----
        # TODO(synk): add pltpu.prng_* based dropout masks if a training-mode
        # forward is ever required.
        deep = jnp.einsum('bud,dh->buh', dense_ref[...], w0d_ref[...],
                          preferred_element_type=f32)          # (TB, 1, H1)
        for f in range(F):
            # Per-field split of the layer-0 weight replaces the
            # concat(dense, flatten(sparse)) of the reference model.
            deep = deep + jnp.einsum('bue,eh->buh', emb[:, f:f + 1, :],
                                     w0s_ref[f], preferred_element_type=f32)
        deep = jnp.maximum(deep + b0_ref[...], 0.0)
        for i in range(num_dnn_layers - 1):
            w_ref, b_ref = dnn_rest[2 * i], dnn_rest[2 * i + 1]
            deep = jnp.maximum(
                jnp.einsum('buh,hk->buk', deep, w_ref[...],
                           preferred_element_type=f32) + b_ref[...], 0.0)

        # ---- Final bias-free linear + sigmoid; lane-dense 128-wide store. --
        logit = jnp.einsum('buh,hk->buk', deep, wfd_ref[...],
                           preferred_element_type=f32)         # (TB, 1, 128)
        for f in range(F):
            logit = logit + jnp.einsum('bue,ek->buk', x[:, f:f + 1, :],
                                       wfa_ref[f],
                                       preferred_element_type=f32)
        o_ref[...] = jax.nn.sigmoid(logit)

    return kernel


# ---------------------------------------------------------------------------
# Parameter init (deterministic, matches the module's parameter shapes).
# ---------------------------------------------------------------------------
def init_mham_params(key, feat_size, embedding_size, dnn_feature_columns,
                     att_layer_num, dnn_hidden_units):
    sparse_cols = [f for f in dnn_feature_columns if f[1] == 'sparse']
    dense_cols = [f for f in dnn_feature_columns if f[1] == 'dense']
    keys = iter(jax.random.split(key, 64))
    params = {}

    params['emb'] = {
        f[0]: 0.05 * jax.random.normal(next(keys),
                                       (feat_size[f[0]], embedding_size),
                                       jnp.float32)
        for f in sparse_cols
    }

    params['int'] = []
    for _ in range(att_layer_num):
        params['int'].append({
            name: 0.05 * jax.random.normal(next(keys),
                                           (embedding_size, embedding_size),
                                           jnp.float32)
            for name in ('wq', 'wk', 'wv', 'wr')
        })

    dnn_in = len(dense_cols) + embedding_size * len(sparse_cols)
    dims = [dnn_in] + list(dnn_hidden_units)
    params['dnn'] = []
    for i in range(len(dims) - 1):
        w = 0.05 * jax.random.normal(next(keys), (dims[i], dims[i + 1]),
                                     jnp.float32)
        b = 0.05 * jax.random.normal(next(keys), (1, dims[i + 1]), jnp.float32)
        params['dnn'].append((w, b))

    final_in = dnn_hidden_units[-1] + embedding_size * len(sparse_cols)
    params['final_w'] = 0.05 * jax.random.normal(next(keys), (final_in, 1),
                                                 jnp.float32)
    return params


# ---------------------------------------------------------------------------
# One-off packing of parameters into kernel-friendly layouts (all static).
# ---------------------------------------------------------------------------
def pack_mham_params(params, feat_size, embedding_size, dnn_feature_columns,
                     dnn_hidden_units):
    sparse_cols = [f for f in dnn_feature_columns if f[1] == 'sparse']
    dense_cols = [f for f in dnn_feature_columns if f[1] == 'dense']
    E = embedding_size
    assert E % 2 == 0, "embedding_size must be even (2 attention heads)"
    H = E // 2
    F = len(sparse_cols)
    Nd = len(dense_cols)
    assert F >= 1 and Nd >= 1
    vmax = max(feat_size[f[0]] for f in sparse_cols)
    vtot = F * vmax
    feature_index = {name: i for i, name in enumerate(feat_size)}

    # Stacked, zero-padded embedding tables: rows [f*vmax, f*vmax + vocab_f).
    table = jnp.zeros((vtot, E), jnp.float32)
    for f, feat in enumerate(sparse_cols):
        t = params['emb'][feat[0]]
        table = table.at[f * vmax:f * vmax + t.shape[0], :].set(t)

    # Packed per-layer attention weight (E, 7E): head-masked q/k/v + residual.
    def head_masked(w, h):
        m = jnp.zeros_like(w)
        return m.at[:, h * H:(h + 1) * H].set(w[:, h * H:(h + 1) * H])

    w_int = jnp.stack([
        jnp.concatenate(
            [head_masked(layer['wq'], 0), head_masked(layer['wq'], 1),
             head_masked(layer['wk'], 0), head_masked(layer['wk'], 1),
             head_masked(layer['wv'], 0), head_masked(layer['wv'], 1),
             layer['wr']], axis=1)
        for layer in params['int']], axis=0)                  # (L, E, 7E)

    hidden = list(dnn_hidden_units)
    # DNN layer 0: split rows into the dense part and per-field sparse parts.
    w0, b0 = params['dnn'][0]
    w0_dense = w0[:Nd, :]                                     # (Nd, H1)
    w0_sparse = w0[Nd:, :].reshape(F, E, hidden[0])           # (F, E, H1)
    b0 = b0.reshape(1, 1, hidden[0])
    dnn_rest = []
    for (w, b) in params['dnn'][1:]:
        dnn_rest.extend([w, b.reshape(1, 1, b.shape[-1])])

    # Final bias-free linear: split att/deep rows; tile to 128 identical
    # columns so the kernel's HBM store is lane-dense.
    fw = params['final_w']                                    # (F*E + Hl, 1)
    wf_att = jnp.tile(fw[:F * E, :], (1, 128)).reshape(F, E, 128)
    wf_deep = jnp.tile(fw[F * E:, :], (1, 128))               # (H_last, 128)

    return {
        'table': table, 'w_int': w_int,
        'w0_dense': w0_dense, 'w0_sparse': w0_sparse, 'b0': b0,
        'dnn_rest': tuple(dnn_rest),
        'wf_att': wf_att, 'wf_deep': wf_deep,
        'config': {
            'E': E, 'F': F, 'Nd': Nd, 'vmax': vmax, 'vtot': vtot,
            'num_att_layers': len(params['int']),
            'hidden': tuple(hidden),
            'sparse_x_cols': tuple(feature_index[f[0]] for f in sparse_cols),
            'dense_x_cols': tuple(feature_index[f[0]] for f in dense_cols),
        },
    }


# ---------------------------------------------------------------------------
# Fused MHAM forward.
# ---------------------------------------------------------------------------
def mham_forward(packed, X, *, block_b=128):
    cfg = packed['config']
    E, F, Nd = cfg['E'], cfg['F'], cfg['Nd']
    vmax, vtot = cfg['vmax'], cfg['vtot']
    L = cfg['num_att_layers']
    hidden = cfg['hidden']
    n_dnn = len(hidden)
    B = X.shape[0]

    # Glue: sparse ids (offset into the stacked table) + dense values.
    # NOTE: ids travel as float in X (like the reference); exact only for
    # vocabularies < 2^24.
    scols = jnp.asarray(cfg['sparse_x_cols'], jnp.int32)
    dcols = jnp.asarray(cfg['dense_x_cols'], jnp.int32)
    ids = jnp.take(X, scols, axis=1).astype(jnp.int32)        # (B, F)
    ids = ids + (jnp.arange(F, dtype=jnp.int32) * vmax)[None, :]
    ids = ids[:, :, None]                                     # (B, F, 1)
    dense = jnp.take(X, dcols, axis=1).astype(jnp.float32)[:, None, :]

    # Batch tiling: TB rows per grid step (multiple of 8), 'parallel' axis.
    TB = min(block_b, _round_up(B, 8))
    B_pad = _round_up(B, TB)
    if B_pad != B:
        ids = jnp.pad(ids, ((0, B_pad - B), (0, 0), (0, 0)))
        dense = jnp.pad(dense, ((0, B_pad - B), (0, 0), (0, 0)))

    kernel = _make_fused_kernel(tb=TB, num_fields=F, emb_dim=E, vtot=vtot,
                                num_att_layers=L, num_dnn_layers=n_dnn)

    def batched3(i):
        return (i, 0, 0)

    def const2(i):
        return (0, 0)

    def const3(i):
        return (0, 0, 0)

    in_specs = [
        pl.BlockSpec((TB, F, 1), batched3),                   # gather ids
        pl.BlockSpec((vtot, E), const2),                      # stacked tables
        pl.BlockSpec((TB, 1, Nd), batched3),                  # dense features
        pl.BlockSpec((L, E, 7 * E), const3),                  # packed attn W
        pl.BlockSpec((Nd, hidden[0]), const2),                # dnn0 dense W
        pl.BlockSpec((F, E, hidden[0]), const3),              # dnn0 sparse W
        pl.BlockSpec((1, 1, hidden[0]), const3),              # dnn0 bias
    ]
    args = [ids, packed['table'], dense, packed['w_int'],
            packed['w0_dense'], packed['w0_sparse'], packed['b0']]
    for i in range(1, n_dnn):
        w = packed['dnn_rest'][2 * (i - 1)]
        b = packed['dnn_rest'][2 * (i - 1) + 1]
        in_specs.append(pl.BlockSpec(w.shape, const2))
        in_specs.append(pl.BlockSpec(b.shape, const3))
        args.extend([w, b])
    in_specs.append(pl.BlockSpec((F, E, 128), const3))        # final W (att)
    in_specs.append(pl.BlockSpec((hidden[-1], 128), const2))  # final W (deep)
    args.extend([packed['wf_att'], packed['wf_deep']])

    out = pl.pallas_call(
        kernel,
        out_shape=jax.ShapeDtypeStruct((B_pad, 1, 128), jnp.float32),
        grid=(B_pad // TB,),
        in_specs=in_specs,
        out_specs=pl.BlockSpec((TB, 1, 128), batched3),
        compiler_params=pltpu.CompilerParams(
            dimension_semantics=("parallel",)),
    )(*args)

    return out[:B, 0, :1]                                     # (B, 1)


# ---------------------------------------------------------------------------
# Pure-JAX reference (mirrors the PyTorch module, eval mode) for validation.
# ---------------------------------------------------------------------------
def mham_reference(params, X, feat_size, dnn_feature_columns, embedding_size):
    feature_index = {name: i for i, name in enumerate(feat_size)}
    sparse_cols = [f for f in dnn_feature_columns if f[1] == 'sparse']
    dense_cols = [f for f in dnn_feature_columns if f[1] == 'dense']
    B = X.shape[0]
    E = embedding_size
    H = E // 2

    embs = [jnp.take(params['emb'][f[0]],
                     X[:, feature_index[f[0]]].astype(jnp.int32), axis=0)
            for f in sparse_cols]
    att = jnp.stack(embs, axis=1)                             # (B, F, E)
    sparse_flat = att.reshape(B, -1)
    dense = jnp.stack([X[:, feature_index[f[0]]] for f in dense_cols], axis=1)

    for layer in params['int']:
        q = jnp.einsum('bfe,eo->bfo', att, layer['wq'])
        k = jnp.einsum('bfe,eo->bfo', att, layer['wk'])
        v = jnp.einsum('bfe,eo->bfo', att, layer['wv'])
        heads = []
        for h in range(2):
            sl = slice(h * H, (h + 1) * H)
            s = jnp.einsum('bik,bjk->bij', q[:, :, sl], k[:, :, sl])
            p = jax.nn.softmax(s, axis=-1)
            heads.append(jnp.einsum('bij,bjk->bik', p, v[:, :, sl]))
        res = jnp.einsum('bfe,eo->bfo', att, layer['wr'])
        att = jax.nn.relu(jnp.concatenate(heads, axis=-1) + res)

    att_flat = att.reshape(B, -1)
    deep = jnp.concatenate([dense, sparse_flat], axis=1)
    for (w, b) in params['dnn']:
        deep = jax.nn.relu(deep @ w + b)
    stack = jnp.concatenate([att_flat, deep], axis=-1)
    return jax.nn.sigmoid(stack @ params['final_w'])


if __name__ == "__main__":
    key = jax.random.PRNGKey(0)

    # Feature config: 4 sparse (vocab 10) + 3 dense columns, embedding = 8.
    embedding_size = 8
    att_layer_num = 2
    dnn_hidden_units = (32, 16)
    feat_size = {'s0': 10, 's1': 10, 's2': 10, 's3': 10,
                 'd0': 1, 'd1': 1, 'd2': 1}
    dnn_feature_columns = [('s0', 'sparse'), ('s1', 'sparse'),
                           ('s2', 'sparse'), ('s3', 'sparse'),
                           ('d0', 'dense'), ('d1', 'dense'), ('d2', 'dense')]

    B = 8
    k_params, k_sparse, k_dense = jax.random.split(key, 3)
    params = init_mham_params(k_params, feat_size, embedding_size,
                              dnn_feature_columns, att_layer_num,
                              dnn_hidden_units)
    packed = pack_mham_params(params, feat_size, embedding_size,
                              dnn_feature_columns, dnn_hidden_units)

    # Input X: (B, num_features); sparse columns hold int ids stored as floats.
    sparse_ids = jax.random.randint(k_sparse, (B, 4), 0, 10).astype(jnp.float32)
    dense_vals = jax.random.normal(k_dense, (B, 3), jnp.float32)
    X = jnp.concatenate([sparse_ids, dense_vals], axis=1)     # (8, 7)

    y_pred = jax.block_until_ready(mham_forward(packed, X))
    assert y_pred.shape == (B, 1)

    y_ref = jax.block_until_ready(
        mham_reference(params, X, feat_size, dnn_feature_columns,
                       embedding_size))
    assert jnp.allclose(y_pred, y_ref, atol=1e-2, rtol=1e-2), (
        "max abs err = %f" % float(jnp.max(jnp.abs(y_pred - y_ref))))

    print("KERNEL_OK")
</pallas_src>

<mosaic_0001>
module attributes {stable_mosaic.version = 11 : i64} {
  func.func @kernel(%arg0: i32, %arg1: memref<8x4x1xi32, #tpu.memory_space<vmem>>, %arg2: memref<40x8xf32, #tpu.memory_space<vmem>>, %arg3: memref<8x1x3xf32, #tpu.memory_space<vmem>>, %arg4: memref<2x8x56xf32, #tpu.memory_space<vmem>>, %arg5: memref<3x32xf32, #tpu.memory_space<vmem>>, %arg6: memref<4x8x32xf32, #tpu.memory_space<vmem>>, %arg7: memref<1x1x32xf32, #tpu.memory_space<vmem>>, %arg8: memref<32x16xf32, #tpu.memory_space<vmem>>, %arg9: memref<1x1x16xf32, #tpu.memory_space<vmem>>, %arg10: memref<4x8x128xf32, #tpu.memory_space<vmem>>, %arg11: memref<16x128xf32, #tpu.memory_space<vmem>>, %arg12: memref<8x1x128xf32, #tpu.memory_space<vmem>>) attributes {dimension_semantics = [#tpu.dimension_semantics<parallel>], iteration_bounds = array<i64: 1>, scalar_prefetch = 0 : i64, scratch_operands = 0 : i64, tpu.core_type = #tpu.core_type<tc>, window_params = [{transform_indices = @transform_0, window_bounds = array<i64: 8, 4, 1>}, {pipeline_mode = #tpu.pipeline_mode<synchronous>, transform_indices = @transform_1, window_bounds = array<i64: 40, 8>}, {transform_indices = @transform_2, window_bounds = array<i64: 8, 1, 3>}, {pipeline_mode = #tpu.pipeline_mode<synchronous>, transform_indices = @transform_3, window_bounds = array<i64: 2, 8, 56>}, {pipeline_mode = #tpu.pipeline_mode<synchronous>, transform_indices = @transform_4, window_bounds = array<i64: 3, 32>}, {pipeline_mode = #tpu.pipeline_mode<synchronous>, transform_indices = @transform_5, window_bounds = array<i64: 4, 8, 32>}, {pipeline_mode = #tpu.pipeline_mode<synchronous>, transform_indices = @transform_6, window_bounds = array<i64: 1, 1, 32>}, {pipeline_mode = #tpu.pipeline_mode<synchronous>, transform_indices = @transform_7, window_bounds = array<i64: 32, 16>}, {pipeline_mode = #tpu.pipeline_mode<synchronous>, transform_indices = @transform_8, window_bounds = array<i64: 1, 1, 16>}, {pipeline_mode = #tpu.pipeline_mode<synchronous>, transform_indices = @transform_9, window_bounds = array<i64: 4, 8, 128>}, {pipeline_mode = #tpu.pipeline_mode<synchronous>, transform_indices = @transform_10, window_bounds = array<i64: 16, 128>}, {transform_indices = @transform_11, window_bounds = array<i64: 8, 1, 128>}]} {
    %0 = tpu.iota {dimensions = array<i32: 2>} : vector<8x4x40xi32>
    %c0 = arith.constant 0 : index
    %c0_0 = arith.constant 0 : index
    %c0_1 = arith.constant 0 : index
    %1 = vector.load %arg1[%c0, %c0_0, %c0_1] : memref<8x4x1xi32, #tpu.memory_space<vmem>>, vector<8x4x1xi32>
    %2 = vector.broadcast %1 : vector<8x4x1xi32> to vector<8x4x40xi32>
    %3 = arith.cmpi eq, %2, %0 : vector<8x4x40xi32>
    %4 = arith.extui %3 : vector<8x4x40xi1> to vector<8x4x40xi32>
    %5 = arith.sitofp %4 : vector<8x4x40xi32> to vector<8x4x40xf32>
    %c0_2 = arith.constant 0 : index
    %c0_3 = arith.constant 0 : index
    %6 = vector.load %arg2[%c0_2, %c0_3] : memref<40x8xf32, #tpu.memory_space<vmem>>, vector<40x8xf32>
    "tpu.trace_start"() <{level = 10 : i32, message = "bfv,ve->bfe"}> : () -> ()
    %cst = arith.constant dense<0.000000e+00> : vector<8x4x8xf32>
    %7 = tpu.matmul %5, %6, %cst {dimension_numbers = #tpu.dot_dimension_numbers<[2], [0], [0, 1], [1], [0, 0, 0, 1, 1, 1], [], []>} : vector<8x4x40xf32>, vector<40x8xf32>, vector<8x4x8xf32> -> vector<8x4x8xf32>
    "tpu.trace_stop"() : () -> ()
    %c0_4 = arith.constant 0 : index
    %c0_5 = arith.constant 0 : index
    %c0_6 = arith.constant 0 : index
    %8 = vector.load %arg4[%c0_4, %c0_5, %c0_6] : memref<2x8x56xf32, #tpu.memory_space<vmem>>, vector<1x8x56xf32>
    %9 = vector.shape_cast %8 : vector<1x8x56xf32> to vector<8x56xf32>
    "tpu.trace_start"() <{level = 10 : i32, message = "bfe,eo->bfo"}> : () -> ()
    %cst_7 = arith.constant dense<0.000000e+00> : vector<8x4x56xf32>
    %10 = tpu.matmul %7, %9, %cst_7 {dimension_numbers = #tpu.dot_dimension_numbers<[2], [0], [0, 1], [1], [0, 0, 0, 1, 1, 1], [], []>} : vector<8x4x8xf32>, vector<8x56xf32>, vector<8x4x56xf32> -> vector<8x4x56xf32>
    "tpu.trace_stop"() : () -> ()
    %11 = vector.extract_strided_slice %10 {offsets = [0, 0, 48], sizes = [8, 4, 8], strides = [1, 1, 1]} : vector<8x4x56xf32> to vector<8x4x8xf32>
    %12 = vector.extract_strided_slice %10 {offsets = [0, 0, 0], sizes = [8, 4, 8], strides = [1, 1, 1]} : vector<8x4x56xf32> to vector<8x4x8xf32>
    %13 = vector.extract_strided_slice %10 {offsets = [0, 0, 16], sizes = [8, 4, 8], strides = [1, 1, 1]} : vector<8x4x56xf32> to vector<8x4x8xf32>
    %14 = vector.extract_strided_slice %10 {offsets = [0, 0, 32], sizes = [8, 4, 8], strides = [1, 1, 1]} : vector<8x4x56xf32> to vector<8x4x8xf32>
    "tpu.trace_start"() <{level = 10 : i32, message = "bik,bjk->bij"}> : () -> ()
    %cst_8 = arith.constant dense<0.000000e+00> : vector<8x4x4xf32>
    %15 = tpu.matmul %12, %13, %cst_8 {dimension_numbers = #tpu.dot_dimension_numbers<[2], [2], [1], [1], [0, 0, 0, 1, 1, 1], [0], [0]>} : vector<8x4x8xf32>, vector<8x4x8xf32>, vector<8x4x4xf32> -> vector<8x4x4xf32>
    "tpu.trace_stop"() : () -> ()
    %cst_9 = arith.constant dense<0xFF800000> : vector<8x4xf32>
    %16 = vector.multi_reduction <maximumf>, %15, %cst_9 [2] : vector<8x4x4xf32> to vector<8x4xf32>
    %17 = vector.shape_cast %16 : vector<8x4xf32> to vector<8x4x1xf32>
    %18 = vector.broadcast %17 : vector<8x4x1xf32> to vector<8x4x4xf32>
    %19 = arith.subf %15, %18 : vector<8x4x4xf32>
    %20 = math.exp %19 : vector<8x4x4xf32>
    %cst_10 = arith.constant dense<0.000000e+00> : vector<8x4xf32>
    %21 = vector.multi_reduction <add>, %20, %cst_10 [2] : vector<8x4x4xf32> to vector<8x4xf32>
    %22 = vector.shape_cast %21 : vector<8x4xf32> to vector<8x4x1xf32>
    %23 = tpu.reciprocal %22 {approx = true} : vector<8x4x1xf32> -> vector<8x4x1xf32>
    %24 = vector.broadcast %23 : vector<8x4x1xf32> to vector<8x4x4xf32>
    %25 = arith.mulf %20, %24 : vector<8x4x4xf32>
    "tpu.trace_start"() <{level = 10 : i32, message = "bij,bjk->bik"}> : () -> ()
    %cst_11 = arith.constant dense<0.000000e+00> : vector<8x4x8xf32>
    %26 = tpu.matmul %25, %14, %cst_11 {dimension_numbers = #tpu.dot_dimension_numbers<[2], [1], [1], [2], [0, 0, 0, 1, 1, 2], [0], [0]>} : vector<8x4x4xf32>, vector<8x4x8xf32>, vector<8x4x8xf32> -> vector<8x4x8xf32>
    "tpu.trace_stop"() : () -> ()
    %27 = arith.addf %11, %26 : vector<8x4x8xf32>
    %28 = vector.extract_strided_slice %10 {offsets = [0, 0, 8], sizes = [8, 4, 8], strides = [1, 1, 1]} : vector<8x4x56xf32> to vector<8x4x8xf32>
    %29 = vector.extract_strided_slice %10 {offsets = [0, 0, 24], sizes = [8, 4, 8], strides = [1, 1, 1]} : vector<8x4x56xf32> to vector<8x4x8xf32>
    %30 = vector.extract_strided_slice %10 {offsets = [0, 0, 40], sizes = [8, 4, 8], strides = [1, 1, 1]} : vector<8x4x56xf32> to vector<8x4x8xf32>
    "tpu.trace_start"() <{level = 10 : i32, message = "bik,bjk->bij"}> : () -> ()
    %cst_12 = arith.constant dense<0.000000e+00> : vector<8x4x4xf32>
    %31 = tpu.matmul %28, %29, %cst_12 {dimension_numbers = #tpu.dot_dimension_numbers<[2], [2], [1], [1], [0, 0, 0, 1, 1, 1], [0], [0]>} : vector<8x4x8xf32>, vector<8x4x8xf32>, vector<8x4x4xf32> -> vector<8x4x4xf32>
    "tpu.trace_stop"() : () -> ()
    %cst_13 = arith.constant dense<0xFF800000> : vector<8x4xf32>
    %32 = vector.multi_reduction <maximumf>, %31, %cst_13 [2] : vector<8x4x4xf32> to vector<8x4xf32>
    %33 = vector.shape_cast %32 : vector<8x4xf32> to vector<8x4x1xf32>
    %34 = vector.broadcast %33 : vector<8x4x1xf32> to vector<8x4x4xf32>
    %35 = arith.subf %31, %34 : vector<8x4x4xf32>
    %36 = math.exp %35 : vector<8x4x4xf32>
    %cst_14 = arith.constant dense<0.000000e+00> : vector<8x4xf32>
    %37 = vector.multi_reduction <add>, %36, %cst_14 [2] : vector<8x4x4xf32> to vector<8x4xf32>
    %38 = vector.shape_cast %37 : vector<8x4xf32> to vector<8x4x1xf32>
    %39 = tpu.reciprocal %38 {approx = true} : vector<8x4x1xf32> -> vector<8x4x1xf32>
    %40 = vector.broadcast %39 : vector<8x4x1xf32> to vector<8x4x4xf32>
    %41 = arith.mulf %36, %40 : vector<8x4x4xf32>
    "tpu.trace_start"() <{level = 10 : i32, message = "bij,bjk->bik"}> : () -> ()
    %cst_15 = arith.constant dense<0.000000e+00> : vector<8x4x8xf32>
    %42 = tpu.matmul %41, %30, %cst_15 {dimension_numbers = #tpu.dot_dimension_numbers<[2], [1], [1], [2], [0, 0, 0, 1, 1, 2], [0], [0]>} : vector<8x4x4xf32>, vector<8x4x8xf32>, vector<8x4x8xf32> -> vector<8x4x8xf32>
    "tpu.trace_stop"() : () -> ()
    %43 = arith.addf %27, %42 : vector<8x4x8xf32>
    %cst_16 = arith.constant 0.000000e+00 : f32
    %44 = vector.broadcast %cst_16 : f32 to vector<8x4x8xf32>
    %45 = arith.maximumf %43, %44 : vector<8x4x8xf32>
    %c1 = arith.constant 1 : index
    %c0_17 = arith.constant 0 : index
    %c0_18 = arith.constant 0 : index
    %46 = vector.load %arg4[%c1, %c0_17, %c0_18] : memref<2x8x56xf32, #tpu.memory_space<vmem>>, vector<1x8x56xf32>
    %47 = vector.shape_cast %46 : vector<1x8x56xf32> to vector<8x56xf32>
    "tpu.trace_start"() <{level = 10 : i32, message = "bfe,eo->bfo"}> : () -> ()
    %cst_19 = arith.constant dense<0.000000e+00> : vector<8x4x56xf32>
    %48 = tpu.matmul %45, %47, %cst_19 {dimension_numbers = #tpu.dot_dimension_numbers<[2], [0], [0, 1], [1], [0, 0, 0, 1, 1, 1], [], []>} : vector<8x4x8xf32>, vector<8x56xf32>, vector<8x4x56xf32> -> vector<8x4x56xf32>
    "tpu.trace_stop"() : () -> ()
    %49 = vector.extract_strided_slice %48 {offsets = [0, 0, 48], sizes = [8, 4, 8], strides = [1, 1, 1]} : vector<8x4x56xf32> to vector<8x4x8xf32>
    %50 = vector.extract_strided_slice %48 {offsets = [0, 0, 0], sizes = [8, 4, 8], strides = [1, 1, 1]} : vector<8x4x56xf32> to vector<8x4x8xf32>
    %51 = vector.extract_strided_slice %48 {offsets = [0, 0, 16], sizes = [8, 4, 8], strides = [1, 1, 1]} : vector<8x4x56xf32> to vector<8x4x8xf32>
    %52 = vector.extract_strided_slice %48 {offsets = [0, 0, 32], sizes = [8, 4, 8], strides = [1, 1, 1]} : vector<8x4x56xf32> to vector<8x4x8xf32>
    "tpu.trace_start"() <{level = 10 : i32, message = "bik,bjk->bij"}> : () -> ()
    %cst_20 = arith.constant dense<0.000000e+00> : vector<8x4x4xf32>
    %53 = tpu.matmul %50, %51, %cst_20 {dimension_numbers = #tpu.dot_dimension_numbers<[2], [2], [1], [1], [0, 0, 0, 1, 1, 1], [0], [0]>} : vector<8x4x8xf32>, vector<8x4x8xf32>, vector<8x4x4xf32> -> vector<8x4x4xf32>
    "tpu.trace_stop"() : () -> ()
    %cst_21 = arith.constant dense<0xFF800000> : vector<8x4xf32>
    %54 = vector.multi_reduction <maximumf>, %53, %cst_21 [2] : vector<8x4x4xf32> to vector<8x4xf32>
    %55 = vector.shape_cast %54 : vector<8x4xf32> to vector<8x4x1xf32>
    %56 = vector.broadcast %55 : vector<8x4x1xf32> to vector<8x4x4xf32>
    %57 = arith.subf %53, %56 : vector<8x4x4xf32>
    %58 = math.exp %57 : vector<8x4x4xf32>
    %cst_22 = arith.constant dense<0.000000e+00> : vector<8x4xf32>
    %59 = vector.multi_reduction <add>, %58, %cst_22 [2] : vector<8x4x4xf32> to vector<8x4xf32>
    %60 = vector.shape_cast %59 : vector<8x4xf32> to vector<8x4x1xf32>
    %61 = tpu.reciprocal %60 {approx = true} : vector<8x4x1xf32> -> vector<8x4x1xf32>
    %62 = vector.broadcast %61 : vector<8x4x1xf32> to vector<8x4x4xf32>
    %63 = arith.mulf %58, %62 : vector<8x4x4xf32>
    "tpu.trace_start"() <{level = 10 : i32, message = "bij,bjk->bik"}> : () -> ()
    %cst_23 = arith.constant dense<0.000000e+00> : vector<8x4x8xf32>
    %64 = tpu.matmul %63, %52, %cst_23 {dimension_numbers = #tpu.dot_dimension_numbers<[2], [1], [1], [2], [0, 0, 0, 1, 1, 2], [0], [0]>} : vector<8x4x4xf32>, vector<8x4x8xf32>, vector<8x4x8xf32> -> vector<8x4x8xf32>
    "tpu.trace_stop"() : () -> ()
    %65 = arith.addf %49, %64 : vector<8x4x8xf32>
    %66 = vector.extract_strided_slice %48 {offsets = [0, 0, 8], sizes = [8, 4, 8], strides = [1, 1, 1]} : vector<8x4x56xf32> to vector<8x4x8xf32>
    %67 = vector.extract_strided_slice %48 {offsets = [0, 0, 24], sizes = [8, 4, 8], strides = [1, 1, 1]} : vector<8x4x56xf32> to vector<8x4x8xf32>
    %68 = vector.extract_strided_slice %48 {offsets = [0, 0, 40], sizes = [8, 4, 8], strides = [1, 1, 1]} : vector<8x4x56xf32> to vector<8x4x8xf32>
    "tpu.trace_start"() <{level = 10 : i32, message = "bik,bjk->bij"}> : () -> ()
    %cst_24 = arith.constant dense<0.000000e+00> : vector<8x4x4xf32>
    %69 = tpu.matmul %66, %67, %cst_24 {dimension_numbers = #tpu.dot_dimension_numbers<[2], [2], [1], [1], [0, 0, 0, 1, 1, 1], [0], [0]>} : vector<8x4x8xf32>, vector<8x4x8xf32>, vector<8x4x4xf32> -> vector<8x4x4xf32>
    "tpu.trace_stop"() : () -> ()
    %cst_25 = arith.constant dense<0xFF800000> : vector<8x4xf32>
    %70 = vector.multi_reduction <maximumf>, %69, %cst_25 [2] : vector<8x4x4xf32> to vector<8x4xf32>
    %71 = vector.shape_cast %70 : vector<8x4xf32> to vector<8x4x1xf32>
    %72 = vector.broadcast %71 : vector<8x4x1xf32> to vector<8x4x4xf32>
    %73 = arith.subf %69, %72 : vector<8x4x4xf32>
    %74 = math.exp %73 : vector<8x4x4xf32>
    %cst_26 = arith.constant dense<0.000000e+00> : vector<8x4xf32>
    %75 = vector.multi_reduction <add>, %74, %cst_26 [2] : vector<8x4x4xf32> to vector<8x4xf32>
    %76 = vector.shape_cast %75 : vector<8x4xf32> to vector<8x4x1xf32>
    %77 = tpu.reciprocal %76 {approx = true} : vector<8x4x1xf32> -> vector<8x4x1xf32>
    %78 = vector.broadcast %77 : vector<8x4x1xf32> to vector<8x4x4xf32>
    %79 = arith.mulf %74, %78 : vector<8x4x4xf32>
    "tpu.trace_start"() <{level = 10 : i32, message = "bij,bjk->bik"}> : () -> ()
    %cst_27 = arith.constant dense<0.000000e+00> : vector<8x4x8xf32>
    %80 = tpu.matmul %79, %68, %cst_27 {dimension_numbers = #tpu.dot_dimension_numbers<[2], [1], [1], [2], [0, 0, 0, 1, 1, 2], [0], [0]>} : vector<8x4x4xf32>, vector<8x4x8xf32>, vector<8x4x8xf32> -> vector<8x4x8xf32>
    "tpu.trace_stop"() : () -> ()
    %81 = arith.addf %65, %80 : vector<8x4x8xf32>
    %cst_28 = arith.constant 0.000000e+00 : f32
    %82 = vector.broadcast %cst_28 : f32 to vector<8x4x8xf32>
    %83 = arith.maximumf %81, %82 : vector<8x4x8xf32>
    %c0_29 = arith.constant 0 : index
    %c0_30 = arith.constant 0 : index
    %c0_31 = arith.constant 0 : index
    %84 = vector.load %arg3[%c0_29, %c0_30, %c0_31] : memref<8x1x3xf32, #tpu.memory_space<vmem>>, vector<8x1x3xf32>
    %c0_32 = arith.constant 0 : index
    %c0_33 = arith.constant 0 : index
    %85 = vector.load %arg5[%c0_32, %c0_33] : memref<3x32xf32, #tpu.memory_space<vmem>>, vector<3x32xf32>
    "tpu.trace_start"() <{level = 10 : i32, message = "bud,dh->buh"}> : () -> ()
    %cst_34 = arith.constant dense<0.000000e+00> : vector<8x1x32xf32>
    %86 = tpu.matmul %84, %85, %cst_34 {dimension_numbers = #tpu.dot_dimension_numbers<[2], [0], [0, 1], [1], [0, 0, 0, 1, 1, 1], [], []>} : vector<8x1x3xf32>, vector<3x32xf32>, vector<8x1x32xf32> -> vector<8x1x32xf32>
    "tpu.trace_stop"() : () -> ()
    %87 = vector.extract_strided_slice %7 {offsets = [0, 0, 0], sizes = [8, 1, 8], strides = [1, 1, 1]} : vector<8x4x8xf32> to vector<8x1x8xf32>
    %c0_35 = arith.constant 0 : index
    %c0_36 = arith.constant 0 : index
    %c0_37 = arith.constant 0 : index
    %88 = vector.load %arg6[%c0_35, %c0_36, %c0_37] : memref<4x8x32xf32, #tpu.memory_space<vmem>>, vector<1x8x32xf32>
    %89 = vector.shape_cast %88 : vector<1x8x32xf32> to vector<8x32xf32>
    "tpu.trace_start"() <{level = 10 : i32, message = "bue,eh->buh"}> : () -> ()
    %cst_38 = arith.constant dense<0.000000e+00> : vector<8x1x32xf32>
    %90 = tpu.matmul %87, %89, %cst_38 {dimension_numbers = #tpu.dot_dimension_numbers<[2], [0], [0, 1], [1], [0, 0, 0, 1, 1, 1], [], []>} : vector<8x1x8xf32>, vector<8x32xf32>, vector<8x1x32xf32> -> vector<8x1x32xf32>
    "tpu.trace_stop"() : () -> ()
    %91 = arith.addf %86, %90 : vector<8x1x32xf32>
    %92 = vector.extract_strided_slice %7 {offsets = [0, 1, 0], sizes = [8, 1, 8], strides = [1, 1, 1]} : vector<8x4x8xf32> to vector<8x1x8xf32>
    %c1_39 = arith.constant 1 : index
    %c0_40 = arith.constant 0 : index
    %c0_41 = arith.constant 0 : index
    %93 = vector.load %arg6[%c1_39, %c0_40, %c0_41] : memref<4x8x32xf32, #tpu.memory_space<vmem>>, vector<1x8x32xf32>
    %94 = vector.shape_cast %93 : vector<1x8x32xf32> to vector<8x32xf32>
    "tpu.trace_start"() <{level = 10 : i32, message = "bue,eh->buh"}> : () -> ()
    %cst_42 = arith.constant dense<0.000000e+00> : vector<8x1x32xf32>
    %95 = tpu.matmul %92, %94, %cst_42 {dimension_numbers = #tpu.dot_dimension_numbers<[2], [0], [0, 1], [1], [0, 0, 0, 1, 1, 1], [], []>} : vector<8x1x8xf32>, vector<8x32xf32>, vector<8x1x32xf32> -> vector<8x1x32xf32>
    "tpu.trace_stop"() : () -> ()
    %96 = arith.addf %91, %95 : vector<8x1x32xf32>
    %97 = vector.extract_strided_slice %7 {offsets = [0, 2, 0], sizes = [8, 1, 8], strides = [1, 1, 1]} : vector<8x4x8xf32> to vector<8x1x8xf32>
    %c2 = arith.constant 2 : index
    %c0_43 = arith.constant 0 : index
    %c0_44 = arith.constant 0 : index
    %98 = vector.load %arg6[%c2, %c0_43, %c0_44] : memref<4x8x32xf32, #tpu.memory_space<vmem>>, vector<1x8x32xf32>
    %99 = vector.shape_cast %98 : vector<1x8x32xf32> to vector<8x32xf32>
    "tpu.trace_start"() <{level = 10 : i32, message = "bue,eh->buh"}> : () -> ()
    %cst_45 = arith.constant dense<0.000000e+00> : vector<8x1x32xf32>
    %100 = tpu.matmul %97, %99, %cst_45 {dimension_numbers = #tpu.dot_dimension_numbers<[2], [0], [0, 1], [1], [0, 0, 0, 1, 1, 1], [], []>} : vector<8x1x8xf32>, vector<8x32xf32>, vector<8x1x32xf32> -> vector<8x1x32xf32>
    "tpu.trace_stop"() : () -> ()
    %101 = arith.addf %96, %100 : vector<8x1x32xf32>
    %102 = vector.extract_strided_slice %7 {offsets = [0, 3, 0], sizes = [8, 1, 8], strides = [1, 1, 1]} : vector<8x4x8xf32> to vector<8x1x8xf32>
    %c3 = arith.constant 3 : index
    %c0_46 = arith.constant 0 : index
    %c0_47 = arith.constant 0 : index
    %103 = vector.load %arg6[%c3, %c0_46, %c0_47] : memref<4x8x32xf32, #tpu.memory_space<vmem>>, vector<1x8x32xf32>
    %104 = vector.shape_cast %103 : vector<1x8x32xf32> to vector<8x32xf32>
    "tpu.trace_start"() <{level = 10 : i32, message = "bue,eh->buh"}> : () -> ()
    %cst_48 = arith.constant dense<0.000000e+00> : vector<8x1x32xf32>
    %105 = tpu.matmul %102, %104, %cst_48 {dimension_numbers = #tpu.dot_dimension_numbers<[2], [0], [0, 1], [1], [0, 0, 0, 1, 1, 1], [], []>} : vector<8x1x8xf32>, vector<8x32xf32>, vector<8x1x32xf32> -> vector<8x1x32xf32>
    "tpu.trace_stop"() : () -> ()
    %106 = arith.addf %101, %105 : vector<8x1x32xf32>
    %c0_49 = arith.constant 0 : index
    %c0_50 = arith.constant 0 : index
    %c0_51 = arith.constant 0 : index
    %107 = vector.load %arg7[%c0_49, %c0_50, %c0_51] : memref<1x1x32xf32, #tpu.memory_space<vmem>>, vector<1x1x32xf32>
    %108 = vector.broadcast %107 : vector<1x1x32xf32> to vector<8x1x32xf32>
    %109 = arith.addf %106, %108 : vector<8x1x32xf32>
    %cst_52 = arith.constant 0.000000e+00 : f32
    %110 = vector.broadcast %cst_52 : f32 to vector<8x1x32xf32>
    %111 = arith.maximumf %109, %110 : vector<8x1x32xf32>
    %c0_53 = arith.constant 0 : index
    %c0_54 = arith.constant 0 : index
    %112 = vector.load %arg8[%c0_53, %c0_54] : memref<32x16xf32, #tpu.memory_space<vmem>>, vector<32x16xf32>
    "tpu.trace_start"() <{level = 10 : i32, message = "buh,hk->buk"}> : () -> ()
    %cst_55 = arith.constant dense<0.000000e+00> : vector<8x1x16xf32>
    %113 = tpu.matmul %111, %112, %cst_55 {dimension_numbers = #tpu.dot_dimension_numbers<[2], [0], [0, 1], [1], [0, 0, 0, 1, 1, 1], [], []>} : vector<8x1x32xf32>, vector<32x16xf32>, vector<8x1x16xf32> -> vector<8x1x16xf32>
    "tpu.trace_stop"() : () -> ()
    %c0_56 = arith.constant 0 : index
    %c0_57 = arith.constant 0 : index
    %c0_58 = arith.constant 0 : index
    %114 = vector.load %arg9[%c0_56, %c0_57, %c0_58] : memref<1x1x16xf32, #tpu.memory_space<vmem>>, vector<1x1x16xf32>
    %115 = vector.broadcast %114 : vector<1x1x16xf32> to vector<8x1x16xf32>
    %116 = arith.addf %113, %115 : vector<8x1x16xf32>
    %cst_59 = arith.constant 0.000000e+00 : f32
    %117 = vector.broadcast %cst_59 : f32 to vector<8x1x16xf32>
    %118 = arith.maximumf %116, %117 : vector<8x1x16xf32>
    %c0_60 = arith.constant 0 : index
    %c0_61 = arith.constant 0 : index
    %119 = vector.load %arg11[%c0_60, %c0_61] : memref<16x128xf32, #tpu.memory_space<vmem>>, vector<16x128xf32>
    "tpu.trace_start"() <{level = 10 : i32, message = "buh,hk->buk"}> : () -> ()
    %cst_62 = arith.constant dense<0.000000e+00> : vector<8x1x128xf32>
    %120 = tpu.matmul %118, %119, %cst_62 {dimension_numbers = #tpu.dot_dimension_numbers<[2], [0], [0, 1], [1], [0, 0, 0, 1, 1, 1], [], []>} : vector<8x1x16xf32>, vector<16x128xf32>, vector<8x1x128xf32> -> vector<8x1x128xf32>
    "tpu.trace_stop"() : () -> ()
    %121 = vector.extract_strided_slice %83 {offsets = [0, 0, 0], sizes = [8, 1, 8], strides = [1, 1, 1]} : vector<8x4x8xf32> to vector<8x1x8xf32>
    %c0_63 = arith.constant 0 : index
    %c0_64 = arith.constant 0 : index
    %c0_65 = arith.constant 0 : index
    %122 = vector.load %arg10[%c0_63, %c0_64, %c0_65] : memref<4x8x128xf32, #tpu.memory_space<vmem>>, vector<1x8x128xf32>
    %123 = vector.shape_cast %122 : vector<1x8x128xf32> to vector<8x128xf32>
    "tpu.trace_start"() <{level = 10 : i32, message = "bue,ek->buk"}> : () -> ()
    %cst_66 = arith.constant dense<0.000000e+00> : vector<8x1x128xf32>
    %124 = tpu.matmul %121, %123, %cst_66 {dimension_numbers = #tpu.dot_dimension_numbers<[2], [0], [0, 1], [1], [0, 0, 0, 1, 1, 1], [], []>} : vector<8x1x8xf32>, vector<8x128xf32>, vector<8x1x128xf32> -> vector<8x1x128xf32>
    "tpu.trace_stop"() : () -> ()
    %125 = arith.addf %120, %124 : vector<8x1x128xf32>
    %126 = vector.extract_strided_slice %83 {offsets = [0, 1, 0], sizes = [8, 1, 8], strides = [1, 1, 1]} : vector<8x4x8xf32> to vector<8x1x8xf32>
    %c1_67 = arith.constant 1 : index
    %c0_68 = arith.constant 0 : index
    %c0_69 = arith.constant 0 : index
    %127 = vector.load %arg10[%c1_67, %c0_68, %c0_69] : memref<4x8x128xf32, #tpu.memory_space<vmem>>, vector<1x8x128xf32>
    %128 = vector.shape_cast %127 : vector<1x8x128xf32> to vector<8x128xf32>
    "tpu.trace_start"() <{level = 10 : i32, message = "bue,ek->buk"}> : () -> ()
    %cst_70 = arith.constant dense<0.000000e+00> : vector<8x1x128xf32>
    %129 = tpu.matmul %126, %128, %cst_70 {dimension_numbers = #tpu.dot_dimension_numbers<[2], [0], [0, 1], [1], [0, 0, 0, 1, 1, 1], [], []>} : vector<8x1x8xf32>, vector<8x128xf32>, vector<8x1x128xf32> -> vector<8x1x128xf32>
    "tpu.trace_stop"() : () -> ()
    %130 = arith.addf %125, %129 : vector<8x1x128xf32>
    %131 = vector.extract_strided_slice %83 {offsets = [0, 2, 0], sizes = [8, 1, 8], strides = [1, 1, 1]} : vector<8x4x8xf32> to vector<8x1x8xf32>
    %c2_71 = arith.constant 2 : index
    %c0_72 = arith.constant 0 : index
    %c0_73 = arith.constant 0 : index
    %132 = vector.load %arg10[%c2_71, %c0_72, %c0_73] : memref<4x8x128xf32, #tpu.memory_space<vmem>>, vector<1x8x128xf32>
    %133 = vector.shape_cast %132 : vector<1x8x128xf32> to vector<8x128xf32>
    "tpu.trace_start"() <{level = 10 : i32, message = "bue,ek->buk"}> : () -> ()
    %cst_74 = arith.constant dense<0.000000e+00> : vector<8x1x128xf32>
    %134 = tpu.matmul %131, %133, %cst_74 {dimension_numbers = #tpu.dot_dimension_numbers<[2], [0], [0, 1], [1], [0, 0, 0, 1, 1, 1], [], []>} : vector<8x1x8xf32>, vector<8x128xf32>, vector<8x1x128xf32> -> vector<8x1x128xf32>
    "tpu.trace_stop"() : () -> ()
    %135 = arith.addf %130, %134 : vector<8x1x128xf32>
    %136 = vector.extract_strided_slice %83 {offsets = [0, 3, 0], sizes = [8, 1, 8], strides = [1, 1, 1]} : vector<8x4x8xf32> to vector<8x1x8xf32>
    %c3_75 = arith.constant 3 : index
    %c0_76 = arith.constant 0 : index
    %c0_77 = arith.constant 0 : index
    %137 = vector.load %arg10[%c3_75, %c0_76, %c0_77] : memref<4x8x128xf32, #tpu.memory_space<vmem>>, vector<1x8x128xf32>
    %138 = vector.shape_cast %137 : vector<1x8x128xf32> to vector<8x128xf32>
    "tpu.trace_start"() <{level = 10 : i32, message = "bue,ek->buk"}> : () -> ()
    %cst_78 = arith.constant dense<0.000000e+00> : vector<8x1x128xf32>
    %139 = tpu.matmul %136, %138, %cst_78 {dimension_numbers = #tpu.dot_dimension_numbers<[2], [0], [0, 1], [1], [0, 0, 0, 1, 1, 1], [], []>} : vector<8x1x8xf32>, vector<8x128xf32>, vector<8x1x128xf32> -> vector<8x1x128xf32>
    "tpu.trace_stop"() : () -> ()
    %140 = arith.addf %135, %139 : vector<8x1x128xf32>
    %141 = arith.negf %140 : vector<8x1x128xf32>
    %142 = math.exp %141 : vector<8x1x128xf32>
    %cst_79 = arith.constant 1.000000e+00 : f32
    %143 = vector.broadcast %cst_79 : f32 to vector<8x1x128xf32>
    %144 = arith.addf %143, %142 : vector<8x1x128xf32>
    %145 = arith.divf %143, %144 : vector<8x1x128xf32>
    %c0_80 = arith.constant 0 : index
    %c0_81 = arith.constant 0 : index
    %c0_82 = arith.constant 0 : index
    %146 = vector.load %arg12[%c0_80, %c0_81, %c0_82] : memref<8x1x128xf32, #tpu.memory_space<vmem>>, vector<8x1x128xf32>
    tpu.vector_store %arg12[%c0_80, %c0_81, %c0_82], %145 {strides = array<i32>} : memref<8x1x128xf32, #tpu.memory_space<vmem>>, vector<8x1x128xf32>,
    return
  }
  func.func @transform_0(%arg0: i32) -> (i32, i32, i32) {
    %c0_i32 = arith.constant 0 : i32
    %c0_i32_0 = arith.constant 0 : i32
    %c0_i32_1 = arith.constant 0 : i32
    return %arg0, %c0_i32, %c0_i32_0 : i32, i32, i32
  }
  func.func @transform_1(%arg0: i32) -> (i32, i32) {
    %c0_i32 = arith.constant 0 : i32
    %c0_i32_0 = arith.constant 0 : i32
    %c0_i32_1 = arith.constant 0 : i32
    return %c0_i32, %c0_i32_0 : i32, i32
  }
  func.func @transform_2(%arg0: i32) -> (i32, i32, i32) {
    %c0_i32 = arith.constant 0 : i32
    %c0_i32_0 = arith.constant 0 : i32
    %c0_i32_1 = arith.constant 0 : i32
    return %arg0, %c0_i32, %c0_i32_0 : i32, i32, i32
  }
  func.func @transform_3(%arg0: i32) -> (i32, i32, i32) {
    %c0_i32 = arith.constant 0 : i32
    %c0_i32_0 = arith.constant 0 : i32
    %c0_i32_1 = arith.constant 0 : i32
    %c0_i32_2 = arith.constant 0 : i32
    return %c0_i32, %c0_i32_0, %c0_i32_1 : i32, i32, i32
  }
  func.func @transform_4(%arg0: i32) -> (i32, i32) {
    %c0_i32 = arith.constant 0 : i32
    %c0_i32_0 = arith.constant 0 : i32
    %c0_i32_1 = arith.constant 0 : i32
    return %c0_i32, %c0_i32_0 : i32, i32
  }
  func.func @transform_5(%arg0: i32) -> (i32, i32, i32) {
    %c0_i32 = arith.constant 0 : i32
    %c0_i32_0 = arith.constant 0 : i32
    %c0_i32_1 = arith.constant 0 : i32
    %c0_i32_2 = arith.constant 0 : i32
    return %c0_i32, %c0_i32_0, %c0_i32_1 : i32, i32, i32
  }
  func.func @transform_6(%arg0: i32) -> (i32, i32, i32) {
    %c0_i32 = arith.constant 0 : i32
    %c0_i32_0 = arith.constant 0 : i32
    %c0_i32_1 = arith.constant 0 : i32
    %c0_i32_2 = arith.constant 0 : i32
    return %c0_i32, %c0_i32_0, %c0_i32_1 : i32, i32, i32
  }
  func.func @transform_7(%arg0: i32) -> (i32, i32) {
    %c0_i32 = arith.constant 0 : i32
    %c0_i32_0 = arith.constant 0 : i32
    %c0_i32_1 = arith.constant 0 : i32
    return %c0_i32, %c0_i32_0 : i32, i32
  }
  func.func @transform_8(%arg0: i32) -> (i32, i32, i32) {
    %c0_i32 = arith.constant 0 : i32
    %c0_i32_0 = arith.constant 0 : i32
    %c0_i32_1 = arith.constant 0 : i32
    %c0_i32_2 = arith.constant 0 : i32
    return %c0_i32, %c0_i32_0, %c0_i32_1 : i32, i32, i32
  }
  func.func @transform_9(%arg0: i32) -> (i32, i32, i32) {
    %c0_i32 = arith.constant 0 : i32
    %c0_i32_0 = arith.constant 0 : i32
    %c0_i32_1 = arith.constant 0 : i32
    %c0_i32_2 = arith.constant 0 : i32
    return %c0_i32, %c0_i32_0, %c0_i32_1 : i32, i32, i32
  }
  func.func @transform_10(%arg0: i32) -> (i32, i32) {
    %c0_i32 = arith.constant 0 : i32
    %c0_i32_0 = arith.constant 0 : i32
    %c0_i32_1 = arith.constant 0 : i32
    return %c0_i32, %c0_i32_0 : i32, i32
  }
  func.func @transform_11(%arg0: i32) -> (i32, i32, i32) {
    %c0_i32 = arith.constant 0 : i32
    %c0_i32_0 = arith.constant 0 : i32
    %c0_i32_1 = arith.constant 0 : i32
    return %arg0, %c0_i32, %c0_i32_0 : i32, i32, i32
  }
}

</mosaic_0001>

<llo_original>
// kernel: tpu_custom_call.1
$region0: #{tpu_custom_call.1}
  #allocation0 [shape = 'u32[]', space=smem, size = 0x4, offset = 0x4, fixed_abs, tag = 'smem constant byte address 0x4 - core index']
  #allocation1 [shape = 'u32[144,128]{1,0:T(1,128)}', space=vmem, size = 0x12000, scoped, tag = 'internal scratch']
  %s0 = inlined_call_operand.vmem [shape: s32[8,4,1], index: 0, kind: input, shape index: {}]
  %s1 = inlined_call_operand.vmem [shape: f32[40,8], index: 1, kind: input, shape index: {}]
  %s2 = inlined_call_operand.vmem [shape: f32[8,1,3], index: 2, kind: input, shape index: {}]
  %s3 = inlined_call_operand.vmem [shape: f32[2,8,56], index: 3, kind: input, shape index: {}]
  %s4 = inlined_call_operand.vmem [shape: f32[3,32], index: 4, kind: input, shape index: {}]
  %s5 = inlined_call_operand.vmem [shape: f32[4,8,32], index: 5, kind: input, shape index: {}]
  %s6 = inlined_call_operand.vmem [shape: f32[1,1,32], index: 6, kind: input, shape index: {}]
  %s7 = inlined_call_operand.vmem [shape: f32[32,16], index: 7, kind: input, shape index: {}]
  %s8 = inlined_call_operand.vmem [shape: f32[1,1,16], index: 8, kind: input, shape index: {}]
  %s9 = inlined_call_operand.vmem [shape: f32[4,8,128], index: 9, kind: input, shape index: {}]
  %s10 = inlined_call_operand.vmem [shape: f32[16,128], index: 10, kind: input, shape index: {}]
  %s11 = inlined_call_operand.hbm [shape: f32[8,1,128], index: 11, kind: output, shape index: {}]
  %s12 = sld [smem:[#allocation0]]
  $region54: #{tpu_custom_call.1} parent=0
    _
  %s14 = ssub.s32 1, %s12
  %s15 = scalar_select 0, %s14, %s12
  $region1: #{tpu_custom_call.1} parent=0
    #allocation2 [shape = 'u8[4096]{0}', space=vmem, size = 0x1000, scoped, tag = 'output window, operand 0, single buffered']
    #allocation3 [shape = 's32[1]{0}', space=sflag, size = 0x4, scoped, tag = 'scoped memory for tpu_custom_call.1']
    %16 = vsyncpa [#allocation3], 0
    // Predicated region
    $region2: #{tpu_custom_call.1} parent=1 // pred_check
      _
    $region3: #{tpu_custom_call.1} parent=1 // pred_check_branch
      %18 = sbr.rel (0) target = $region5
    $region4: #{tpu_custom_call.1} parent=1 // pred_region
      _
    $region5: #{tpu_custom_call.1} parent=1 // pred_fallthru
      _
    // Predicated region
    $region6: #{tpu_custom_call.1} parent=1 // pred_check
      _
    $region7: #{tpu_custom_call.1} parent=1 // pred_check_branch
      %20 = sbr.rel (0) target = $region9
    $region8: #{tpu_custom_call.1} parent=1 // pred_region
      _
    $region9: #{tpu_custom_call.1} parent=1 // pred_fallthru
      _
    // Predicated region
    $region10: #{tpu_custom_call.1} parent=1 // pred_check
      _
    $region11: #{tpu_custom_call.1} parent=1 // pred_check_branch
      %22 = sbr.rel (0) target = $region13
    $region12: #{tpu_custom_call.1} parent=1 // pred_region
      _
    $region13: #{tpu_custom_call.1} parent=1 // pred_fallthru
      _
    // Predicated region
    $region14: #{tpu_custom_call.1} parent=1 // pred_check
      _
    $region15: #{tpu_custom_call.1} parent=1 // pred_check_branch
      %24 = sbr.rel (0) target = $region17
    $region16: #{tpu_custom_call.1} parent=1 // pred_region
      _
    $region17: #{tpu_custom_call.1} parent=1 // pred_fallthru
      _
    // Predicated region
    $region18: #{tpu_custom_call.1} parent=1 // pred_check
      _
    $region19: #{tpu_custom_call.1} parent=1 // pred_check_branch
      %26 = sbr.rel (0) target = $region21
    $region20: #{tpu_custom_call.1} parent=1 // pred_region
      _
    $region21: #{tpu_custom_call.1} parent=1 // pred_fallthru
      _
    // Predicated region
    $region22: #{tpu_custom_call.1} parent=1 // pred_check
      _
    $region23: #{tpu_custom_call.1} parent=1 // pred_check_branch
      %28 = sbr.rel (0) target = $region25
    $region24: #{tpu_custom_call.1} parent=1 // pred_region
      _
    $region25: #{tpu_custom_call.1} parent=1 // pred_fallthru
      _
    // Predicated region
    $region26: #{tpu_custom_call.1} parent=1 // pred_check
      _
    $region27: #{tpu_custom_call.1} parent=1 // pred_check_branch
      %30 = sbr.rel (0) target = $region29
    $region28: #{tpu_custom_call.1} parent=1 // pred_region
      _
    $region29: #{tpu_custom_call.1} parent=1 // pred_fallthru
      _
    // Predicated region
    $region30: #{tpu_custom_call.1} parent=1 // pred_check
      _
    $region31: #{tpu_custom_call.1} parent=1 // pred_check_branch
      %32 = sbr.rel (0) target = $region33
    $region32: #{tpu_custom_call.1} parent=1 // pred_region
      _
    $region33: #{tpu_custom_call.1} parent=1 // pred_fallthru
      _
    // Predicated region
    $region34: #{tpu_custom_call.1} parent=1 // pred_check
      _
    $region35: #{tpu_custom_call.1} parent=1 // pred_check_branch
      %34 = sbr.rel (0) target = $region37
    $region36: #{tpu_custom_call.1} parent=1 // pred_region
      _
    $region37: #{tpu_custom_call.1} parent=1 // pred_fallthru
      _
    // Predicated region
    $region38: #{tpu_custom_call.1} parent=1 // pred_check
      _
    $region39: #{tpu_custom_call.1} parent=1 // pred_check_branch
      %36 = sbr.rel (0) target = $region41
    $region40: #{tpu_custom_call.1} parent=1 // pred_region
      _
    $region41: #{tpu_custom_call.1} parent=1 // pred_fallthru
      _
    // Predicated region
    $region42: #{tpu_custom_call.1} parent=1 // pred_check
      _
    $region43: #{tpu_custom_call.1} parent=1 // pred_check_branch
      %38 = sbr.rel (0) target = $region45
    $region44: #{tpu_custom_call.1} parent=1 // pred_region
      _
    $region45: #{tpu_custom_call.1} parent=1 // pred_fallthru
      _
    %v39 = vlaneseq
    %v40 = vand.u32 %v39, 127
    %v41 = vld [vmem:[%s0] sm:$0xf]
    %v42 = vld [vmem:[%s0 + $0x4] sm:$0xf]
    %v43 = vld [vmem:[%s0 + $0x8] sm:$0xf]
    %v44 = vld [vmem:[%s0 + $0xc] sm:$0xf]
    %v45 = vld [vmem:[%s0 + $0x10] sm:$0xf]
    %v46 = vld [vmem:[%s0 + $0x14] sm:$0xf]
    %v47 = vld [vmem:[%s0 + $0x18] sm:$0xf]
    %v48 = vld [vmem:[%s0 + $0x1c] sm:$0xf]
    %49 = vset.pattern.permute.xlu0 0
    %50 = vperm.xlu0 %49, %v41
    %v51 = vpop.permute.xlu0 %50
    %52 = vset.pattern.permute.xlu0 0
    %53 = vperm.xlu0 %52, %v42
    %v54 = vpop.permute.xlu0 %53
    %55 = vset.pattern.permute.xlu0 0
    %56 = vperm.xlu0 %55, %v43
    %v57 = vpop.permute.xlu0 %56
    %58 = vset.pattern.permute.xlu0 0
    %59 = vperm.xlu0 %58, %v44
    %v60 = vpop.permute.xlu0 %59
    %61 = vset.pattern.permute.xlu0 0
    %62 = vperm.xlu0 %61, %v45
    %v63 = vpop.permute.xlu0 %62
    %64 = vset.pattern.permute.xlu0 0
    %65 = vperm.xlu0 %64, %v46
    %v66 = vpop.permute.xlu0 %65
    %67 = vset.pattern.permute.xlu0 0
    %68 = vperm.xlu0 %67, %v47
    %v69 = vpop.permute.xlu0 %68
    %70 = vset.pattern.permute.xlu0 0
    %71 = vperm.xlu0 %70, %v48
    %v72 = vpop.permute.xlu0 %71
    %vm73 = vcmp.eq.s32.totalorder %v51, %v40
    %vm74 = vcmp.eq.s32.totalorder %v54, %v40
    %vm75 = vcmp.eq.s32.totalorder %v57, %v40
    %vm76 = vcmp.eq.s32.totalorder %v60, %v40
    %vm77 = vcmp.eq.s32.totalorder %v63, %v40
    %vm78 = vcmp.eq.s32.totalorder %v66, %v40
    %vm79 = vcmp.eq.s32.totalorder %v69, %v40
    %vm80 = vcmp.eq.s32.totalorder %v72, %v40
    %v81 = vsel %vm73, 1, 0
    %v82 = vsel %vm74, 1, 0
    %v83 = vsel %vm75, 1, 0
    %v84 = vsel %vm76, 1, 0
    %v85 = vsel %vm77, 1, 0
    %v86 = vsel %vm78, 1, 0
    %v87 = vsel %vm79, 1, 0
    %v88 = vsel %vm80, 1, 0
    %v89 = vcvt.s32.f32 %v81
    %v90 = vcvt.s32.f32 %v82
    %v91 = vcvt.s32.f32 %v83
    %v92 = vcvt.s32.f32 %v84
    %v93 = vcvt.s32.f32 %v85
    %v94 = vcvt.s32.f32 %v86
    %v95 = vcvt.s32.f32 %v87
    %v96 = vcvt.s32.f32 %v88
    %v97 = vld [vmem:[%s1] sm:$0xff]
    %v98 = vld [vmem:[%s1 + $0x8] sm:$0xff]
    %v99 = vld [vmem:[%s1 + $0x10] sm:$0xff]
    %v100 = vld [vmem:[%s1 + $0x18] sm:$0xff]
    %v101 = vld [vmem:[%s1 + $0x20] sm:$0xff]
    %v110 = vcombine.low %v89, %v90
    %v111 = vcombine.low %v91, %v92
    %v112 = vcombine.low %v93, %v94
    %v113 = vcombine.low %v95, %v96
    %vm114 = vcmask 326656
    %v115 = vsel %vm114, %v110, 0
    %v117 = vsel %vm114, %v111, 0
    %v119 = vsel %vm114, %v112, 0
    %v121 = vsel %vm114, %v113, 0
    %123 = vmatprep.subr.mxu0 0.0
    %124 = vmatpush1.msra.mxu0 0.0
    %125 = vmatprep.subr.mxu0 0.0
    %126 = vmatpush1.msra.mxu0 0.0
    %127 = vmatprep.subr.mxu0 0.0
    %128 = vmatpush1.msra.mxu0 0.0
    %129 = vmatprep.subr.mxu0 0.0
    %130 = vmatpush1.msra.mxu0 0.0
    %131 = vmatprep.subr.mxu0 0.0
    %132 = vmatpush1.msra.mxu0 0.0
    %133 = vmatprep.subr.mxu0 0.0
    %134 = vmatpush1.msra.mxu0 0.0
    %135 = vmatprep.subr.mxu0 0.0
    %136 = vmatpush1.msra.mxu0 0.0
    %137 = vmatprep.subr.mxu0 0.0
    %138 = vmatpush1.msra.mxu0 0.0
    %139 = vmatprep.subr.mxu0 0.0
    %140 = vmatpush1.msra.mxu0 0.0
    %141 = vmatprep.subr.mxu0 0.0
    %142 = vmatpush1.msra.mxu0 0.0
    %143 = vmatprep.subr.mxu0 0.0
    %144 = vmatpush1.msra.mxu0 0.0
    %145 = vmatprep.subr.mxu0 0.0
    %146 = vmatpush1.msra.mxu0 %v101
    %147 = vmatprep.subr.mxu0 0.0
    %148 = vmatpush1.msra.mxu0 %v100
    %149 = vmatprep.subr.mxu0 0.0
    %150 = vmatpush1.msra.mxu0 %v99
    %151 = vmatprep.subr.mxu0 0.0
    %152 = vmatpush1.msra.mxu0 %v98
    %153 = vmatprep.subr.mxu0 0.0
    %154 = vmatpush1.msra.mxu0 %v97
    %155 = vmatprep.subr.mxu0 0.0
    %156 = vmatpush2.msra.mxu0 0.0
    %157 = vmatprep.subr.mxu0 0.0
    %158 = vmatpush2.msra.mxu0 0.0
    %159 = vmatprep.subr.mxu0 0.0
    %160 = vmatpush2.msra.mxu0 0.0
    %161 = vmatprep.subr.mxu0 0.0
    %162 = vmatpush2.msra.mxu0 0.0
    %163 = vmatprep.subr.mxu0 0.0
    %164 = vmatpush2.msra.mxu0 0.0
    %165 = vmatprep.subr.mxu0 0.0
    %166 = vmatpush2.msra.mxu0 0.0
    %167 = vmatprep.subr.mxu0 0.0
    %168 = vmatpush2.msra.mxu0 0.0
    %169 = vmatprep.subr.mxu0 0.0
    %170 = vmatpush2.msra.mxu0 0.0
    %171 = vmatprep.subr.mxu0 0.0
    %172 = vmatpush2.msra.mxu0 0.0
    %173 = vmatprep.subr.mxu0 0.0
    %174 = vmatpush2.msra.mxu0 0.0
    %175 = vmatprep.subr.mxu0 0.0
    %176 = vmatpush2.msra.mxu0 0.0
    %177 = vmatprep.subr.mxu0 0.0
    %178 = vmatpush2.msra.mxu0 0.0
    %179 = vmatprep.subr.mxu0 0.0
    %180 = vmatpush2.msra.mxu0 0.0
    %181 = vmatprep.subr.mxu0 0.0
    %182 = vmatpush2.msra.mxu0 0.0
    %183 = vmatprep.subr.mxu0 0.0
    %184 = vmatpush2.msra.mxu0 0.0
    %185 = vmatprep.subr.mxu0 0.0
    %186 = vmatpush2.msra.mxu0 0.0
    %187 = vmatprep.mubr.f32.mxu0 0.0
    %188 = vmatmul.mubr.f32.gmra.mxu0 %v115
    %v189 = vpop.f32.mrf.mxu0
    %v190 = vadd.f32 0.0, %v189
    %v191 = vpop.f32.mrf.mxu0
    %192 = vmatprep.mubr.f32.mxu0 0.0
    %193 = vmatmul.mubr.f32.gmra.mxu0 %v117
    %v194 = vpop.f32.mrf.mxu0
    %v195 = vadd.f32 0.0, %v194
    %v196 = vpop.f32.mrf.mxu0
    %197 = vmatprep.mubr.f32.mxu0 0.0
    %198 = vmatmul.mubr.f32.gmra.mxu0 %v119
    %v199 = vpop.f32.mrf.mxu0
    %v200 = vadd.f32 0.0, %v199
    %v201 = vpop.f32.mrf.mxu0
    %202 = vmatprep.mubr.f32.mxu0 0.0
    %203 = vmatmul.mubr.f32.gmra.mxu0 %v121
    %v204 = vpop.f32.mrf.mxu0
    %v205 = vadd.f32 0.0, %v204
    %v206 = vpop.f32.mrf.mxu0
    %207 = vdwg.mxu0
    %v212 = vcombine.high %v190, %v190
    %v213 = vcombine.high %v195, %v195
    %v214 = vcombine.high %v200, %v200
    %v215 = vcombine.high %v205, %v205
    %v216 = vld [vmem:[%s3] sm:$0xff]
    %vm217 = vcmask 64512
    %v218 = vsel %vm217, %v190, 0
    %v220 = vsel %vm217, %v195, 0
    %v222 = vsel %vm217, %v200, 0
    %v224 = vsel %vm217, %v205, 0
    %226 = vmatprep.subr.mxu0 0.0
    %227 = vmatpush1.msra.mxu0 0.0
    %228 = vmatprep.subr.mxu0 0.0
    %229 = vmatpush1.msra.mxu0 0.0
    %230 = vmatprep.subr.mxu0 0.0
    %231 = vmatpush1.msra.mxu0 0.0
    %232 = vmatprep.subr.mxu0 0.0
    %233 = vmatpush1.msra.mxu0 0.0
    %234 = vmatprep.subr.mxu0 0.0
    %235 = vmatpush1.msra.mxu0 0.0
    %236 = vmatprep.subr.mxu0 0.0
    %237 = vmatpush1.msra.mxu0 0.0
    %238 = vmatprep.subr.mxu0 0.0
    %239 = vmatpush1.msra.mxu0 0.0
    %240 = vmatprep.subr.mxu0 0.0
    %241 = vmatpush1.msra.mxu0 0.0
    %242 = vmatprep.subr.mxu0 0.0
    %243 = vmatpush1.msra.mxu0 0.0
    %244 = vmatprep.subr.mxu0 0.0
    %245 = vmatpush1.msra.mxu0 0.0
    %246 = vmatprep.subr.mxu0 0.0
    %247 = vmatpush1.msra.mxu0 0.0
    %248 = vmatprep.subr.mxu0 0.0
    %249 = vmatpush1.msra.mxu0 0.0
    %250 = vmatprep.subr.mxu0 0.0
    %251 = vmatpush1.msra.mxu0 0.0
    %252 = vmatprep.subr.mxu0 0.0
    %253 = vmatpush1.msra.mxu0 0.0
    %254 = vmatprep.subr.mxu0 0.0
    %255 = vmatpush1.msra.mxu0 0.0
    %256 = vmatprep.subr.mxu0 0.0
    %257 = vmatpush1.msra.mxu0 %v216
    %258 = vmatprep.subr.mxu0 0.0
    %259 = vmatpush2.msra.mxu0 0.0
    %260 = vmatprep.subr.mxu0 0.0
    %261 = vmatpush2.msra.mxu0 0.0
    %262 = vmatprep.subr.mxu0 0.0
    %263 = vmatpush2.msra.mxu0 0.0
    %264 = vmatprep.subr.mxu0 0.0
    %265 = vmatpush2.msra.mxu0 0.0
    %266 = vmatprep.subr.mxu0 0.0
    %267 = vmatpush2.msra.mxu0 0.0
    %268 = vmatprep.subr.mxu0 0.0
    %269 = vmatpush2.msra.mxu0 0.0
    %270 = vmatprep.subr.mxu0 0.0
    %271 = vmatpush2.msra.mxu0 0.0
    %272 = vmatprep.subr.mxu0 0.0
    %273 = vmatpush2.msra.mxu0 0.0
    %274 = vmatprep.subr.mxu0 0.0
    %275 = vmatpush2.msra.mxu0 0.0
    %276 = vmatprep.subr.mxu0 0.0
    %277 = vmatpush2.msra.mxu0 0.0
    %278 = vmatprep.subr.mxu0 0.0
    %279 = vmatpush2.msra.mxu0 0.0
    %280 = vmatprep.subr.mxu0 0.0
    %281 = vmatpush2.msra.mxu0 0.0
    %282 = vmatprep.subr.mxu0 0.0
    %283 = vmatpush2.msra.mxu0 0.0
    %284 = vmatprep.subr.mxu0 0.0
    %285 = vmatpush2.msra.mxu0 0.0
    %286 = vmatprep.subr.mxu0 0.0
    %287 = vmatpush2.msra.mxu0 0.0
    %288 = vmatprep.subr.mxu0 0.0
    %289 = vmatpush2.msra.mxu0 0.0
    %290 = vmatprep.mubr.f32.mxu0 0.0
    %291 = vmatmul.mubr.f32.gmra.mxu0 %v218
    %v292 = vpop.f32.mrf.mxu0
    %v293 = vadd.f32 0.0, %v292
    %v294 = vpop.f32.mrf.mxu0
    %295 = vmatprep.mubr.f32.mxu0 0.0
    %296 = vmatmul.mubr.f32.gmra.mxu0 %v220
    %v297 = vpop.f32.mrf.mxu0
    %v298 = vadd.f32 0.0, %v297
    %v299 = vpop.f32.mrf.mxu0
    %300 = vmatprep.mubr.f32.mxu0 0.0
    %301 = vmatmul.mubr.f32.gmra.mxu0 %v222
    %v302 = vpop.f32.mrf.mxu0
    %v303 = vadd.f32 0.0, %v302
    %v304 = vpop.f32.mrf.mxu0
    %305 = vmatprep.mubr.f32.mxu0 0.0
    %306 = vmatmul.mubr.f32.gmra.mxu0 %v224
    %v307 = vpop.f32.mrf.mxu0
    %v308 = vadd.f32 0.0, %v307
    %v309 = vpop.f32.mrf.mxu0
    %310 = vdwg.mxu0
    %v315 = vcombine.high %v293, %v293
    %v316 = vcombine.high %v298, %v298
    %v317 = vcombine.high %v303, %v303
    %v318 = vcombine.high %v308, %v308
    %323 = vrot.lane.b32.xlu0 %v293, 112
    %v324 = vpop.permute.xlu0 %323
    %v325 = vsel %vm217, %v293, 0
    %v327 = vsel %vm217, %v324, 0
    %329 = vmatprep.subr.mxu0 0.0
    %330 = vmatpush1.xpose.msra.mxu0 0.0
    %331 = vmatprep.subr.mxu0 0.0
    %332 = vmatpush1.xpose.msra.mxu0 0.0
    %333 = vmatprep.subr.mxu0 0.0
    %334 = vmatpush1.xpose.msra.mxu0 0.0
    %335 = vmatprep.subr.mxu0 0.0
    %336 = vmatpush1.xpose.msra.mxu0 0.0
    %337 = vmatprep.subr.mxu0 0.0
    %338 = vmatpush1.xpose.msra.mxu0 0.0
    %339 = vmatprep.subr.mxu0 0.0
    %340 = vmatpush1.xpose.msra.mxu0 0.0
    %341 = vmatprep.subr.mxu0 0.0
    %342 = vmatpush1.xpose.msra.mxu0 0.0
    %343 = vmatprep.subr.mxu0 0.0
    %344 = vmatpush1.xpose.msra.mxu0 0.0
    %345 = vmatprep.subr.mxu0 0.0
    %346 = vmatpush1.xpose.msra.mxu0 0.0
    %347 = vmatprep.subr.mxu0 0.0
    %348 = vmatpush1.xpose.msra.mxu0 0.0
    %349 = vmatprep.subr.mxu0 0.0
    %350 = vmatpush1.xpose.msra.mxu0 0.0
    %351 = vmatprep.subr.mxu0 0.0
    %352 = vmatpush1.xpose.msra.mxu0 0.0
    %353 = vmatprep.subr.mxu0 0.0
    %354 = vmatpush1.xpose.msra.mxu0 0.0
    %355 = vmatprep.subr.mxu0 0.0
    %356 = vmatpush1.xpose.msra.mxu0 0.0
    %357 = vmatprep.subr.mxu0 0.0
    %358 = vmatpush1.xpose.msra.mxu0 0.0
    %359 = vmatprep.subr.mxu0 0.0
    %360 = vmatpush1.xpose.msra.mxu0 %v327
    %361 = vmatprep.subr.mxu0 0.0
    %362 = vmatpush2.xpose.msra.mxu0 0.0
    %363 = vmatprep.subr.mxu0 0.0
    %364 = vmatpush2.xpose.msra.mxu0 0.0
    %365 = vmatprep.subr.mxu0 0.0
    %366 = vmatpush2.xpose.msra.mxu0 0.0
    %367 = vmatprep.subr.mxu0 0.0
    %368 = vmatpush2.xpose.msra.mxu0 0.0
    %369 = vmatprep.subr.mxu0 0.0
    %370 = vmatpush2.xpose.msra.mxu0 0.0
    %371 = vmatprep.subr.mxu0 0.0
    %372 = vmatpush2.xpose.msra.mxu0 0.0
    %373 = vmatprep.subr.mxu0 0.0
    %374 = vmatpush2.xpose.msra.mxu0 0.0
    %375 = vmatprep.subr.mxu0 0.0
    %376 = vmatpush2.xpose.msra.mxu0 0.0
    %377 = vmatprep.subr.mxu0 0.0
    %378 = vmatpush2.xpose.msra.mxu0 0.0
    %379 = vmatprep.subr.mxu0 0.0
    %380 = vmatpush2.xpose.msra.mxu0 0.0
    %381 = vmatprep.subr.mxu0 0.0
    %382 = vmatpush2.xpose.msra.mxu0 0.0
    %383 = vmatprep.subr.mxu0 0.0
    %384 = vmatpush2.xpose.msra.mxu0 0.0
    %385 = vmatprep.subr.mxu0 0.0
    %386 = vmatpush2.xpose.msra.mxu0 0.0
    %387 = vmatprep.subr.mxu0 0.0
    %388 = vmatpush2.xpose.msra.mxu0 0.0
    %389 = vmatprep.subr.mxu0 0.0
    %390 = vmatpush2.xpose.msra.mxu0 0.0
    %391 = vmatprep.subr.mxu0 0.0
    %392 = vmatpush2.xpose.msra.mxu0 0.0
    %393 = vmatprep.mubr.f32.mxu0 0.0
    %394 = vmatmul.mubr.f32.gmra.mxu0 %v325
    %v395 = vpop.f32.mrf.mxu0
    %v396 = vadd.f32 0.0, %v395
    %v397 = vpop.f32.mrf.mxu0
    %398 = vdwg.mxu0
    %399 = vrot.lane.b32.xlu0 %v315, 112
    %v400 = vpop.permute.xlu0 %399
    %v401 = vsel %vm217, %v315, 0
    %v403 = vsel %vm217, %v400, 0
    %405 = vmatprep.subr.mxu0 0.0
    %406 = vmatpush1.xpose.msra.mxu0 0.0
    %407 = vmatprep.subr.mxu0 0.0
    %408 = vmatpush1.xpose.msra.mxu0 0.0
    %409 = vmatprep.subr.mxu0 0.0
    %410 = vmatpush1.xpose.msra.mxu0 0.0
    %411 = vmatprep.subr.mxu0 0.0
    %412 = vmatpush1.xpose.msra.mxu0 0.0
    %413 = vmatprep.subr.mxu0 0.0
    %414 = vmatpush1.xpose.msra.mxu0 0.0
    %415 = vmatprep.subr.mxu0 0.0
    %416 = vmatpush1.xpose.msra.mxu0 0.0
    %417 = vmatprep.subr.mxu0 0.0
    %418 = vmatpush1.xpose.msra.mxu0 0.0
    %419 = vmatprep.subr.mxu0 0.0
    %420 = vmatpush1.xpose.msra.mxu0 0.0
    %421 = vmatprep.subr.mxu0 0.0
    %422 = vmatpush1.xpose.msra.mxu0 0.0
    %423 = vmatprep.subr.mxu0 0.0
    %424 = vmatpush1.xpose.msra.mxu0 0.0
    %425 = vmatprep.subr.mxu0 0.0
    %426 = vmatpush1.xpose.msra.mxu0 0.0
    %427 = vmatprep.subr.mxu0 0.0
    %428 = vmatpush1.xpose.msra.mxu0 0.0
    %429 = vmatprep.subr.mxu0 0.0
    %430 = vmatpush1.xpose.msra.mxu0 0.0
    %431 = vmatprep.subr.mxu0 0.0
    %432 = vmatpush1.xpose.msra.mxu0 0.0
    %433 = vmatprep.subr.mxu0 0.0
    %434 = vmatpush1.xpose.msra.mxu0 0.0
    %435 = vmatprep.subr.mxu0 0.0
    %436 = vmatpush1.xpose.msra.mxu0 %v403
    %437 = vmatprep.subr.mxu0 0.0
    %438 = vmatpush2.xpose.msra.mxu0 0.0
    %439 = vmatprep.subr.mxu0 0.0
    %440 = vmatpush2.xpose.msra.mxu0 0.0
    %441 = vmatprep.subr.mxu0 0.0
    %442 = vmatpush2.xpose.msra.mxu0 0.0
    %443 = vmatprep.subr.mxu0 0.0
    %444 = vmatpush2.xpose.msra.mxu0 0.0
    %445 = vmatprep.subr.mxu0 0.0
    %446 = vmatpush2.xpose.msra.mxu0 0.0
    %447 = vmatprep.subr.mxu0 0.0
    %448 = vmatpush2.xpose.msra.mxu0 0.0
    %449 = vmatprep.subr.mxu0 0.0
    %450 = vmatpush2.xpose.msra.mxu0 0.0
    %451 = vmatprep.subr.mxu0 0.0
    %452 = vmatpush2.xpose.msra.mxu0 0.0
    %453 = vmatprep.subr.mxu0 0.0
    %454 = vmatpush2.xpose.msra.mxu0 0.0
    %455 = vmatprep.subr.mxu0 0.0
    %456 = vmatpush2.xpose.msra.mxu0 0.0
    %457 = vmatprep.subr.mxu0 0.0
    %458 = vmatpush2.xpose.msra.mxu0 0.0
    %459 = vmatprep.subr.mxu0 0.0
    %460 = vmatpush2.xpose.msra.mxu0 0.0
    %461 = vmatprep.subr.mxu0 0.0
    %462 = vmatpush2.xpose.msra.mxu0 0.0
    %463 = vmatprep.subr.mxu0 0.0
    %464 = vmatpush2.xpose.msra.mxu0 0.0
    %465 = vmatprep.subr.mxu0 0.0
    %466 = vmatpush2.xpose.msra.mxu0 0.0
    %467 = vmatprep.subr.mxu0 0.0
    %468 = vmatpush2.xpose.msra.mxu0 0.0
    %469 = vmatprep.mubr.f32.mxu0 0.0
    %470 = vmatmul.mubr.f32.gmra.mxu0 %v401
    %v471 = vpop.f32.mrf.mxu0
    %v472 = vadd.f32 0.0, %v471
    %v473 = vpop.f32.mrf.mxu0
    %474 = vdwg.mxu0
    %475 = vrot.lane.b32.xlu0 %v298, 112
    %v476 = vpop.permute.xlu0 %475
    %v477 = vsel %vm217, %v298, 0
    %v479 = vsel %vm217, %v476, 0
    %481 = vmatprep.subr.mxu0 0.0
    %482 = vmatpush1.xpose.msra.mxu0 0.0
    %483 = vmatprep.subr.mxu0 0.0
    %484 = vmatpush1.xpose.msra.mxu0 0.0
    %485 = vmatprep.subr.mxu0 0.0
    %486 = vmatpush1.xpose.msra.mxu0 0.0
    %487 = vmatprep.subr.mxu0 0.0
    %488 = vmatpush1.xpose.msra.mxu0 0.0
    %489 = vmatprep.subr.mxu0 0.0
    %490 = vmatpush1.xpose.msra.mxu0 0.0
    %491 = vmatprep.subr.mxu0 0.0
    %492 = vmatpush1.xpose.msra.mxu0 0.0
    %493 = vmatprep.subr.mxu0 0.0
    %494 = vmatpush1.xpose.msra.mxu0 0.0
    %495 = vmatprep.subr.mxu0 0.0
    %496 = vmatpush1.xpose.msra.mxu0 0.0
    %497 = vmatprep.subr.mxu0 0.0
    %498 = vmatpush1.xpose.msra.mxu0 0.0
    %499 = vmatprep.subr.mxu0 0.0
    %500 = vmatpush1.xpose.msra.mxu0 0.0
    %501 = vmatprep.subr.mxu0 0.0
    %502 = vmatpush1.xpose.msra.mxu0 0.0
    %503 = vmatprep.subr.mxu0 0.0
    %504 = vmatpush1.xpose.msra.mxu0 0.0
    %505 = vmatprep.subr.mxu0 0.0
    %506 = vmatpush1.xpose.msra.mxu0 0.0
    %507 = vmatprep.subr.mxu0 0.0
    %508 = vmatpush1.xpose.msra.mxu0 0.0
    %509 = vmatprep.subr.mxu0 0.0
    %510 = vmatpush1.xpose.msra.mxu0 0.0
    %511 = vmatprep.subr.mxu0 0.0
    %512 = vmatpush1.xpose.msra.mxu0 %v479
    %513 = vmatprep.subr.mxu0 0.0
    %514 = vmatpush2.xpose.msra.mxu0 0.0
    %515 = vmatprep.subr.mxu0 0.0
    %516 = vmatpush2.xpose.msra.mxu0 0.0
    %517 = vmatprep.subr.mxu0 0.0
    %518 = vmatpush2.xpose.msra.mxu0 0.0
    %519 = vmatprep.subr.mxu0 0.0
    %520 = vmatpush2.xpose.msra.mxu0 0.0
    %521 = vmatprep.subr.mxu0 0.0
    %522 = vmatpush2.xpose.msra.mxu0 0.0
    %523 = vmatprep.subr.mxu0 0.0
    %524 = vmatpush2.xpose.msra.mxu0 0.0
    %525 = vmatprep.subr.mxu0 0.0
    %526 = vmatpush2.xpose.msra.mxu0 0.0
    %527 = vmatprep.subr.mxu0 0.0
    %528 = vmatpush2.xpose.msra.mxu0 0.0
    %529 = vmatprep.subr.mxu0 0.0
    %530 = vmatpush2.xpose.msra.mxu0 0.0
    %531 = vmatprep.subr.mxu0 0.0
    %532 = vmatpush2.xpose.msra.mxu0 0.0
    %533 = vmatprep.subr.mxu0 0.0
    %534 = vmatpush2.xpose.msra.mxu0 0.0
    %535 = vmatprep.subr.mxu0 0.0
    %536 = vmatpush2.xpose.msra.mxu0 0.0
    %537 = vmatprep.subr.mxu0 0.0
    %538 = vmatpush2.xpose.msra.mxu0 0.0
    %539 = vmatprep.subr.mxu0 0.0
    %540 = vmatpush2.xpose.msra.mxu0 0.0
    %541 = vmatprep.subr.mxu0 0.0
    %542 = vmatpush2.xpose.msra.mxu0 0.0
    %543 = vmatprep.subr.mxu0 0.0
    %544 = vmatpush2.xpose.msra.mxu0 0.0
    %545 = vmatprep.mubr.f32.mxu0 0.0
    %546 = vmatmul.mubr.f32.gmra.mxu0 %v477
    %v547 = vpop.f32.mrf.mxu0
    %v548 = vadd.f32 0.0, %v547
    %v549 = vpop.f32.mrf.mxu0
    %550 = vdwg.mxu0
    %551 = vrot.lane.b32.xlu0 %v316, 112
    %v552 = vpop.permute.xlu0 %551
    %v553 = vsel %vm217, %v316, 0
    %v555 = vsel %vm217, %v552, 0
    %557 = vmatprep.subr.mxu0 0.0
    %558 = vmatpush1.xpose.msra.mxu0 0.0
    %559 = vmatprep.subr.mxu0 0.0
    %560 = vmatpush1.xpose.msra.mxu0 0.0
    %561 = vmatprep.subr.mxu0 0.0
    %562 = vmatpush1.xpose.msra.mxu0 0.0
    %563 = vmatprep.subr.mxu0 0.0
    %564 = vmatpush1.xpose.msra.mxu0 0.0
    %565 = vmatprep.subr.mxu0 0.0
    %566 = vmatpush1.xpose.msra.mxu0 0.0
    %567 = vmatprep.subr.mxu0 0.0
    %568 = vmatpush1.xpose.msra.mxu0 0.0
    %569 = vmatprep.subr.mxu0 0.0
    %570 = vmatpush1.xpose.msra.mxu0 0.0
    %571 = vmatprep.subr.mxu0 0.0
    %572 = vmatpush1.xpose.msra.mxu0 0.0
    %573 = vmatprep.subr.mxu0 0.0
    %574 = vmatpush1.xpose.msra.mxu0 0.0
    %575 = vmatprep.subr.mxu0 0.0
    %576 = vmatpush1.xpose.msra.mxu0 0.0
    %577 = vmatprep.subr.mxu0 0.0
    %578 = vmatpush1.xpose.msra.mxu0 0.0
    %579 = vmatprep.subr.mxu0 0.0
    %580 = vmatpush1.xpose.msra.mxu0 0.0
    %581 = vmatprep.subr.mxu0 0.0
    %582 = vmatpush1.xpose.msra.mxu0 0.0
    %583 = vmatprep.subr.mxu0 0.0
    %584 = vmatpush1.xpose.msra.mxu0 0.0
    %585 = vmatprep.subr.mxu0 0.0
    %586 = vmatpush1.xpose.msra.mxu0 0.0
    %587 = vmatprep.subr.mxu0 0.0
    %588 = vmatpush1.xpose.msra.mxu0 %v555
    %589 = vmatprep.subr.mxu0 0.0
    %590 = vmatpush2.xpose.msra.mxu0 0.0
    %591 = vmatprep.subr.mxu0 0.0
    %592 = vmatpush2.xpose.msra.mxu0 0.0
    %593 = vmatprep.subr.mxu0 0.0
    %594 = vmatpush2.xpose.msra.mxu0 0.0
    %595 = vmatprep.subr.mxu0 0.0
    %596 = vmatpush2.xpose.msra.mxu0 0.0
    %597 = vmatprep.subr.mxu0 0.0
    %598 = vmatpush2.xpose.msra.mxu0 0.0
    %599 = vmatprep.subr.mxu0 0.0
    %600 = vmatpush2.xpose.msra.mxu0 0.0
    %601 = vmatprep.subr.mxu0 0.0
    %602 = vmatpush2.xpose.msra.mxu0 0.0
    %603 = vmatprep.subr.mxu0 0.0
    %604 = vmatpush2.xpose.msra.mxu0 0.0
    %605 = vmatprep.subr.mxu0 0.0
    %606 = vmatpush2.xpose.msra.mxu0 0.0
    %607 = vmatprep.subr.mxu0 0.0
    %608 = vmatpush2.xpose.msra.mxu0 0.0
    %609 = vmatprep.subr.mxu0 0.0
    %610 = vmatpush2.xpose.msra.mxu0 0.0
    %611 = vmatprep.subr.mxu0 0.0
    %612 = vmatpush2.xpose.msra.mxu0 0.0
    %613 = vmatprep.subr.mxu0 0.0
    %614 = vmatpush2.xpose.msra.mxu0 0.0
    %615 = vmatprep.subr.mxu0 0.0
    %616 = vmatpush2.xpose.msra.mxu0 0.0
    %617 = vmatprep.subr.mxu0 0.0
    %618 = vmatpush2.xpose.msra.mxu0 0.0
    %619 = vmatprep.subr.mxu0 0.0
    %620 = vmatpush2.xpose.msra.mxu0 0.0
    %621 = vmatprep.mubr.f32.mxu0 0.0
    %622 = vmatmul.mubr.f32.gmra.mxu0 %v553
    %v623 = vpop.f32.mrf.mxu0
    %v624 = vadd.f32 0.0, %v623
    %v625 = vpop.f32.mrf.mxu0
    %626 = vdwg.mxu0
    %627 = vrot.lane.b32.xlu0 %v303, 112
    %v628 = vpop.permute.xlu0 %627
    %v629 = vsel %vm217, %v303, 0
    %v631 = vsel %vm217, %v628, 0
    %633 = vmatprep.subr.mxu0 0.0
    %634 = vmatpush1.xpose.msra.mxu0 0.0
    %635 = vmatprep.subr.mxu0 0.0
    %636 = vmatpush1.xpose.msra.mxu0 0.0
    %637 = vmatprep.subr.mxu0 0.0
    %638 = vmatpush1.xpose.msra.mxu0 0.0
    %639 = vmatprep.subr.mxu0 0.0
    %640 = vmatpush1.xpose.msra.mxu0 0.0
    %641 = vmatprep.subr.mxu0 0.0
    %642 = vmatpush1.xpose.msra.mxu0 0.0
    %643 = vmatprep.subr.mxu0 0.0
    %644 = vmatpush1.xpose.msra.mxu0 0.0
    %645 = vmatprep.subr.mxu0 0.0
    %646 = vmatpush1.xpose.msra.mxu0 0.0
    %647 = vmatprep.subr.mxu0 0.0
    %648 = vmatpush1.xpose.msra.mxu0 0.0
    %649 = vmatprep.subr.mxu0 0.0
    %650 = vmatpush1.xpose.msra.mxu0 0.0
    %651 = vmatprep.subr.mxu0 0.0
    %652 = vmatpush1.xpose.msra.mxu0 0.0
    %653 = vmatprep.subr.mxu0 0.0
    %654 = vmatpush1.xpose.msra.mxu0 0.0
    %655 = vmatprep.subr.mxu0 0.0
    %656 = vmatpush1.xpose.msra.mxu0 0.0
    %657 = vmatprep.subr.mxu0 0.0
    %658 = vmatpush1.xpose.msra.mxu0 0.0
    %659 = vmatprep.subr.mxu0 0.0
    %660 = vmatpush1.xpose.msra.mxu0 0.0
    %661 = vmatprep.subr.mxu0 0.0
    %662 = vmatpush1.xpose.msra.mxu0 0.0
    %663 = vmatprep.subr.mxu0 0.0
    %664 = vmatpush1.xpose.msra.mxu0 %v631
    %665 = vmatprep.subr.mxu0 0.0
    %666 = vmatpush2.xpose.msra.mxu0 0.0
    %667 = vmatprep.subr.mxu0 0.0
    %668 = vmatpush2.xpose.msra.mxu0 0.0
    %669 = vmatprep.subr.mxu0 0.0
    %670 = vmatpush2.xpose.msra.mxu0 0.0
    %671 = vmatprep.subr.mxu0 0.0
    %672 = vmatpush2.xpose.msra.mxu0 0.0
    %673 = vmatprep.subr.mxu0 0.0
    %674 = vmatpush2.xpose.msra.mxu0 0.0
    %675 = vmatprep.subr.mxu0 0.0
    %676 = vmatpush2.xpose.msra.mxu0 0.0
    %677 = vmatprep.subr.mxu0 0.0
    %678 = vmatpush2.xpose.msra.mxu0 0.0
    %679 = vmatprep.subr.mxu0 0.0
    %680 = vmatpush2.xpose.msra.mxu0 0.0
    %681 = vmatprep.subr.mxu0 0.0
    %682 = vmatpush2.xpose.msra.mxu0 0.0
    %683 = vmatprep.subr.mxu0 0.0
    %684 = vmatpush2.xpose.msra.mxu0 0.0
    %685 = vmatprep.subr.mxu0 0.0
    %686 = vmatpush2.xpose.msra.mxu0 0.0
    %687 = vmatprep.subr.mxu0 0.0
    %688 = vmatpush2.xpose.msra.mxu0 0.0
    %689 = vmatprep.subr.mxu0 0.0
    %690 = vmatpush2.xpose.msra.mxu0 0.0
    %691 = vmatprep.subr.mxu0 0.0
    %692 = vmatpush2.xpose.msra.mxu0 0.0
    %693 = vmatprep.subr.mxu0 0.0
    %694 = vmatpush2.xpose.msra.mxu0 0.0
    %695 = vmatprep.subr.mxu0 0.0
    %696 = vmatpush2.xpose.msra.mxu0 0.0
    %697 = vmatprep.mubr.f32.mxu0 0.0
    %698 = vmatmul.mubr.f32.gmra.mxu0 %v629
    %v699 = vpop.f32.mrf.mxu0
    %v700 = vadd.f32 0.0, %v699
    %v701 = vpop.f32.mrf.mxu0
    %702 = vdwg.mxu0
    %703 = vrot.lane.b32.xlu0 %v317, 112
    %v704 = vpop.permute.xlu0 %703
    %v705 = vsel %vm217, %v317, 0
    %v707 = vsel %vm217, %v704, 0
    %709 = vmatprep.subr.mxu0 0.0
    %710 = vmatpush1.xpose.msra.mxu0 0.0
    %711 = vmatprep.subr.mxu0 0.0
    %712 = vmatpush1.xpose.msra.mxu0 0.0
    %713 = vmatprep.subr.mxu0 0.0
    %714 = vmatpush1.xpose.msra.mxu0 0.0
    %715 = vmatprep.subr.mxu0 0.0
    %716 = vmatpush1.xpose.msra.mxu0 0.0
    %717 = vmatprep.subr.mxu0 0.0
    %718 = vmatpush1.xpose.msra.mxu0 0.0
    %719 = vmatprep.subr.mxu0 0.0
    %720 = vmatpush1.xpose.msra.mxu0 0.0
    %721 = vmatprep.subr.mxu0 0.0
    %722 = vmatpush1.xpose.msra.mxu0 0.0
    %723 = vmatprep.subr.mxu0 0.0
    %724 = vmatpush1.xpose.msra.mxu0 0.0
    %725 = vmatprep.subr.mxu0 0.0
    %726 = vmatpush1.xpose.msra.mxu0 0.0
    %727 = vmatprep.subr.mxu0 0.0
    %728 = vmatpush1.xpose.msra.mxu0 0.0
    %729 = vmatprep.subr.mxu0 0.0
    %730 = vmatpush1.xpose.msra.mxu0 0.0
    %731 = vmatprep.subr.mxu0 0.0
    %732 = vmatpush1.xpose.msra.mxu0 0.0
    %733 = vmatprep.subr.mxu0 0.0
    %734 = vmatpush1.xpose.msra.mxu0 0.0
    %735 = vmatprep.subr.mxu0 0.0
    %736 = vmatpush1.xpose.msra.mxu0 0.0
    %737 = vmatprep.subr.mxu0 0.0
    %738 = vmatpush1.xpose.msra.mxu0 0.0
    %739 = vmatprep.subr.mxu0 0.0
    %740 = vmatpush1.xpose.msra.mxu0 %v707
    %741 = vmatprep.subr.mxu0 0.0
    %742 = vmatpush2.xpose.msra.mxu0 0.0
    %743 = vmatprep.subr.mxu0 0.0
    %744 = vmatpush2.xpose.msra.mxu0 0.0
    %745 = vmatprep.subr.mxu0 0.0
    %746 = vmatpush2.xpose.msra.mxu0 0.0
    %747 = vmatprep.subr.mxu0 0.0
    %748 = vmatpush2.xpose.msra.mxu0 0.0
    %749 = vmatprep.subr.mxu0 0.0
    %750 = vmatpush2.xpose.msra.mxu0 0.0
    %751 = vmatprep.subr.mxu0 0.0
    %752 = vmatpush2.xpose.msra.mxu0 0.0
    %753 = vmatprep.subr.mxu0 0.0
    %754 = vmatpush2.xpose.msra.mxu0 0.0
    %755 = vmatprep.subr.mxu0 0.0
    %756 = vmatpush2.xpose.msra.mxu0 0.0
    %757 = vmatprep.subr.mxu0 0.0
    %758 = vmatpush2.xpose.msra.mxu0 0.0
    %759 = vmatprep.subr.mxu0 0.0
    %760 = vmatpush2.xpose.msra.mxu0 0.0
    %761 = vmatprep.subr.mxu0 0.0
    %762 = vmatpush2.xpose.msra.mxu0 0.0
    %763 = vmatprep.subr.mxu0 0.0
    %764 = vmatpush2.xpose.msra.mxu0 0.0
    %765 = vmatprep.subr.mxu0 0.0
    %766 = vmatpush2.xpose.msra.mxu0 0.0
    %767 = vmatprep.subr.mxu0 0.0
    %768 = vmatpush2.xpose.msra.mxu0 0.0
    %769 = vmatprep.subr.mxu0 0.0
    %770 = vmatpush2.xpose.msra.mxu0 0.0
    %771 = vmatprep.subr.mxu0 0.0
    %772 = vmatpush2.xpose.msra.mxu0 0.0
    %773 = vmatprep.mubr.f32.mxu0 0.0
    %774 = vmatmul.mubr.f32.gmra.mxu0 %v705
    %v775 = vpop.f32.mrf.mxu0
    %v776 = vadd.f32 0.0, %v775
    %v777 = vpop.f32.mrf.mxu0
    %778 = vdwg.mxu0
    %779 = vrot.lane.b32.xlu0 %v308, 112
    %v780 = vpop.permute.xlu0 %779
    %v781 = vsel %vm217, %v308, 0
    %v783 = vsel %vm217, %v780, 0
    %785 = vmatprep.subr.mxu0 0.0
    %786 = vmatpush1.xpose.msra.mxu0 0.0
    %787 = vmatprep.subr.mxu0 0.0
    %788 = vmatpush1.xpose.msra.mxu0 0.0
    %789 = vmatprep.subr.mxu0 0.0
    %790 = vmatpush1.xpose.msra.mxu0 0.0
    %791 = vmatprep.subr.mxu0 0.0
    %792 = vmatpush1.xpose.msra.mxu0 0.0
    %793 = vmatprep.subr.mxu0 0.0
    %794 = vmatpush1.xpose.msra.mxu0 0.0
    %795 = vmatprep.subr.mxu0 0.0
    %796 = vmatpush1.xpose.msra.mxu0 0.0
    %797 = vmatprep.subr.mxu0 0.0
    %798 = vmatpush1.xpose.msra.mxu0 0.0
    %799 = vmatprep.subr.mxu0 0.0
    %800 = vmatpush1.xpose.msra.mxu0 0.0
    %801 = vmatprep.subr.mxu0 0.0
    %802 = vmatpush1.xpose.msra.mxu0 0.0
    %803 = vmatprep.subr.mxu0 0.0
    %804 = vmatpush1.xpose.msra.mxu0 0.0
    %805 = vmatprep.subr.mxu0 0.0
    %806 = vmatpush1.xpose.msra.mxu0 0.0
    %807 = vmatprep.subr.mxu0 0.0
    %808 = vmatpush1.xpose.msra.mxu0 0.0
    %809 = vmatprep.subr.mxu0 0.0
    %810 = vmatpush1.xpose.msra.mxu0 0.0
    %811 = vmatprep.subr.mxu0 0.0
    %812 = vmatpush1.xpose.msra.mxu0 0.0
    %813 = vmatprep.subr.mxu0 0.0
    %814 = vmatpush1.xpose.msra.mxu0 0.0
    %815 = vmatprep.subr.mxu0 0.0
    %816 = vmatpush1.xpose.msra.mxu0 %v783
    %817 = vmatprep.subr.mxu0 0.0
    %818 = vmatpush2.xpose.msra.mxu0 0.0
    %819 = vmatprep.subr.mxu0 0.0
    %820 = vmatpush2.xpose.msra.mxu0 0.0
    %821 = vmatprep.subr.mxu0 0.0
    %822 = vmatpush2.xpose.msra.mxu0 0.0
    %823 = vmatprep.subr.mxu0 0.0
    %824 = vmatpush2.xpose.msra.mxu0 0.0
    %825 = vmatprep.subr.mxu0 0.0
    %826 = vmatpush2.xpose.msra.mxu0 0.0
    %827 = vmatprep.subr.mxu0 0.0
    %828 = vmatpush2.xpose.msra.mxu0 0.0
    %829 = vmatprep.subr.mxu0 0.0
    %830 = vmatpush2.xpose.msra.mxu0 0.0
    %831 = vmatprep.subr.mxu0 0.0
    %832 = vmatpush2.xpose.msra.mxu0 0.0
    %833 = vmatprep.subr.mxu0 0.0
    %834 = vmatpush2.xpose.msra.mxu0 0.0
    %835 = vmatprep.subr.mxu0 0.0
    %836 = vmatpush2.xpose.msra.mxu0 0.0
    %837 = vmatprep.subr.mxu0 0.0
    %838 = vmatpush2.xpose.msra.mxu0 0.0
    %839 = vmatprep.subr.mxu0 0.0
    %840 = vmatpush2.xpose.msra.mxu0 0.0
    %841 = vmatprep.subr.mxu0 0.0
    %842 = vmatpush2.xpose.msra.mxu0 0.0
    %843 = vmatprep.subr.mxu0 0.0
    %844 = vmatpush2.xpose.msra.mxu0 0.0
    %845 = vmatprep.subr.mxu0 0.0
    %846 = vmatpush2.xpose.msra.mxu0 0.0
    %847 = vmatprep.subr.mxu0 0.0
    %848 = vmatpush2.xpose.msra.mxu0 0.0
    %849 = vmatprep.mubr.f32.mxu0 0.0
    %850 = vmatmul.mubr.f32.gmra.mxu0 %v781
    %v851 = vpop.f32.mrf.mxu0
    %v852 = vadd.f32 0.0, %v851
    %v853 = vpop.f32.mrf.mxu0
    %854 = vdwg.mxu0
    %855 = vrot.lane.b32.xlu0 %v318, 112
    %v856 = vpop.permute.xlu0 %855
    %v857 = vsel %vm217, %v318, 0
    %v859 = vsel %vm217, %v856, 0
    %861 = vmatprep.subr.mxu0 0.0
    %862 = vmatpush1.xpose.msra.mxu0 0.0
    %863 = vmatprep.subr.mxu0 0.0
    %864 = vmatpush1.xpose.msra.mxu0 0.0
    %865 = vmatprep.subr.mxu0 0.0
    %866 = vmatpush1.xpose.msra.mxu0 0.0
    %867 = vmatprep.subr.mxu0 0.0
    %868 = vmatpush1.xpose.msra.mxu0 0.0
    %869 = vmatprep.subr.mxu0 0.0
    %870 = vmatpush1.xpose.msra.mxu0 0.0
    %871 = vmatprep.subr.mxu0 0.0
    %872 = vmatpush1.xpose.msra.mxu0 0.0
    %873 = vmatprep.subr.mxu0 0.0
    %874 = vmatpush1.xpose.msra.mxu0 0.0
    %875 = vmatprep.subr.mxu0 0.0
    %876 = vmatpush1.xpose.msra.mxu0 0.0
    %877 = vmatprep.subr.mxu0 0.0
    %878 = vmatpush1.xpose.msra.mxu0 0.0
    %879 = vmatprep.subr.mxu0 0.0
    %880 = vmatpush1.xpose.msra.mxu0 0.0
    %881 = vmatprep.subr.mxu0 0.0
    %882 = vmatpush1.xpose.msra.mxu0 0.0
    %883 = vmatprep.subr.mxu0 0.0
    %884 = vmatpush1.xpose.msra.mxu0 0.0
    %885 = vmatprep.subr.mxu0 0.0
    %886 = vmatpush1.xpose.msra.mxu0 0.0
    %887 = vmatprep.subr.mxu0 0.0
    %888 = vmatpush1.xpose.msra.mxu0 0.0
    %889 = vmatprep.subr.mxu0 0.0
    %890 = vmatpush1.xpose.msra.mxu0 0.0
    %891 = vmatprep.subr.mxu0 0.0
    %892 = vmatpush1.xpose.msra.mxu0 %v859
    %893 = vmatprep.subr.mxu0 0.0
    %894 = vmatpush2.xpose.msra.mxu0 0.0
    %895 = vmatprep.subr.mxu0 0.0
    %896 = vmatpush2.xpose.msra.mxu0 0.0
    %897 = vmatprep.subr.mxu0 0.0
    %898 = vmatpush2.xpose.msra.mxu0 0.0
    %899 = vmatprep.subr.mxu0 0.0
    %900 = vmatpush2.xpose.msra.mxu0 0.0
    %901 = vmatprep.subr.mxu0 0.0
    %902 = vmatpush2.xpose.msra.mxu0 0.0
    %903 = vmatprep.subr.mxu0 0.0
    %904 = vmatpush2.xpose.msra.mxu0 0.0
    %905 = vmatprep.subr.mxu0 0.0
    %906 = vmatpush2.xpose.msra.mxu0 0.0
    %907 = vmatprep.subr.mxu0 0.0
    %908 = vmatpush2.xpose.msra.mxu0 0.0
    %909 = vmatprep.subr.mxu0 0.0
    %910 = vmatpush2.xpose.msra.mxu0 0.0
    %911 = vmatprep.subr.mxu0 0.0
    %912 = vmatpush2.xpose.msra.mxu0 0.0
    %913 = vmatprep.subr.mxu0 0.0
    %914 = vmatpush2.xpose.msra.mxu0 0.0
    %915 = vmatprep.subr.mxu0 0.0
    %916 = vmatpush2.xpose.msra.mxu0 0.0
    %917 = vmatprep.subr.mxu0 0.0
    %918 = vmatpush2.xpose.msra.mxu0 0.0
    %919 = vmatprep.subr.mxu0 0.0
    %920 = vmatpush2.xpose.msra.mxu0 0.0
    %921 = vmatprep.subr.mxu0 0.0
    %922 = vmatpush2.xpose.msra.mxu0 0.0
    %923 = vmatprep.subr.mxu0 0.0
    %924 = vmatpush2.xpose.msra.mxu0 0.0
    %925 = vmatprep.mubr.f32.mxu0 0.0
    %926 = vmatmul.mubr.f32.gmra.mxu0 %v857
    %v927 = vpop.f32.mrf.mxu0
    %v928 = vadd.f32 0.0, %v927
    %v929 = vpop.f32.mrf.mxu0
    %930 = vdwg.mxu0
    %vm931 = vcmask 27648
    %v932 = vsel %vm931, %v396, -inf
    %933 = vmax.xlane.f32.xlu0 %v932
    %v934 = vpop.xlane.xlu0 %933
    %v935 = vsel %vm931, %v472, -inf
    %936 = vmax.xlane.f32.xlu0 %v935
    %v937 = vpop.xlane.xlu0 %936
    %v938 = vsel %vm931, %v548, -inf
    %939 = vmax.xlane.f32.xlu0 %v938
    %v940 = vpop.xlane.xlu0 %939
    %v941 = vsel %vm931, %v624, -inf
    %942 = vmax.xlane.f32.xlu0 %v941
    %v943 = vpop.xlane.xlu0 %942
    %v944 = vsel %vm931, %v700, -inf
    %945 = vmax.xlane.f32.xlu0 %v944
    %v946 = vpop.xlane.xlu0 %945
    %v947 = vsel %vm931, %v776, -inf
    %948 = vmax.xlane.f32.xlu0 %v947
    %v949 = vpop.xlane.xlu0 %948
    %v950 = vsel %vm931, %v852, -inf
    %951 = vmax.xlane.f32.xlu0 %v950
    %v952 = vpop.xlane.xlu0 %951
    %v953 = vsel %vm931, %v928, -inf
    %954 = vmax.xlane.f32.xlu0 %v953
    %v955 = vpop.xlane.xlu0 %954
    %v956 = vsub.f32 %v396, %v934
    %v957 = vsub.f32 %v472, %v937
    %v958 = vsub.f32 %v548, %v940
    %v959 = vsub.f32 %v624, %v943
    %v960 = vsub.f32 %v700, %v946
    %v961 = vsub.f32 %v776, %v949
    %v962 = vsub.f32 %v852, %v952
    %v963 = vsub.f32 %v928, %v955
    %v964 = vmul.f32 %v956, 1.442695
    %v965 = vpow.pop %v964
    %v966 = vmul.f32 %v957, 1.442695
    %v967 = vpow.pop %v966
    %v968 = vmul.f32 %v958, 1.442695
    %v969 = vpow.pop %v968
    %v970 = vmul.f32 %v959, 1.442695
    %v971 = vpow.pop %v970
    %v972 = vmul.f32 %v960, 1.442695
    %v973 = vpow.pop %v972
    %v974 = vmul.f32 %v961, 1.442695
    %v975 = vpow.pop %v974
    %v976 = vmul.f32 %v962, 1.442695
    %v977 = vpow.pop %v976
    %v978 = vmul.f32 %v963, 1.442695
    %v979 = vpow.pop %v978
    %v980 = vsel %vm931, %v965, 0.0
    %981 = vadd.xlane.f32.xlu0 %v980
    %v982 = vpop.xlane.xlu0 %981
    %v983 = vsel %vm931, %v967, 0.0
    %984 = vadd.xlane.f32.xlu0 %v983
    %v985 = vpop.xlane.xlu0 %984
    %v986 = vsel %vm931, %v969, 0.0
    %987 = vadd.xlane.f32.xlu0 %v986
    %v988 = vpop.xlane.xlu0 %987
    %v989 = vsel %vm931, %v971, 0.0
    %990 = vadd.xlane.f32.xlu0 %v989
    %v991 = vpop.xlane.xlu0 %990
    %v992 = vsel %vm931, %v973, 0.0
    %993 = vadd.xlane.f32.xlu0 %v992
    %v994 = vpop.xlane.xlu0 %993
    %v995 = vsel %vm931, %v975, 0.0
    %996 = vadd.xlane.f32.xlu0 %v995
    %v997 = vpop.xlane.xlu0 %996
    %v998 = vsel %vm931, %v977, 0.0
    %999 = vadd.xlane.f32.xlu0 %v998
    %v1000 = vpop.xlane.xlu0 %999
    %v1001 = vsel %vm931, %v979, 0.0
    %1002 = vadd.xlane.f32.xlu0 %v1001
    %v1003 = vpop.xlane.xlu0 %1002
    %v1004 = vrcp.pop %v982
    %v1005 = vrcp.pop %v985
    %v1006 = vrcp.pop %v988
    %v1007 = vrcp.pop %v991
    %v1008 = vrcp.pop %v994
    %v1009 = vrcp.pop %v997
    %v1010 = vrcp.pop %v1000
    %v1011 = vrcp.pop %v1003
    %v1012 = vmul.f32 %v965, %v1004
    %v1013 = vmul.f32 %v967, %v1005
    %v1014 = vmul.f32 %v969, %v1006
    %v1015 = vmul.f32 %v971, %v1007
    %v1016 = vmul.f32 %v973, %v1008
    %v1017 = vmul.f32 %v975, %v1009
    %v1018 = vmul.f32 %v977, %v1010
    %v1019 = vmul.f32 %v979, %v1011
    %1020 = vrot.lane.b32.xlu0 %v293, 96
    %v1021 = vpop.permute.xlu0 %1020
    %vm1022 = vcmask 31744
    %v1024 = vsel %vm1022, %v1012, 0
    %vm1026 = vcmask 1043456
    %v1027 = vsel %vm1026, %v1021, 0
    %1029 = vmatprep.subr.mxu0 0.0
    %1030 = vmatpush1.msra.mxu0 0.0
    %1031 = vmatprep.subr.mxu0 0.0
    %1032 = vmatpush1.msra.mxu0 0.0
    %1033 = vmatprep.subr.mxu0 0.0
    %1034 = vmatpush1.msra.mxu0 0.0
    %1035 = vmatprep.subr.mxu0 0.0
    %1036 = vmatpush1.msra.mxu0 0.0
    %1037 = vmatprep.subr.mxu0 0.0
    %1038 = vmatpush1.msra.mxu0 0.0
    %1039 = vmatprep.subr.mxu0 0.0
    %1040 = vmatpush1.msra.mxu0 0.0
    %1041 = vmatprep.subr.mxu0 0.0
    %1042 = vmatpush1.msra.mxu0 0.0
    %1043 = vmatprep.subr.mxu0 0.0
    %1044 = vmatpush1.msra.mxu0 0.0
    %1045 = vmatprep.subr.mxu0 0.0
    %1046 = vmatpush1.msra.mxu0 0.0
    %1047 = vmatprep.subr.mxu0 0.0
    %1048 = vmatpush1.msra.mxu0 0.0
    %1049 = vmatprep.subr.mxu0 0.0
    %1050 = vmatpush1.msra.mxu0 0.0
    %1051 = vmatprep.subr.mxu0 0.0
    %1052 = vmatpush1.msra.mxu0 0.0
    %1053 = vmatprep.subr.mxu0 0.0
    %1054 = vmatpush1.msra.mxu0 0.0
    %1055 = vmatprep.subr.mxu0 0.0
    %1056 = vmatpush1.msra.mxu0 0.0
    %1057 = vmatprep.subr.mxu0 0.0
    %1058 = vmatpush1.msra.mxu0 0.0
    %1059 = vmatprep.subr.mxu0 0.0
    %1060 = vmatpush1.msra.mxu0 %v1027
    %1061 = vmatprep.subr.mxu0 0.0
    %1062 = vmatpush2.msra.mxu0 0.0
    %1063 = vmatprep.subr.mxu0 0.0
    %1064 = vmatpush2.msra.mxu0 0.0
    %1065 = vmatprep.subr.mxu0 0.0
    %1066 = vmatpush2.msra.mxu0 0.0
    %1067 = vmatprep.subr.mxu0 0.0
    %1068 = vmatpush2.msra.mxu0 0.0
    %1069 = vmatprep.subr.mxu0 0.0
    %1070 = vmatpush2.msra.mxu0 0.0
    %1071 = vmatprep.subr.mxu0 0.0
    %1072 = vmatpush2.msra.mxu0 0.0
    %1073 = vmatprep.subr.mxu0 0.0
    %1074 = vmatpush2.msra.mxu0 0.0
    %1075 = vmatprep.subr.mxu0 0.0
    %1076 = vmatpush2.msra.mxu0 0.0
    %1077 = vmatprep.subr.mxu0 0.0
    %1078 = vmatpush2.msra.mxu0 0.0
    %1079 = vmatprep.subr.mxu0 0.0
    %1080 = vmatpush2.msra.mxu0 0.0
    %1081 = vmatprep.subr.mxu0 0.0
    %1082 = vmatpush2.msra.mxu0 0.0
    %1083 = vmatprep.subr.mxu0 0.0
    %1084 = vmatpush2.msra.mxu0 0.0
    %1085 = vmatprep.subr.mxu0 0.0
    %1086 = vmatpush2.msra.mxu0 0.0
    %1087 = vmatprep.subr.mxu0 0.0
    %1088 = vmatpush2.msra.mxu0 0.0
    %1089 = vmatprep.subr.mxu0 0.0
    %1090 = vmatpush2.msra.mxu0 0.0
    %1091 = vmatprep.subr.mxu0 0.0
    %1092 = vmatpush2.msra.mxu0 0.0
    %1093 = vmatprep.mubr.f32.mxu0 0.0
    %1094 = vmatmul.mubr.f32.gmra.mxu0 %v1024
    %v1095 = vpop.f32.mrf.mxu0
    %v1096 = vadd.f32 0.0, %v1095
    %v1097 = vpop.f32.mrf.mxu0
    %1098 = vdwg.mxu0
    %1099 = vrot.lane.b32.xlu0 %v315, 96
    %v1100 = vpop.permute.xlu0 %1099
    %v1102 = vsel %vm1022, %v1013, 0
    %v1104 = vsel %vm1026, %v1100, 0
    %1106 = vmatprep.subr.mxu0 0.0
    %1107 = vmatpush1.msra.mxu0 0.0
    %1108 = vmatprep.subr.mxu0 0.0
    %1109 = vmatpush1.msra.mxu0 0.0
    %1110 = vmatprep.subr.mxu0 0.0
    %1111 = vmatpush1.msra.mxu0 0.0
    %1112 = vmatprep.subr.mxu0 0.0
    %1113 = vmatpush1.msra.mxu0 0.0
    %1114 = vmatprep.subr.mxu0 0.0
    %1115 = vmatpush1.msra.mxu0 0.0
    %1116 = vmatprep.subr.mxu0 0.0
    %1117 = vmatpush1.msra.mxu0 0.0
    %1118 = vmatprep.subr.mxu0 0.0
    %1119 = vmatpush1.msra.mxu0 0.0
    %1120 = vmatprep.subr.mxu0 0.0
    %1121 = vmatpush1.msra.mxu0 0.0
    %1122 = vmatprep.subr.mxu0 0.0
    %1123 = vmatpush1.msra.mxu0 0.0
    %1124 = vmatprep.subr.mxu0 0.0
    %1125 = vmatpush1.msra.mxu0 0.0
    %1126 = vmatprep.subr.mxu0 0.0
    %1127 = vmatpush1.msra.mxu0 0.0
    %1128 = vmatprep.subr.mxu0 0.0
    %1129 = vmatpush1.msra.mxu0 0.0
    %1130 = vmatprep.subr.mxu0 0.0
    %1131 = vmatpush1.msra.mxu0 0.0
    %1132 = vmatprep.subr.mxu0 0.0
    %1133 = vmatpush1.msra.mxu0 0.0
    %1134 = vmatprep.subr.mxu0 0.0
    %1135 = vmatpush1.msra.mxu0 0.0
    %1136 = vmatprep.subr.mxu0 0.0
    %1137 = vmatpush1.msra.mxu0 %v1104
    %1138 = vmatprep.subr.mxu0 0.0
    %1139 = vmatpush2.msra.mxu0 0.0
    %1140 = vmatprep.subr.mxu0 0.0
    %1141 = vmatpush2.msra.mxu0 0.0
    %1142 = vmatprep.subr.mxu0 0.0
    %1143 = vmatpush2.msra.mxu0 0.0
    %1144 = vmatprep.subr.mxu0 0.0
    %1145 = vmatpush2.msra.mxu0 0.0
    %1146 = vmatprep.subr.mxu0 0.0
    %1147 = vmatpush2.msra.mxu0 0.0
    %1148 = vmatprep.subr.mxu0 0.0
    %1149 = vmatpush2.msra.mxu0 0.0
    %1150 = vmatprep.subr.mxu0 0.0
    %1151 = vmatpush2.msra.mxu0 0.0
    %1152 = vmatprep.subr.mxu0 0.0
    %1153 = vmatpush2.msra.mxu0 0.0
    %1154 = vmatprep.subr.mxu0 0.0
    %1155 = vmatpush2.msra.mxu0 0.0
    %1156 = vmatprep.subr.mxu0 0.0
    %1157 = vmatpush2.msra.mxu0 0.0
    %1158 = vmatprep.subr.mxu0 0.0
    %1159 = vmatpush2.msra.mxu0 0.0
    %1160 = vmatprep.subr.mxu0 0.0
    %1161 = vmatpush2.msra.mxu0 0.0
    %1162 = vmatprep.subr.mxu0 0.0
    %1163 = vmatpush2.msra.mxu0 0.0
    %1164 = vmatprep.subr.mxu0 0.0
    %1165 = vmatpush2.msra.mxu0 0.0
    %1166 = vmatprep.subr.mxu0 0.0
    %1167 = vmatpush2.msra.mxu0 0.0
    %1168 = vmatprep.subr.mxu0 0.0
    %1169 = vmatpush2.msra.mxu0 0.0
    %1170 = vmatprep.mubr.f32.mxu0 0.0
    %1171 = vmatmul.mubr.f32.gmra.mxu0 %v1102
    %v1172 = vpop.f32.mrf.mxu0
    %v1173 = vadd.f32 0.0, %v1172
    %v1174 = vpop.f32.mrf.mxu0
    %1175 = vdwg.mxu0
    %1176 = vrot.lane.b32.xlu0 %v298, 96
    %v1177 = vpop.permute.xlu0 %1176
    %v1179 = vsel %vm1022, %v1014, 0
    %v1181 = vsel %vm1026, %v1177, 0
    %1183 = vmatprep.subr.mxu0 0.0
    %1184 = vmatpush1.msra.mxu0 0.0
    %1185 = vmatprep.subr.mxu0 0.0
    %1186 = vmatpush1.msra.mxu0 0.0
    %1187 = vmatprep.subr.mxu0 0.0
    %1188 = vmatpush1.msra.mxu0 0.0
    %1189 = vmatprep.subr.mxu0 0.0
    %1190 = vmatpush1.msra.mxu0 0.0
    %1191 = vmatprep.subr.mxu0 0.0
    %1192 = vmatpush1.msra.mxu0 0.0
    %1193 = vmatprep.subr.mxu0 0.0
    %1194 = vmatpush1.msra.mxu0 0.0
    %1195 = vmatprep.subr.mxu0 0.0
    %1196 = vmatpush1.msra.mxu0 0.0
    %1197 = vmatprep.subr.mxu0 0.0
    %1198 = vmatpush1.msra.mxu0 0.0
    %1199 = vmatprep.subr.mxu0 0.0
    %1200 = vmatpush1.msra.mxu0 0.0
    %1201 = vmatprep.subr.mxu0 0.0
    %1202 = vmatpush1.msra.mxu0 0.0
    %1203 = vmatprep.subr.mxu0 0.0
    %1204 = vmatpush1.msra.mxu0 0.0
    %1205 = vmatprep.subr.mxu0 0.0
    %1206 = vmatpush1.msra.mxu0 0.0
    %1207 = vmatprep.subr.mxu0 0.0
    %1208 = vmatpush1.msra.mxu0 0.0
    %1209 = vmatprep.subr.mxu0 0.0
    %1210 = vmatpush1.msra.mxu0 0.0
    %1211 = vmatprep.subr.mxu0 0.0
    %1212 = vmatpush1.msra.mxu0 0.0
    %1213 = vmatprep.subr.mxu0 0.0
    %1214 = vmatpush1.msra.mxu0 %v1181
    %1215 = vmatprep.subr.mxu0 0.0
    %1216 = vmatpush2.msra.mxu0 0.0
    %1217 = vmatprep.subr.mxu0 0.0
    %1218 = vmatpush2.msra.mxu0 0.0
    %1219 = vmatprep.subr.mxu0 0.0
    %1220 = vmatpush2.msra.mxu0 0.0
    %1221 = vmatprep.subr.mxu0 0.0
    %1222 = vmatpush2.msra.mxu0 0.0
    %1223 = vmatprep.subr.mxu0 0.0
    %1224 = vmatpush2.msra.mxu0 0.0
    %1225 = vmatprep.subr.mxu0 0.0
    %1226 = vmatpush2.msra.mxu0 0.0
    %1227 = vmatprep.subr.mxu0 0.0
    %1228 = vmatpush2.msra.mxu0 0.0
    %1229 = vmatprep.subr.mxu0 0.0
    %1230 = vmatpush2.msra.mxu0 0.0
    %1231 = vmatprep.subr.mxu0 0.0
    %1232 = vmatpush2.msra.mxu0 0.0
    %1233 = vmatprep.subr.mxu0 0.0
    %1234 = vmatpush2.msra.mxu0 0.0
    %1235 = vmatprep.subr.mxu0 0.0
    %1236 = vmatpush2.msra.mxu0 0.0
    %1237 = vmatprep.subr.mxu0 0.0
    %1238 = vmatpush2.msra.mxu0 0.0
    %1239 = vmatprep.subr.mxu0 0.0
    %1240 = vmatpush2.msra.mxu0 0.0
    %1241 = vmatprep.subr.mxu0 0.0
    %1242 = vmatpush2.msra.mxu0 0.0
    %1243 = vmatprep.subr.mxu0 0.0
    %1244 = vmatpush2.msra.mxu0 0.0
    %1245 = vmatprep.subr.mxu0 0.0
    %1246 = vmatpush2.msra.mxu0 0.0
    %1247 = vmatprep.mubr.f32.mxu0 0.0
    %1248 = vmatmul.mubr.f32.gmra.mxu0 %v1179
    %v1249 = vpop.f32.mrf.mxu0
    %v1250 = vadd.f32 0.0, %v1249
    %v1251 = vpop.f32.mrf.mxu0
    %1252 = vdwg.mxu0
    %1253 = vrot.lane.b32.xlu0 %v316, 96
    %v1254 = vpop.permute.xlu0 %1253
    %v1256 = vsel %vm1022, %v1015, 0
    %v1258 = vsel %vm1026, %v1254, 0
    %1260 = vmatprep.subr.mxu0 0.0
    %1261 = vmatpush1.msra.mxu0 0.0
    %1262 = vmatprep.subr.mxu0 0.0
    %1263 = vmatpush1.msra.mxu0 0.0
    %1264 = vmatprep.subr.mxu0 0.0
    %1265 = vmatpush1.msra.mxu0 0.0
    %1266 = vmatprep.subr.mxu0 0.0
    %1267 = vmatpush1.msra.mxu0 0.0
    %1268 = vmatprep.subr.mxu0 0.0
    %1269 = vmatpush1.msra.mxu0 0.0
    %1270 = vmatprep.subr.mxu0 0.0
    %1271 = vmatpush1.msra.mxu0 0.0
    %1272 = vmatprep.subr.mxu0 0.0
    %1273 = vmatpush1.msra.mxu0 0.0
    %1274 = vmatprep.subr.mxu0 0.0
    %1275 = vmatpush1.msra.mxu0 0.0
    %1276 = vmatprep.subr.mxu0 0.0
    %1277 = vmatpush1.msra.mxu0 0.0
    %1278 = vmatprep.subr.mxu0 0.0
    %1279 = vmatpush1.msra.mxu0 0.0
    %1280 = vmatprep.subr.mxu0 0.0
    %1281 = vmatpush1.msra.mxu0 0.0
    %1282 = vmatprep.subr.mxu0 0.0
    %1283 = vmatpush1.msra.mxu0 0.0
    %1284 = vmatprep.subr.mxu0 0.0
    %1285 = vmatpush1.msra.mxu0 0.0
    %1286 = vmatprep.subr.mxu0 0.0
    %1287 = vmatpush1.msra.mxu0 0.0
    %1288 = vmatprep.subr.mxu0 0.0
    %1289 = vmatpush1.msra.mxu0 0.0
    %1290 = vmatprep.subr.mxu0 0.0
    %1291 = vmatpush1.msra.mxu0 %v1258
    %1292 = vmatprep.subr.mxu0 0.0
    %1293 = vmatpush2.msra.mxu0 0.0
    %1294 = vmatprep.subr.mxu0 0.0
    %1295 = vmatpush2.msra.mxu0 0.0
    %1296 = vmatprep.subr.mxu0 0.0
    %1297 = vmatpush2.msra.mxu0 0.0
    %1298 = vmatprep.subr.mxu0 0.0
    %1299 = vmatpush2.msra.mxu0 0.0
    %1300 = vmatprep.subr.mxu0 0.0
    %1301 = vmatpush2.msra.mxu0 0.0
    %1302 = vmatprep.subr.mxu0 0.0
    %1303 = vmatpush2.msra.mxu0 0.0
    %1304 = vmatprep.subr.mxu0 0.0
    %1305 = vmatpush2.msra.mxu0 0.0
    %1306 = vmatprep.subr.mxu0 0.0
    %1307 = vmatpush2.msra.mxu0 0.0
    %1308 = vmatprep.subr.mxu0 0.0
    %1309 = vmatpush2.msra.mxu0 0.0
    %1310 = vmatprep.subr.mxu0 0.0
    %1311 = vmatpush2.msra.mxu0 0.0
    %1312 = vmatprep.subr.mxu0 0.0
    %1313 = vmatpush2.msra.mxu0 0.0
    %1314 = vmatprep.subr.mxu0 0.0
    %1315 = vmatpush2.msra.mxu0 0.0
    %1316 = vmatprep.subr.mxu0 0.0
    %1317 = vmatpush2.msra.mxu0 0.0
    %1318 = vmatprep.subr.mxu0 0.0
    %1319 = vmatpush2.msra.mxu0 0.0
    %1320 = vmatprep.subr.mxu0 0.0
    %1321 = vmatpush2.msra.mxu0 0.0
    %1322 = vmatprep.subr.mxu0 0.0
    %1323 = vmatpush2.msra.mxu0 0.0
    %1324 = vmatprep.mubr.f32.mxu0 0.0
    %1325 = vmatmul.mubr.f32.gmra.mxu0 %v1256
    %v1326 = vpop.f32.mrf.mxu0
    %v1327 = vadd.f32 0.0, %v1326
    %v1328 = vpop.f32.mrf.mxu0
    %1329 = vdwg.mxu0
    %1330 = vrot.lane.b32.xlu0 %v303, 96
    %v1331 = vpop.permute.xlu0 %1330
    %v1333 = vsel %vm1022, %v1016, 0
    %v1335 = vsel %vm1026, %v1331, 0
    %1337 = vmatprep.subr.mxu0 0.0
    %1338 = vmatpush1.msra.mxu0 0.0
    %1339 = vmatprep.subr.mxu0 0.0
    %1340 = vmatpush1.msra.mxu0 0.0
    %1341 = vmatprep.subr.mxu0 0.0
    %1342 = vmatpush1.msra.mxu0 0.0
    %1343 = vmatprep.subr.mxu0 0.0
    %1344 = vmatpush1.msra.mxu0 0.0
    %1345 = vmatprep.subr.mxu0 0.0
    %1346 = vmatpush1.msra.mxu0 0.0
    %1347 = vmatprep.subr.mxu0 0.0
    %1348 = vmatpush1.msra.mxu0 0.0
    %1349 = vmatprep.subr.mxu0 0.0
    %1350 = vmatpush1.msra.mxu0 0.0
    %1351 = vmatprep.subr.mxu0 0.0
    %1352 = vmatpush1.msra.mxu0 0.0
    %1353 = vmatprep.subr.mxu0 0.0
    %1354 = vmatpush1.msra.mxu0 0.0
    %1355 = vmatprep.subr.mxu0 0.0
    %1356 = vmatpush1.msra.mxu0 0.0
    %1357 = vmatprep.subr.mxu0 0.0
    %1358 = vmatpush1.msra.mxu0 0.0
    %1359 = vmatprep.subr.mxu0 0.0
    %1360 = vmatpush1.msra.mxu0 0.0
    %1361 = vmatprep.subr.mxu0 0.0
    %1362 = vmatpush1.msra.mxu0 0.0
    %1363 = vmatprep.subr.mxu0 0.0
    %1364 = vmatpush1.msra.mxu0 0.0
    %1365 = vmatprep.subr.mxu0 0.0
    %1366 = vmatpush1.msra.mxu0 0.0
    %1367 = vmatprep.subr.mxu0 0.0
    %1368 = vmatpush1.msra.mxu0 %v1335
    %1369 = vmatprep.subr.mxu0 0.0
    %1370 = vmatpush2.msra.mxu0 0.0
    %1371 = vmatprep.subr.mxu0 0.0
    %1372 = vmatpush2.msra.mxu0 0.0
    %1373 = vmatprep.subr.mxu0 0.0
    %1374 = vmatpush2.msra.mxu0 0.0
    %1375 = vmatprep.subr.mxu0 0.0
    %1376 = vmatpush2.msra.mxu0 0.0
    %1377 = vmatprep.subr.mxu0 0.0
    %1378 = vmatpush2.msra.mxu0 0.0
    %1379 = vmatprep.subr.mxu0 0.0
    %1380 = vmatpush2.msra.mxu0 0.0
    %1381 = vmatprep.subr.mxu0 0.0
    %1382 = vmatpush2.msra.mxu0 0.0
    %1383 = vmatprep.subr.mxu0 0.0
    %1384 = vmatpush2.msra.mxu0 0.0
    %1385 = vmatprep.subr.mxu0 0.0
    %1386 = vmatpush2.msra.mxu0 0.0
    %1387 = vmatprep.subr.mxu0 0.0
    %1388 = vmatpush2.msra.mxu0 0.0
    %1389 = vmatprep.subr.mxu0 0.0
    %1390 = vmatpush2.msra.mxu0 0.0
    %1391 = vmatprep.subr.mxu0 0.0
    %1392 = vmatpush2.msra.mxu0 0.0
    %1393 = vmatprep.subr.mxu0 0.0
    %1394 = vmatpush2.msra.mxu0 0.0
    %1395 = vmatprep.subr.mxu0 0.0
    %1396 = vmatpush2.msra.mxu0 0.0
    %1397 = vmatprep.subr.mxu0 0.0
    %1398 = vmatpush2.msra.mxu0 0.0
    %1399 = vmatprep.subr.mxu0 0.0
    %1400 = vmatpush2.msra.mxu0 0.0
    %1401 = vmatprep.mubr.f32.mxu0 0.0
    %1402 = vmatmul.mubr.f32.gmra.mxu0 %v1333
    %v1403 = vpop.f32.mrf.mxu0
    %v1404 = vadd.f32 0.0, %v1403
    %v1405 = vpop.f32.mrf.mxu0
    %1406 = vdwg.mxu0
    %1407 = vrot.lane.b32.xlu0 %v317, 96
    %v1408 = vpop.permute.xlu0 %1407
    %v1410 = vsel %vm1022, %v1017, 0
    %v1412 = vsel %vm1026, %v1408, 0
    %1414 = vmatprep.subr.mxu0 0.0
    %1415 = vmatpush1.msra.mxu0 0.0
    %1416 = vmatprep.subr.mxu0 0.0
    %1417 = vmatpush1.msra.mxu0 0.0
    %1418 = vmatprep.subr.mxu0 0.0
    %1419 = vmatpush1.msra.mxu0 0.0
    %1420 = vmatprep.subr.mxu0 0.0
    %1421 = vmatpush1.msra.mxu0 0.0
    %1422 = vmatprep.subr.mxu0 0.0
    %1423 = vmatpush1.msra.mxu0 0.0
    %1424 = vmatprep.subr.mxu0 0.0
    %1425 = vmatpush1.msra.mxu0 0.0
    %1426 = vmatprep.subr.mxu0 0.0
    %1427 = vmatpush1.msra.mxu0 0.0
    %1428 = vmatprep.subr.mxu0 0.0
    %1429 = vmatpush1.msra.mxu0 0.0
    %1430 = vmatprep.subr.mxu0 0.0
    %1431 = vmatpush1.msra.mxu0 0.0
    %1432 = vmatprep.subr.mxu0 0.0
    %1433 = vmatpush1.msra.mxu0 0.0
    %1434 = vmatprep.subr.mxu0 0.0
    %1435 = vmatpush1.msra.mxu0 0.0
    %1436 = vmatprep.subr.mxu0 0.0
    %1437 = vmatpush1.msra.mxu0 0.0
    %1438 = vmatprep.subr.mxu0 0.0
    %1439 = vmatpush1.msra.mxu0 0.0
    %1440 = vmatprep.subr.mxu0 0.0
    %1441 = vmatpush1.msra.mxu0 0.0
    %1442 = vmatprep.subr.mxu0 0.0
    %1443 = vmatpush1.msra.mxu0 0.0
    %1444 = vmatprep.subr.mxu0 0.0
    %1445 = vmatpush1.msra.mxu0 %v1412
    %1446 = vmatprep.subr.mxu0 0.0
    %1447 = vmatpush2.msra.mxu0 0.0
    %1448 = vmatprep.subr.mxu0 0.0
    %1449 = vmatpush2.msra.mxu0 0.0
    %1450 = vmatprep.subr.mxu0 0.0
    %1451 = vmatpush2.msra.mxu0 0.0
    %1452 = vmatprep.subr.mxu0 0.0
    %1453 = vmatpush2.msra.mxu0 0.0
    %1454 = vmatprep.subr.mxu0 0.0
    %1455 = vmatpush2.msra.mxu0 0.0
    %1456 = vmatprep.subr.mxu0 0.0
    %1457 = vmatpush2.msra.mxu0 0.0
    %1458 = vmatprep.subr.mxu0 0.0
    %1459 = vmatpush2.msra.mxu0 0.0
    %1460 = vmatprep.subr.mxu0 0.0
    %1461 = vmatpush2.msra.mxu0 0.0
    %1462 = vmatprep.subr.mxu0 0.0
    %1463 = vmatpush2.msra.mxu0 0.0
    %1464 = vmatprep.subr.mxu0 0.0
    %1465 = vmatpush2.msra.mxu0 0.0
    %1466 = vmatprep.subr.mxu0 0.0
    %1467 = vmatpush2.msra.mxu0 0.0
    %1468 = vmatprep.subr.mxu0 0.0
    %1469 = vmatpush2.msra.mxu0 0.0
    %1470 = vmatprep.subr.mxu0 0.0
    %1471 = vmatpush2.msra.mxu0 0.0
    %1472 = vmatprep.subr.mxu0 0.0
    %1473 = vmatpush2.msra.mxu0 0.0
    %1474 = vmatprep.subr.mxu0 0.0
    %1475 = vmatpush2.msra.mxu0 0.0
    %1476 = vmatprep.subr.mxu0 0.0
    %1477 = vmatpush2.msra.mxu0 0.0
    %1478 = vmatprep.mubr.f32.mxu0 0.0
    %1479 = vmatmul.mubr.f32.gmra.mxu0 %v1410
    %v1480 = vpop.f32.mrf.mxu0
    %v1481 = vadd.f32 0.0, %v1480
    %v1482 = vpop.f32.mrf.mxu0
    %1483 = vdwg.mxu0
    %1484 = vrot.lane.b32.xlu0 %v308, 96
    %v1485 = vpop.permute.xlu0 %1484
    %v1487 = vsel %vm1022, %v1018, 0
    %v1489 = vsel %vm1026, %v1485, 0
    %1491 = vmatprep.subr.mxu0 0.0
    %1492 = vmatpush1.msra.mxu0 0.0
    %1493 = vmatprep.subr.mxu0 0.0
    %1494 = vmatpush1.msra.mxu0 0.0
    %1495 = vmatprep.subr.mxu0 0.0
    %1496 = vmatpush1.msra.mxu0 0.0
    %1497 = vmatprep.subr.mxu0 0.0
    %1498 = vmatpush1.msra.mxu0 0.0
    %1499 = vmatprep.subr.mxu0 0.0
    %1500 = vmatpush1.msra.mxu0 0.0
    %1501 = vmatprep.subr.mxu0 0.0
    %1502 = vmatpush1.msra.mxu0 0.0
    %1503 = vmatprep.subr.mxu0 0.0
    %1504 = vmatpush1.msra.mxu0 0.0
    %1505 = vmatprep.subr.mxu0 0.0
    %1506 = vmatpush1.msra.mxu0 0.0
    %1507 = vmatprep.subr.mxu0 0.0
    %1508 = vmatpush1.msra.mxu0 0.0
    %1509 = vmatprep.subr.mxu0 0.0
    %1510 = vmatpush1.msra.mxu0 0.0
    %1511 = vmatprep.subr.mxu0 0.0
    %1512 = vmatpush1.msra.mxu0 0.0
    %1513 = vmatprep.subr.mxu0 0.0
    %1514 = vmatpush1.msra.mxu0 0.0
    %1515 = vmatprep.subr.mxu0 0.0
    %1516 = vmatpush1.msra.mxu0 0.0
    %1517 = vmatprep.subr.mxu0 0.0
    %1518 = vmatpush1.msra.mxu0 0.0
    %1519 = vmatprep.subr.mxu0 0.0
    %1520 = vmatpush1.msra.mxu0 0.0
    %1521 = vmatprep.subr.mxu0 0.0
    %1522 = vmatpush1.msra.mxu0 %v1489
    %1523 = vmatprep.subr.mxu0 0.0
    %1524 = vmatpush2.msra.mxu0 0.0
    %1525 = vmatprep.subr.mxu0 0.0
    %1526 = vmatpush2.msra.mxu0 0.0
    %1527 = vmatprep.subr.mxu0 0.0
    %1528 = vmatpush2.msra.mxu0 0.0
    %1529 = vmatprep.subr.mxu0 0.0
    %1530 = vmatpush2.msra.mxu0 0.0
    %1531 = vmatprep.subr.mxu0 0.0
    %1532 = vmatpush2.msra.mxu0 0.0
    %1533 = vmatprep.subr.mxu0 0.0
    %1534 = vmatpush2.msra.mxu0 0.0
    %1535 = vmatprep.subr.mxu0 0.0
    %1536 = vmatpush2.msra.mxu0 0.0
    %1537 = vmatprep.subr.mxu0 0.0
    %1538 = vmatpush2.msra.mxu0 0.0
    %1539 = vmatprep.subr.mxu0 0.0
    %1540 = vmatpush2.msra.mxu0 0.0
    %1541 = vmatprep.subr.mxu0 0.0
    %1542 = vmatpush2.msra.mxu0 0.0
    %1543 = vmatprep.subr.mxu0 0.0
    %1544 = vmatpush2.msra.mxu0 0.0
    %1545 = vmatprep.subr.mxu0 0.0
    %1546 = vmatpush2.msra.mxu0 0.0
    %1547 = vmatprep.subr.mxu0 0.0
    %1548 = vmatpush2.msra.mxu0 0.0
    %1549 = vmatprep.subr.mxu0 0.0
    %1550 = vmatpush2.msra.mxu0 0.0
    %1551 = vmatprep.subr.mxu0 0.0
    %1552 = vmatpush2.msra.mxu0 0.0
    %1553 = vmatprep.subr.mxu0 0.0
    %1554 = vmatpush2.msra.mxu0 0.0
    %1555 = vmatprep.mubr.f32.mxu0 0.0
    %1556 = vmatmul.mubr.f32.gmra.mxu0 %v1487
    %v1557 = vpop.f32.mrf.mxu0
    %v1558 = vadd.f32 0.0, %v1557
    %v1559 = vpop.f32.mrf.mxu0
    %1560 = vdwg.mxu0
    %1561 = vrot.lane.b32.xlu0 %v318, 96
    %v1562 = vpop.permute.xlu0 %1561
    %v1564 = vsel %vm1022, %v1019, 0
    %v1566 = vsel %vm1026, %v1562, 0
    %1568 = vmatprep.subr.mxu0 0.0
    %1569 = vmatpush1.msra.mxu0 0.0
    %1570 = vmatprep.subr.mxu0 0.0
    %1571 = vmatpush1.msra.mxu0 0.0
    %1572 = vmatprep.subr.mxu0 0.0
    %1573 = vmatpush1.msra.mxu0 0.0
    %1574 = vmatprep.subr.mxu0 0.0
    %1575 = vmatpush1.msra.mxu0 0.0
    %1576 = vmatprep.subr.mxu0 0.0
    %1577 = vmatpush1.msra.mxu0 0.0
    %1578 = vmatprep.subr.mxu0 0.0
    %1579 = vmatpush1.msra.mxu0 0.0
    %1580 = vmatprep.subr.mxu0 0.0
    %1581 = vmatpush1.msra.mxu0 0.0
    %1582 = vmatprep.subr.mxu0 0.0
    %1583 = vmatpush1.msra.mxu0 0.0
    %1584 = vmatprep.subr.mxu0 0.0
    %1585 = vmatpush1.msra.mxu0 0.0
    %1586 = vmatprep.subr.mxu0 0.0
    %1587 = vmatpush1.msra.mxu0 0.0
    %1588 = vmatprep.subr.mxu0 0.0
    %1589 = vmatpush1.msra.mxu0 0.0
    %1590 = vmatprep.subr.mxu0 0.0
    %1591 = vmatpush1.msra.mxu0 0.0
    %1592 = vmatprep.subr.mxu0 0.0
    %1593 = vmatpush1.msra.mxu0 0.0
    %1594 = vmatprep.subr.mxu0 0.0
    %1595 = vmatpush1.msra.mxu0 0.0
    %1596 = vmatprep.subr.mxu0 0.0
    %1597 = vmatpush1.msra.mxu0 0.0
    %1598 = vmatprep.subr.mxu0 0.0
    %1599 = vmatpush1.msra.mxu0 %v1566
    %1600 = vmatprep.subr.mxu0 0.0
    %1601 = vmatpush2.msra.mxu0 0.0
    %1602 = vmatprep.subr.mxu0 0.0
    %1603 = vmatpush2.msra.mxu0 0.0
    %1604 = vmatprep.subr.mxu0 0.0
    %1605 = vmatpush2.msra.mxu0 0.0
    %1606 = vmatprep.subr.mxu0 0.0
    %1607 = vmatpush2.msra.mxu0 0.0
    %1608 = vmatprep.subr.mxu0 0.0
    %1609 = vmatpush2.msra.mxu0 0.0
    %1610 = vmatprep.subr.mxu0 0.0
    %1611 = vmatpush2.msra.mxu0 0.0
    %1612 = vmatprep.subr.mxu0 0.0
    %1613 = vmatpush2.msra.mxu0 0.0
    %1614 = vmatprep.subr.mxu0 0.0
    %1615 = vmatpush2.msra.mxu0 0.0
    %1616 = vmatprep.subr.mxu0 0.0
    %1617 = vmatpush2.msra.mxu0 0.0
    %1618 = vmatprep.subr.mxu0 0.0
    %1619 = vmatpush2.msra.mxu0 0.0
    %1620 = vmatprep.subr.mxu0 0.0
    %1621 = vmatpush2.msra.mxu0 0.0
    %1622 = vmatprep.subr.mxu0 0.0
    %1623 = vmatpush2.msra.mxu0 0.0
    %1624 = vmatprep.subr.mxu0 0.0
    %1625 = vmatpush2.msra.mxu0 0.0
    %1626 = vmatprep.subr.mxu0 0.0
    %1627 = vmatpush2.msra.mxu0 0.0
    %1628 = vmatprep.subr.mxu0 0.0
    %1629 = vmatpush2.msra.mxu0 0.0
    %1630 = vmatprep.subr.mxu0 0.0
    %1631 = vmatpush2.msra.mxu0 0.0
    %1632 = vmatprep.mubr.f32.mxu0 0.0
    %1633 = vmatmul.mubr.f32.gmra.mxu0 %v1564
    %v1634 = vpop.f32.mrf.mxu0
    %v1635 = vadd.f32 0.0, %v1634
    %v1636 = vpop.f32.mrf.mxu0
    %1637 = vdwg.mxu0
    %1646 = vrot.lane.b32.xlu0 %v1096, 48
    %v1647 = vpop.permute.xlu0 %1646
    %1648 = vrot.lane.b32.xlu0 %v1173, 48
    %v1649 = vpop.permute.xlu0 %1648
    %1650 = vrot.lane.b32.xlu0 %v1250, 48
    %v1651 = vpop.permute.xlu0 %1650
    %1652 = vrot.lane.b32.xlu0 %v1327, 48
    %v1653 = vpop.permute.xlu0 %1652
    %1654 = vrot.lane.b32.xlu0 %v1404, 48
    %v1655 = vpop.permute.xlu0 %1654
    %1656 = vrot.lane.b32.xlu0 %v1481, 48
    %v1657 = vpop.permute.xlu0 %1656
    %1658 = vrot.lane.b32.xlu0 %v1558, 48
    %v1659 = vpop.permute.xlu0 %1658
    %1660 = vrot.lane.b32.xlu0 %v1635, 48
    %v1661 = vpop.permute.xlu0 %1660
    %v1670 = vadd.f32 %v293, %v1647
    %v1671 = vadd.f32 %v315, %v1649
    %v1672 = vadd.f32 %v298, %v1651
    %v1673 = vadd.f32 %v316, %v1653
    %v1674 = vadd.f32 %v303, %v1655
    %v1675 = vadd.f32 %v317, %v1657
    %v1676 = vadd.f32 %v308, %v1659
    %v1677 = vadd.f32 %v318, %v1661
    %1678 = vrot.lane.b32.xlu0 %v293, 120
    %v1679 = vpop.permute.xlu0 %1678
    %1680 = vrot.lane.b32.xlu0 %v293, 104
    %v1681 = vpop.permute.xlu0 %1680
    %v1682 = vsel %vm217, %v1679, 0
    %v1684 = vsel %vm217, %v1681, 0
    %1686 = vmatprep.subr.mxu0 0.0
    %1687 = vmatpush1.xpose.msra.mxu0 0.0
    %1688 = vmatprep.subr.mxu0 0.0
    %1689 = vmatpush1.xpose.msra.mxu0 0.0
    %1690 = vmatprep.subr.mxu0 0.0
    %1691 = vmatpush1.xpose.msra.mxu0 0.0
    %1692 = vmatprep.subr.mxu0 0.0
    %1693 = vmatpush1.xpose.msra.mxu0 0.0
    %1694 = vmatprep.subr.mxu0 0.0
    %1695 = vmatpush1.xpose.msra.mxu0 0.0
    %1696 = vmatprep.subr.mxu0 0.0
    %1697 = vmatpush1.xpose.msra.mxu0 0.0
    %1698 = vmatprep.subr.mxu0 0.0
    %1699 = vmatpush1.xpose.msra.mxu0 0.0
    %1700 = vmatprep.subr.mxu0 0.0
    %1701 = vmatpush1.xpose.msra.mxu0 0.0
    %1702 = vmatprep.subr.mxu0 0.0
    %1703 = vmatpush1.xpose.msra.mxu0 0.0
    %1704 = vmatprep.subr.mxu0 0.0
    %1705 = vmatpush1.xpose.msra.mxu0 0.0
    %1706 = vmatprep.subr.mxu0 0.0
    %1707 = vmatpush1.xpose.msra.mxu0 0.0
    %1708 = vmatprep.subr.mxu0 0.0
    %1709 = vmatpush1.xpose.msra.mxu0 0.0
    %1710 = vmatprep.subr.mxu0 0.0
    %1711 = vmatpush1.xpose.msra.mxu0 0.0
    %1712 = vmatprep.subr.mxu0 0.0
    %1713 = vmatpush1.xpose.msra.mxu0 0.0
    %1714 = vmatprep.subr.mxu0 0.0
    %1715 = vmatpush1.xpose.msra.mxu0 0.0
    %1716 = vmatprep.subr.mxu0 0.0
    %1717 = vmatpush1.xpose.msra.mxu0 %v1684
    %1718 = vmatprep.subr.mxu0 0.0
    %1719 = vmatpush2.xpose.msra.mxu0 0.0
    %1720 = vmatprep.subr.mxu0 0.0
    %1721 = vmatpush2.xpose.msra.mxu0 0.0
    %1722 = vmatprep.subr.mxu0 0.0
    %1723 = vmatpush2.xpose.msra.mxu0 0.0
    %1724 = vmatprep.subr.mxu0 0.0
    %1725 = vmatpush2.xpose.msra.mxu0 0.0
    %1726 = vmatprep.subr.mxu0 0.0
    %1727 = vmatpush2.xpose.msra.mxu0 0.0
    %1728 = vmatprep.subr.mxu0 0.0
    %1729 = vmatpush2.xpose.msra.mxu0 0.0
    %1730 = vmatprep.subr.mxu0 0.0
    %1731 = vmatpush2.xpose.msra.mxu0 0.0
    %1732 = vmatprep.subr.mxu0 0.0
    %1733 = vmatpush2.xpose.msra.mxu0 0.0
    %1734 = vmatprep.subr.mxu0 0.0
    %1735 = vmatpush2.xpose.msra.mxu0 0.0
    %1736 = vmatprep.subr.mxu0 0.0
    %1737 = vmatpush2.xpose.msra.mxu0 0.0
    %1738 = vmatprep.subr.mxu0 0.0
    %1739 = vmatpush2.xpose.msra.mxu0 0.0
    %1740 = vmatprep.subr.mxu0 0.0
    %1741 = vmatpush2.xpose.msra.mxu0 0.0
    %1742 = vmatprep.subr.mxu0 0.0
    %1743 = vmatpush2.xpose.msra.mxu0 0.0
    %1744 = vmatprep.subr.mxu0 0.0
    %1745 = vmatpush2.xpose.msra.mxu0 0.0
    %1746 = vmatprep.subr.mxu0 0.0
    %1747 = vmatpush2.xpose.msra.mxu0 0.0
    %1748 = vmatprep.subr.mxu0 0.0
    %1749 = vmatpush2.xpose.msra.mxu0 0.0
    %1750 = vmatprep.mubr.f32.mxu0 0.0
    %1751 = vmatmul.mubr.f32.gmra.mxu0 %v1682
    %v1752 = vpop.f32.mrf.mxu0
    %v1753 = vadd.f32 0.0, %v1752
    %v1754 = vpop.f32.mrf.mxu0
    %1755 = vdwg.mxu0
    %1756 = vrot.lane.b32.xlu0 %v315, 120
    %v1757 = vpop.permute.xlu0 %1756
    %1758 = vrot.lane.b32.xlu0 %v315, 104
    %v1759 = vpop.permute.xlu0 %1758
    %v1760 = vsel %vm217, %v1757, 0
    %v1762 = vsel %vm217, %v1759, 0
    %1764 = vmatprep.subr.mxu0 0.0
    %1765 = vmatpush1.xpose.msra.mxu0 0.0
    %1766 = vmatprep.subr.mxu0 0.0
    %1767 = vmatpush1.xpose.msra.mxu0 0.0
    %1768 = vmatprep.subr.mxu0 0.0
    %1769 = vmatpush1.xpose.msra.mxu0 0.0
    %1770 = vmatprep.subr.mxu0 0.0
    %1771 = vmatpush1.xpose.msra.mxu0 0.0
    %1772 = vmatprep.subr.mxu0 0.0
    %1773 = vmatpush1.xpose.msra.mxu0 0.0
    %1774 = vmatprep.subr.mxu0 0.0
    %1775 = vmatpush1.xpose.msra.mxu0 0.0
    %1776 = vmatprep.subr.mxu0 0.0
    %1777 = vmatpush1.xpose.msra.mxu0 0.0
    %1778 = vmatprep.subr.mxu0 0.0
    %1779 = vmatpush1.xpose.msra.mxu0 0.0
    %1780 = vmatprep.subr.mxu0 0.0
    %1781 = vmatpush1.xpose.msra.mxu0 0.0
    %1782 = vmatprep.subr.mxu0 0.0
    %1783 = vmatpush1.xpose.msra.mxu0 0.0
    %1784 = vmatprep.subr.mxu0 0.0
    %1785 = vmatpush1.xpose.msra.mxu0 0.0
    %1786 = vmatprep.subr.mxu0 0.0
    %1787 = vmatpush1.xpose.msra.mxu0 0.0
    %1788 = vmatprep.subr.mxu0 0.0
    %1789 = vmatpush1.xpose.msra.mxu0 0.0
    %1790 = vmatprep.subr.mxu0 0.0
    %1791 = vmatpush1.xpose.msra.mxu0 0.0
    %1792 = vmatprep.subr.mxu0 0.0
    %1793 = vmatpush1.xpose.msra.mxu0 0.0
    %1794 = vmatprep.subr.mxu0 0.0
    %1795 = vmatpush1.xpose.msra.mxu0 %v1762
    %1796 = vmatprep.subr.mxu0 0.0
    %1797 = vmatpush2.xpose.msra.mxu0 0.0
    %1798 = vmatprep.subr.mxu0 0.0
    %1799 = vmatpush2.xpose.msra.mxu0 0.0
    %1800 = vmatprep.subr.mxu0 0.0
    %1801 = vmatpush2.xpose.msra.mxu0 0.0
    %1802 = vmatprep.subr.mxu0 0.0
    %1803 = vmatpush2.xpose.msra.mxu0 0.0
    %1804 = vmatprep.subr.mxu0 0.0
    %1805 = vmatpush2.xpose.msra.mxu0 0.0
    %1806 = vmatprep.subr.mxu0 0.0
    %1807 = vmatpush2.xpose.msra.mxu0 0.0
    %1808 = vmatprep.subr.mxu0 0.0
    %1809 = vmatpush2.xpose.msra.mxu0 0.0
    %1810 = vmatprep.subr.mxu0 0.0
    %1811 = vmatpush2.xpose.msra.mxu0 0.0
    %1812 = vmatprep.subr.mxu0 0.0
    %1813 = vmatpush2.xpose.msra.mxu0 0.0
    %1814 = vmatprep.subr.mxu0 0.0
    %1815 = vmatpush2.xpose.msra.mxu0 0.0
    %1816 = vmatprep.subr.mxu0 0.0
    %1817 = vmatpush2.xpose.msra.mxu0 0.0
    %1818 = vmatprep.subr.mxu0 0.0
    %1819 = vmatpush2.xpose.msra.mxu0 0.0
    %1820 = vmatprep.subr.mxu0 0.0
    %1821 = vmatpush2.xpose.msra.mxu0 0.0
    %1822 = vmatprep.subr.mxu0 0.0
    %1823 = vmatpush2.xpose.msra.mxu0 0.0
    %1824 = vmatprep.subr.mxu0 0.0
    %1825 = vmatpush2.xpose.msra.mxu0 0.0
    %1826 = vmatprep.subr.mxu0 0.0
    %1827 = vmatpush2.xpose.msra.mxu0 0.0
    %1828 = vmatprep.mubr.f32.mxu0 0.0
    %1829 = vmatmul.mubr.f32.gmra.mxu0 %v1760
    %v1830 = vpop.f32.mrf.mxu0
    %v1831 = vadd.f32 0.0, %v1830
    %v1832 = vpop.f32.mrf.mxu0
    %1833 = vdwg.mxu0
    %1834 = vrot.lane.b32.xlu0 %v298, 120
    %v1835 = vpop.permute.xlu0 %1834
    %1836 = vrot.lane.b32.xlu0 %v298, 104
    %v1837 = vpop.permute.xlu0 %1836
    %v1838 = vsel %vm217, %v1835, 0
    %v1840 = vsel %vm217, %v1837, 0
    %1842 = vmatprep.subr.mxu0 0.0
    %1843 = vmatpush1.xpose.msra.mxu0 0.0
    %1844 = vmatprep.subr.mxu0 0.0
    %1845 = vmatpush1.xpose.msra.mxu0 0.0
    %1846 = vmatprep.subr.mxu0 0.0
    %1847 = vmatpush1.xpose.msra.mxu0 0.0
    %1848 = vmatprep.subr.mxu0 0.0
    %1849 = vmatpush1.xpose.msra.mxu0 0.0
    %1850 = vmatprep.subr.mxu0 0.0
    %1851 = vmatpush1.xpose.msra.mxu0 0.0
    %1852 = vmatprep.subr.mxu0 0.0
    %1853 = vmatpush1.xpose.msra.mxu0 0.0
    %1854 = vmatprep.subr.mxu0 0.0
    %1855 = vmatpush1.xpose.msra.mxu0 0.0
    %1856 = vmatprep.subr.mxu0 0.0
    %1857 = vmatpush1.xpose.msra.mxu0 0.0
    %1858 = vmatprep.subr.mxu0 0.0
    %1859 = vmatpush1.xpose.msra.mxu0 0.0
    %1860 = vmatprep.subr.mxu0 0.0
    %1861 = vmatpush1.xpose.msra.mxu0 0.0
    %1862 = vmatprep.subr.mxu0 0.0
    %1863 = vmatpush1.xpose.msra.mxu0 0.0
    %1864 = vmatprep.subr.mxu0 0.0
    %1865 = vmatpush1.xpose.msra.mxu0 0.0
    %1866 = vmatprep.subr.mxu0 0.0
    %1867 = vmatpush1.xpose.msra.mxu0 0.0
    %1868 = vmatprep.subr.mxu0 0.0
    %1869 = vmatpush1.xpose.msra.mxu0 0.0
    %1870 = vmatprep.subr.mxu0 0.0
    %1871 = vmatpush1.xpose.msra.mxu0 0.0
    %1872 = vmatprep.subr.mxu0 0.0
    %1873 = vmatpush1.xpose.msra.mxu0 %v1840
    %1874 = vmatprep.subr.mxu0 0.0
    %1875 = vmatpush2.xpose.msra.mxu0 0.0
    %1876 = vmatprep.subr.mxu0 0.0
    %1877 = vmatpush2.xpose.msra.mxu0 0.0
    %1878 = vmatprep.subr.mxu0 0.0
    %1879 = vmatpush2.xpose.msra.mxu0 0.0
    %1880 = vmatprep.subr.mxu0 0.0
    %1881 = vmatpush2.xpose.msra.mxu0 0.0
    %1882 = vmatprep.subr.mxu0 0.0
    %1883 = vmatpush2.xpose.msra.mxu0 0.0
    %1884 = vmatprep.subr.mxu0 0.0
    %1885 = vmatpush2.xpose.msra.mxu0 0.0
    %1886 = vmatprep.subr.mxu0 0.0
    %1887 = vmatpush2.xpose.msra.mxu0 0.0
    %1888 = vmatprep.subr.mxu0 0.0
    %1889 = vmatpush2.xpose.msra.mxu0 0.0
    %1890 = vmatprep.subr.mxu0 0.0
    %1891 = vmatpush2.xpose.msra.mxu0 0.0
    %1892 = vmatprep.subr.mxu0 0.0
    %1893 = vmatpush2.xpose.msra.mxu0 0.0
    %1894 = vmatprep.subr.mxu0 0.0
    %1895 = vmatpush2.xpose.msra.mxu0 0.0
    %1896 = vmatprep.subr.mxu0 0.0
    %1897 = vmatpush2.xpose.msra.mxu0 0.0
    %1898 = vmatprep.subr.mxu0 0.0
    %1899 = vmatpush2.xpose.msra.mxu0 0.0
    %1900 = vmatprep.subr.mxu0 0.0
    %1901 = vmatpush2.xpose.msra.mxu0 0.0
    %1902 = vmatprep.subr.mxu0 0.0
    %1903 = vmatpush2.xpose.msra.mxu0 0.0
    %1904 = vmatprep.subr.mxu0 0.0
    %1905 = vmatpush2.xpose.msra.mxu0 0.0
    %1906 = vmatprep.mubr.f32.mxu0 0.0
    %1907 = vmatmul.mubr.f32.gmra.mxu0 %v1838
    %v1908 = vpop.f32.mrf.mxu0
    %v1909 = vadd.f32 0.0, %v1908
    %v1910 = vpop.f32.mrf.mxu0
    %1911 = vdwg.mxu0
    %1912 = vrot.lane.b32.xlu0 %v316, 120
    %v1913 = vpop.permute.xlu0 %1912
    %1914 = vrot.lane.b32.xlu0 %v316, 104
    %v1915 = vpop.permute.xlu0 %1914
    %v1916 = vsel %vm217, %v1913, 0
    %v1918 = vsel %vm217, %v1915, 0
    %1920 = vmatprep.subr.mxu0 0.0
    %1921 = vmatpush1.xpose.msra.mxu0 0.0
    %1922 = vmatprep.subr.mxu0 0.0
    %1923 = vmatpush1.xpose.msra.mxu0 0.0
    %1924 = vmatprep.subr.mxu0 0.0
    %1925 = vmatpush1.xpose.msra.mxu0 0.0
    %1926 = vmatprep.subr.mxu0 0.0
    %1927 = vmatpush1.xpose.msra.mxu0 0.0
    %1928 = vmatprep.subr.mxu0 0.0
    %1929 = vmatpush1.xpose.msra.mxu0 0.0
    %1930 = vmatprep.subr.mxu0 0.0
    %1931 = vmatpush1.xpose.msra.mxu0 0.0
    %1932 = vmatprep.subr.mxu0 0.0
    %1933 = vmatpush1.xpose.msra.mxu0 0.0
    %1934 = vmatprep.subr.mxu0 0.0
    %1935 = vmatpush1.xpose.msra.mxu0 0.0
    %1936 = vmatprep.subr.mxu0 0.0
    %1937 = vmatpush1.xpose.msra.mxu0 0.0
    %1938 = vmatprep.subr.mxu0 0.0
    %1939 = vmatpush1.xpose.msra.mxu0 0.0
    %1940 = vmatprep.subr.mxu0 0.0
    %1941 = vmatpush1.xpose.msra.mxu0 0.0
    %1942 = vmatprep.subr.mxu0 0.0
    %1943 = vmatpush1.xpose.msra.mxu0 0.0
    %1944 = vmatprep.subr.mxu0 0.0
    %1945 = vmatpush1.xpose.msra.mxu0 0.0
    %1946 = vmatprep.subr.mxu0 0.0
    %1947 = vmatpush1.xpose.msra.mxu0 0.0
    %1948 = vmatprep.subr.mxu0 0.0
    %1949 = vmatpush1.xpose.msra.mxu0 0.0
    %1950 = vmatprep.subr.mxu0 0.0
    %1951 = vmatpush1.xpose.msra.mxu0 %v1918
    %1952 = vmatprep.subr.mxu0 0.0
    %1953 = vmatpush2.xpose.msra.mxu0 0.0
    %1954 = vmatprep.subr.mxu0 0.0
    %1955 = vmatpush2.xpose.msra.mxu0 0.0
    %1956 = vmatprep.subr.mxu0 0.0
    %1957 = vmatpush2.xpose.msra.mxu0 0.0
    %1958 = vmatprep.subr.mxu0 0.0
    %1959 = vmatpush2.xpose.msra.mxu0 0.0
    %1960 = vmatprep.subr.mxu0 0.0
    %1961 = vmatpush2.xpose.msra.mxu0 0.0
    %1962 = vmatprep.subr.mxu0 0.0
    %1963 = vmatpush2.xpose.msra.mxu0 0.0
    %1964 = vmatprep.subr.mxu0 0.0
    %1965 = vmatpush2.xpose.msra.mxu0 0.0
    %1966 = vmatprep.subr.mxu0 0.0
    %1967 = vmatpush2.xpose.msra.mxu0 0.0
    %1968 = vmatprep.subr.mxu0 0.0
    %1969 = vmatpush2.xpose.msra.mxu0 0.0
    %1970 = vmatprep.subr.mxu0 0.0
    %1971 = vmatpush2.xpose.msra.mxu0 0.0
    %1972 = vmatprep.subr.mxu0 0.0
    %1973 = vmatpush2.xpose.msra.mxu0 0.0
    %1974 = vmatprep.subr.mxu0 0.0
    %1975 = vmatpush2.xpose.msra.mxu0 0.0
    %1976 = vmatprep.subr.mxu0 0.0
    %1977 = vmatpush2.xpose.msra.mxu0 0.0
    %1978 = vmatprep.subr.mxu0 0.0
    %1979 = vmatpush2.xpose.msra.mxu0 0.0
    %1980 = vmatprep.subr.mxu0 0.0
    %1981 = vmatpush2.xpose.msra.mxu0 0.0
    %1982 = vmatprep.subr.mxu0 0.0
    %1983 = vmatpush2.xpose.msra.mxu0 0.0
    %1984 = vmatprep.mubr.f32.mxu0 0.0
    %1985 = vmatmul.mubr.f32.gmra.mxu0 %v1916
    %v1986 = vpop.f32.mrf.mxu0
    %v1987 = vadd.f32 0.0, %v1986
    %v1988 = vpop.f32.mrf.mxu0
    %1989 = vdwg.mxu0
    %1990 = vrot.lane.b32.xlu0 %v303, 120
    %v1991 = vpop.permute.xlu0 %1990
    %1992 = vrot.lane.b32.xlu0 %v303, 104
    %v1993 = vpop.permute.xlu0 %1992
    %v1994 = vsel %vm217, %v1991, 0
    %v1996 = vsel %vm217, %v1993, 0
    %1998 = vmatprep.subr.mxu0 0.0
    %1999 = vmatpush1.xpose.msra.mxu0 0.0
    %2000 = vmatprep.subr.mxu0 0.0
    %2001 = vmatpush1.xpose.msra.mxu0 0.0
    %2002 = vmatprep.subr.mxu0 0.0
    %2003 = vmatpush1.xpose.msra.mxu0 0.0
    %2004 = vmatprep.subr.mxu0 0.0
    %2005 = vmatpush1.xpose.msra.mxu0 0.0
    %2006 = vmatprep.subr.mxu0 0.0
    %2007 = vmatpush1.xpose.msra.mxu0 0.0
    %2008 = vmatprep.subr.mxu0 0.0
    %2009 = vmatpush1.xpose.msra.mxu0 0.0
    %2010 = vmatprep.subr.mxu0 0.0
    %2011 = vmatpush1.xpose.msra.mxu0 0.0
    %2012 = vmatprep.subr.mxu0 0.0
    %2013 = vmatpush1.xpose.msra.mxu0 0.0
    %2014 = vmatprep.subr.mxu0 0.0
    %2015 = vmatpush1.xpose.msra.mxu0 0.0
    %2016 = vmatprep.subr.mxu0 0.0
    %2017 = vmatpush1.xpose.msra.mxu0 0.0
    %2018 = vmatprep.subr.mxu0 0.0
    %2019 = vmatpush1.xpose.msra.mxu0 0.0
    %2020 = vmatprep.subr.mxu0 0.0
    %2021 = vmatpush1.xpose.msra.mxu0 0.0
    %2022 = vmatprep.subr.mxu0 0.0
    %2023 = vmatpush1.xpose.msra.mxu0 0.0
    %2024 = vmatprep.subr.mxu0 0.0
    %2025 = vmatpush1.xpose.msra.mxu0 0.0
    %2026 = vmatprep.subr.mxu0 0.0
    %2027 = vmatpush1.xpose.msra.mxu0 0.0
    %2028 = vmatprep.subr.mxu0 0.0
    %2029 = vmatpush1.xpose.msra.mxu0 %v1996
    %2030 = vmatprep.subr.mxu0 0.0
    %2031 = vmatpush2.xpose.msra.mxu0 0.0
    %2032 = vmatprep.subr.mxu0 0.0
    %2033 = vmatpush2.xpose.msra.mxu0 0.0
    %2034 = vmatprep.subr.mxu0 0.0
    %2035 = vmatpush2.xpose.msra.mxu0 0.0
    %2036 = vmatprep.subr.mxu0 0.0
    %2037 = vmatpush2.xpose.msra.mxu0 0.0
    %2038 = vmatprep.subr.mxu0 0.0
    %2039 = vmatpush2.xpose.msra.mxu0 0.0
    %2040 = vmatprep.subr.mxu0 0.0
    %2041 = vmatpush2.xpose.msra.mxu0 0.0
    %2042 = vmatprep.subr.mxu0 0.0
    %2043 = vmatpush2.xpose.msra.mxu0 0.0
    %2044 = vmatprep.subr.mxu0 0.0
    %2045 = vmatpush2.xpose.msra.mxu0 0.0
    %2046 = vmatprep.subr.mxu0 0.0
    %2047 = vmatpush2.xpose.msra.mxu0 0.0
    %2048 = vmatprep.subr.mxu0 0.0
    %2049 = vmatpush2.xpose.msra.mxu0 0.0
    %2050 = vmatprep.subr.mxu0 0.0
    %2051 = vmatpush2.xpose.msra.mxu0 0.0
    %2052 = vmatprep.subr.mxu0 0.0
    %2053 = vmatpush2.xpose.msra.mxu0 0.0
    %2054 = vmatprep.subr.mxu0 0.0
    %2055 = vmatpush2.xpose.msra.mxu0 0.0
    %2056 = vmatprep.subr.mxu0 0.0
    %2057 = vmatpush2.xpose.msra.mxu0 0.0
    %2058 = vmatprep.subr.mxu0 0.0
    %2059 = vmatpush2.xpose.msra.mxu0 0.0
    %2060 = vmatprep.subr.mxu0 0.0
    %2061 = vmatpush2.xpose.msra.mxu0 0.0
    %2062 = vmatprep.mubr.f32.mxu0 0.0
    %2063 = vmatmul.mubr.f32.gmra.mxu0 %v1994
    %v2064 = vpop.f32.mrf.mxu0
    %v2065 = vadd.f32 0.0, %v2064
    %v2066 = vpop.f32.mrf.mxu0
    %2067 = vdwg.mxu0
    %2068 = vrot.lane.b32.xlu0 %v317, 120
    %v2069 = vpop.permute.xlu0 %2068
    %2070 = vrot.lane.b32.xlu0 %v317, 104
    %v2071 = vpop.permute.xlu0 %2070
    %v2072 = vsel %vm217, %v2069, 0
    %v2074 = vsel %vm217, %v2071, 0
    %2076 = vmatprep.subr.mxu0 0.0
    %2077 = vmatpush1.xpose.msra.mxu0 0.0
    %2078 = vmatprep.subr.mxu0 0.0
    %2079 = vmatpush1.xpose.msra.mxu0 0.0
    %2080 = vmatprep.subr.mxu0 0.0
    %2081 = vmatpush1.xpose.msra.mxu0 0.0
    %2082 = vmatprep.subr.mxu0 0.0
    %2083 = vmatpush1.xpose.msra.mxu0 0.0
    %2084 = vmatprep.subr.mxu0 0.0
    %2085 = vmatpush1.xpose.msra.mxu0 0.0
    %2086 = vmatprep.subr.mxu0 0.0
    %2087 = vmatpush1.xpose.msra.mxu0 0.0
    %2088 = vmatprep.subr.mxu0 0.0
    %2089 = vmatpush1.xpose.msra.mxu0 0.0
    %2090 = vmatprep.subr.mxu0 0.0
    %2091 = vmatpush1.xpose.msra.mxu0 0.0
    %2092 = vmatprep.subr.mxu0 0.0
    %2093 = vmatpush1.xpose.msra.mxu0 0.0
    %2094 = vmatprep.subr.mxu0 0.0
    %2095 = vmatpush1.xpose.msra.mxu0 0.0
    %2096 = vmatprep.subr.mxu0 0.0
    %2097 = vmatpush1.xpose.msra.mxu0 0.0
    %2098 = vmatprep.subr.mxu0 0.0
    %2099 = vmatpush1.xpose.msra.mxu0 0.0
    %2100 = vmatprep.subr.mxu0 0.0
    %2101 = vmatpush1.xpose.msra.mxu0 0.0
    %2102 = vmatprep.subr.mxu0 0.0
    %2103 = vmatpush1.xpose.msra.mxu0 0.0
    %2104 = vmatprep.subr.mxu0 0.0
    %2105 = vmatpush1.xpose.msra.mxu0 0.0
    %2106 = vmatprep.subr.mxu0 0.0
    %2107 = vmatpush1.xpose.msra.mxu0 %v2074
    %2108 = vmatprep.subr.mxu0 0.0
    %2109 = vmatpush2.xpose.msra.mxu0 0.0
    %2110 = vmatprep.subr.mxu0 0.0
    %2111 = vmatpush2.xpose.msra.mxu0 0.0
    %2112 = vmatprep.subr.mxu0 0.0
    %2113 = vmatpush2.xpose.msra.mxu0 0.0
    %2114 = vmatprep.subr.mxu0 0.0
    %2115 = vmatpush2.xpose.msra.mxu0 0.0
    %2116 = vmatprep.subr.mxu0 0.0
    %2117 = vmatpush2.xpose.msra.mxu0 0.0
    %2118 = vmatprep.subr.mxu0 0.0
    %2119 = vmatpush2.xpose.msra.mxu0 0.0
    %2120 = vmatprep.subr.mxu0 0.0
    %2121 = vmatpush2.xpose.msra.mxu0 0.0
    %2122 = vmatprep.subr.mxu0 0.0
    %2123 = vmatpush2.xpose.msra.mxu0 0.0
    %2124 = vmatprep.subr.mxu0 0.0
    %2125 = vmatpush2.xpose.msra.mxu0 0.0
    %2126 = vmatprep.subr.mxu0 0.0
    %2127 = vmatpush2.xpose.msra.mxu0 0.0
    %2128 = vmatprep.subr.mxu0 0.0
    %2129 = vmatpush2.xpose.msra.mxu0 0.0
    %2130 = vmatprep.subr.mxu0 0.0
    %2131 = vmatpush2.xpose.msra.mxu0 0.0
    %2132 = vmatprep.subr.mxu0 0.0
    %2133 = vmatpush2.xpose.msra.mxu0 0.0
    %2134 = vmatprep.subr.mxu0 0.0
    %2135 = vmatpush2.xpose.msra.mxu0 0.0
    %2136 = vmatprep.subr.mxu0 0.0
    %2137 = vmatpush2.xpose.msra.mxu0 0.0
    %2138 = vmatprep.subr.mxu0 0.0
    %2139 = vmatpush2.xpose.msra.mxu0 0.0
    %2140 = vmatprep.mubr.f32.mxu0 0.0
    %2141 = vmatmul.mubr.f32.gmra.mxu0 %v2072
    %v2142 = vpop.f32.mrf.mxu0
    %v2143 = vadd.f32 0.0, %v2142
    %v2144 = vpop.f32.mrf.mxu0
    %2145 = vdwg.mxu0
    %2146 = vrot.lane.b32.xlu0 %v308, 120
    %v2147 = vpop.permute.xlu0 %2146
    %2148 = vrot.lane.b32.xlu0 %v308, 104
    %v2149 = vpop.permute.xlu0 %2148
    %v2150 = vsel %vm217, %v2147, 0
    %v2152 = vsel %vm217, %v2149, 0
    %2154 = vmatprep.subr.mxu0 0.0
    %2155 = vmatpush1.xpose.msra.mxu0 0.0
    %2156 = vmatprep.subr.mxu0 0.0
    %2157 = vmatpush1.xpose.msra.mxu0 0.0
    %2158 = vmatprep.subr.mxu0 0.0
    %2159 = vmatpush1.xpose.msra.mxu0 0.0
    %2160 = vmatprep.subr.mxu0 0.0
    %2161 = vmatpush1.xpose.msra.mxu0 0.0
    %2162 = vmatprep.subr.mxu0 0.0
    %2163 = vmatpush1.xpose.msra.mxu0 0.0
    %2164 = vmatprep.subr.mxu0 0.0
    %2165 = vmatpush1.xpose.msra.mxu0 0.0
    %2166 = vmatprep.subr.mxu0 0.0
    %2167 = vmatpush1.xpose.msra.mxu0 0.0
    %2168 = vmatprep.subr.mxu0 0.0
    %2169 = vmatpush1.xpose.msra.mxu0 0.0
    %2170 = vmatprep.subr.mxu0 0.0
    %2171 = vmatpush1.xpose.msra.mxu0 0.0
    %2172 = vmatprep.subr.mxu0 0.0
    %2173 = vmatpush1.xpose.msra.mxu0 0.0
    %2174 = vmatprep.subr.mxu0 0.0
    %2175 = vmatpush1.xpose.msra.mxu0 0.0
    %2176 = vmatprep.subr.mxu0 0.0
    %2177 = vmatpush1.xpose.msra.mxu0 0.0
    %2178 = vmatprep.subr.mxu0 0.0
    %2179 = vmatpush1.xpose.msra.mxu0 0.0
    %2180 = vmatprep.subr.mxu0 0.0
    %2181 = vmatpush1.xpose.msra.mxu0 0.0
    %2182 = vmatprep.subr.mxu0 0.0
    %2183 = vmatpush1.xpose.msra.mxu0 0.0
    %2184 = vmatprep.subr.mxu0 0.0
    %2185 = vmatpush1.xpose.msra.mxu0 %v2152
    %2186 = vmatprep.subr.mxu0 0.0
    %2187 = vmatpush2.xpose.msra.mxu0 0.0
    %2188 = vmatprep.subr.mxu0 0.0
    %2189 = vmatpush2.xpose.msra.mxu0 0.0
    %2190 = vmatprep.subr.mxu0 0.0
    %2191 = vmatpush2.xpose.msra.mxu0 0.0
    %2192 = vmatprep.subr.mxu0 0.0
    %2193 = vmatpush2.xpose.msra.mxu0 0.0
    %2194 = vmatprep.subr.mxu0 0.0
    %2195 = vmatpush2.xpose.msra.mxu0 0.0
    %2196 = vmatprep.subr.mxu0 0.0
    %2197 = vmatpush2.xpose.msra.mxu0 0.0
    %2198 = vmatprep.subr.mxu0 0.0
    %2199 = vmatpush2.xpose.msra.mxu0 0.0
    %2200 = vmatprep.subr.mxu0 0.0
    %2201 = vmatpush2.xpose.msra.mxu0 0.0
    %2202 = vmatprep.subr.mxu0 0.0
    %2203 = vmatpush2.xpose.msra.mxu0 0.0
    %2204 = vmatprep.subr.mxu0 0.0
    %2205 = vmatpush2.xpose.msra.mxu0 0.0
    %2206 = vmatprep.subr.mxu0 0.0
    %2207 = vmatpush2.xpose.msra.mxu0 0.0
    %2208 = vmatprep.subr.mxu0 0.0
    %2209 = vmatpush2.xpose.msra.mxu0 0.0
    %2210 = vmatprep.subr.mxu0 0.0
    %2211 = vmatpush2.xpose.msra.mxu0 0.0
    %2212 = vmatprep.subr.mxu0 0.0
    %2213 = vmatpush2.xpose.msra.mxu0 0.0
    %2214 = vmatprep.subr.mxu0 0.0
    %2215 = vmatpush2.xpose.msra.mxu0 0.0
    %2216 = vmatprep.subr.mxu0 0.0
    %2217 = vmatpush2.xpose.msra.mxu0 0.0
    %2218 = vmatprep.mubr.f32.mxu0 0.0
    %2219 = vmatmul.mubr.f32.gmra.mxu0 %v2150
    %v2220 = vpop.f32.mrf.mxu0
    %v2221 = vadd.f32 0.0, %v2220
    %v2222 = vpop.f32.mrf.mxu0
    %2223 = vdwg.mxu0
    %2224 = vrot.lane.b32.xlu0 %v318, 120
    %v2225 = vpop.permute.xlu0 %2224
    %2226 = vrot.lane.b32.xlu0 %v318, 104
    %v2227 = vpop.permute.xlu0 %2226
    %v2228 = vsel %vm217, %v2225, 0
    %v2230 = vsel %vm217, %v2227, 0
    %2232 = vmatprep.subr.mxu0 0.0
    %2233 = vmatpush1.xpose.msra.mxu0 0.0
    %2234 = vmatprep.subr.mxu0 0.0
    %2235 = vmatpush1.xpose.msra.mxu0 0.0
    %2236 = vmatprep.subr.mxu0 0.0
    %2237 = vmatpush1.xpose.msra.mxu0 0.0
    %2238 = vmatprep.subr.mxu0 0.0
    %2239 = vmatpush1.xpose.msra.mxu0 0.0
    %2240 = vmatprep.subr.mxu0 0.0
    %2241 = vmatpush1.xpose.msra.mxu0 0.0
    %2242 = vmatprep.subr.mxu0 0.0
    %2243 = vmatpush1.xpose.msra.mxu0 0.0
    %2244 = vmatprep.subr.mxu0 0.0
    %2245 = vmatpush1.xpose.msra.mxu0 0.0
    %2246 = vmatprep.subr.mxu0 0.0
    %2247 = vmatpush1.xpose.msra.mxu0 0.0
    %2248 = vmatprep.subr.mxu0 0.0
    %2249 = vmatpush1.xpose.msra.mxu0 0.0
    %2250 = vmatprep.subr.mxu0 0.0
    %2251 = vmatpush1.xpose.msra.mxu0 0.0
    %2252 = vmatprep.subr.mxu0 0.0
    %2253 = vmatpush1.xpose.msra.mxu0 0.0
    %2254 = vmatprep.subr.mxu0 0.0
    %2255 = vmatpush1.xpose.msra.mxu0 0.0
    %2256 = vmatprep.subr.mxu0 0.0
    %2257 = vmatpush1.xpose.msra.mxu0 0.0
    %2258 = vmatprep.subr.mxu0 0.0
    %2259 = vmatpush1.xpose.msra.mxu0 0.0
    %2260 = vmatprep.subr.mxu0 0.0
    %2261 = vmatpush1.xpose.msra.mxu0 0.0
    %2262 = vmatprep.subr.mxu0 0.0
    %2263 = vmatpush1.xpose.msra.mxu0 %v2230
    %2264 = vmatprep.subr.mxu0 0.0
    %2265 = vmatpush2.xpose.msra.mxu0 0.0
    %2266 = vmatprep.subr.mxu0 0.0
    %2267 = vmatpush2.xpose.msra.mxu0 0.0
    %2268 = vmatprep.subr.mxu0 0.0
    %2269 = vmatpush2.xpose.msra.mxu0 0.0
    %2270 = vmatprep.subr.mxu0 0.0
    %2271 = vmatpush2.xpose.msra.mxu0 0.0
    %2272 = vmatprep.subr.mxu0 0.0
    %2273 = vmatpush2.xpose.msra.mxu0 0.0
    %2274 = vmatprep.subr.mxu0 0.0
    %2275 = vmatpush2.xpose.msra.mxu0 0.0
    %2276 = vmatprep.subr.mxu0 0.0
    %2277 = vmatpush2.xpose.msra.mxu0 0.0
    %2278 = vmatprep.subr.mxu0 0.0
    %2279 = vmatpush2.xpose.msra.mxu0 0.0
    %2280 = vmatprep.subr.mxu0 0.0
    %2281 = vmatpush2.xpose.msra.mxu0 0.0
    %2282 = vmatprep.subr.mxu0 0.0
    %2283 = vmatpush2.xpose.msra.mxu0 0.0
    %2284 = vmatprep.subr.mxu0 0.0
    %2285 = vmatpush2.xpose.msra.mxu0 0.0
    %2286 = vmatprep.subr.mxu0 0.0
    %2287 = vmatpush2.xpose.msra.mxu0 0.0
    %2288 = vmatprep.subr.mxu0 0.0
    %2289 = vmatpush2.xpose.msra.mxu0 0.0
    %2290 = vmatprep.subr.mxu0 0.0
    %2291 = vmatpush2.xpose.msra.mxu0 0.0
    %2292 = vmatprep.subr.mxu0 0.0
    %2293 = vmatpush2.xpose.msra.mxu0 0.0
    %2294 = vmatprep.subr.mxu0 0.0
    %2295 = vmatpush2.xpose.msra.mxu0 0.0
    %2296 = vmatprep.mubr.f32.mxu0 0.0
    %2297 = vmatmul.mubr.f32.gmra.mxu0 %v2228
    %v2298 = vpop.f32.mrf.mxu0
    %v2299 = vadd.f32 0.0, %v2298
    %v2300 = vpop.f32.mrf.mxu0
    %2301 = vdwg.mxu0
    %v2302 = vsel %vm931, %v1753, -inf
    %2303 = vmax.xlane.f32.xlu0 %v2302
    %v2304 = vpop.xlane.xlu0 %2303
    %v2305 = vsel %vm931, %v1831, -inf
    %2306 = vmax.xlane.f32.xlu0 %v2305
    %v2307 = vpop.xlane.xlu0 %2306
    %v2308 = vsel %vm931, %v1909, -inf
    %2309 = vmax.xlane.f32.xlu0 %v2308
    %v2310 = vpop.xlane.xlu0 %2309
    %v2311 = vsel %vm931, %v1987, -inf
    %2312 = vmax.xlane.f32.xlu0 %v2311
    %v2313 = vpop.xlane.xlu0 %2312
    %v2314 = vsel %vm931, %v2065, -inf
    %2315 = vmax.xlane.f32.xlu0 %v2314
    %v2316 = vpop.xlane.xlu0 %2315
    %v2317 = vsel %vm931, %v2143, -inf
    %2318 = vmax.xlane.f32.xlu0 %v2317
    %v2319 = vpop.xlane.xlu0 %2318
    %v2320 = vsel %vm931, %v2221, -inf
    %2321 = vmax.xlane.f32.xlu0 %v2320
    %v2322 = vpop.xlane.xlu0 %2321
    %v2323 = vsel %vm931, %v2299, -inf
    %2324 = vmax.xlane.f32.xlu0 %v2323
    %v2325 = vpop.xlane.xlu0 %2324
    %v2326 = vsub.f32 %v1753, %v2304
    %v2327 = vsub.f32 %v1831, %v2307
    %v2328 = vsub.f32 %v1909, %v2310
    %v2329 = vsub.f32 %v1987, %v2313
    %v2330 = vsub.f32 %v2065, %v2316
    %v2331 = vsub.f32 %v2143, %v2319
    %v2332 = vsub.f32 %v2221, %v2322
    %v2333 = vsub.f32 %v2299, %v2325
    %v2334 = vmul.f32 %v2326, 1.442695
    %v2335 = vpow.pop %v2334
    %v2336 = vmul.f32 %v2327, 1.442695
    %v2337 = vpow.pop %v2336
    %v2338 = vmul.f32 %v2328, 1.442695
    %v2339 = vpow.pop %v2338
    %v2340 = vmul.f32 %v2329, 1.442695
    %v2341 = vpow.pop %v2340
    %v2342 = vmul.f32 %v2330, 1.442695
    %v2343 = vpow.pop %v2342
    %v2344 = vmul.f32 %v2331, 1.442695
    %v2345 = vpow.pop %v2344
    %v2346 = vmul.f32 %v2332, 1.442695
    %v2347 = vpow.pop %v2346
    %v2348 = vmul.f32 %v2333, 1.442695
    %v2349 = vpow.pop %v2348
    %v2350 = vsel %vm931, %v2335, 0.0
    %2351 = vadd.xlane.f32.xlu0 %v2350
    %v2352 = vpop.xlane.xlu0 %2351
    %v2353 = vsel %vm931, %v2337, 0.0
    %2354 = vadd.xlane.f32.xlu0 %v2353
    %v2355 = vpop.xlane.xlu0 %2354
    %v2356 = vsel %vm931, %v2339, 0.0
    %2357 = vadd.xlane.f32.xlu0 %v2356
    %v2358 = vpop.xlane.xlu0 %2357
    %v2359 = vsel %vm931, %v2341, 0.0
    %2360 = vadd.xlane.f32.xlu0 %v2359
    %v2361 = vpop.xlane.xlu0 %2360
    %v2362 = vsel %vm931, %v2343, 0.0
    %2363 = vadd.xlane.f32.xlu0 %v2362
    %v2364 = vpop.xlane.xlu0 %2363
    %v2365 = vsel %vm931, %v2345, 0.0
    %2366 = vadd.xlane.f32.xlu0 %v2365
    %v2367 = vpop.xlane.xlu0 %2366
    %v2368 = vsel %vm931, %v2347, 0.0
    %2369 = vadd.xlane.f32.xlu0 %v2368
    %v2370 = vpop.xlane.xlu0 %2369
    %v2371 = vsel %vm931, %v2349, 0.0
    %2372 = vadd.xlane.f32.xlu0 %v2371
    %v2373 = vpop.xlane.xlu0 %2372
    %v2374 = vrcp.pop %v2352
    %v2375 = vrcp.pop %v2355
    %v2376 = vrcp.pop %v2358
    %v2377 = vrcp.pop %v2361
    %v2378 = vrcp.pop %v2364
    %v2379 = vrcp.pop %v2367
    %v2380 = vrcp.pop %v2370
    %v2381 = vrcp.pop %v2373
    %v2382 = vmul.f32 %v2335, %v2374
    %v2383 = vmul.f32 %v2337, %v2375
    %v2384 = vmul.f32 %v2339, %v2376
    %v2385 = vmul.f32 %v2341, %v2377
    %v2386 = vmul.f32 %v2343, %v2378
    %v2387 = vmul.f32 %v2345, %v2379
    %v2388 = vmul.f32 %v2347, %v2380
    %v2389 = vmul.f32 %v2349, %v2381
    %2390 = vrot.lane.b32.xlu0 %v293, 88
    %v2391 = vpop.permute.xlu0 %2390
    %v2393 = vsel %vm1022, %v2382, 0
    %v2395 = vsel %vm1026, %v2391, 0
    %2397 = vmatprep.subr.mxu0 0.0
    %2398 = vmatpush1.msra.mxu0 0.0
    %2399 = vmatprep.subr.mxu0 0.0
    %2400 = vmatpush1.msra.mxu0 0.0
    %2401 = vmatprep.subr.mxu0 0.0
    %2402 = vmatpush1.msra.mxu0 0.0
    %2403 = vmatprep.subr.mxu0 0.0
    %2404 = vmatpush1.msra.mxu0 0.0
    %2405 = vmatprep.subr.mxu0 0.0
    %2406 = vmatpush1.msra.mxu0 0.0
    %2407 = vmatprep.subr.mxu0 0.0
    %2408 = vmatpush1.msra.mxu0 0.0
    %2409 = vmatprep.subr.mxu0 0.0
    %2410 = vmatpush1.msra.mxu0 0.0
    %2411 = vmatprep.subr.mxu0 0.0
    %2412 = vmatpush1.msra.mxu0 0.0
    %2413 = vmatprep.subr.mxu0 0.0
    %2414 = vmatpush1.msra.mxu0 0.0
    %2415 = vmatprep.subr.mxu0 0.0
    %2416 = vmatpush1.msra.mxu0 0.0
    %2417 = vmatprep.subr.mxu0 0.0
    %2418 = vmatpush1.msra.mxu0 0.0
    %2419 = vmatprep.subr.mxu0 0.0
    %2420 = vmatpush1.msra.mxu0 0.0
    %2421 = vmatprep.subr.mxu0 0.0
    %2422 = vmatpush1.msra.mxu0 0.0
    %2423 = vmatprep.subr.mxu0 0.0
    %2424 = vmatpush1.msra.mxu0 0.0
    %2425 = vmatprep.subr.mxu0 0.0
    %2426 = vmatpush1.msra.mxu0 0.0
    %2427 = vmatprep.subr.mxu0 0.0
    %2428 = vmatpush1.msra.mxu0 %v2395
    %2429 = vmatprep.subr.mxu0 0.0
    %2430 = vmatpush2.msra.mxu0 0.0
    %2431 = vmatprep.subr.mxu0 0.0
    %2432 = vmatpush2.msra.mxu0 0.0
    %2433 = vmatprep.subr.mxu0 0.0
    %2434 = vmatpush2.msra.mxu0 0.0
    %2435 = vmatprep.subr.mxu0 0.0
    %2436 = vmatpush2.msra.mxu0 0.0
    %2437 = vmatprep.subr.mxu0 0.0
    %2438 = vmatpush2.msra.mxu0 0.0
    %2439 = vmatprep.subr.mxu0 0.0
    %2440 = vmatpush2.msra.mxu0 0.0
    %2441 = vmatprep.subr.mxu0 0.0
    %2442 = vmatpush2.msra.mxu0 0.0
    %2443 = vmatprep.subr.mxu0 0.0
    %2444 = vmatpush2.msra.mxu0 0.0
    %2445 = vmatprep.subr.mxu0 0.0
    %2446 = vmatpush2.msra.mxu0 0.0
    %2447 = vmatprep.subr.mxu0 0.0
    %2448 = vmatpush2.msra.mxu0 0.0
    %2449 = vmatprep.subr.mxu0 0.0
    %2450 = vmatpush2.msra.mxu0 0.0
    %2451 = vmatprep.subr.mxu0 0.0
    %2452 = vmatpush2.msra.mxu0 0.0
    %2453 = vmatprep.subr.mxu0 0.0
    %2454 = vmatpush2.msra.mxu0 0.0
    %2455 = vmatprep.subr.mxu0 0.0
    %2456 = vmatpush2.msra.mxu0 0.0
    %2457 = vmatprep.subr.mxu0 0.0
    %2458 = vmatpush2.msra.mxu0 0.0
    %2459 = vmatprep.subr.mxu0 0.0
    %2460 = vmatpush2.msra.mxu0 0.0
    %2461 = vmatprep.mubr.f32.mxu0 0.0
    %2462 = vmatmul.mubr.f32.gmra.mxu0 %v2393
    %v2463 = vpop.f32.mrf.mxu0
    %v2464 = vadd.f32 0.0, %v2463
    %v2465 = vpop.f32.mrf.mxu0
    %2466 = vdwg.mxu0
    %2467 = vrot.lane.b32.xlu0 %v315, 88
    %v2468 = vpop.permute.xlu0 %2467
    %v2470 = vsel %vm1022, %v2383, 0
    %v2472 = vsel %vm1026, %v2468, 0
    %2474 = vmatprep.subr.mxu0 0.0
    %2475 = vmatpush1.msra.mxu0 0.0
    %2476 = vmatprep.subr.mxu0 0.0
    %2477 = vmatpush1.msra.mxu0 0.0
    %2478 = vmatprep.subr.mxu0 0.0
    %2479 = vmatpush1.msra.mxu0 0.0
    %2480 = vmatprep.subr.mxu0 0.0
    %2481 = vmatpush1.msra.mxu0 0.0
    %2482 = vmatprep.subr.mxu0 0.0
    %2483 = vmatpush1.msra.mxu0 0.0
    %2484 = vmatprep.subr.mxu0 0.0
    %2485 = vmatpush1.msra.mxu0 0.0
    %2486 = vmatprep.subr.mxu0 0.0
    %2487 = vmatpush1.msra.mxu0 0.0
    %2488 = vmatprep.subr.mxu0 0.0
    %2489 = vmatpush1.msra.mxu0 0.0
    %2490 = vmatprep.subr.mxu0 0.0
    %2491 = vmatpush1.msra.mxu0 0.0
    %2492 = vmatprep.subr.mxu0 0.0
    %2493 = vmatpush1.msra.mxu0 0.0
    %2494 = vmatprep.subr.mxu0 0.0
    %2495 = vmatpush1.msra.mxu0 0.0
    %2496 = vmatprep.subr.mxu0 0.0
    %2497 = vmatpush1.msra.mxu0 0.0
    %2498 = vmatprep.subr.mxu0 0.0
    %2499 = vmatpush1.msra.mxu0 0.0
    %2500 = vmatprep.subr.mxu0 0.0
    %2501 = vmatpush1.msra.mxu0 0.0
    %2502 = vmatprep.subr.mxu0 0.0
    %2503 = vmatpush1.msra.mxu0 0.0
    %2504 = vmatprep.subr.mxu0 0.0
    %2505 = vmatpush1.msra.mxu0 %v2472
    %2506 = vmatprep.subr.mxu0 0.0
    %2507 = vmatpush2.msra.mxu0 0.0
    %2508 = vmatprep.subr.mxu0 0.0
    %2509 = vmatpush2.msra.mxu0 0.0
    %2510 = vmatprep.subr.mxu0 0.0
    %2511 = vmatpush2.msra.mxu0 0.0
    %2512 = vmatprep.subr.mxu0 0.0
    %2513 = vmatpush2.msra.mxu0 0.0
    %2514 = vmatprep.subr.mxu0 0.0
    %2515 = vmatpush2.msra.mxu0 0.0
    %2516 = vmatprep.subr.mxu0 0.0
    %2517 = vmatpush2.msra.mxu0 0.0
    %2518 = vmatprep.subr.mxu0 0.0
    %2519 = vmatpush2.msra.mxu0 0.0
    %2520 = vmatprep.subr.mxu0 0.0
    %2521 = vmatpush2.msra.mxu0 0.0
    %2522 = vmatprep.subr.mxu0 0.0
    %2523 = vmatpush2.msra.mxu0 0.0
    %2524 = vmatprep.subr.mxu0 0.0
    %2525 = vmatpush2.msra.mxu0 0.0
    %2526 = vmatprep.subr.mxu0 0.0
    %2527 = vmatpush2.msra.mxu0 0.0
    %2528 = vmatprep.subr.mxu0 0.0
    %2529 = vmatpush2.msra.mxu0 0.0
    %2530 = vmatprep.subr.mxu0 0.0
    %2531 = vmatpush2.msra.mxu0 0.0
    %2532 = vmatprep.subr.mxu0 0.0
    %2533 = vmatpush2.msra.mxu0 0.0
    %2534 = vmatprep.subr.mxu0 0.0
    %2535 = vmatpush2.msra.mxu0 0.0
    %2536 = vmatprep.subr.mxu0 0.0
    %2537 = vmatpush2.msra.mxu0 0.0
    %2538 = vmatprep.mubr.f32.mxu0 0.0
    %2539 = vmatmul.mubr.f32.gmra.mxu0 %v2470
    %v2540 = vpop.f32.mrf.mxu0
    %v2541 = vadd.f32 0.0, %v2540
    %v2542 = vpop.f32.mrf.mxu0
    %2543 = vdwg.mxu0
    %2544 = vrot.lane.b32.xlu0 %v298, 88
    %v2545 = vpop.permute.xlu0 %2544
    %v2547 = vsel %vm1022, %v2384, 0
    %v2549 = vsel %vm1026, %v2545, 0
    %2551 = vmatprep.subr.mxu0 0.0
    %2552 = vmatpush1.msra.mxu0 0.0
    %2553 = vmatprep.subr.mxu0 0.0
    %2554 = vmatpush1.msra.mxu0 0.0
    %2555 = vmatprep.subr.mxu0 0.0
    %2556 = vmatpush1.msra.mxu0 0.0
    %2557 = vmatprep.subr.mxu0 0.0
    %2558 = vmatpush1.msra.mxu0 0.0
    %2559 = vmatprep.subr.mxu0 0.0
    %2560 = vmatpush1.msra.mxu0 0.0
    %2561 = vmatprep.subr.mxu0 0.0
    %2562 = vmatpush1.msra.mxu0 0.0
    %2563 = vmatprep.subr.mxu0 0.0
    %2564 = vmatpush1.msra.mxu0 0.0
    %2565 = vmatprep.subr.mxu0 0.0
    %2566 = vmatpush1.msra.mxu0 0.0
    %2567 = vmatprep.subr.mxu0 0.0
    %2568 = vmatpush1.msra.mxu0 0.0
    %2569 = vmatprep.subr.mxu0 0.0
    %2570 = vmatpush1.msra.mxu0 0.0
    %2571 = vmatprep.subr.mxu0 0.0
    %2572 = vmatpush1.msra.mxu0 0.0
    %2573 = vmatprep.subr.mxu0 0.0
    %2574 = vmatpush1.msra.mxu0 0.0
    %2575 = vmatprep.subr.mxu0 0.0
    %2576 = vmatpush1.msra.mxu0 0.0
    %2577 = vmatprep.subr.mxu0 0.0
    %2578 = vmatpush1.msra.mxu0 0.0
    %2579 = vmatprep.subr.mxu0 0.0
    %2580 = vmatpush1.msra.mxu0 0.0
    %2581 = vmatprep.subr.mxu0 0.0
    %2582 = vmatpush1.msra.mxu0 %v2549
    %2583 = vmatprep.subr.mxu0 0.0
    %2584 = vmatpush2.msra.mxu0 0.0
    %2585 = vmatprep.subr.mxu0 0.0
    %2586 = vmatpush2.msra.mxu0 0.0
    %2587 = vmatprep.subr.mxu0 0.0
    %2588 = vmatpush2.msra.mxu0 0.0
    %2589 = vmatprep.subr.mxu0 0.0
    %2590 = vmatpush2.msra.mxu0 0.0
    %2591 = vmatprep.subr.mxu0 0.0
    %2592 = vmatpush2.msra.mxu0 0.0
    %2593 = vmatprep.subr.mxu0 0.0
    %2594 = vmatpush2.msra.mxu0 0.0
    %2595 = vmatprep.subr.mxu0 0.0
    %2596 = vmatpush2.msra.mxu0 0.0
    %2597 = vmatprep.subr.mxu0 0.0
    %2598 = vmatpush2.msra.mxu0 0.0
    %2599 = vmatprep.subr.mxu0 0.0
    %2600 = vmatpush2.msra.mxu0 0.0
    %2601 = vmatprep.subr.mxu0 0.0
    %2602 = vmatpush2.msra.mxu0 0.0
    %2603 = vmatprep.subr.mxu0 0.0
    %2604 = vmatpush2.msra.mxu0 0.0
    %2605 = vmatprep.subr.mxu0 0.0
    %2606 = vmatpush2.msra.mxu0 0.0
    %2607 = vmatprep.subr.mxu0 0.0
    %2608 = vmatpush2.msra.mxu0 0.0
    %2609 = vmatprep.subr.mxu0 0.0
    %2610 = vmatpush2.msra.mxu0 0.0
    %2611 = vmatprep.subr.mxu0 0.0
    %2612 = vmatpush2.msra.mxu0 0.0
    %2613 = vmatprep.subr.mxu0 0.0
    %2614 = vmatpush2.msra.mxu0 0.0
    %2615 = vmatprep.mubr.f32.mxu0 0.0
    %2616 = vmatmul.mubr.f32.gmra.mxu0 %v2547
    %v2617 = vpop.f32.mrf.mxu0
    %v2618 = vadd.f32 0.0, %v2617
    %v2619 = vpop.f32.mrf.mxu0
    %2620 = vdwg.mxu0
    %2621 = vrot.lane.b32.xlu0 %v316, 88
    %v2622 = vpop.permute.xlu0 %2621
    %v2624 = vsel %vm1022, %v2385, 0
    %v2626 = vsel %vm1026, %v2622, 0
    %2628 = vmatprep.subr.mxu0 0.0
    %2629 = vmatpush1.msra.mxu0 0.0
    %2630 = vmatprep.subr.mxu0 0.0
    %2631 = vmatpush1.msra.mxu0 0.0
    %2632 = vmatprep.subr.mxu0 0.0
    %2633 = vmatpush1.msra.mxu0 0.0
    %2634 = vmatprep.subr.mxu0 0.0
    %2635 = vmatpush1.msra.mxu0 0.0
    %2636 = vmatprep.subr.mxu0 0.0
    %2637 = vmatpush1.msra.mxu0 0.0
    %2638 = vmatprep.subr.mxu0 0.0
    %2639 = vmatpush1.msra.mxu0 0.0
    %2640 = vmatprep.subr.mxu0 0.0
    %2641 = vmatpush1.msra.mxu0 0.0
    %2642 = vmatprep.subr.mxu0 0.0
    %2643 = vmatpush1.msra.mxu0 0.0
    %2644 = vmatprep.subr.mxu0 0.0
    %2645 = vmatpush1.msra.mxu0 0.0
    %2646 = vmatprep.subr.mxu0 0.0
    %2647 = vmatpush1.msra.mxu0 0.0
    %2648 = vmatprep.subr.mxu0 0.0
    %2649 = vmatpush1.msra.mxu0 0.0
    %2650 = vmatprep.subr.mxu0 0.0
    %2651 = vmatpush1.msra.mxu0 0.0
    %2652 = vmatprep.subr.mxu0 0.0
    %2653 = vmatpush1.msra.mxu0 0.0
    %2654 = vmatprep.subr.mxu0 0.0
    %2655 = vmatpush1.msra.mxu0 0.0
    %2656 = vmatprep.subr.mxu0 0.0
    %2657 = vmatpush1.msra.mxu0 0.0
    %2658 = vmatprep.subr.mxu0 0.0
    %2659 = vmatpush1.msra.mxu0 %v2626
    %2660 = vmatprep.subr.mxu0 0.0
    %2661 = vmatpush2.msra.mxu0 0.0
    %2662 = vmatprep.subr.mxu0 0.0
    %2663 = vmatpush2.msra.mxu0 0.0
    %2664 = vmatprep.subr.mxu0 0.0
    %2665 = vmatpush2.msra.mxu0 0.0
    %2666 = vmatprep.subr.mxu0 0.0
    %2667 = vmatpush2.msra.mxu0 0.0
    %2668 = vmatprep.subr.mxu0 0.0
    %2669 = vmatpush2.msra.mxu0 0.0
    %2670 = vmatprep.subr.mxu0 0.0
    %2671 = vmatpush2.msra.mxu0 0.0
    %2672 = vmatprep.subr.mxu0 0.0
    %2673 = vmatpush2.msra.mxu0 0.0
    %2674 = vmatprep.subr.mxu0 0.0
    %2675 = vmatpush2.msra.mxu0 0.0
    %2676 = vmatprep.subr.mxu0 0.0
    %2677 = vmatpush2.msra.mxu0 0.0
    %2678 = vmatprep.subr.mxu0 0.0
    %2679 = vmatpush2.msra.mxu0 0.0
    %2680 = vmatprep.subr.mxu0 0.0
    %2681 = vmatpush2.msra.mxu0 0.0
    %2682 = vmatprep.subr.mxu0 0.0
    %2683 = vmatpush2.msra.mxu0 0.0
    %2684 = vmatprep.subr.mxu0 0.0
    %2685 = vmatpush2.msra.mxu0 0.0
    %2686 = vmatprep.subr.mxu0 0.0
    %2687 = vmatpush2.msra.mxu0 0.0
    %2688 = vmatprep.subr.mxu0 0.0
    %2689 = vmatpush2.msra.mxu0 0.0
    %2690 = vmatprep.subr.mxu0 0.0
    %2691 = vmatpush2.msra.mxu0 0.0
    %2692 = vmatprep.mubr.f32.mxu0 0.0
    %2693 = vmatmul.mubr.f32.gmra.mxu0 %v2624
    %v2694 = vpop.f32.mrf.mxu0
    %v2695 = vadd.f32 0.0, %v2694
    %v2696 = vpop.f32.mrf.mxu0
    %2697 = vdwg.mxu0
    %2698 = vrot.lane.b32.xlu0 %v303, 88
    %v2699 = vpop.permute.xlu0 %2698
    %v2701 = vsel %vm1022, %v2386, 0
    %v2703 = vsel %vm1026, %v2699, 0
    %2705 = vmatprep.subr.mxu0 0.0
    %2706 = vmatpush1.msra.mxu0 0.0
    %2707 = vmatprep.subr.mxu0 0.0
    %2708 = vmatpush1.msra.mxu0 0.0
    %2709 = vmatprep.subr.mxu0 0.0
    %2710 = vmatpush1.msra.mxu0 0.0
    %2711 = vmatprep.subr.mxu0 0.0
    %2712 = vmatpush1.msra.mxu0 0.0
    %2713 = vmatprep.subr.mxu0 0.0
    %2714 = vmatpush1.msra.mxu0 0.0
    %2715 = vmatprep.subr.mxu0 0.0
    %2716 = vmatpush1.msra.mxu0 0.0
    %2717 = vmatprep.subr.mxu0 0.0
    %2718 = vmatpush1.msra.mxu0 0.0
    %2719 = vmatprep.subr.mxu0 0.0
    %2720 = vmatpush1.msra.mxu0 0.0
    %2721 = vmatprep.subr.mxu0 0.0
    %2722 = vmatpush1.msra.mxu0 0.0
    %2723 = vmatprep.subr.mxu0 0.0
    %2724 = vmatpush1.msra.mxu0 0.0
    %2725 = vmatprep.subr.mxu0 0.0
    %2726 = vmatpush1.msra.mxu0 0.0
    %2727 = vmatprep.subr.mxu0 0.0
    %2728 = vmatpush1.msra.mxu0 0.0
    %2729 = vmatprep.subr.mxu0 0.0
    %2730 = vmatpush1.msra.mxu0 0.0
    %2731 = vmatprep.subr.mxu0 0.0
    %2732 = vmatpush1.msra.mxu0 0.0
    %2733 = vmatprep.subr.mxu0 0.0
    %2734 = vmatpush1.msra.mxu0 0.0
    %2735 = vmatprep.subr.mxu0 0.0
    %2736 = vmatpush1.msra.mxu0 %v2703
    %2737 = vmatprep.subr.mxu0 0.0
    %2738 = vmatpush2.msra.mxu0 0.0
    %2739 = vmatprep.subr.mxu0 0.0
    %2740 = vmatpush2.msra.mxu0 0.0
    %2741 = vmatprep.subr.mxu0 0.0
    %2742 = vmatpush2.msra.mxu0 0.0
    %2743 = vmatprep.subr.mxu0 0.0
    %2744 = vmatpush2.msra.mxu0 0.0
    %2745 = vmatprep.subr.mxu0 0.0
    %2746 = vmatpush2.msra.mxu0 0.0
    %2747 = vmatprep.subr.mxu0 0.0
    %2748 = vmatpush2.msra.mxu0 0.0
    %2749 = vmatprep.subr.mxu0 0.0
    %2750 = vmatpush2.msra.mxu0 0.0
    %2751 = vmatprep.subr.mxu0 0.0
    %2752 = vmatpush2.msra.mxu0 0.0
    %2753 = vmatprep.subr.mxu0 0.0
    %2754 = vmatpush2.msra.mxu0 0.0
    %2755 = vmatprep.subr.mxu0 0.0
    %2756 = vmatpush2.msra.mxu0 0.0
    %2757 = vmatprep.subr.mxu0 0.0
    %2758 = vmatpush2.msra.mxu0 0.0
    %2759 = vmatprep.subr.mxu0 0.0
    %2760 = vmatpush2.msra.mxu0 0.0
    %2761 = vmatprep.subr.mxu0 0.0
    %2762 = vmatpush2.msra.mxu0 0.0
    %2763 = vmatprep.subr.mxu0 0.0
    %2764 = vmatpush2.msra.mxu0 0.0
    %2765 = vmatprep.subr.mxu0 0.0
    %2766 = vmatpush2.msra.mxu0 0.0
    %2767 = vmatprep.subr.mxu0 0.0
    %2768 = vmatpush2.msra.mxu0 0.0
    %2769 = vmatprep.mubr.f32.mxu0 0.0
    %2770 = vmatmul.mubr.f32.gmra.mxu0 %v2701
    %v2771 = vpop.f32.mrf.mxu0
    %v2772 = vadd.f32 0.0, %v2771
    %v2773 = vpop.f32.mrf.mxu0
    %2774 = vdwg.mxu0
    %2775 = vrot.lane.b32.xlu0 %v317, 88
    %v2776 = vpop.permute.xlu0 %2775
    %v2778 = vsel %vm1022, %v2387, 0
    %v2780 = vsel %vm1026, %v2776, 0
    %2782 = vmatprep.subr.mxu0 0.0
    %2783 = vmatpush1.msra.mxu0 0.0
    %2784 = vmatprep.subr.mxu0 0.0
    %2785 = vmatpush1.msra.mxu0 0.0
    %2786 = vmatprep.subr.mxu0 0.0
    %2787 = vmatpush1.msra.mxu0 0.0
    %2788 = vmatprep.subr.mxu0 0.0
    %2789 = vmatpush1.msra.mxu0 0.0
    %2790 = vmatprep.subr.mxu0 0.0
    %2791 = vmatpush1.msra.mxu0 0.0
    %2792 = vmatprep.subr.mxu0 0.0
    %2793 = vmatpush1.msra.mxu0 0.0
    %2794 = vmatprep.subr.mxu0 0.0
    %2795 = vmatpush1.msra.mxu0 0.0
    %2796 = vmatprep.subr.mxu0 0.0
    %2797 = vmatpush1.msra.mxu0 0.0
    %2798 = vmatprep.subr.mxu0 0.0
    %2799 = vmatpush1.msra.mxu0 0.0
    %2800 = vmatprep.subr.mxu0 0.0
    %2801 = vmatpush1.msra.mxu0 0.0
    %2802 = vmatprep.subr.mxu0 0.0
    %2803 = vmatpush1.msra.mxu0 0.0
    %2804 = vmatprep.subr.mxu0 0.0
    %2805 = vmatpush1.msra.mxu0 0.0
    %2806 = vmatprep.subr.mxu0 0.0
    %2807 = vmatpush1.msra.mxu0 0.0
    %2808 = vmatprep.subr.mxu0 0.0
    %2809 = vmatpush1.msra.mxu0 0.0
    %2810 = vmatprep.subr.mxu0 0.0
    %2811 = vmatpush1.msra.mxu0 0.0
    %2812 = vmatprep.subr.mxu0 0.0
    %2813 = vmatpush1.msra.mxu0 %v2780
    %2814 = vmatprep.subr.mxu0 0.0
    %2815 = vmatpush2.msra.mxu0 0.0
    %2816 = vmatprep.subr.mxu0 0.0
    %2817 = vmatpush2.msra.mxu0 0.0
    %2818 = vmatprep.subr.mxu0 0.0
    %2819 = vmatpush2.msra.mxu0 0.0
    %2820 = vmatprep.subr.mxu0 0.0
    %2821 = vmatpush2.msra.mxu0 0.0
    %2822 = vmatprep.subr.mxu0 0.0
    %2823 = vmatpush2.msra.mxu0 0.0
    %2824 = vmatprep.subr.mxu0 0.0
    %2825 = vmatpush2.msra.mxu0 0.0
    %2826 = vmatprep.subr.mxu0 0.0
    %2827 = vmatpush2.msra.mxu0 0.0
    %2828 = vmatprep.subr.mxu0 0.0
    %2829 = vmatpush2.msra.mxu0 0.0
    %2830 = vmatprep.subr.mxu0 0.0
    %2831 = vmatpush2.msra.mxu0 0.0
    %2832 = vmatprep.subr.mxu0 0.0
    %2833 = vmatpush2.msra.mxu0 0.0
    %2834 = vmatprep.subr.mxu0 0.0
    %2835 = vmatpush2.msra.mxu0 0.0
    %2836 = vmatprep.subr.mxu0 0.0
    %2837 = vmatpush2.msra.mxu0 0.0
    %2838 = vmatprep.subr.mxu0 0.0
    %2839 = vmatpush2.msra.mxu0 0.0
    %2840 = vmatprep.subr.mxu0 0.0
    %2841 = vmatpush2.msra.mxu0 0.0
    %2842 = vmatprep.subr.mxu0 0.0
    %2843 = vmatpush2.msra.mxu0 0.0
    %2844 = vmatprep.subr.mxu0 0.0
    %2845 = vmatpush2.msra.mxu0 0.0
    %2846 = vmatprep.mubr.f32.mxu0 0.0
    %2847 = vmatmul.mubr.f32.gmra.mxu0 %v2778
    %v2848 = vpop.f32.mrf.mxu0
    %v2849 = vadd.f32 0.0, %v2848
    %v2850 = vpop.f32.mrf.mxu0
    %2851 = vdwg.mxu0
    %2852 = vrot.lane.b32.xlu0 %v308, 88
    %v2853 = vpop.permute.xlu0 %2852
    %v2855 = vsel %vm1022, %v2388, 0
    %v2857 = vsel %vm1026, %v2853, 0
    %2859 = vmatprep.subr.mxu0 0.0
    %2860 = vmatpush1.msra.mxu0 0.0
    %2861 = vmatprep.subr.mxu0 0.0
    %2862 = vmatpush1.msra.mxu0 0.0
    %2863 = vmatprep.subr.mxu0 0.0
    %2864 = vmatpush1.msra.mxu0 0.0
    %2865 = vmatprep.subr.mxu0 0.0
    %2866 = vmatpush1.msra.mxu0 0.0
    %2867 = vmatprep.subr.mxu0 0.0
    %2868 = vmatpush1.msra.mxu0 0.0
    %2869 = vmatprep.subr.mxu0 0.0
    %2870 = vmatpush1.msra.mxu0 0.0
    %2871 = vmatprep.subr.mxu0 0.0
    %2872 = vmatpush1.msra.mxu0 0.0
    %2873 = vmatprep.subr.mxu0 0.0
    %2874 = vmatpush1.msra.mxu0 0.0
    %2875 = vmatprep.subr.mxu0 0.0
    %2876 = vmatpush1.msra.mxu0 0.0
    %2877 = vmatprep.subr.mxu0 0.0
    %2878 = vmatpush1.msra.mxu0 0.0
    %2879 = vmatprep.subr.mxu0 0.0
    %2880 = vmatpush1.msra.mxu0 0.0
    %2881 = vmatprep.subr.mxu0 0.0
    %2882 = vmatpush1.msra.mxu0 0.0
    %2883 = vmatprep.subr.mxu0 0.0
    %2884 = vmatpush1.msra.mxu0 0.0
    %2885 = vmatprep.subr.mxu0 0.0
    %2886 = vmatpush1.msra.mxu0 0.0
    %2887 = vmatprep.subr.mxu0 0.0
    %2888 = vmatpush1.msra.mxu0 0.0
    %2889 = vmatprep.subr.mxu0 0.0
    %2890 = vmatpush1.msra.mxu0 %v2857
    %2891 = vmatprep.subr.mxu0 0.0
    %2892 = vmatpush2.msra.mxu0 0.0
    %2893 = vmatprep.subr.mxu0 0.0
    %2894 = vmatpush2.msra.mxu0 0.0
    %2895 = vmatprep.subr.mxu0 0.0
    %2896 = vmatpush2.msra.mxu0 0.0
    %2897 = vmatprep.subr.mxu0 0.0
    %2898 = vmatpush2.msra.mxu0 0.0
    %2899 = vmatprep.subr.mxu0 0.0
    %2900 = vmatpush2.msra.mxu0 0.0
    %2901 = vmatprep.subr.mxu0 0.0
    %2902 = vmatpush2.msra.mxu0 0.0
    %2903 = vmatprep.subr.mxu0 0.0
    %2904 = vmatpush2.msra.mxu0 0.0
    %2905 = vmatprep.subr.mxu0 0.0
    %2906 = vmatpush2.msra.mxu0 0.0
    %2907 = vmatprep.subr.mxu0 0.0
    %2908 = vmatpush2.msra.mxu0 0.0
    %2909 = vmatprep.subr.mxu0 0.0
    %2910 = vmatpush2.msra.mxu0 0.0
    %2911 = vmatprep.subr.mxu0 0.0
    %2912 = vmatpush2.msra.mxu0 0.0
    %2913 = vmatprep.subr.mxu0 0.0
    %2914 = vmatpush2.msra.mxu0 0.0
    %2915 = vmatprep.subr.mxu0 0.0
    %2916 = vmatpush2.msra.mxu0 0.0
    %2917 = vmatprep.subr.mxu0 0.0
    %2918 = vmatpush2.msra.mxu0 0.0
    %2919 = vmatprep.subr.mxu0 0.0
    %2920 = vmatpush2.msra.mxu0 0.0
    %2921 = vmatprep.subr.mxu0 0.0
    %2922 = vmatpush2.msra.mxu0 0.0
    %2923 = vmatprep.mubr.f32.mxu0 0.0
    %2924 = vmatmul.mubr.f32.gmra.mxu0 %v2855
    %v2925 = vpop.f32.mrf.mxu0
    %v2926 = vadd.f32 0.0, %v2925
    %v2927 = vpop.f32.mrf.mxu0
    %2928 = vdwg.mxu0
    %2929 = vrot.lane.b32.xlu0 %v318, 88
    %v2930 = vpop.permute.xlu0 %2929
    %v2932 = vsel %vm1022, %v2389, 0
    %v2934 = vsel %vm1026, %v2930, 0
    %2936 = vmatprep.subr.mxu0 0.0
    %2937 = vmatpush1.msra.mxu0 0.0
    %2938 = vmatprep.subr.mxu0 0.0
    %2939 = vmatpush1.msra.mxu0 0.0
    %2940 = vmatprep.subr.mxu0 0.0
    %2941 = vmatpush1.msra.mxu0 0.0
    %2942 = vmatprep.subr.mxu0 0.0
    %2943 = vmatpush1.msra.mxu0 0.0
    %2944 = vmatprep.subr.mxu0 0.0
    %2945 = vmatpush1.msra.mxu0 0.0
    %2946 = vmatprep.subr.mxu0 0.0
    %2947 = vmatpush1.msra.mxu0 0.0
    %2948 = vmatprep.subr.mxu0 0.0
    %2949 = vmatpush1.msra.mxu0 0.0
    %2950 = vmatprep.subr.mxu0 0.0
    %2951 = vmatpush1.msra.mxu0 0.0
    %2952 = vmatprep.subr.mxu0 0.0
    %2953 = vmatpush1.msra.mxu0 0.0
    %2954 = vmatprep.subr.mxu0 0.0
    %2955 = vmatpush1.msra.mxu0 0.0
    %2956 = vmatprep.subr.mxu0 0.0
    %2957 = vmatpush1.msra.mxu0 0.0
    %2958 = vmatprep.subr.mxu0 0.0
    %2959 = vmatpush1.msra.mxu0 0.0
    %2960 = vmatprep.subr.mxu0 0.0
    %2961 = vmatpush1.msra.mxu0 0.0
    %2962 = vmatprep.subr.mxu0 0.0
    %2963 = vmatpush1.msra.mxu0 0.0
    %2964 = vmatprep.subr.mxu0 0.0
    %2965 = vmatpush1.msra.mxu0 0.0
    %2966 = vmatprep.subr.mxu0 0.0
    %2967 = vmatpush1.msra.mxu0 %v2934
    %2968 = vmatprep.subr.mxu0 0.0
    %2969 = vmatpush2.msra.mxu0 0.0
    %2970 = vmatprep.subr.mxu0 0.0
    %2971 = vmatpush2.msra.mxu0 0.0
    %2972 = vmatprep.subr.mxu0 0.0
    %2973 = vmatpush2.msra.mxu0 0.0
    %2974 = vmatprep.subr.mxu0 0.0
    %2975 = vmatpush2.msra.mxu0 0.0
    %2976 = vmatprep.subr.mxu0 0.0
    %2977 = vmatpush2.msra.mxu0 0.0
    %2978 = vmatprep.subr.mxu0 0.0
    %2979 = vmatpush2.msra.mxu0 0.0
    %2980 = vmatprep.subr.mxu0 0.0
    %2981 = vmatpush2.msra.mxu0 0.0
    %2982 = vmatprep.subr.mxu0 0.0
    %2983 = vmatpush2.msra.mxu0 0.0
    %2984 = vmatprep.subr.mxu0 0.0
    %2985 = vmatpush2.msra.mxu0 0.0
    %2986 = vmatprep.subr.mxu0 0.0
    %2987 = vmatpush2.msra.mxu0 0.0
    %2988 = vmatprep.subr.mxu0 0.0
    %2989 = vmatpush2.msra.mxu0 0.0
    %2990 = vmatprep.subr.mxu0 0.0
    %2991 = vmatpush2.msra.mxu0 0.0
    %2992 = vmatprep.subr.mxu0 0.0
    %2993 = vmatpush2.msra.mxu0 0.0
    %2994 = vmatprep.subr.mxu0 0.0
    %2995 = vmatpush2.msra.mxu0 0.0
    %2996 = vmatprep.subr.mxu0 0.0
    %2997 = vmatpush2.msra.mxu0 0.0
    %2998 = vmatprep.subr.mxu0 0.0
    %2999 = vmatpush2.msra.mxu0 0.0
    %3000 = vmatprep.mubr.f32.mxu0 0.0
    %3001 = vmatmul.mubr.f32.gmra.mxu0 %v2932
    %v3002 = vpop.f32.mrf.mxu0
    %v3003 = vadd.f32 0.0, %v3002
    %v3004 = vpop.f32.mrf.mxu0
    %3005 = vdwg.mxu0
    %3014 = vrot.lane.b32.xlu0 %v2464, 48
    %v3015 = vpop.permute.xlu0 %3014
    %3016 = vrot.lane.b32.xlu0 %v2541, 48
    %v3017 = vpop.permute.xlu0 %3016
    %3018 = vrot.lane.b32.xlu0 %v2618, 48
    %v3019 = vpop.permute.xlu0 %3018
    %3020 = vrot.lane.b32.xlu0 %v2695, 48
    %v3021 = vpop.permute.xlu0 %3020
    %3022 = vrot.lane.b32.xlu0 %v2772, 48
    %v3023 = vpop.permute.xlu0 %3022
    %3024 = vrot.lane.b32.xlu0 %v2849, 48
    %v3025 = vpop.permute.xlu0 %3024
    %3026 = vrot.lane.b32.xlu0 %v2926, 48
    %v3027 = vpop.permute.xlu0 %3026
    %3028 = vrot.lane.b32.xlu0 %v3003, 48
    %v3029 = vpop.permute.xlu0 %3028
    %v3038 = vadd.f32 %v1670, %v3015
    %v3039 = vadd.f32 %v1671, %v3017
    %v3040 = vadd.f32 %v1672, %v3019
    %v3041 = vadd.f32 %v1673, %v3021
    %v3042 = vadd.f32 %v1674, %v3023
    %v3043 = vadd.f32 %v1675, %v3025
    %v3044 = vadd.f32 %v1676, %v3027
    %v3045 = vadd.f32 %v1677, %v3029
    %v3046 = vmax.f32 %v3038, 0.0
    %v3047 = vmax.f32 %v3039, 0.0
    %v3048 = vmax.f32 %v3040, 0.0
    %v3049 = vmax.f32 %v3041, 0.0
    %v3050 = vmax.f32 %v3042, 0.0
    %v3051 = vmax.f32 %v3043, 0.0
    %v3052 = vmax.f32 %v3044, 0.0
    %v3053 = vmax.f32 %v3045, 0.0
    %s3054 = scalar_lea.vmem %s3, 8
    %v3055 = vld [vmem:[%s3054] sm:$0xff]
    %v3064 = vcombine.low %v3046, %v3047
    %v3065 = vcombine.low %v3048, %v3049
    %v3066 = vcombine.low %v3050, %v3051
    %v3067 = vcombine.low %v3052, %v3053
    %3068 = vrot.lane.b32.xlu0 %v3064, 80
    %v3069 = vpop.permute.xlu0 %3068
    %3070 = vrot.lane.b32.xlu0 %v3065, 80
    %v3071 = vpop.permute.xlu0 %3070
    %3072 = vrot.lane.b32.xlu0 %v3066, 80
    %v3073 = vpop.permute.xlu0 %3072
    %3074 = vrot.lane.b32.xlu0 %v3067, 80
    %v3075 = vpop.permute.xlu0 %3074
    %v3076 = vsel %vm217, %v3069, 0
    %v3078 = vsel %vm217, %v3071, 0
    %v3080 = vsel %vm217, %v3073, 0
    %v3082 = vsel %vm217, %v3075, 0
    %3084 = vmatprep.subr.mxu0 0.0
    %3085 = vmatpush1.msra.mxu0 0.0
    %3086 = vmatprep.subr.mxu0 0.0
    %3087 = vmatpush1.msra.mxu0 0.0
    %3088 = vmatprep.subr.mxu0 0.0
    %3089 = vmatpush1.msra.mxu0 0.0
    %3090 = vmatprep.subr.mxu0 0.0
    %3091 = vmatpush1.msra.mxu0 0.0
    %3092 = vmatprep.subr.mxu0 0.0
    %3093 = vmatpush1.msra.mxu0 0.0
    %3094 = vmatprep.subr.mxu0 0.0
    %3095 = vmatpush1.msra.mxu0 0.0
    %3096 = vmatprep.subr.mxu0 0.0
    %3097 = vmatpush1.msra.mxu0 0.0
    %3098 = vmatprep.subr.mxu0 0.0
    %3099 = vmatpush1.msra.mxu0 0.0
    %3100 = vmatprep.subr.mxu0 0.0
    %3101 = vmatpush1.msra.mxu0 0.0
    %3102 = vmatprep.subr.mxu0 0.0
    %3103 = vmatpush1.msra.mxu0 0.0
    %3104 = vmatprep.subr.mxu0 0.0
    %3105 = vmatpush1.msra.mxu0 0.0
    %3106 = vmatprep.subr.mxu0 0.0
    %3107 = vmatpush1.msra.mxu0 0.0
    %3108 = vmatprep.subr.mxu0 0.0
    %3109 = vmatpush1.msra.mxu0 0.0
    %3110 = vmatprep.subr.mxu0 0.0
    %3111 = vmatpush1.msra.mxu0 0.0
    %3112 = vmatprep.subr.mxu0 0.0
    %3113 = vmatpush1.msra.mxu0 0.0
    %3114 = vmatprep.subr.mxu0 0.0
    %3115 = vmatpush1.msra.mxu0 %v3055
    %3116 = vmatprep.subr.mxu0 0.0
    %3117 = vmatpush2.msra.mxu0 0.0
    %3118 = vmatprep.subr.mxu0 0.0
    %3119 = vmatpush2.msra.mxu0 0.0
    %3120 = vmatprep.subr.mxu0 0.0
    %3121 = vmatpush2.msra.mxu0 0.0
    %3122 = vmatprep.subr.mxu0 0.0
    %3123 = vmatpush2.msra.mxu0 0.0
    %3124 = vmatprep.subr.mxu0 0.0
    %3125 = vmatpush2.msra.mxu0 0.0
    %3126 = vmatprep.subr.mxu0 0.0
    %3127 = vmatpush2.msra.mxu0 0.0
    %3128 = vmatprep.subr.mxu0 0.0
    %3129 = vmatpush2.msra.mxu0 0.0
    %3130 = vmatprep.subr.mxu0 0.0
    %3131 = vmatpush2.msra.mxu0 0.0
    %3132 = vmatprep.subr.mxu0 0.0
    %3133 = vmatpush2.msra.mxu0 0.0
    %3134 = vmatprep.subr.mxu0 0.0
    %3135 = vmatpush2.msra.mxu0 0.0
    %3136 = vmatprep.subr.mxu0 0.0
    %3137 = vmatpush2.msra.mxu0 0.0
    %3138 = vmatprep.subr.mxu0 0.0
    %3139 = vmatpush2.msra.mxu0 0.0
    %3140 = vmatprep.subr.mxu0 0.0
    %3141 = vmatpush2.msra.mxu0 0.0
    %3142 = vmatprep.subr.mxu0 0.0
    %3143 = vmatpush2.msra.mxu0 0.0
    %3144 = vmatprep.subr.mxu0 0.0
    %3145 = vmatpush2.msra.mxu0 0.0
    %3146 = vmatprep.subr.mxu0 0.0
    %3147 = vmatpush2.msra.mxu0 0.0
    %3148 = vmatprep.mubr.f32.mxu0 0.0
    %3149 = vmatmul.mubr.f32.gmra.mxu0 %v3076
    %v3150 = vpop.f32.mrf.mxu0
    %v3151 = vadd.f32 0.0, %v3150
    %v3152 = vpop.f32.mrf.mxu0
    %3153 = vmatprep.mubr.f32.mxu0 0.0
    %3154 = vmatmul.mubr.f32.gmra.mxu0 %v3078
    %v3155 = vpop.f32.mrf.mxu0
    %v3156 = vadd.f32 0.0, %v3155
    %v3157 = vpop.f32.mrf.mxu0
    %3158 = vmatprep.mubr.f32.mxu0 0.0
    %3159 = vmatmul.mubr.f32.gmra.mxu0 %v3080
    %v3160 = vpop.f32.mrf.mxu0
    %v3161 = vadd.f32 0.0, %v3160
    %v3162 = vpop.f32.mrf.mxu0
    %3163 = vmatprep.mubr.f32.mxu0 0.0
    %3164 = vmatmul.mubr.f32.gmra.mxu0 %v3082
    %v3165 = vpop.f32.mrf.mxu0
    %v3166 = vadd.f32 0.0, %v3165
    %v3167 = vpop.f32.mrf.mxu0
    %3168 = vdwg.mxu0
    %v3173 = vcombine.high %v3151, %v3151
    %v3174 = vcombine.high %v3156, %v3156
    %v3175 = vcombine.high %v3161, %v3161
    %v3176 = vcombine.high %v3166, %v3166
    %3181 = vrot.lane.b32.xlu0 %v3151, 112
    %v3182 = vpop.permute.xlu0 %3181
    %v3183 = vsel %vm217, %v3151, 0
    %v3185 = vsel %vm217, %v3182, 0
    %3187 = vmatprep.subr.mxu0 0.0
    %3188 = vmatpush1.xpose.msra.mxu0 0.0
    %3189 = vmatprep.subr.mxu0 0.0
    %3190 = vmatpush1.xpose.msra.mxu0 0.0
    %3191 = vmatprep.subr.mxu0 0.0
    %3192 = vmatpush1.xpose.msra.mxu0 0.0
    %3193 = vmatprep.subr.mxu0 0.0
    %3194 = vmatpush1.xpose.msra.mxu0 0.0
    %3195 = vmatprep.subr.mxu0 0.0
    %3196 = vmatpush1.xpose.msra.mxu0 0.0
    %3197 = vmatprep.subr.mxu0 0.0
    %3198 = vmatpush1.xpose.msra.mxu0 0.0
    %3199 = vmatprep.subr.mxu0 0.0
    %3200 = vmatpush1.xpose.msra.mxu0 0.0
    %3201 = vmatprep.subr.mxu0 0.0
    %3202 = vmatpush1.xpose.msra.mxu0 0.0
    %3203 = vmatprep.subr.mxu0 0.0
    %3204 = vmatpush1.xpose.msra.mxu0 0.0
    %3205 = vmatprep.subr.mxu0 0.0
    %3206 = vmatpush1.xpose.msra.mxu0 0.0
    %3207 = vmatprep.subr.mxu0 0.0
    %3208 = vmatpush1.xpose.msra.mxu0 0.0
    %3209 = vmatprep.subr.mxu0 0.0
    %3210 = vmatpush1.xpose.msra.mxu0 0.0
    %3211 = vmatprep.subr.mxu0 0.0
    %3212 = vmatpush1.xpose.msra.mxu0 0.0
    %3213 = vmatprep.subr.mxu0 0.0
    %3214 = vmatpush1.xpose.msra.mxu0 0.0
    %3215 = vmatprep.subr.mxu0 0.0
    %3216 = vmatpush1.xpose.msra.mxu0 0.0
    %3217 = vmatprep.subr.mxu0 0.0
    %3218 = vmatpush1.xpose.msra.mxu0 %v3185
    %3219 = vmatprep.subr.mxu0 0.0
    %3220 = vmatpush2.xpose.msra.mxu0 0.0
    %3221 = vmatprep.subr.mxu0 0.0
    %3222 = vmatpush2.xpose.msra.mxu0 0.0
    %3223 = vmatprep.subr.mxu0 0.0
    %3224 = vmatpush2.xpose.msra.mxu0 0.0
    %3225 = vmatprep.subr.mxu0 0.0
    %3226 = vmatpush2.xpose.msra.mxu0 0.0
    %3227 = vmatprep.subr.mxu0 0.0
    %3228 = vmatpush2.xpose.msra.mxu0 0.0
    %3229 = vmatprep.subr.mxu0 0.0
    %3230 = vmatpush2.xpose.msra.mxu0 0.0
    %3231 = vmatprep.subr.mxu0 0.0
    %3232 = vmatpush2.xpose.msra.mxu0 0.0
    %3233 = vmatprep.subr.mxu0 0.0
    %3234 = vmatpush2.xpose.msra.mxu0 0.0
    %3235 = vmatprep.subr.mxu0 0.0
    %3236 = vmatpush2.xpose.msra.mxu0 0.0
    %3237 = vmatprep.subr.mxu0 0.0
    %3238 = vmatpush2.xpose.msra.mxu0 0.0
    %3239 = vmatprep.subr.mxu0 0.0
    %3240 = vmatpush2.xpose.msra.mxu0 0.0
    %3241 = vmatprep.subr.mxu0 0.0
    %3242 = vmatpush2.xpose.msra.mxu0 0.0
    %3243 = vmatprep.subr.mxu0 0.0
    %3244 = vmatpush2.xpose.msra.mxu0 0.0
    %3245 = vmatprep.subr.mxu0 0.0
    %3246 = vmatpush2.xpose.msra.mxu0 0.0
    %3247 = vmatprep.subr.mxu0 0.0
    %3248 = vmatpush2.xpose.msra.mxu0 0.0
    %3249 = vmatprep.subr.mxu0 0.0
    %3250 = vmatpush2.xpose.msra.mxu0 0.0
    %3251 = vmatprep.mubr.f32.mxu0 0.0
    %3252 = vmatmul.mubr.f32.gmra.mxu0 %v3183
    %v3253 = vpop.f32.mrf.mxu0
    %v3254 = vadd.f32 0.0, %v3253
    %v3255 = vpop.f32.mrf.mxu0
    %3256 = vdwg.mxu0
    %3257 = vrot.lane.b32.xlu0 %v3173, 112
    %v3258 = vpop.permute.xlu0 %3257
    %v3259 = vsel %vm217, %v3173, 0
    %v3261 = vsel %vm217, %v3258, 0
    %3263 = vmatprep.subr.mxu0 0.0
    %3264 = vmatpush1.xpose.msra.mxu0 0.0
    %3265 = vmatprep.subr.mxu0 0.0
    %3266 = vmatpush1.xpose.msra.mxu0 0.0
    %3267 = vmatprep.subr.mxu0 0.0
    %3268 = vmatpush1.xpose.msra.mxu0 0.0
    %3269 = vmatprep.subr.mxu0 0.0
    %3270 = vmatpush1.xpose.msra.mxu0 0.0
    %3271 = vmatprep.subr.mxu0 0.0
    %3272 = vmatpush1.xpose.msra.mxu0 0.0
    %3273 = vmatprep.subr.mxu0 0.0
    %3274 = vmatpush1.xpose.msra.mxu0 0.0
    %3275 = vmatprep.subr.mxu0 0.0
    %3276 = vmatpush1.xpose.msra.mxu0 0.0
    %3277 = vmatprep.subr.mxu0 0.0
    %3278 = vmatpush1.xpose.msra.mxu0 0.0
    %3279 = vmatprep.subr.mxu0 0.0
    %3280 = vmatpush1.xpose.msra.mxu0 0.0
    %3281 = vmatprep.subr.mxu0 0.0
    %3282 = vmatpush1.xpose.msra.mxu0 0.0
    %3283 = vmatprep.subr.mxu0 0.0
    %3284 = vmatpush1.xpose.msra.mxu0 0.0
    %3285 = vmatprep.subr.mxu0 0.0
    %3286 = vmatpush1.xpose.msra.mxu0 0.0
    %3287 = vmatprep.subr.mxu0 0.0
    %3288 = vmatpush1.xpose.msra.mxu0 0.0
    %3289 = vmatprep.subr.mxu0 0.0
    %3290 = vmatpush1.xpose.msra.mxu0 0.0
    %3291 = vmatprep.subr.mxu0 0.0
    %3292 = vmatpush1.xpose.msra.mxu0 0.0
    %3293 = vmatprep.subr.mxu0 0.0
    %3294 = vmatpush1.xpose.msra.mxu0 %v3261
    %3295 = vmatprep.subr.mxu0 0.0
    %3296 = vmatpush2.xpose.msra.mxu0 0.0
    %3297 = vmatprep.subr.mxu0 0.0
    %3298 = vmatpush2.xpose.msra.mxu0 0.0
    %3299 = vmatprep.subr.mxu0 0.0
    %3300 = vmatpush2.xpose.msra.mxu0 0.0
    %3301 = vmatprep.subr.mxu0 0.0
    %3302 = vmatpush2.xpose.msra.mxu0 0.0
    %3303 = vmatprep.subr.mxu0 0.0
    %3304 = vmatpush2.xpose.msra.mxu0 0.0
    %3305 = vmatprep.subr.mxu0 0.0
    %3306 = vmatpush2.xpose.msra.mxu0 0.0
    %3307 = vmatprep.subr.mxu0 0.0
    %3308 = vmatpush2.xpose.msra.mxu0 0.0
    %3309 = vmatprep.subr.mxu0 0.0
    %3310 = vmatpush2.xpose.msra.mxu0 0.0
    %3311 = vmatprep.subr.mxu0 0.0
    %3312 = vmatpush2.xpose.msra.mxu0 0.0
    %3313 = vmatprep.subr.mxu0 0.0
    %3314 = vmatpush2.xpose.msra.mxu0 0.0
    %3315 = vmatprep.subr.mxu0 0.0
    %3316 = vmatpush2.xpose.msra.mxu0 0.0
    %3317 = vmatprep.subr.mxu0 0.0
    %3318 = vmatpush2.xpose.msra.mxu0 0.0
    %3319 = vmatprep.subr.mxu0 0.0
    %3320 = vmatpush2.xpose.msra.mxu0 0.0
    %3321 = vmatprep.subr.mxu0 0.0
    %3322 = vmatpush2.xpose.msra.mxu0 0.0
    %3323 = vmatprep.subr.mxu0 0.0
    %3324 = vmatpush2.xpose.msra.mxu0 0.0
    %3325 = vmatprep.subr.mxu0 0.0
    %3326 = vmatpush2.xpose.msra.mxu0 0.0
    %3327 = vmatprep.mubr.f32.mxu0 0.0
    %3328 = vmatmul.mubr.f32.gmra.mxu0 %v3259
    %v3329 = vpop.f32.mrf.mxu0
    %v3330 = vadd.f32 0.0, %v3329
    %v3331 = vpop.f32.mrf.mxu0
    %3332 = vdwg.mxu0
    %3333 = vrot.lane.b32.xlu0 %v3156, 112
    %v3334 = vpop.permute.xlu0 %3333
    %v3335 = vsel %vm217, %v3156, 0
    %v3337 = vsel %vm217, %v3334, 0
    %3339 = vmatprep.subr.mxu0 0.0
    %3340 = vmatpush1.xpose.msra.mxu0 0.0
    %3341 = vmatprep.subr.mxu0 0.0
    %3342 = vmatpush1.xpose.msra.mxu0 0.0
    %3343 = vmatprep.subr.mxu0 0.0
    %3344 = vmatpush1.xpose.msra.mxu0 0.0
    %3345 = vmatprep.subr.mxu0 0.0
    %3346 = vmatpush1.xpose.msra.mxu0 0.0
    %3347 = vmatprep.subr.mxu0 0.0
    %3348 = vmatpush1.xpose.msra.mxu0 0.0
    %3349 = vmatprep.subr.mxu0 0.0
    %3350 = vmatpush1.xpose.msra.mxu0 0.0
    %3351 = vmatprep.subr.mxu0 0.0
    %3352 = vmatpush1.xpose.msra.mxu0 0.0
    %3353 = vmatprep.subr.mxu0 0.0
    %3354 = vmatpush1.xpose.msra.mxu0 0.0
    %3355 = vmatprep.subr.mxu0 0.0
    %3356 = vmatpush1.xpose.msra.mxu0 0.0
    %3357 = vmatprep.subr.mxu0 0.0
    %3358 = vmatpush1.xpose.msra.mxu0 0.0
    %3359 = vmatprep.subr.mxu0 0.0
    %3360 = vmatpush1.xpose.msra.mxu0 0.0
    %3361 = vmatprep.subr.mxu0 0.0
    %3362 = vmatpush1.xpose.msra.mxu0 0.0
    %3363 = vmatprep.subr.mxu0 0.0
    %3364 = vmatpush1.xpose.msra.mxu0 0.0
    %3365 = vmatprep.subr.mxu0 0.0
    %3366 = vmatpush1.xpose.msra.mxu0 0.0
    %3367 = vmatprep.subr.mxu0 0.0
    %3368 = vmatpush1.xpose.msra.mxu0 0.0
    %3369 = vmatprep.subr.mxu0 0.0
    %3370 = vmatpush1.xpose.msra.mxu0 %v3337
    %3371 = vmatprep.subr.mxu0 0.0
    %3372 = vmatpush2.xpose.msra.mxu0 0.0
    %3373 = vmatprep.subr.mxu0 0.0
    %3374 = vmatpush2.xpose.msra.mxu0 0.0
    %3375 = vmatprep.subr.mxu0 0.0
    %3376 = vmatpush2.xpose.msra.mxu0 0.0
    %3377 = vmatprep.subr.mxu0 0.0
    %3378 = vmatpush2.xpose.msra.mxu0 0.0
    %3379 = vmatprep.subr.mxu0 0.0
    %3380 = vmatpush2.xpose.msra.mxu0 0.0
    %3381 = vmatprep.subr.mxu0 0.0
    %3382 = vmatpush2.xpose.msra.mxu0 0.0
    %3383 = vmatprep.subr.mxu0 0.0
    %3384 = vmatpush2.xpose.msra.mxu0 0.0
    %3385 = vmatprep.subr.mxu0 0.0
    %3386 = vmatpush2.xpose.msra.mxu0 0.0
    %3387 = vmatprep.subr.mxu0 0.0
    %3388 = vmatpush2.xpose.msra.mxu0 0.0
    %3389 = vmatprep.subr.mxu0 0.0
    %3390 = vmatpush2.xpose.msra.mxu0 0.0
    %3391 = vmatprep.subr.mxu0 0.0
    %3392 = vmatpush2.xpose.msra.mxu0 0.0
    %3393 = vmatprep.subr.mxu0 0.0
    %3394 = vmatpush2.xpose.msra.mxu0 0.0
    %3395 = vmatprep.subr.mxu0 0.0
    %3396 = vmatpush2.xpose.msra.mxu0 0.0
    %3397 = vmatprep.subr.mxu0 0.0
    %3398 = vmatpush2.xpose.msra.mxu0 0.0
    %3399 = vmatprep.subr.mxu0 0.0
    %3400 = vmatpush2.xpose.msra.mxu0 0.0
    %3401 = vmatprep.subr.mxu0 0.0
    %3402 = vmatpush2.xpose.msra.mxu0 0.0
    %3403 = vmatprep.mubr.f32.mxu0 0.0
    %3404 = vmatmul.mubr.f32.gmra.mxu0 %v3335
    %v3405 = vpop.f32.mrf.mxu0
    %v3406 = vadd.f32 0.0, %v3405
    %v3407 = vpop.f32.mrf.mxu0
    %3408 = vdwg.mxu0
    %3409 = vrot.lane.b32.xlu0 %v3174, 112
    %v3410 = vpop.permute.xlu0 %3409
    %v3411 = vsel %vm217, %v3174, 0
    %v3413 = vsel %vm217, %v3410, 0
    %3415 = vmatprep.subr.mxu0 0.0
    %3416 = vmatpush1.xpose.msra.mxu0 0.0
    %3417 = vmatprep.subr.mxu0 0.0
    %3418 = vmatpush1.xpose.msra.mxu0 0.0
    %3419 = vmatprep.subr.mxu0 0.0
    %3420 = vmatpush1.xpose.msra.mxu0 0.0
    %3421 = vmatprep.subr.mxu0 0.0
    %3422 = vmatpush1.xpose.msra.mxu0 0.0
    %3423 = vmatprep.subr.mxu0 0.0
    %3424 = vmatpush1.xpose.msra.mxu0 0.0
    %3425 = vmatprep.subr.mxu0 0.0
    %3426 = vmatpush1.xpose.msra.mxu0 0.0
    %3427 = vmatprep.subr.mxu0 0.0
    %3428 = vmatpush1.xpose.msra.mxu0 0.0
    %3429 = vmatprep.subr.mxu0 0.0
    %3430 = vmatpush1.xpose.msra.mxu0 0.0
    %3431 = vmatprep.subr.mxu0 0.0
    %3432 = vmatpush1.xpose.msra.mxu0 0.0
    %3433 = vmatprep.subr.mxu0 0.0
    %3434 = vmatpush1.xpose.msra.mxu0 0.0
    %3435 = vmatprep.subr.mxu0 0.0
    %3436 = vmatpush1.xpose.msra.mxu0 0.0
    %3437 = vmatprep.subr.mxu0 0.0
    %3438 = vmatpush1.xpose.msra.mxu0 0.0
    %3439 = vmatprep.subr.mxu0 0.0
    %3440 = vmatpush1.xpose.msra.mxu0 0.0
    %3441 = vmatprep.subr.mxu0 0.0
    %3442 = vmatpush1.xpose.msra.mxu0 0.0
    %3443 = vmatprep.subr.mxu0 0.0
    %3444 = vmatpush1.xpose.msra.mxu0 0.0
    %3445 = vmatprep.subr.mxu0 0.0
    %3446 = vmatpush1.xpose.msra.mxu0 %v3413
    %3447 = vmatprep.subr.mxu0 0.0
    %3448 = vmatpush2.xpose.msra.mxu0 0.0
    %3449 = vmatprep.subr.mxu0 0.0
    %3450 = vmatpush2.xpose.msra.mxu0 0.0
    %3451 = vmatprep.subr.mxu0 0.0
    %3452 = vmatpush2.xpose.msra.mxu0 0.0
    %3453 = vmatprep.subr.mxu0 0.0
    %3454 = vmatpush2.xpose.msra.mxu0 0.0
    %3455 = vmatprep.subr.mxu0 0.0
    %3456 = vmatpush2.xpose.msra.mxu0 0.0
    %3457 = vmatprep.subr.mxu0 0.0
    %3458 = vmatpush2.xpose.msra.mxu0 0.0
    %3459 = vmatprep.subr.mxu0 0.0
    %3460 = vmatpush2.xpose.msra.mxu0 0.0
    %3461 = vmatprep.subr.mxu0 0.0
    %3462 = vmatpush2.xpose.msra.mxu0 0.0
    %3463 = vmatprep.subr.mxu0 0.0
    %3464 = vmatpush2.xpose.msra.mxu0 0.0
    %3465 = vmatprep.subr.mxu0 0.0
    %3466 = vmatpush2.xpose.msra.mxu0 0.0
    %3467 = vmatprep.subr.mxu0 0.0
    %3468 = vmatpush2.xpose.msra.mxu0 0.0
    %3469 = vmatprep.subr.mxu0 0.0
    %3470 = vmatpush2.xpose.msra.mxu0 0.0
    %3471 = vmatprep.subr.mxu0 0.0
    %3472 = vmatpush2.xpose.msra.mxu0 0.0
    %3473 = vmatprep.subr.mxu0 0.0
    %3474 = vmatpush2.xpose.msra.mxu0 0.0
    %3475 = vmatprep.subr.mxu0 0.0
    %3476 = vmatpush2.xpose.msra.mxu0 0.0
    %3477 = vmatprep.subr.mxu0 0.0
    %3478 = vmatpush2.xpose.msra.mxu0 0.0
    %3479 = vmatprep.mubr.f32.mxu0 0.0
    %3480 = vmatmul.mubr.f32.gmra.mxu0 %v3411
    %v3481 = vpop.f32.mrf.mxu0
    %v3482 = vadd.f32 0.0, %v3481
    %v3483 = vpop.f32.mrf.mxu0
    %3484 = vdwg.mxu0
    %3485 = vrot.lane.b32.xlu0 %v3161, 112
    %v3486 = vpop.permute.xlu0 %3485
    %v3487 = vsel %vm217, %v3161, 0
    %v3489 = vsel %vm217, %v3486, 0
    %3491 = vmatprep.subr.mxu0 0.0
    %3492 = vmatpush1.xpose.msra.mxu0 0.0
    %3493 = vmatprep.subr.mxu0 0.0
    %3494 = vmatpush1.xpose.msra.mxu0 0.0
    %3495 = vmatprep.subr.mxu0 0.0
    %3496 = vmatpush1.xpose.msra.mxu0 0.0
    %3497 = vmatprep.subr.mxu0 0.0
    %3498 = vmatpush1.xpose.msra.mxu0 0.0
    %3499 = vmatprep.subr.mxu0 0.0
    %3500 = vmatpush1.xpose.msra.mxu0 0.0
    %3501 = vmatprep.subr.mxu0 0.0
    %3502 = vmatpush1.xpose.msra.mxu0 0.0
    %3503 = vmatprep.subr.mxu0 0.0
    %3504 = vmatpush1.xpose.msra.mxu0 0.0
    %3505 = vmatprep.subr.mxu0 0.0
    %3506 = vmatpush1.xpose.msra.mxu0 0.0
    %3507 = vmatprep.subr.mxu0 0.0
    %3508 = vmatpush1.xpose.msra.mxu0 0.0
    %3509 = vmatprep.subr.mxu0 0.0
    %3510 = vmatpush1.xpose.msra.mxu0 0.0
    %3511 = vmatprep.subr.mxu0 0.0
    %3512 = vmatpush1.xpose.msra.mxu0 0.0
    %3513 = vmatprep.subr.mxu0 0.0
    %3514 = vmatpush1.xpose.msra.mxu0 0.0
    %3515 = vmatprep.subr.mxu0 0.0
    %3516 = vmatpush1.xpose.msra.mxu0 0.0
    %3517 = vmatprep.subr.mxu0 0.0
    %3518 = vmatpush1.xpose.msra.mxu0 0.0
    %3519 = vmatprep.subr.mxu0 0.0
    %3520 = vmatpush1.xpose.msra.mxu0 0.0
    %3521 = vmatprep.subr.mxu0 0.0
    %3522 = vmatpush1.xpose.msra.mxu0 %v3489
    %3523 = vmatprep.subr.mxu0 0.0
    %3524 = vmatpush2.xpose.msra.mxu0 0.0
    %3525 = vmatprep.subr.mxu0 0.0
    %3526 = vmatpush2.xpose.msra.mxu0 0.0
    %3527 = vmatprep.subr.mxu0 0.0
    %3528 = vmatpush2.xpose.msra.mxu0 0.0
    %3529 = vmatprep.subr.mxu0 0.0
    %3530 = vmatpush2.xpose.msra.mxu0 0.0
    %3531 = vmatprep.subr.mxu0 0.0
    %3532 = vmatpush2.xpose.msra.mxu0 0.0
    %3533 = vmatprep.subr.mxu0 0.0
    %3534 = vmatpush2.xpose.msra.mxu0 0.0
    %3535 = vmatprep.subr.mxu0 0.0
    %3536 = vmatpush2.xpose.msra.mxu0 0.0
    %3537 = vmatprep.subr.mxu0 0.0
    %3538 = vmatpush2.xpose.msra.mxu0 0.0
    %3539 = vmatprep.subr.mxu0 0.0
    %3540 = vmatpush2.xpose.msra.mxu0 0.0
    %3541 = vmatprep.subr.mxu0 0.0
    %3542 = vmatpush2.xpose.msra.mxu0 0.0
    %3543 = vmatprep.subr.mxu0 0.0
    %3544 = vmatpush2.xpose.msra.mxu0 0.0
    %3545 = vmatprep.subr.mxu0 0.0
    %3546 = vmatpush2.xpose.msra.mxu0 0.0
    %3547 = vmatprep.subr.mxu0 0.0
    %3548 = vmatpush2.xpose.msra.mxu0 0.0
    %3549 = vmatprep.subr.mxu0 0.0
    %3550 = vmatpush2.xpose.msra.mxu0 0.0
    %3551 = vmatprep.subr.mxu0 0.0
    %3552 = vmatpush2.xpose.msra.mxu0 0.0
    %3553 = vmatprep.subr.mxu0 0.0
    %3554 = vmatpush2.xpose.msra.mxu0 0.0
    %3555 = vmatprep.mubr.f32.mxu0 0.0
    %3556 = vmatmul.mubr.f32.gmra.mxu0 %v3487
    %v3557 = vpop.f32.mrf.mxu0
    %v3558 = vadd.f32 0.0, %v3557
    %v3559 = vpop.f32.mrf.mxu0
    %3560 = vdwg.mxu0
    %3561 = vrot.lane.b32.xlu0 %v3175, 112
    %v3562 = vpop.permute.xlu0 %3561
    %v3563 = vsel %vm217, %v3175, 0
    %v3565 = vsel %vm217, %v3562, 0
    %3567 = vmatprep.subr.mxu0 0.0
    %3568 = vmatpush1.xpose.msra.mxu0 0.0
    %3569 = vmatprep.subr.mxu0 0.0
    %3570 = vmatpush1.xpose.msra.mxu0 0.0
    %3571 = vmatprep.subr.mxu0 0.0
    %3572 = vmatpush1.xpose.msra.mxu0 0.0
    %3573 = vmatprep.subr.mxu0 0.0
    %3574 = vmatpush1.xpose.msra.mxu0 0.0
    %3575 = vmatprep.subr.mxu0 0.0
    %3576 = vmatpush1.xpose.msra.mxu0 0.0
    %3577 = vmatprep.subr.mxu0 0.0
    %3578 = vmatpush1.xpose.msra.mxu0 0.0
    %3579 = vmatprep.subr.mxu0 0.0
    %3580 = vmatpush1.xpose.msra.mxu0 0.0
    %3581 = vmatprep.subr.mxu0 0.0
    %3582 = vmatpush1.xpose.msra.mxu0 0.0
    %3583 = vmatprep.subr.mxu0 0.0
    %3584 = vmatpush1.xpose.msra.mxu0 0.0
    %3585 = vmatprep.subr.mxu0 0.0
    %3586 = vmatpush1.xpose.msra.mxu0 0.0
    %3587 = vmatprep.subr.mxu0 0.0
    %3588 = vmatpush1.xpose.msra.mxu0 0.0
    %3589 = vmatprep.subr.mxu0 0.0
    %3590 = vmatpush1.xpose.msra.mxu0 0.0
    %3591 = vmatprep.subr.mxu0 0.0
    %3592 = vmatpush1.xpose.msra.mxu0 0.0
    %3593 = vmatprep.subr.mxu0 0.0
    %3594 = vmatpush1.xpose.msra.mxu0 0.0
    %3595 = vmatprep.subr.mxu0 0.0
    %3596 = vmatpush1.xpose.msra.mxu0 0.0
    %3597 = vmatprep.subr.mxu0 0.0
    %3598 = vmatpush1.xpose.msra.mxu0 %v3565
    %3599 = vmatprep.subr.mxu0 0.0
    %3600 = vmatpush2.xpose.msra.mxu0 0.0
    %3601 = vmatprep.subr.mxu0 0.0
    %3602 = vmatpush2.xpose.msra.mxu0 0.0
    %3603 = vmatprep.subr.mxu0 0.0
    %3604 = vmatpush2.xpose.msra.mxu0 0.0
    %3605 = vmatprep.subr.mxu0 0.0
    %3606 = vmatpush2.xpose.msra.mxu0 0.0
    %3607 = vmatprep.subr.mxu0 0.0
    %3608 = vmatpush2.xpose.msra.mxu0 0.0
    %3609 = vmatprep.subr.mxu0 0.0
    %3610 = vmatpush2.xpose.msra.mxu0 0.0
    %3611 = vmatprep.subr.mxu0 0.0
    %3612 = vmatpush2.xpose.msra.mxu0 0.0
    %3613 = vmatprep.subr.mxu0 0.0
    %3614 = vmatpush2.xpose.msra.mxu0 0.0
    %3615 = vmatprep.subr.mxu0 0.0
    %3616 = vmatpush2.xpose.msra.mxu0 0.0
    %3617 = vmatprep.subr.mxu0 0.0
    %3618 = vmatpush2.xpose.msra.mxu0 0.0
    %3619 = vmatprep.subr.mxu0 0.0
    %3620 = vmatpush2.xpose.msra.mxu0 0.0
    %3621 = vmatprep.subr.mxu0 0.0
    %3622 = vmatpush2.xpose.msra.mxu0 0.0
    %3623 = vmatprep.subr.mxu0 0.0
    %3624 = vmatpush2.xpose.msra.mxu0 0.0
    %3625 = vmatprep.subr.mxu0 0.0
    %3626 = vmatpush2.xpose.msra.mxu0 0.0
    %3627 = vmatprep.subr.mxu0 0.0
    %3628 = vmatpush2.xpose.msra.mxu0 0.0
    %3629 = vmatprep.subr.mxu0 0.0
    %3630 = vmatpush2.xpose.msra.mxu0 0.0
    %3631 = vmatprep.mubr.f32.mxu0 0.0
    %3632 = vmatmul.mubr.f32.gmra.mxu0 %v3563
    %v3633 = vpop.f32.mrf.mxu0
    %v3634 = vadd.f32 0.0, %v3633
    %v3635 = vpop.f32.mrf.mxu0
    %3636 = vdwg.mxu0
    %3637 = vrot.lane.b32.xlu0 %v3166, 112
    %v3638 = vpop.permute.xlu0 %3637
    %v3639 = vsel %vm217, %v3166, 0
    %v3641 = vsel %vm217, %v3638, 0
    %3643 = vmatprep.subr.mxu0 0.0
    %3644 = vmatpush1.xpose.msra.mxu0 0.0
    %3645 = vmatprep.subr.mxu0 0.0
    %3646 = vmatpush1.xpose.msra.mxu0 0.0
    %3647 = vmatprep.subr.mxu0 0.0
    %3648 = vmatpush1.xpose.msra.mxu0 0.0
    %3649 = vmatprep.subr.mxu0 0.0
    %3650 = vmatpush1.xpose.msra.mxu0 0.0
    %3651 = vmatprep.subr.mxu0 0.0
    %3652 = vmatpush1.xpose.msra.mxu0 0.0
    %3653 = vmatprep.subr.mxu0 0.0
    %3654 = vmatpush1.xpose.msra.mxu0 0.0
    %3655 = vmatprep.subr.mxu0 0.0
    %3656 = vmatpush1.xpose.msra.mxu0 0.0
    %3657 = vmatprep.subr.mxu0 0.0
    %3658 = vmatpush1.xpose.msra.mxu0 0.0
    %3659 = vmatprep.subr.mxu0 0.0
    %3660 = vmatpush1.xpose.msra.mxu0 0.0
    %3661 = vmatprep.subr.mxu0 0.0
    %3662 = vmatpush1.xpose.msra.mxu0 0.0
    %3663 = vmatprep.subr.mxu0 0.0
    %3664 = vmatpush1.xpose.msra.mxu0 0.0
    %3665 = vmatprep.subr.mxu0 0.0
    %3666 = vmatpush1.xpose.msra.mxu0 0.0
    %3667 = vmatprep.subr.mxu0 0.0
    %3668 = vmatpush1.xpose.msra.mxu0 0.0
    %3669 = vmatprep.subr.mxu0 0.0
    %3670 = vmatpush1.xpose.msra.mxu0 0.0
    %3671 = vmatprep.subr.mxu0 0.0
    %3672 = vmatpush1.xpose.msra.mxu0 0.0
    %3673 = vmatprep.subr.mxu0 0.0
    %3674 = vmatpush1.xpose.msra.mxu0 %v3641
    %3675 = vmatprep.subr.mxu0 0.0
    %3676 = vmatpush2.xpose.msra.mxu0 0.0
    %3677 = vmatprep.subr.mxu0 0.0
    %3678 = vmatpush2.xpose.msra.mxu0 0.0
    %3679 = vmatprep.subr.mxu0 0.0
    %3680 = vmatpush2.xpose.msra.mxu0 0.0
    %3681 = vmatprep.subr.mxu0 0.0
    %3682 = vmatpush2.xpose.msra.mxu0 0.0
    %3683 = vmatprep.subr.mxu0 0.0
    %3684 = vmatpush2.xpose.msra.mxu0 0.0
    %3685 = vmatprep.subr.mxu0 0.0
    %3686 = vmatpush2.xpose.msra.mxu0 0.0
    %3687 = vmatprep.subr.mxu0 0.0
    %3688 = vmatpush2.xpose.msra.mxu0 0.0
    %3689 = vmatprep.subr.mxu0 0.0
    %3690 = vmatpush2.xpose.msra.mxu0 0.0
    %3691 = vmatprep.subr.mxu0 0.0
    %3692 = vmatpush2.xpose.msra.mxu0 0.0
    %3693 = vmatprep.subr.mxu0 0.0
    %3694 = vmatpush2.xpose.msra.mxu0 0.0
    %3695 = vmatprep.subr.mxu0 0.0
    %3696 = vmatpush2.xpose.msra.mxu0 0.0
    %3697 = vmatprep.subr.mxu0 0.0
    %3698 = vmatpush2.xpose.msra.mxu0 0.0
    %3699 = vmatprep.subr.mxu0 0.0
    %3700 = vmatpush2.xpose.msra.mxu0 0.0
    %3701 = vmatprep.subr.mxu0 0.0
    %3702 = vmatpush2.xpose.msra.mxu0 0.0
    %3703 = vmatprep.subr.mxu0 0.0
    %3704 = vmatpush2.xpose.msra.mxu0 0.0
    %3705 = vmatprep.subr.mxu0 0.0
    %3706 = vmatpush2.xpose.msra.mxu0 0.0
    %3707 = vmatprep.mubr.f32.mxu0 0.0
    %3708 = vmatmul.mubr.f32.gmra.mxu0 %v3639
    %v3709 = vpop.f32.mrf.mxu0
    %v3710 = vadd.f32 0.0, %v3709
    %v3711 = vpop.f32.mrf.mxu0
    %3712 = vdwg.mxu0
    %3713 = vrot.lane.b32.xlu0 %v3176, 112
    %v3714 = vpop.permute.xlu0 %3713
    %v3715 = vsel %vm217, %v3176, 0
    %v3717 = vsel %vm217, %v3714, 0
    %3719 = vmatprep.subr.mxu0 0.0
    %3720 = vmatpush1.xpose.msra.mxu0 0.0
    %3721 = vmatprep.subr.mxu0 0.0
    %3722 = vmatpush1.xpose.msra.mxu0 0.0
    %3723 = vmatprep.subr.mxu0 0.0
    %3724 = vmatpush1.xpose.msra.mxu0 0.0
    %3725 = vmatprep.subr.mxu0 0.0
    %3726 = vmatpush1.xpose.msra.mxu0 0.0
    %3727 = vmatprep.subr.mxu0 0.0
    %3728 = vmatpush1.xpose.msra.mxu0 0.0
    %3729 = vmatprep.subr.mxu0 0.0
    %3730 = vmatpush1.xpose.msra.mxu0 0.0
    %3731 = vmatprep.subr.mxu0 0.0
    %3732 = vmatpush1.xpose.msra.mxu0 0.0
    %3733 = vmatprep.subr.mxu0 0.0
    %3734 = vmatpush1.xpose.msra.mxu0 0.0
    %3735 = vmatprep.subr.mxu0 0.0
    %3736 = vmatpush1.xpose.msra.mxu0 0.0
    %3737 = vmatprep.subr.mxu0 0.0
    %3738 = vmatpush1.xpose.msra.mxu0 0.0
    %3739 = vmatprep.subr.mxu0 0.0
    %3740 = vmatpush1.xpose.msra.mxu0 0.0
    %3741 = vmatprep.subr.mxu0 0.0
    %3742 = vmatpush1.xpose.msra.mxu0 0.0
    %3743 = vmatprep.subr.mxu0 0.0
    %3744 = vmatpush1.xpose.msra.mxu0 0.0
    %3745 = vmatprep.subr.mxu0 0.0
    %3746 = vmatpush1.xpose.msra.mxu0 0.0
    %3747 = vmatprep.subr.mxu0 0.0
    %3748 = vmatpush1.xpose.msra.mxu0 0.0
    %3749 = vmatprep.subr.mxu0 0.0
    %3750 = vmatpush1.xpose.msra.mxu0 %v3717
    %3751 = vmatprep.subr.mxu0 0.0
    %3752 = vmatpush2.xpose.msra.mxu0 0.0
    %3753 = vmatprep.subr.mxu0 0.0
    %3754 = vmatpush2.xpose.msra.mxu0 0.0
    %3755 = vmatprep.subr.mxu0 0.0
    %3756 = vmatpush2.xpose.msra.mxu0 0.0
    %3757 = vmatprep.subr.mxu0 0.0
    %3758 = vmatpush2.xpose.msra.mxu0 0.0
    %3759 = vmatprep.subr.mxu0 0.0
    %3760 = vmatpush2.xpose.msra.mxu0 0.0
    %3761 = vmatprep.subr.mxu0 0.0
    %3762 = vmatpush2.xpose.msra.mxu0 0.0
    %3763 = vmatprep.subr.mxu0 0.0
    %3764 = vmatpush2.xpose.msra.mxu0 0.0
    %3765 = vmatprep.subr.mxu0 0.0
    %3766 = vmatpush2.xpose.msra.mxu0 0.0
    %3767 = vmatprep.subr.mxu0 0.0
    %3768 = vmatpush2.xpose.msra.mxu0 0.0
    %3769 = vmatprep.subr.mxu0 0.0
    %3770 = vmatpush2.xpose.msra.mxu0 0.0
    %3771 = vmatprep.subr.mxu0 0.0
    %3772 = vmatpush2.xpose.msra.mxu0 0.0
    %3773 = vmatprep.subr.mxu0 0.0
    %3774 = vmatpush2.xpose.msra.mxu0 0.0
    %3775 = vmatprep.subr.mxu0 0.0
    %3776 = vmatpush2.xpose.msra.mxu0 0.0
    %3777 = vmatprep.subr.mxu0 0.0
    %3778 = vmatpush2.xpose.msra.mxu0 0.0
    %3779 = vmatprep.subr.mxu0 0.0
    %3780 = vmatpush2.xpose.msra.mxu0 0.0
    %3781 = vmatprep.subr.mxu0 0.0
    %3782 = vmatpush2.xpose.msra.mxu0 0.0
    %3783 = vmatprep.mubr.f32.mxu0 0.0
    %3784 = vmatmul.mubr.f32.gmra.mxu0 %v3715
    %v3785 = vpop.f32.mrf.mxu0
    %v3786 = vadd.f32 0.0, %v3785
    %v3787 = vpop.f32.mrf.mxu0
    %3788 = vdwg.mxu0
    %v3789 = vsel %vm931, %v3254, -inf
    %3790 = vmax.xlane.f32.xlu0 %v3789
    %v3791 = vpop.xlane.xlu0 %3790
    %v3792 = vsel %vm931, %v3330, -inf
    %3793 = vmax.xlane.f32.xlu0 %v3792
    %v3794 = vpop.xlane.xlu0 %3793
    %v3795 = vsel %vm931, %v3406, -inf
    %3796 = vmax.xlane.f32.xlu0 %v3795
    %v3797 = vpop.xlane.xlu0 %3796
    %v3798 = vsel %vm931, %v3482, -inf
    %3799 = vmax.xlane.f32.xlu0 %v3798
    %v3800 = vpop.xlane.xlu0 %3799
    %v3801 = vsel %vm931, %v3558, -inf
    %3802 = vmax.xlane.f32.xlu0 %v3801
    %v3803 = vpop.xlane.xlu0 %3802
    %v3804 = vsel %vm931, %v3634, -inf
    %3805 = vmax.xlane.f32.xlu0 %v3804
    %v3806 = vpop.xlane.xlu0 %3805
    %v3807 = vsel %vm931, %v3710, -inf
    %3808 = vmax.xlane.f32.xlu0 %v3807
    %v3809 = vpop.xlane.xlu0 %3808
    %v3810 = vsel %vm931, %v3786, -inf
    %3811 = vmax.xlane.f32.xlu0 %v3810
    %v3812 = vpop.xlane.xlu0 %3811
    %v3813 = vsub.f32 %v3254, %v3791
    %v3814 = vsub.f32 %v3330, %v3794
    %v3815 = vsub.f32 %v3406, %v3797
    %v3816 = vsub.f32 %v3482, %v3800
    %v3817 = vsub.f32 %v3558, %v3803
    %v3818 = vsub.f32 %v3634, %v3806
    %v3819 = vsub.f32 %v3710, %v3809
    %v3820 = vsub.f32 %v3786, %v3812
    %v3821 = vmul.f32 %v3813, 1.442695
    %v3822 = vpow.pop %v3821
    %v3823 = vmul.f32 %v3814, 1.442695
    %v3824 = vpow.pop %v3823
    %v3825 = vmul.f32 %v3815, 1.442695
    %v3826 = vpow.pop %v3825
    %v3827 = vmul.f32 %v3816, 1.442695
    %v3828 = vpow.pop %v3827
    %v3829 = vmul.f32 %v3817, 1.442695
    %v3830 = vpow.pop %v3829
    %v3831 = vmul.f32 %v3818, 1.442695
    %v3832 = vpow.pop %v3831
    %v3833 = vmul.f32 %v3819, 1.442695
    %v3834 = vpow.pop %v3833
    %v3835 = vmul.f32 %v3820, 1.442695
    %v3836 = vpow.pop %v3835
    %v3837 = vsel %vm931, %v3822, 0.0
    %3838 = vadd.xlane.f32.xlu0 %v3837
    %v3839 = vpop.xlane.xlu0 %3838
    %v3840 = vsel %vm931, %v3824, 0.0
    %3841 = vadd.xlane.f32.xlu0 %v3840
    %v3842 = vpop.xlane.xlu0 %3841
    %v3843 = vsel %vm931, %v3826, 0.0
    %3844 = vadd.xlane.f32.xlu0 %v3843
    %v3845 = vpop.xlane.xlu0 %3844
    %v3846 = vsel %vm931, %v3828, 0.0
    %3847 = vadd.xlane.f32.xlu0 %v3846
    %v3848 = vpop.xlane.xlu0 %3847
    %v3849 = vsel %vm931, %v3830, 0.0
    %3850 = vadd.xlane.f32.xlu0 %v3849
    %v3851 = vpop.xlane.xlu0 %3850
    %v3852 = vsel %vm931, %v3832, 0.0
    %3853 = vadd.xlane.f32.xlu0 %v3852
    %v3854 = vpop.xlane.xlu0 %3853
    %v3855 = vsel %vm931, %v3834, 0.0
    %3856 = vadd.xlane.f32.xlu0 %v3855
    %v3857 = vpop.xlane.xlu0 %3856
    %v3858 = vsel %vm931, %v3836, 0.0
    %3859 = vadd.xlane.f32.xlu0 %v3858
    %v3860 = vpop.xlane.xlu0 %3859
    %v3861 = vrcp.pop %v3839
    %v3862 = vrcp.pop %v3842
    %v3863 = vrcp.pop %v3845
    %v3864 = vrcp.pop %v3848
    %v3865 = vrcp.pop %v3851
    %v3866 = vrcp.pop %v3854
    %v3867 = vrcp.pop %v3857
    %v3868 = vrcp.pop %v3860
    %v3869 = vmul.f32 %v3822, %v3861
    %v3870 = vmul.f32 %v3824, %v3862
    %v3871 = vmul.f32 %v3826, %v3863
    %v3872 = vmul.f32 %v3828, %v3864
    %v3873 = vmul.f32 %v3830, %v3865
    %v3874 = vmul.f32 %v3832, %v3866
    %v3875 = vmul.f32 %v3834, %v3867
    %v3876 = vmul.f32 %v3836, %v3868
    %3877 = vrot.lane.b32.xlu0 %v3151, 96
    %v3878 = vpop.permute.xlu0 %3877
    %v3880 = vsel %vm1022, %v3869, 0
    %v3882 = vsel %vm1026, %v3878, 0
    %3884 = vmatprep.subr.mxu0 0.0
    %3885 = vmatpush1.msra.mxu0 0.0
    %3886 = vmatprep.subr.mxu0 0.0
    %3887 = vmatpush1.msra.mxu0 0.0
    %3888 = vmatprep.subr.mxu0 0.0
    %3889 = vmatpush1.msra.mxu0 0.0
    %3890 = vmatprep.subr.mxu0 0.0
    %3891 = vmatpush1.msra.mxu0 0.0
    %3892 = vmatprep.subr.mxu0 0.0
    %3893 = vmatpush1.msra.mxu0 0.0
    %3894 = vmatprep.subr.mxu0 0.0
    %3895 = vmatpush1.msra.mxu0 0.0
    %3896 = vmatprep.subr.mxu0 0.0
    %3897 = vmatpush1.msra.mxu0 0.0
    %3898 = vmatprep.subr.mxu0 0.0
    %3899 = vmatpush1.msra.mxu0 0.0
    %3900 = vmatprep.subr.mxu0 0.0
    %3901 = vmatpush1.msra.mxu0 0.0
    %3902 = vmatprep.subr.mxu0 0.0
    %3903 = vmatpush1.msra.mxu0 0.0
    %3904 = vmatprep.subr.mxu0 0.0
    %3905 = vmatpush1.msra.mxu0 0.0
    %3906 = vmatprep.subr.mxu0 0.0
    %3907 = vmatpush1.msra.mxu0 0.0
    %3908 = vmatprep.subr.mxu0 0.0
    %3909 = vmatpush1.msra.mxu0 0.0
    %3910 = vmatprep.subr.mxu0 0.0
    %3911 = vmatpush1.msra.mxu0 0.0
    %3912 = vmatprep.subr.mxu0 0.0
    %3913 = vmatpush1.msra.mxu0 0.0
    %3914 = vmatprep.subr.mxu0 0.0
    %3915 = vmatpush1.msra.mxu0 %v3882
    %3916 = vmatprep.subr.mxu0 0.0
    %3917 = vmatpush2.msra.mxu0 0.0
    %3918 = vmatprep.subr.mxu0 0.0
    %3919 = vmatpush2.msra.mxu0 0.0
    %3920 = vmatprep.subr.mxu0 0.0
    %3921 = vmatpush2.msra.mxu0 0.0
    %3922 = vmatprep.subr.mxu0 0.0
    %3923 = vmatpush2.msra.mxu0 0.0
    %3924 = vmatprep.subr.mxu0 0.0
    %3925 = vmatpush2.msra.mxu0 0.0
    %3926 = vmatprep.subr.mxu0 0.0
    %3927 = vmatpush2.msra.mxu0 0.0
    %3928 = vmatprep.subr.mxu0 0.0
    %3929 = vmatpush2.msra.mxu0 0.0
    %3930 = vmatprep.subr.mxu0 0.0
    %3931 = vmatpush2.msra.mxu0 0.0
    %3932 = vmatprep.subr.mxu0 0.0
    %3933 = vmatpush2.msra.mxu0 0.0
    %3934 = vmatprep.subr.mxu0 0.0
    %3935 = vmatpush2.msra.mxu0 0.0
    %3936 = vmatprep.subr.mxu0 0.0
    %3937 = vmatpush2.msra.mxu0 0.0
    %3938 = vmatprep.subr.mxu0 0.0
    %3939 = vmatpush2.msra.mxu0 0.0
    %3940 = vmatprep.subr.mxu0 0.0
    %3941 = vmatpush2.msra.mxu0 0.0
    %3942 = vmatprep.subr.mxu0 0.0
    %3943 = vmatpush2.msra.mxu0 0.0
    %3944 = vmatprep.subr.mxu0 0.0
    %3945 = vmatpush2.msra.mxu0 0.0
    %3946 = vmatprep.subr.mxu0 0.0
    %3947 = vmatpush2.msra.mxu0 0.0
    %3948 = vmatprep.mubr.f32.mxu0 0.0
    %3949 = vmatmul.mubr.f32.gmra.mxu0 %v3880
    %v3950 = vpop.f32.mrf.mxu0
    %v3951 = vadd.f32 0.0, %v3950
    %v3952 = vpop.f32.mrf.mxu0
    %3953 = vdwg.mxu0
    %3954 = vrot.lane.b32.xlu0 %v3173, 96
    %v3955 = vpop.permute.xlu0 %3954
    %v3957 = vsel %vm1022, %v3870, 0
    %v3959 = vsel %vm1026, %v3955, 0
    %3961 = vmatprep.subr.mxu0 0.0
    %3962 = vmatpush1.msra.mxu0 0.0
    %3963 = vmatprep.subr.mxu0 0.0
    %3964 = vmatpush1.msra.mxu0 0.0
    %3965 = vmatprep.subr.mxu0 0.0
    %3966 = vmatpush1.msra.mxu0 0.0
    %3967 = vmatprep.subr.mxu0 0.0
    %3968 = vmatpush1.msra.mxu0 0.0
    %3969 = vmatprep.subr.mxu0 0.0
    %3970 = vmatpush1.msra.mxu0 0.0
    %3971 = vmatprep.subr.mxu0 0.0
    %3972 = vmatpush1.msra.mxu0 0.0
    %3973 = vmatprep.subr.mxu0 0.0
    %3974 = vmatpush1.msra.mxu0 0.0
    %3975 = vmatprep.subr.mxu0 0.0
    %3976 = vmatpush1.msra.mxu0 0.0
    %3977 = vmatprep.subr.mxu0 0.0
    %3978 = vmatpush1.msra.mxu0 0.0
    %3979 = vmatprep.subr.mxu0 0.0
    %3980 = vmatpush1.msra.mxu0 0.0
    %3981 = vmatprep.subr.mxu0 0.0
    %3982 = vmatpush1.msra.mxu0 0.0
    %3983 = vmatprep.subr.mxu0 0.0
    %3984 = vmatpush1.msra.mxu0 0.0
    %3985 = vmatprep.subr.mxu0 0.0
    %3986 = vmatpush1.msra.mxu0 0.0
    %3987 = vmatprep.subr.mxu0 0.0
    %3988 = vmatpush1.msra.mxu0 0.0
    %3989 = vmatprep.subr.mxu0 0.0
    %3990 = vmatpush1.msra.mxu0 0.0
    %3991 = vmatprep.subr.mxu0 0.0
    %3992 = vmatpush1.msra.mxu0 %v3959
    %3993 = vmatprep.subr.mxu0 0.0
    %3994 = vmatpush2.msra.mxu0 0.0
    %3995 = vmatprep.subr.mxu0 0.0
    %3996 = vmatpush2.msra.mxu0 0.0
    %3997 = vmatprep.subr.mxu0 0.0
    %3998 = vmatpush2.msra.mxu0 0.0
    %3999 = vmatprep.subr.mxu0 0.0
    %4000 = vmatpush2.msra.mxu0 0.0
    %4001 = vmatprep.subr.mxu0 0.0
    %4002 = vmatpush2.msra.mxu0 0.0
    %4003 = vmatprep.subr.mxu0 0.0
    %4004 = vmatpush2.msra.mxu0 0.0
    %4005 = vmatprep.subr.mxu0 0.0
    %4006 = vmatpush2.msra.mxu0 0.0
    %4007 = vmatprep.subr.mxu0 0.0
    %4008 = vmatpush2.msra.mxu0 0.0
    %4009 = vmatprep.subr.mxu0 0.0
    %4010 = vmatpush2.msra.mxu0 0.0
    %4011 = vmatprep.subr.mxu0 0.0
    %4012 = vmatpush2.msra.mxu0 0.0
    %4013 = vmatprep.subr.mxu0 0.0
    %4014 = vmatpush2.msra.mxu0 0.0
    %4015 = vmatprep.subr.mxu0 0.0
    %4016 = vmatpush2.msra.mxu0 0.0
    %4017 = vmatprep.subr.mxu0 0.0
    %4018 = vmatpush2.msra.mxu0 0.0
    %4019 = vmatprep.subr.mxu0 0.0
    %4020 = vmatpush2.msra.mxu0 0.0
    %4021 = vmatprep.subr.mxu0 0.0
    %4022 = vmatpush2.msra.mxu0 0.0
    %4023 = vmatprep.subr.mxu0 0.0
    %4024 = vmatpush2.msra.mxu0 0.0
    %4025 = vmatprep.mubr.f32.mxu0 0.0
    %4026 = vmatmul.mubr.f32.gmra.mxu0 %v3957
    %v4027 = vpop.f32.mrf.mxu0
    %v4028 = vadd.f32 0.0, %v4027
    %v4029 = vpop.f32.mrf.mxu0
    %4030 = vdwg.mxu0
    %4031 = vrot.lane.b32.xlu0 %v3156, 96
    %v4032 = vpop.permute.xlu0 %4031
    %v4034 = vsel %vm1022, %v3871, 0
    %v4036 = vsel %vm1026, %v4032, 0
    %4038 = vmatprep.subr.mxu0 0.0
    %4039 = vmatpush1.msra.mxu0 0.0
    %4040 = vmatprep.subr.mxu0 0.0
    %4041 = vmatpush1.msra.mxu0 0.0
    %4042 = vmatprep.subr.mxu0 0.0
    %4043 = vmatpush1.msra.mxu0 0.0
    %4044 = vmatprep.subr.mxu0 0.0
    %4045 = vmatpush1.msra.mxu0 0.0
    %4046 = vmatprep.subr.mxu0 0.0
    %4047 = vmatpush1.msra.mxu0 0.0
    %4048 = vmatprep.subr.mxu0 0.0
    %4049 = vmatpush1.msra.mxu0 0.0
    %4050 = vmatprep.subr.mxu0 0.0
    %4051 = vmatpush1.msra.mxu0 0.0
    %4052 = vmatprep.subr.mxu0 0.0
    %4053 = vmatpush1.msra.mxu0 0.0
    %4054 = vmatprep.subr.mxu0 0.0
    %4055 = vmatpush1.msra.mxu0 0.0
    %4056 = vmatprep.subr.mxu0 0.0
    %4057 = vmatpush1.msra.mxu0 0.0
    %4058 = vmatprep.subr.mxu0 0.0
    %4059 = vmatpush1.msra.mxu0 0.0
    %4060 = vmatprep.subr.mxu0 0.0
    %4061 = vmatpush1.msra.mxu0 0.0
    %4062 = vmatprep.subr.mxu0 0.0
    %4063 = vmatpush1.msra.mxu0 0.0
    %4064 = vmatprep.subr.mxu0 0.0
    %4065 = vmatpush1.msra.mxu0 0.0
    %4066 = vmatprep.subr.mxu0 0.0
    %4067 = vmatpush1.msra.mxu0 0.0
    %4068 = vmatprep.subr.mxu0 0.0
    %4069 = vmatpush1.msra.mxu0 %v4036
    %4070 = vmatprep.subr.mxu0 0.0
    %4071 = vmatpush2.msra.mxu0 0.0
    %4072 = vmatprep.subr.mxu0 0.0
    %4073 = vmatpush2.msra.mxu0 0.0
    %4074 = vmatprep.subr.mxu0 0.0
    %4075 = vmatpush2.msra.mxu0 0.0
    %4076 = vmatprep.subr.mxu0 0.0
    %4077 = vmatpush2.msra.mxu0 0.0
    %4078 = vmatprep.subr.mxu0 0.0
    %4079 = vmatpush2.msra.mxu0 0.0
    %4080 = vmatprep.subr.mxu0 0.0
    %4081 = vmatpush2.msra.mxu0 0.0
    %4082 = vmatprep.subr.mxu0 0.0
    %4083 = vmatpush2.msra.mxu0 0.0
    %4084 = vmatprep.subr.mxu0 0.0
    %4085 = vmatpush2.msra.mxu0 0.0
    %4086 = vmatprep.subr.mxu0 0.0
    %4087 = vmatpush2.msra.mxu0 0.0
    %4088 = vmatprep.subr.mxu0 0.0
    %4089 = vmatpush2.msra.mxu0 0.0
    %4090 = vmatprep.subr.mxu0 0.0
    %4091 = vmatpush2.msra.mxu0 0.0
    %4092 = vmatprep.subr.mxu0 0.0
    %4093 = vmatpush2.msra.mxu0 0.0
    %4094 = vmatprep.subr.mxu0 0.0
    %4095 = vmatpush2.msra.mxu0 0.0
    %4096 = vmatprep.subr.mxu0 0.0
    %4097 = vmatpush2.msra.mxu0 0.0
    %4098 = vmatprep.subr.mxu0 0.0
    %4099 = vmatpush2.msra.mxu0 0.0
    %4100 = vmatprep.subr.mxu0 0.0
    %4101 = vmatpush2.msra.mxu0 0.0
    %4102 = vmatprep.mubr.f32.mxu0 0.0
    %4103 = vmatmul.mubr.f32.gmra.mxu0 %v4034
    %v4104 = vpop.f32.mrf.mxu0
    %v4105 = vadd.f32 0.0, %v4104
    %v4106 = vpop.f32.mrf.mxu0
    %4107 = vdwg.mxu0
    %4108 = vrot.lane.b32.xlu0 %v3174, 96
    %v4109 = vpop.permute.xlu0 %4108
    %v4111 = vsel %vm1022, %v3872, 0
    %v4113 = vsel %vm1026, %v4109, 0
    %4115 = vmatprep.subr.mxu0 0.0
    %4116 = vmatpush1.msra.mxu0 0.0
    %4117 = vmatprep.subr.mxu0 0.0
    %4118 = vmatpush1.msra.mxu0 0.0
    %4119 = vmatprep.subr.mxu0 0.0
    %4120 = vmatpush1.msra.mxu0 0.0
    %4121 = vmatprep.subr.mxu0 0.0
    %4122 = vmatpush1.msra.mxu0 0.0
    %4123 = vmatprep.subr.mxu0 0.0
    %4124 = vmatpush1.msra.mxu0 0.0
    %4125 = vmatprep.subr.mxu0 0.0
    %4126 = vmatpush1.msra.mxu0 0.0
    %4127 = vmatprep.subr.mxu0 0.0
    %4128 = vmatpush1.msra.mxu0 0.0
    %4129 = vmatprep.subr.mxu0 0.0
    %4130 = vmatpush1.msra.mxu0 0.0
    %4131 = vmatprep.subr.mxu0 0.0
    %4132 = vmatpush1.msra.mxu0 0.0
    %4133 = vmatprep.subr.mxu0 0.0
    %4134 = vmatpush1.msra.mxu0 0.0
    %4135 = vmatprep.subr.mxu0 0.0
    %4136 = vmatpush1.msra.mxu0 0.0
    %4137 = vmatprep.subr.mxu0 0.0
    %4138 = vmatpush1.msra.mxu0 0.0
    %4139 = vmatprep.subr.mxu0 0.0
    %4140 = vmatpush1.msra.mxu0 0.0
    %4141 = vmatprep.subr.mxu0 0.0
    %4142 = vmatpush1.msra.mxu0 0.0
    %4143 = vmatprep.subr.mxu0 0.0
    %4144 = vmatpush1.msra.mxu0 0.0
    %4145 = vmatprep.subr.mxu0 0.0
    %4146 = vmatpush1.msra.mxu0 %v4113
    %4147 = vmatprep.subr.mxu0 0.0
    %4148 = vmatpush2.msra.mxu0 0.0
    %4149 = vmatprep.subr.mxu0 0.0
    %4150 = vmatpush2.msra.mxu0 0.0
    %4151 = vmatprep.subr.mxu0 0.0
    %4152 = vmatpush2.msra.mxu0 0.0
    %4153 = vmatprep.subr.mxu0 0.0
    %4154 = vmatpush2.msra.mxu0 0.0
    %4155 = vmatprep.subr.mxu0 0.0
    %4156 = vmatpush2.msra.mxu0 0.0
    %4157 = vmatprep.subr.mxu0 0.0
    %4158 = vmatpush2.msra.mxu0 0.0
    %4159 = vmatprep.subr.mxu0 0.0
    %4160 = vmatpush2.msra.mxu0 0.0
    %4161 = vmatprep.subr.mxu0 0.0
    %4162 = vmatpush2.msra.mxu0 0.0
    %4163 = vmatprep.subr.mxu0 0.0
    %4164 = vmatpush2.msra.mxu0 0.0
    %4165 = vmatprep.subr.mxu0 0.0
    %4166 = vmatpush2.msra.mxu0 0.0
    %4167 = vmatprep.subr.mxu0 0.0
    %4168 = vmatpush2.msra.mxu0 0.0
    %4169 = vmatprep.subr.mxu0 0.0
    %4170 = vmatpush2.msra.mxu0 0.0
    %4171 = vmatprep.subr.mxu0 0.0
    %4172 = vmatpush2.msra.mxu0 0.0
    %4173 = vmatprep.subr.mxu0 0.0
    %4174 = vmatpush2.msra.mxu0 0.0
    %4175 = vmatprep.subr.mxu0 0.0
    %4176 = vmatpush2.msra.mxu0 0.0
    %4177 = vmatprep.subr.mxu0 0.0
    %4178 = vmatpush2.msra.mxu0 0.0
    %4179 = vmatprep.mubr.f32.mxu0 0.0
    %4180 = vmatmul.mubr.f32.gmra.mxu0 %v4111
    %v4181 = vpop.f32.mrf.mxu0
    %v4182 = vadd.f32 0.0, %v4181
    %v4183 = vpop.f32.mrf.mxu0
    %4184 = vdwg.mxu0
    %4185 = vrot.lane.b32.xlu0 %v3161, 96
    %v4186 = vpop.permute.xlu0 %4185
    %v4188 = vsel %vm1022, %v3873, 0
    %v4190 = vsel %vm1026, %v4186, 0
    %4192 = vmatprep.subr.mxu0 0.0
    %4193 = vmatpush1.msra.mxu0 0.0
    %4194 = vmatprep.subr.mxu0 0.0
    %4195 = vmatpush1.msra.mxu0 0.0
    %4196 = vmatprep.subr.mxu0 0.0
    %4197 = vmatpush1.msra.mxu0 0.0
    %4198 = vmatprep.subr.mxu0 0.0
    %4199 = vmatpush1.msra.mxu0 0.0
    %4200 = vmatprep.subr.mxu0 0.0
    %4201 = vmatpush1.msra.mxu0 0.0
    %4202 = vmatprep.subr.mxu0 0.0
    %4203 = vmatpush1.msra.mxu0 0.0
    %4204 = vmatprep.subr.mxu0 0.0
    %4205 = vmatpush1.msra.mxu0 0.0
    %4206 = vmatprep.subr.mxu0 0.0
    %4207 = vmatpush1.msra.mxu0 0.0
    %4208 = vmatprep.subr.mxu0 0.0
    %4209 = vmatpush1.msra.mxu0 0.0
    %4210 = vmatprep.subr.mxu0 0.0
    %4211 = vmatpush1.msra.mxu0 0.0
    %4212 = vmatprep.subr.mxu0 0.0
    %4213 = vmatpush1.msra.mxu0 0.0
    %4214 = vmatprep.subr.mxu0 0.0
    %4215 = vmatpush1.msra.mxu0 0.0
    %4216 = vmatprep.subr.mxu0 0.0
    %4217 = vmatpush1.msra.mxu0 0.0
    %4218 = vmatprep.subr.mxu0 0.0
    %4219 = vmatpush1.msra.mxu0 0.0
    %4220 = vmatprep.subr.mxu0 0.0
    %4221 = vmatpush1.msra.mxu0 0.0
    %4222 = vmatprep.subr.mxu0 0.0
    %4223 = vmatpush1.msra.mxu0 %v4190
    %4224 = vmatprep.subr.mxu0 0.0
    %4225 = vmatpush2.msra.mxu0 0.0
    %4226 = vmatprep.subr.mxu0 0.0
    %4227 = vmatpush2.msra.mxu0 0.0
    %4228 = vmatprep.subr.mxu0 0.0
    %4229 = vmatpush2.msra.mxu0 0.0
    %4230 = vmatprep.subr.mxu0 0.0
    %4231 = vmatpush2.msra.mxu0 0.0
    %4232 = vmatprep.subr.mxu0 0.0
    %4233 = vmatpush2.msra.mxu0 0.0
    %4234 = vmatprep.subr.mxu0 0.0
    %4235 = vmatpush2.msra.mxu0 0.0
    %4236 = vmatprep.subr.mxu0 0.0
    %4237 = vmatpush2.msra.mxu0 0.0
    %4238 = vmatprep.subr.mxu0 0.0
    %4239 = vmatpush2.msra.mxu0 0.0
    %4240 = vmatprep.subr.mxu0 0.0
    %4241 = vmatpush2.msra.mxu0 0.0
    %4242 = vmatprep.subr.mxu0 0.0
    %4243 = vmatpush2.msra.mxu0 0.0
    %4244 = vmatprep.subr.mxu0 0.0
    %4245 = vmatpush2.msra.mxu0 0.0
    %4246 = vmatprep.subr.mxu0 0.0
    %4247 = vmatpush2.msra.mxu0 0.0
    %4248 = vmatprep.subr.mxu0 0.0
    %4249 = vmatpush2.msra.mxu0 0.0
    %4250 = vmatprep.subr.mxu0 0.0
    %4251 = vmatpush2.msra.mxu0 0.0
    %4252 = vmatprep.subr.mxu0 0.0
    %4253 = vmatpush2.msra.mxu0 0.0
    %4254 = vmatprep.subr.mxu0 0.0
    %4255 = vmatpush2.msra.mxu0 0.0
    %4256 = vmatprep.mubr.f32.mxu0 0.0
    %4257 = vmatmul.mubr.f32.gmra.mxu0 %v4188
    %v4258 = vpop.f32.mrf.mxu0
    %v4259 = vadd.f32 0.0, %v4258
    %v4260 = vpop.f32.mrf.mxu0
    %4261 = vdwg.mxu0
    %4262 = vrot.lane.b32.xlu0 %v3175, 96
    %v4263 = vpop.permute.xlu0 %4262
    %v4265 = vsel %vm1022, %v3874, 0
    %v4267 = vsel %vm1026, %v4263, 0
    %4269 = vmatprep.subr.mxu0 0.0
    %4270 = vmatpush1.msra.mxu0 0.0
    %4271 = vmatprep.subr.mxu0 0.0
    %4272 = vmatpush1.msra.mxu0 0.0
    %4273 = vmatprep.subr.mxu0 0.0
    %4274 = vmatpush1.msra.mxu0 0.0
    %4275 = vmatprep.subr.mxu0 0.0
    %4276 = vmatpush1.msra.mxu0 0.0
    %4277 = vmatprep.subr.mxu0 0.0
    %4278 = vmatpush1.msra.mxu0 0.0
    %4279 = vmatprep.subr.mxu0 0.0
    %4280 = vmatpush1.msra.mxu0 0.0
    %4281 = vmatprep.subr.mxu0 0.0
    %4282 = vmatpush1.msra.mxu0 0.0
    %4283 = vmatprep.subr.mxu0 0.0
    %4284 = vmatpush1.msra.mxu0 0.0
    %4285 = vmatprep.subr.mxu0 0.0
    %4286 = vmatpush1.msra.mxu0 0.0
    %4287 = vmatprep.subr.mxu0 0.0
    %4288 = vmatpush1.msra.mxu0 0.0
    %4289 = vmatprep.subr.mxu0 0.0
    %4290 = vmatpush1.msra.mxu0 0.0
    %4291 = vmatprep.subr.mxu0 0.0
    %4292 = vmatpush1.msra.mxu0 0.0
    %4293 = vmatprep.subr.mxu0 0.0
    %4294 = vmatpush1.msra.mxu0 0.0
    %4295 = vmatprep.subr.mxu0 0.0
    %4296 = vmatpush1.msra.mxu0 0.0
    %4297 = vmatprep.subr.mxu0 0.0
    %4298 = vmatpush1.msra.mxu0 0.0
    %4299 = vmatprep.subr.mxu0 0.0
    %4300 = vmatpush1.msra.mxu0 %v4267
    %4301 = vmatprep.subr.mxu0 0.0
    %4302 = vmatpush2.msra.mxu0 0.0
    %4303 = vmatprep.subr.mxu0 0.0
    %4304 = vmatpush2.msra.mxu0 0.0
    %4305 = vmatprep.subr.mxu0 0.0
    %4306 = vmatpush2.msra.mxu0 0.0
    %4307 = vmatprep.subr.mxu0 0.0
    %4308 = vmatpush2.msra.mxu0 0.0
    %4309 = vmatprep.subr.mxu0 0.0
    %4310 = vmatpush2.msra.mxu0 0.0
    %4311 = vmatprep.subr.mxu0 0.0
    %4312 = vmatpush2.msra.mxu0 0.0
    %4313 = vmatprep.subr.mxu0 0.0
    %4314 = vmatpush2.msra.mxu0 0.0
    %4315 = vmatprep.subr.mxu0 0.0
    %4316 = vmatpush2.msra.mxu0 0.0
    %4317 = vmatprep.subr.mxu0 0.0
    %4318 = vmatpush2.msra.mxu0 0.0
    %4319 = vmatprep.subr.mxu0 0.0
    %4320 = vmatpush2.msra.mxu0 0.0
    %4321 = vmatprep.subr.mxu0 0.0
    %4322 = vmatpush2.msra.mxu0 0.0
    %4323 = vmatprep.subr.mxu0 0.0
    %4324 = vmatpush2.msra.mxu0 0.0
    %4325 = vmatprep.subr.mxu0 0.0
    %4326 = vmatpush2.msra.mxu0 0.0
    %4327 = vmatprep.subr.mxu0 0.0
    %4328 = vmatpush2.msra.mxu0 0.0
    %4329 = vmatprep.subr.mxu0 0.0
    %4330 = vmatpush2.msra.mxu0 0.0
    %4331 = vmatprep.subr.mxu0 0.0
    %4332 = vmatpush2.msra.mxu0 0.0
    %4333 = vmatprep.mubr.f32.mxu0 0.0
    %4334 = vmatmul.mubr.f32.gmra.mxu0 %v4265
    %v4335 = vpop.f32.mrf.mxu0
    %v4336 = vadd.f32 0.0, %v4335
    %v4337 = vpop.f32.mrf.mxu0
    %4338 = vdwg.mxu0
    %4339 = vrot.lane.b32.xlu0 %v3166, 96
    %v4340 = vpop.permute.xlu0 %4339
    %v4342 = vsel %vm1022, %v3875, 0
    %v4344 = vsel %vm1026, %v4340, 0
    %4346 = vmatprep.subr.mxu0 0.0
    %4347 = vmatpush1.msra.mxu0 0.0
    %4348 = vmatprep.subr.mxu0 0.0
    %4349 = vmatpush1.msra.mxu0 0.0
    %4350 = vmatprep.subr.mxu0 0.0
    %4351 = vmatpush1.msra.mxu0 0.0
    %4352 = vmatprep.subr.mxu0 0.0
    %4353 = vmatpush1.msra.mxu0 0.0
    %4354 = vmatprep.subr.mxu0 0.0
    %4355 = vmatpush1.msra.mxu0 0.0
    %4356 = vmatprep.subr.mxu0 0.0
    %4357 = vmatpush1.msra.mxu0 0.0
    %4358 = vmatprep.subr.mxu0 0.0
    %4359 = vmatpush1.msra.mxu0 0.0
    %4360 = vmatprep.subr.mxu0 0.0
    %4361 = vmatpush1.msra.mxu0 0.0
    %4362 = vmatprep.subr.mxu0 0.0
    %4363 = vmatpush1.msra.mxu0 0.0
    %4364 = vmatprep.subr.mxu0 0.0
    %4365 = vmatpush1.msra.mxu0 0.0
    %4366 = vmatprep.subr.mxu0 0.0
    %4367 = vmatpush1.msra.mxu0 0.0
    %4368 = vmatprep.subr.mxu0 0.0
    %4369 = vmatpush1.msra.mxu0 0.0
    %4370 = vmatprep.subr.mxu0 0.0
    %4371 = vmatpush1.msra.mxu0 0.0
    %4372 = vmatprep.subr.mxu0 0.0
    %4373 = vmatpush1.msra.mxu0 0.0
    %4374 = vmatprep.subr.mxu0 0.0
    %4375 = vmatpush1.msra.mxu0 0.0
    %4376 = vmatprep.subr.mxu0 0.0
    %4377 = vmatpush1.msra.mxu0 %v4344
    %4378 = vmatprep.subr.mxu0 0.0
    %4379 = vmatpush2.msra.mxu0 0.0
    %4380 = vmatprep.subr.mxu0 0.0
    %4381 = vmatpush2.msra.mxu0 0.0
    %4382 = vmatprep.subr.mxu0 0.0
    %4383 = vmatpush2.msra.mxu0 0.0
    %4384 = vmatprep.subr.mxu0 0.0
    %4385 = vmatpush2.msra.mxu0 0.0
    %4386 = vmatprep.subr.mxu0 0.0
    %4387 = vmatpush2.msra.mxu0 0.0
    %4388 = vmatprep.subr.mxu0 0.0
    %4389 = vmatpush2.msra.mxu0 0.0
    %4390 = vmatprep.subr.mxu0 0.0
    %4391 = vmatpush2.msra.mxu0 0.0
    %4392 = vmatprep.subr.mxu0 0.0
    %4393 = vmatpush2.msra.mxu0 0.0
    %4394 = vmatprep.subr.mxu0 0.0
    %4395 = vmatpush2.msra.mxu0 0.0
    %4396 = vmatprep.subr.mxu0 0.0
    %4397 = vmatpush2.msra.mxu0 0.0
    %4398 = vmatprep.subr.mxu0 0.0
    %4399 = vmatpush2.msra.mxu0 0.0
    %4400 = vmatprep.subr.mxu0 0.0
    %4401 = vmatpush2.msra.mxu0 0.0
    %4402 = vmatprep.subr.mxu0 0.0
    %4403 = vmatpush2.msra.mxu0 0.0
    %4404 = vmatprep.subr.mxu0 0.0
    %4405 = vmatpush2.msra.mxu0 0.0
    %4406 = vmatprep.subr.mxu0 0.0
    %4407 = vmatpush2.msra.mxu0 0.0
    %4408 = vmatprep.subr.mxu0 0.0
    %4409 = vmatpush2.msra.mxu0 0.0
    %4410 = vmatprep.mubr.f32.mxu0 0.0
    %4411 = vmatmul.mubr.f32.gmra.mxu0 %v4342
    %v4412 = vpop.f32.mrf.mxu0
    %v4413 = vadd.f32 0.0, %v4412
    %v4414 = vpop.f32.mrf.mxu0
    %4415 = vdwg.mxu0
    %4416 = vrot.lane.b32.xlu0 %v3176, 96
    %v4417 = vpop.permute.xlu0 %4416
    %v4419 = vsel %vm1022, %v3876, 0
    %v4421 = vsel %vm1026, %v4417, 0
    %4423 = vmatprep.subr.mxu0 0.0
    %4424 = vmatpush1.msra.mxu0 0.0
    %4425 = vmatprep.subr.mxu0 0.0
    %4426 = vmatpush1.msra.mxu0 0.0
    %4427 = vmatprep.subr.mxu0 0.0
    %4428 = vmatpush1.msra.mxu0 0.0
    %4429 = vmatprep.subr.mxu0 0.0
    %4430 = vmatpush1.msra.mxu0 0.0
    %4431 = vmatprep.subr.mxu0 0.0
    %4432 = vmatpush1.msra.mxu0 0.0
    %4433 = vmatprep.subr.mxu0 0.0
    %4434 = vmatpush1.msra.mxu0 0.0
    %4435 = vmatprep.subr.mxu0 0.0
    %4436 = vmatpush1.msra.mxu0 0.0
    %4437 = vmatprep.subr.mxu0 0.0
    %4438 = vmatpush1.msra.mxu0 0.0
    %4439 = vmatprep.subr.mxu0 0.0
    %4440 = vmatpush1.msra.mxu0 0.0
    %4441 = vmatprep.subr.mxu0 0.0
    %4442 = vmatpush1.msra.mxu0 0.0
    %4443 = vmatprep.subr.mxu0 0.0
    %4444 = vmatpush1.msra.mxu0 0.0
    %4445 = vmatprep.subr.mxu0 0.0
    %4446 = vmatpush1.msra.mxu0 0.0
    %4447 = vmatprep.subr.mxu0 0.0
    %4448 = vmatpush1.msra.mxu0 0.0
    %4449 = vmatprep.subr.mxu0 0.0
    %4450 = vmatpush1.msra.mxu0 0.0
    %4451 = vmatprep.subr.mxu0 0.0
    %4452 = vmatpush1.msra.mxu0 0.0
    %4453 = vmatprep.subr.mxu0 0.0
    %4454 = vmatpush1.msra.mxu0 %v4421
    %4455 = vmatprep.subr.mxu0 0.0
    %4456 = vmatpush2.msra.mxu0 0.0
    %4457 = vmatprep.subr.mxu0 0.0
    %4458 = vmatpush2.msra.mxu0 0.0
    %4459 = vmatprep.subr.mxu0 0.0
    %4460 = vmatpush2.msra.mxu0 0.0
    %4461 = vmatprep.subr.mxu0 0.0
    %4462 = vmatpush2.msra.mxu0 0.0
    %4463 = vmatprep.subr.mxu0 0.0
    %4464 = vmatpush2.msra.mxu0 0.0
    %4465 = vmatprep.subr.mxu0 0.0
    %4466 = vmatpush2.msra.mxu0 0.0
    %4467 = vmatprep.subr.mxu0 0.0
    %4468 = vmatpush2.msra.mxu0 0.0
    %4469 = vmatprep.subr.mxu0 0.0
    %4470 = vmatpush2.msra.mxu0 0.0
    %4471 = vmatprep.subr.mxu0 0.0
    %4472 = vmatpush2.msra.mxu0 0.0
    %4473 = vmatprep.subr.mxu0 0.0
    %4474 = vmatpush2.msra.mxu0 0.0
    %4475 = vmatprep.subr.mxu0 0.0
    %4476 = vmatpush2.msra.mxu0 0.0
    %4477 = vmatprep.subr.mxu0 0.0
    %4478 = vmatpush2.msra.mxu0 0.0
    %4479 = vmatprep.subr.mxu0 0.0
    %4480 = vmatpush2.msra.mxu0 0.0
    %4481 = vmatprep.subr.mxu0 0.0
    %4482 = vmatpush2.msra.mxu0 0.0
    %4483 = vmatprep.subr.mxu0 0.0
    %4484 = vmatpush2.msra.mxu0 0.0
    %4485 = vmatprep.subr.mxu0 0.0
    %4486 = vmatpush2.msra.mxu0 0.0
    %4487 = vmatprep.mubr.f32.mxu0 0.0
    %4488 = vmatmul.mubr.f32.gmra.mxu0 %v4419
    %v4489 = vpop.f32.mrf.mxu0
    %v4490 = vadd.f32 0.0, %v4489
    %v4491 = vpop.f32.mrf.mxu0
    %4492 = vdwg.mxu0
    %4501 = vrot.lane.b32.xlu0 %v3951, 48
    %v4502 = vpop.permute.xlu0 %4501
    %4503 = vrot.lane.b32.xlu0 %v4028, 48
    %v4504 = vpop.permute.xlu0 %4503
    %4505 = vrot.lane.b32.xlu0 %v4105, 48
    %v4506 = vpop.permute.xlu0 %4505
    %4507 = vrot.lane.b32.xlu0 %v4182, 48
    %v4508 = vpop.permute.xlu0 %4507
    %4509 = vrot.lane.b32.xlu0 %v4259, 48
    %v4510 = vpop.permute.xlu0 %4509
    %4511 = vrot.lane.b32.xlu0 %v4336, 48
    %v4512 = vpop.permute.xlu0 %4511
    %4513 = vrot.lane.b32.xlu0 %v4413, 48
    %v4514 = vpop.permute.xlu0 %4513
    %4515 = vrot.lane.b32.xlu0 %v4490, 48
    %v4516 = vpop.permute.xlu0 %4515
    %v4525 = vadd.f32 %v3151, %v4502
    %v4526 = vadd.f32 %v3173, %v4504
    %v4527 = vadd.f32 %v3156, %v4506
    %v4528 = vadd.f32 %v3174, %v4508
    %v4529 = vadd.f32 %v3161, %v4510
    %v4530 = vadd.f32 %v3175, %v4512
    %v4531 = vadd.f32 %v3166, %v4514
    %v4532 = vadd.f32 %v3176, %v4516
    %4533 = vrot.lane.b32.xlu0 %v3151, 120
    %v4534 = vpop.permute.xlu0 %4533
    %4535 = vrot.lane.b32.xlu0 %v3151, 104
    %v4536 = vpop.permute.xlu0 %4535
    %v4537 = vsel %vm217, %v4534, 0
    %v4539 = vsel %vm217, %v4536, 0
    %4541 = vmatprep.subr.mxu0 0.0
    %4542 = vmatpush1.xpose.msra.mxu0 0.0
    %4543 = vmatprep.subr.mxu0 0.0
    %4544 = vmatpush1.xpose.msra.mxu0 0.0
    %4545 = vmatprep.subr.mxu0 0.0
    %4546 = vmatpush1.xpose.msra.mxu0 0.0
    %4547 = vmatprep.subr.mxu0 0.0
    %4548 = vmatpush1.xpose.msra.mxu0 0.0
    %4549 = vmatprep.subr.mxu0 0.0
    %4550 = vmatpush1.xpose.msra.mxu0 0.0
    %4551 = vmatprep.subr.mxu0 0.0
    %4552 = vmatpush1.xpose.msra.mxu0 0.0
    %4553 = vmatprep.subr.mxu0 0.0
    %4554 = vmatpush1.xpose.msra.mxu0 0.0
    %4555 = vmatprep.subr.mxu0 0.0
    %4556 = vmatpush1.xpose.msra.mxu0 0.0
    %4557 = vmatprep.subr.mxu0 0.0
    %4558 = vmatpush1.xpose.msra.mxu0 0.0
    %4559 = vmatprep.subr.mxu0 0.0
    %4560 = vmatpush1.xpose.msra.mxu0 0.0
    %4561 = vmatprep.subr.mxu0 0.0
    %4562 = vmatpush1.xpose.msra.mxu0 0.0
    %4563 = vmatprep.subr.mxu0 0.0
    %4564 = vmatpush1.xpose.msra.mxu0 0.0
    %4565 = vmatprep.subr.mxu0 0.0
    %4566 = vmatpush1.xpose.msra.mxu0 0.0
    %4567 = vmatprep.subr.mxu0 0.0
    %4568 = vmatpush1.xpose.msra.mxu0 0.0
    %4569 = vmatprep.subr.mxu0 0.0
    %4570 = vmatpush1.xpose.msra.mxu0 0.0
    %4571 = vmatprep.subr.mxu0 0.0
    %4572 = vmatpush1.xpose.msra.mxu0 %v4539
    %4573 = vmatprep.subr.mxu0 0.0
    %4574 = vmatpush2.xpose.msra.mxu0 0.0
    %4575 = vmatprep.subr.mxu0 0.0
    %4576 = vmatpush2.xpose.msra.mxu0 0.0
    %4577 = vmatprep.subr.mxu0 0.0
    %4578 = vmatpush2.xpose.msra.mxu0 0.0
    %4579 = vmatprep.subr.mxu0 0.0
    %4580 = vmatpush2.xpose.msra.mxu0 0.0
    %4581 = vmatprep.subr.mxu0 0.0
    %4582 = vmatpush2.xpose.msra.mxu0 0.0
    %4583 = vmatprep.subr.mxu0 0.0
    %4584 = vmatpush2.xpose.msra.mxu0 0.0
    %4585 = vmatprep.subr.mxu0 0.0
    %4586 = vmatpush2.xpose.msra.mxu0 0.0
    %4587 = vmatprep.subr.mxu0 0.0
    %4588 = vmatpush2.xpose.msra.mxu0 0.0
    %4589 = vmatprep.subr.mxu0 0.0
    %4590 = vmatpush2.xpose.msra.mxu0 0.0
    %4591 = vmatprep.subr.mxu0 0.0
    %4592 = vmatpush2.xpose.msra.mxu0 0.0
    %4593 = vmatprep.subr.mxu0 0.0
    %4594 = vmatpush2.xpose.msra.mxu0 0.0
    %4595 = vmatprep.subr.mxu0 0.0
    %4596 = vmatpush2.xpose.msra.mxu0 0.0
    %4597 = vmatprep.subr.mxu0 0.0
    %4598 = vmatpush2.xpose.msra.mxu0 0.0
    %4599 = vmatprep.subr.mxu0 0.0
    %4600 = vmatpush2.xpose.msra.mxu0 0.0
    %4601 = vmatprep.subr.mxu0 0.0
    %4602 = vmatpush2.xpose.msra.mxu0 0.0
    %4603 = vmatprep.subr.mxu0 0.0
    %4604 = vmatpush2.xpose.msra.mxu0 0.0
    %4605 = vmatprep.mubr.f32.mxu0 0.0
    %4606 = vmatmul.mubr.f32.gmra.mxu0 %v4537
    %v4607 = vpop.f32.mrf.mxu0
    %v4608 = vadd.f32 0.0, %v4607
    %v4609 = vpop.f32.mrf.mxu0
    %4610 = vdwg.mxu0
    %4611 = vrot.lane.b32.xlu0 %v3173, 120
    %v4612 = vpop.permute.xlu0 %4611
    %4613 = vrot.lane.b32.xlu0 %v3173, 104
    %v4614 = vpop.permute.xlu0 %4613
    %v4615 = vsel %vm217, %v4612, 0
    %v4617 = vsel %vm217, %v4614, 0
    %4619 = vmatprep.subr.mxu0 0.0
    %4620 = vmatpush1.xpose.msra.mxu0 0.0
    %4621 = vmatprep.subr.mxu0 0.0
    %4622 = vmatpush1.xpose.msra.mxu0 0.0
    %4623 = vmatprep.subr.mxu0 0.0
    %4624 = vmatpush1.xpose.msra.mxu0 0.0
    %4625 = vmatprep.subr.mxu0 0.0
    %4626 = vmatpush1.xpose.msra.mxu0 0.0
    %4627 = vmatprep.subr.mxu0 0.0
    %4628 = vmatpush1.xpose.msra.mxu0 0.0
    %4629 = vmatprep.subr.mxu0 0.0
    %4630 = vmatpush1.xpose.msra.mxu0 0.0
    %4631 = vmatprep.subr.mxu0 0.0
    %4632 = vmatpush1.xpose.msra.mxu0 0.0
    %4633 = vmatprep.subr.mxu0 0.0
    %4634 = vmatpush1.xpose.msra.mxu0 0.0
    %4635 = vmatprep.subr.mxu0 0.0
    %4636 = vmatpush1.xpose.msra.mxu0 0.0
    %4637 = vmatprep.subr.mxu0 0.0
    %4638 = vmatpush1.xpose.msra.mxu0 0.0
    %4639 = vmatprep.subr.mxu0 0.0
    %4640 = vmatpush1.xpose.msra.mxu0 0.0
    %4641 = vmatprep.subr.mxu0 0.0
    %4642 = vmatpush1.xpose.msra.mxu0 0.0
    %4643 = vmatprep.subr.mxu0 0.0
    %4644 = vmatpush1.xpose.msra.mxu0 0.0
    %4645 = vmatprep.subr.mxu0 0.0
    %4646 = vmatpush1.xpose.msra.mxu0 0.0
    %4647 = vmatprep.subr.mxu0 0.0
    %4648 = vmatpush1.xpose.msra.mxu0 0.0
    %4649 = vmatprep.subr.mxu0 0.0
    %4650 = vmatpush1.xpose.msra.mxu0 %v4617
    %4651 = vmatprep.subr.mxu0 0.0
    %4652 = vmatpush2.xpose.msra.mxu0 0.0
    %4653 = vmatprep.subr.mxu0 0.0
    %4654 = vmatpush2.xpose.msra.mxu0 0.0
    %4655 = vmatprep.subr.mxu0 0.0
    %4656 = vmatpush2.xpose.msra.mxu0 0.0
    %4657 = vmatprep.subr.mxu0 0.0
    %4658 = vmatpush2.xpose.msra.mxu0 0.0
    %4659 = vmatprep.subr.mxu0 0.0
    %4660 = vmatpush2.xpose.msra.mxu0 0.0
    %4661 = vmatprep.subr.mxu0 0.0
    %4662 = vmatpush2.xpose.msra.mxu0 0.0
    %4663 = vmatprep.subr.mxu0 0.0
    %4664 = vmatpush2.xpose.msra.mxu0 0.0
    %4665 = vmatprep.subr.mxu0 0.0
    %4666 = vmatpush2.xpose.msra.mxu0 0.0
    %4667 = vmatprep.subr.mxu0 0.0
    %4668 = vmatpush2.xpose.msra.mxu0 0.0
    %4669 = vmatprep.subr.mxu0 0.0
    %4670 = vmatpush2.xpose.msra.mxu0 0.0
    %4671 = vmatprep.subr.mxu0 0.0
    %4672 = vmatpush2.xpose.msra.mxu0 0.0
    %4673 = vmatprep.subr.mxu0 0.0
    %4674 = vmatpush2.xpose.msra.mxu0 0.0
    %4675 = vmatprep.subr.mxu0 0.0
    %4676 = vmatpush2.xpose.msra.mxu0 0.0
    %4677 = vmatprep.subr.mxu0 0.0
    %4678 = vmatpush2.xpose.msra.mxu0 0.0
    %4679 = vmatprep.subr.mxu0 0.0
    %4680 = vmatpush2.xpose.msra.mxu0 0.0
    %4681 = vmatprep.subr.mxu0 0.0
    %4682 = vmatpush2.xpose.msra.mxu0 0.0
    %4683 = vmatprep.mubr.f32.mxu0 0.0
    %4684 = vmatmul.mubr.f32.gmra.mxu0 %v4615
    %v4685 = vpop.f32.mrf.mxu0
    %v4686 = vadd.f32 0.0, %v4685
    %v4687 = vpop.f32.mrf.mxu0
    %4688 = vdwg.mxu0
    %4689 = vrot.lane.b32.xlu0 %v3156, 120
    %v4690 = vpop.permute.xlu0 %4689
    %4691 = vrot.lane.b32.xlu0 %v3156, 104
    %v4692 = vpop.permute.xlu0 %4691
    %v4693 = vsel %vm217, %v4690, 0
    %v4695 = vsel %vm217, %v4692, 0
    %4697 = vmatprep.subr.mxu0 0.0
    %4698 = vmatpush1.xpose.msra.mxu0 0.0
    %4699 = vmatprep.subr.mxu0 0.0
    %4700 = vmatpush1.xpose.msra.mxu0 0.0
    %4701 = vmatprep.subr.mxu0 0.0
    %4702 = vmatpush1.xpose.msra.mxu0 0.0
    %4703 = vmatprep.subr.mxu0 0.0
    %4704 = vmatpush1.xpose.msra.mxu0 0.0
    %4705 = vmatprep.subr.mxu0 0.0
    %4706 = vmatpush1.xpose.msra.mxu0 0.0
    %4707 = vmatprep.subr.mxu0 0.0
    %4708 = vmatpush1.xpose.msra.mxu0 0.0
    %4709 = vmatprep.subr.mxu0 0.0
    %4710 = vmatpush1.xpose.msra.mxu0 0.0
    %4711 = vmatprep.subr.mxu0 0.0
    %4712 = vmatpush1.xpose.msra.mxu0 0.0
    %4713 = vmatprep.subr.mxu0 0.0
    %4714 = vmatpush1.xpose.msra.mxu0 0.0
    %4715 = vmatprep.subr.mxu0 0.0
    %4716 = vmatpush1.xpose.msra.mxu0 0.0
    %4717 = vmatprep.subr.mxu0 0.0
    %4718 = vmatpush1.xpose.msra.mxu0 0.0
    %4719 = vmatprep.subr.mxu0 0.0
    %4720 = vmatpush1.xpose.msra.mxu0 0.0
    %4721 = vmatprep.subr.mxu0 0.0
    %4722 = vmatpush1.xpose.msra.mxu0 0.0
    %4723 = vmatprep.subr.mxu0 0.0
    %4724 = vmatpush1.xpose.msra.mxu0 0.0
    %4725 = vmatprep.subr.mxu0 0.0
    %4726 = vmatpush1.xpose.msra.mxu0 0.0
    %4727 = vmatprep.subr.mxu0 0.0
    %4728 = vmatpush1.xpose.msra.mxu0 %v4695
    %4729 = vmatprep.subr.mxu0 0.0
    %4730 = vmatpush2.xpose.msra.mxu0 0.0
    %4731 = vmatprep.subr.mxu0 0.0
    %4732 = vmatpush2.xpose.msra.mxu0 0.0
    %4733 = vmatprep.subr.mxu0 0.0
    %4734 = vmatpush2.xpose.msra.mxu0 0.0
    %4735 = vmatprep.subr.mxu0 0.0
    %4736 = vmatpush2.xpose.msra.mxu0 0.0
    %4737 = vmatprep.subr.mxu0 0.0
    %4738 = vmatpush2.xpose.msra.mxu0 0.0
    %4739 = vmatprep.subr.mxu0 0.0
    %4740 = vmatpush2.xpose.msra.mxu0 0.0
    %4741 = vmatprep.subr.mxu0 0.0
    %4742 = vmatpush2.xpose.msra.mxu0 0.0
    %4743 = vmatprep.subr.mxu0 0.0
    %4744 = vmatpush2.xpose.msra.mxu0 0.0
    %4745 = vmatprep.subr.mxu0 0.0
    %4746 = vmatpush2.xpose.msra.mxu0 0.0
    %4747 = vmatprep.subr.mxu0 0.0
    %4748 = vmatpush2.xpose.msra.mxu0 0.0
    %4749 = vmatprep.subr.mxu0 0.0
    %4750 = vmatpush2.xpose.msra.mxu0 0.0
    %4751 = vmatprep.subr.mxu0 0.0
    %4752 = vmatpush2.xpose.msra.mxu0 0.0
    %4753 = vmatprep.subr.mxu0 0.0
    %4754 = vmatpush2.xpose.msra.mxu0 0.0
    %4755 = vmatprep.subr.mxu0 0.0
    %4756 = vmatpush2.xpose.msra.mxu0 0.0
    %4757 = vmatprep.subr.mxu0 0.0
    %4758 = vmatpush2.xpose.msra.mxu0 0.0
    %4759 = vmatprep.subr.mxu0 0.0
    %4760 = vmatpush2.xpose.msra.mxu0 0.0
    %4761 = vmatprep.mubr.f32.mxu0 0.0
    %4762 = vmatmul.mubr.f32.gmra.mxu0 %v4693
    %v4763 = vpop.f32.mrf.mxu0
    %v4764 = vadd.f32 0.0, %v4763
    %v4765 = vpop.f32.mrf.mxu0
    %4766 = vdwg.mxu0
    %4767 = vrot.lane.b32.xlu0 %v3174, 120
    %v4768 = vpop.permute.xlu0 %4767
    %4769 = vrot.lane.b32.xlu0 %v3174, 104
    %v4770 = vpop.permute.xlu0 %4769
    %v4771 = vsel %vm217, %v4768, 0
    %v4773 = vsel %vm217, %v4770, 0
    %4775 = vmatprep.subr.mxu0 0.0
    %4776 = vmatpush1.xpose.msra.mxu0 0.0
    %4777 = vmatprep.subr.mxu0 0.0
    %4778 = vmatpush1.xpose.msra.mxu0 0.0
    %4779 = vmatprep.subr.mxu0 0.0
    %4780 = vmatpush1.xpose.msra.mxu0 0.0
    %4781 = vmatprep.subr.mxu0 0.0
    %4782 = vmatpush1.xpose.msra.mxu0 0.0
    %4783 = vmatprep.subr.mxu0 0.0
    %4784 = vmatpush1.xpose.msra.mxu0 0.0
    %4785 = vmatprep.subr.mxu0 0.0
    %4786 = vmatpush1.xpose.msra.mxu0 0.0
    %4787 = vmatprep.subr.mxu0 0.0
    %4788 = vmatpush1.xpose.msra.mxu0 0.0
    %4789 = vmatprep.subr.mxu0 0.0
    %4790 = vmatpush1.xpose.msra.mxu0 0.0
    %4791 = vmatprep.subr.mxu0 0.0
    %4792 = vmatpush1.xpose.msra.mxu0 0.0
    %4793 = vmatprep.subr.mxu0 0.0
    %4794 = vmatpush1.xpose.msra.mxu0 0.0
    %4795 = vmatprep.subr.mxu0 0.0
    %4796 = vmatpush1.xpose.msra.mxu0 0.0
    %4797 = vmatprep.subr.mxu0 0.0
    %4798 = vmatpush1.xpose.msra.mxu0 0.0
    %4799 = vmatprep.subr.mxu0 0.0
    %4800 = vmatpush1.xpose.msra.mxu0 0.0
    %4801 = vmatprep.subr.mxu0 0.0
    %4802 = vmatpush1.xpose.msra.mxu0 0.0
    %4803 = vmatprep.subr.mxu0 0.0
    %4804 = vmatpush1.xpose.msra.mxu0 0.0
    %4805 = vmatprep.subr.mxu0 0.0
    %4806 = vmatpush1.xpose.msra.mxu0 %v4773
    %4807 = vmatprep.subr.mxu0 0.0
    %4808 = vmatpush2.xpose.msra.mxu0 0.0
    %4809 = vmatprep.subr.mxu0 0.0
    %4810 = vmatpush2.xpose.msra.mxu0 0.0
    %4811 = vmatprep.subr.mxu0 0.0
    %4812 = vmatpush2.xpose.msra.mxu0 0.0
    %4813 = vmatprep.subr.mxu0 0.0
    %4814 = vmatpush2.xpose.msra.mxu0 0.0
    %4815 = vmatprep.subr.mxu0 0.0
    %4816 = vmatpush2.xpose.msra.mxu0 0.0
    %4817 = vmatprep.subr.mxu0 0.0
    %4818 = vmatpush2.xpose.msra.mxu0 0.0
    %4819 = vmatprep.subr.mxu0 0.0
    %4820 = vmatpush2.xpose.msra.mxu0 0.0
    %4821 = vmatprep.subr.mxu0 0.0
    %4822 = vmatpush2.xpose.msra.mxu0 0.0
    %4823 = vmatprep.subr.mxu0 0.0
    %4824 = vmatpush2.xpose.msra.mxu0 0.0
    %4825 = vmatprep.subr.mxu0 0.0
    %4826 = vmatpush2.xpose.msra.mxu0 0.0
    %4827 = vmatprep.subr.mxu0 0.0
    %4828 = vmatpush2.xpose.msra.mxu0 0.0
    %4829 = vmatprep.subr.mxu0 0.0
    %4830 = vmatpush2.xpose.msra.mxu0 0.0
    %4831 = vmatprep.subr.mxu0 0.0
    %4832 = vmatpush2.xpose.msra.mxu0 0.0
    %4833 = vmatprep.subr.mxu0 0.0
    %4834 = vmatpush2.xpose.msra.mxu0 0.0
    %4835 = vmatprep.subr.mxu0 0.0
    %4836 = vmatpush2.xpose.msra.mxu0 0.0
    %4837 = vmatprep.subr.mxu0 0.0
    %4838 = vmatpush2.xpose.msra.mxu0 0.0
    %4839 = vmatprep.mubr.f32.mxu0 0.0
    %4840 = vmatmul.mubr.f32.gmra.mxu0 %v4771
    %v4841 = vpop.f32.mrf.mxu0
    %v4842 = vadd.f32 0.0, %v4841
    %v4843 = vpop.f32.mrf.mxu0
    %4844 = vdwg.mxu0
    %4845 = vrot.lane.b32.xlu0 %v3161, 120
    %v4846 = vpop.permute.xlu0 %4845
    %4847 = vrot.lane.b32.xlu0 %v3161, 104
    %v4848 = vpop.permute.xlu0 %4847
    %v4849 = vsel %vm217, %v4846, 0
    %v4851 = vsel %vm217, %v4848, 0
    %4853 = vmatprep.subr.mxu0 0.0
    %4854 = vmatpush1.xpose.msra.mxu0 0.0
    %4855 = vmatprep.subr.mxu0 0.0
    %4856 = vmatpush1.xpose.msra.mxu0 0.0
    %4857 = vmatprep.subr.mxu0 0.0
    %4858 = vmatpush1.xpose.msra.mxu0 0.0
    %4859 = vmatprep.subr.mxu0 0.0
    %4860 = vmatpush1.xpose.msra.mxu0 0.0
    %4861 = vmatprep.subr.mxu0 0.0
    %4862 = vmatpush1.xpose.msra.mxu0 0.0
    %4863 = vmatprep.subr.mxu0 0.0
    %4864 = vmatpush1.xpose.msra.mxu0 0.0
    %4865 = vmatprep.subr.mxu0 0.0
    %4866 = vmatpush1.xpose.msra.mxu0 0.0
    %4867 = vmatprep.subr.mxu0 0.0
    %4868 = vmatpush1.xpose.msra.mxu0 0.0
    %4869 = vmatprep.subr.mxu0 0.0
    %4870 = vmatpush1.xpose.msra.mxu0 0.0
    %4871 = vmatprep.subr.mxu0 0.0
    %4872 = vmatpush1.xpose.msra.mxu0 0.0
    %4873 = vmatprep.subr.mxu0 0.0
    %4874 = vmatpush1.xpose.msra.mxu0 0.0
    %4875 = vmatprep.subr.mxu0 0.0
    %4876 = vmatpush1.xpose.msra.mxu0 0.0
    %4877 = vmatprep.subr.mxu0 0.0
    %4878 = vmatpush1.xpose.msra.mxu0 0.0
    %4879 = vmatprep.subr.mxu0 0.0
    %4880 = vmatpush1.xpose.msra.mxu0 0.0
    %4881 = vmatprep.subr.mxu0 0.0
    %4882 = vmatpush1.xpose.msra.mxu0 0.0
    %4883 = vmatprep.subr.mxu0 0.0
    %4884 = vmatpush1.xpose.msra.mxu0 %v4851
    %4885 = vmatprep.subr.mxu0 0.0
    %4886 = vmatpush2.xpose.msra.mxu0 0.0
    %4887 = vmatprep.subr.mxu0 0.0
    %4888 = vmatpush2.xpose.msra.mxu0 0.0
    %4889 = vmatprep.subr.mxu0 0.0
    %4890 = vmatpush2.xpose.msra.mxu0 0.0
    %4891 = vmatprep.subr.mxu0 0.0
    %4892 = vmatpush2.xpose.msra.mxu0 0.0
    %4893 = vmatprep.subr.mxu0 0.0
    %4894 = vmatpush2.xpose.msra.mxu0 0.0
    %4895 = vmatprep.subr.mxu0 0.0
    %4896 = vmatpush2.xpose.msra.mxu0 0.0
    %4897 = vmatprep.subr.mxu0 0.0
    %4898 = vmatpush2.xpose.msra.mxu0 0.0
    %4899 = vmatprep.subr.mxu0 0.0
    %4900 = vmatpush2.xpose.msra.mxu0 0.0
    %4901 = vmatprep.subr.mxu0 0.0
    %4902 = vmatpush2.xpose.msra.mxu0 0.0
    %4903 = vmatprep.subr.mxu0 0.0
    %4904 = vmatpush2.xpose.msra.mxu0 0.0
    %4905 = vmatprep.subr.mxu0 0.0
    %4906 = vmatpush2.xpose.msra.mxu0 0.0
    %4907 = vmatprep.subr.mxu0 0.0
    %4908 = vmatpush2.xpose.msra.mxu0 0.0
    %4909 = vmatprep.subr.mxu0 0.0
    %4910 = vmatpush2.xpose.msra.mxu0 0.0
    %4911 = vmatprep.subr.mxu0 0.0
    %4912 = vmatpush2.xpose.msra.mxu0 0.0
    %4913 = vmatprep.subr.mxu0 0.0
    %4914 = vmatpush2.xpose.msra.mxu0 0.0
    %4915 = vmatprep.subr.mxu0 0.0
    %4916 = vmatpush2.xpose.msra.mxu0 0.0
    %4917 = vmatprep.mubr.f32.mxu0 0.0
    %4918 = vmatmul.mubr.f32.gmra.mxu0 %v4849
    %v4919 = vpop.f32.mrf.mxu0
    %v4920 = vadd.f32 0.0, %v4919
    %v4921 = vpop.f32.mrf.mxu0
    %4922 = vdwg.mxu0
    %4923 = vrot.lane.b32.xlu0 %v3175, 120
    %v4924 = vpop.permute.xlu0 %4923
    %4925 = vrot.lane.b32.xlu0 %v3175, 104
    %v4926 = vpop.permute.xlu0 %4925
    %v4927 = vsel %vm217, %v4924, 0
    %v4929 = vsel %vm217, %v4926, 0
    %4931 = vmatprep.subr.mxu0 0.0
    %4932 = vmatpush1.xpose.msra.mxu0 0.0
    %4933 = vmatprep.subr.mxu0 0.0
    %4934 = vmatpush1.xpose.msra.mxu0 0.0
    %4935 = vmatprep.subr.mxu0 0.0
    %4936 = vmatpush1.xpose.msra.mxu0 0.0
    %4937 = vmatprep.subr.mxu0 0.0
    %4938 = vmatpush1.xpose.msra.mxu0 0.0
    %4939 = vmatprep.subr.mxu0 0.0
    %4940 = vmatpush1.xpose.msra.mxu0 0.0
    %4941 = vmatprep.subr.mxu0 0.0
    %4942 = vmatpush1.xpose.msra.mxu0 0.0
    %4943 = vmatprep.subr.mxu0 0.0
    %4944 = vmatpush1.xpose.msra.mxu0 0.0
    %4945 = vmatprep.subr.mxu0 0.0
    %4946 = vmatpush1.xpose.msra.mxu0 0.0
    %4947 = vmatprep.subr.mxu0 0.0
    %4948 = vmatpush1.xpose.msra.mxu0 0.0
    %4949 = vmatprep.subr.mxu0 0.0
    %4950 = vmatpush1.xpose.msra.mxu0 0.0
    %4951 = vmatprep.subr.mxu0 0.0
    %4952 = vmatpush1.xpose.msra.mxu0 0.0
    %4953 = vmatprep.subr.mxu0 0.0
    %4954 = vmatpush1.xpose.msra.mxu0 0.0
    %4955 = vmatprep.subr.mxu0 0.0
    %4956 = vmatpush1.xpose.msra.mxu0 0.0
    %4957 = vmatprep.subr.mxu0 0.0
    %4958 = vmatpush1.xpose.msra.mxu0 0.0
    %4959 = vmatprep.subr.mxu0 0.0
    %4960 = vmatpush1.xpose.msra.mxu0 0.0
    %4961 = vmatprep.subr.mxu0 0.0
    %4962 = vmatpush1.xpose.msra.mxu0 %v4929
    %4963 = vmatprep.subr.mxu0 0.0
    %4964 = vmatpush2.xpose.msra.mxu0 0.0
    %4965 = vmatprep.subr.mxu0 0.0
    %4966 = vmatpush2.xpose.msra.mxu0 0.0
    %4967 = vmatprep.subr.mxu0 0.0
    %4968 = vmatpush2.xpose.msra.mxu0 0.0
    %4969 = vmatprep.subr.mxu0 0.0
    %4970 = vmatpush2.xpose.msra.mxu0 0.0
    %4971 = vmatprep.subr.mxu0 0.0
    %4972 = vmatpush2.xpose.msra.mxu0 0.0
    %4973 = vmatprep.subr.mxu0 0.0
    %4974 = vmatpush2.xpose.msra.mxu0 0.0
    %4975 = vmatprep.subr.mxu0 0.0
    %4976 = vmatpush2.xpose.msra.mxu0 0.0
    %4977 = vmatprep.subr.mxu0 0.0
    %4978 = vmatpush2.xpose.msra.mxu0 0.0
    %4979 = vmatprep.subr.mxu0 0.0
    %4980 = vmatpush2.xpose.msra.mxu0 0.0
    %4981 = vmatprep.subr.mxu0 0.0
    %4982 = vmatpush2.xpose.msra.mxu0 0.0
    %4983 = vmatprep.subr.mxu0 0.0
    %4984 = vmatpush2.xpose.msra.mxu0 0.0
    %4985 = vmatprep.subr.mxu0 0.0
    %4986 = vmatpush2.xpose.msra.mxu0 0.0
    %4987 = vmatprep.subr.mxu0 0.0
    %4988 = vmatpush2.xpose.msra.mxu0 0.0
    %4989 = vmatprep.subr.mxu0 0.0
    %4990 = vmatpush2.xpose.msra.mxu0 0.0
    %4991 = vmatprep.subr.mxu0 0.0
    %4992 = vmatpush2.xpose.msra.mxu0 0.0
    %4993 = vmatprep.subr.mxu0 0.0
    %4994 = vmatpush2.xpose.msra.mxu0 0.0
    %4995 = vmatprep.mubr.f32.mxu0 0.0
    %4996 = vmatmul.mubr.f32.gmra.mxu0 %v4927
    %v4997 = vpop.f32.mrf.mxu0
    %v4998 = vadd.f32 0.0, %v4997
    %v4999 = vpop.f32.mrf.mxu0
    %5000 = vdwg.mxu0
    %5001 = vrot.lane.b32.xlu0 %v3166, 120
    %v5002 = vpop.permute.xlu0 %5001
    %5003 = vrot.lane.b32.xlu0 %v3166, 104
    %v5004 = vpop.permute.xlu0 %5003
    %v5005 = vsel %vm217, %v5002, 0
    %v5007 = vsel %vm217, %v5004, 0
    %5009 = vmatprep.subr.mxu0 0.0
    %5010 = vmatpush1.xpose.msra.mxu0 0.0
    %5011 = vmatprep.subr.mxu0 0.0
    %5012 = vmatpush1.xpose.msra.mxu0 0.0
    %5013 = vmatprep.subr.mxu0 0.0
    %5014 = vmatpush1.xpose.msra.mxu0 0.0
    %5015 = vmatprep.subr.mxu0 0.0
    %5016 = vmatpush1.xpose.msra.mxu0 0.0
    %5017 = vmatprep.subr.mxu0 0.0
    %5018 = vmatpush1.xpose.msra.mxu0 0.0
    %5019 = vmatprep.subr.mxu0 0.0
    %5020 = vmatpush1.xpose.msra.mxu0 0.0
    %5021 = vmatprep.subr.mxu0 0.0
    %5022 = vmatpush1.xpose.msra.mxu0 0.0
    %5023 = vmatprep.subr.mxu0 0.0
    %5024 = vmatpush1.xpose.msra.mxu0 0.0
    %5025 = vmatprep.subr.mxu0 0.0
    %5026 = vmatpush1.xpose.msra.mxu0 0.0
    %5027 = vmatprep.subr.mxu0 0.0
    %5028 = vmatpush1.xpose.msra.mxu0 0.0
    %5029 = vmatprep.subr.mxu0 0.0
    %5030 = vmatpush1.xpose.msra.mxu0 0.0
    %5031 = vmatprep.subr.mxu0 0.0
    %5032 = vmatpush1.xpose.msra.mxu0 0.0
    %5033 = vmatprep.subr.mxu0 0.0
    %5034 = vmatpush1.xpose.msra.mxu0 0.0
    %5035 = vmatprep.subr.mxu0 0.0
    %5036 = vmatpush1.xpose.msra.mxu0 0.0
    %5037 = vmatprep.subr.mxu0 0.0
    %5038 = vmatpush1.xpose.msra.mxu0 0.0
    %5039 = vmatprep.subr.mxu0 0.0
    %5040 = vmatpush1.xpose.msra.mxu0 %v5007
    %5041 = vmatprep.subr.mxu0 0.0
    %5042 = vmatpush2.xpose.msra.mxu0 0.0
    %5043 = vmatprep.subr.mxu0 0.0
    %5044 = vmatpush2.xpose.msra.mxu0 0.0
    %5045 = vmatprep.subr.mxu0 0.0
    %5046 = vmatpush2.xpose.msra.mxu0 0.0
    %5047 = vmatprep.subr.mxu0 0.0
    %5048 = vmatpush2.xpose.msra.mxu0 0.0
    %5049 = vmatprep.subr.mxu0 0.0
    %5050 = vmatpush2.xpose.msra.mxu0 0.0
    %5051 = vmatprep.subr.mxu0 0.0
    %5052 = vmatpush2.xpose.msra.mxu0 0.0
    %5053 = vmatprep.subr.mxu0 0.0
    %5054 = vmatpush2.xpose.msra.mxu0 0.0
    %5055 = vmatprep.subr.mxu0 0.0
    %5056 = vmatpush2.xpose.msra.mxu0 0.0
    %5057 = vmatprep.subr.mxu0 0.0
    %5058 = vmatpush2.xpose.msra.mxu0 0.0
    %5059 = vmatprep.subr.mxu0 0.0
    %5060 = vmatpush2.xpose.msra.mxu0 0.0
    %5061 = vmatprep.subr.mxu0 0.0
    %5062 = vmatpush2.xpose.msra.mxu0 0.0
    %5063 = vmatprep.subr.mxu0 0.0
    %5064 = vmatpush2.xpose.msra.mxu0 0.0
    %5065 = vmatprep.subr.mxu0 0.0
    %5066 = vmatpush2.xpose.msra.mxu0 0.0
    %5067 = vmatprep.subr.mxu0 0.0
    %5068 = vmatpush2.xpose.msra.mxu0 0.0
    %5069 = vmatprep.subr.mxu0 0.0
    %5070 = vmatpush2.xpose.msra.mxu0 0.0
    %5071 = vmatprep.subr.mxu0 0.0
    %5072 = vmatpush2.xpose.msra.mxu0 0.0
    %5073 = vmatprep.mubr.f32.mxu0 0.0
    %5074 = vmatmul.mubr.f32.gmra.mxu0 %v5005
    %v5075 = vpop.f32.mrf.mxu0
    %v5076 = vadd.f32 0.0, %v5075
    %v5077 = vpop.f32.mrf.mxu0
    %5078 = vdwg.mxu0
    %5079 = vrot.lane.b32.xlu0 %v3176, 120
    %v5080 = vpop.permute.xlu0 %5079
    %5081 = vrot.lane.b32.xlu0 %v3176, 104
    %v5082 = vpop.permute.xlu0 %5081
    %v5083 = vsel %vm217, %v5080, 0
    %v5085 = vsel %vm217, %v5082, 0
    %5087 = vmatprep.subr.mxu0 0.0
    %5088 = vmatpush1.xpose.msra.mxu0 0.0
    %5089 = vmatprep.subr.mxu0 0.0
    %5090 = vmatpush1.xpose.msra.mxu0 0.0
    %5091 = vmatprep.subr.mxu0 0.0
    %5092 = vmatpush1.xpose.msra.mxu0 0.0
    %5093 = vmatprep.subr.mxu0 0.0
    %5094 = vmatpush1.xpose.msra.mxu0 0.0
    %5095 = vmatprep.subr.mxu0 0.0
    %5096 = vmatpush1.xpose.msra.mxu0 0.0
    %5097 = vmatprep.subr.mxu0 0.0
    %5098 = vmatpush1.xpose.msra.mxu0 0.0
    %5099 = vmatprep.subr.mxu0 0.0
    %5100 = vmatpush1.xpose.msra.mxu0 0.0
    %5101 = vmatprep.subr.mxu0 0.0
    %5102 = vmatpush1.xpose.msra.mxu0 0.0
    %5103 = vmatprep.subr.mxu0 0.0
    %5104 = vmatpush1.xpose.msra.mxu0 0.0
    %5105 = vmatprep.subr.mxu0 0.0
    %5106 = vmatpush1.xpose.msra.mxu0 0.0
    %5107 = vmatprep.subr.mxu0 0.0
    %5108 = vmatpush1.xpose.msra.mxu0 0.0
    %5109 = vmatprep.subr.mxu0 0.0
    %5110 = vmatpush1.xpose.msra.mxu0 0.0
    %5111 = vmatprep.subr.mxu0 0.0
    %5112 = vmatpush1.xpose.msra.mxu0 0.0
    %5113 = vmatprep.subr.mxu0 0.0
    %5114 = vmatpush1.xpose.msra.mxu0 0.0
    %5115 = vmatprep.subr.mxu0 0.0
    %5116 = vmatpush1.xpose.msra.mxu0 0.0
    %5117 = vmatprep.subr.mxu0 0.0
    %5118 = vmatpush1.xpose.msra.mxu0 %v5085
    %5119 = vmatprep.subr.mxu0 0.0
    %5120 = vmatpush2.xpose.msra.mxu0 0.0
    %5121 = vmatprep.subr.mxu0 0.0
    %5122 = vmatpush2.xpose.msra.mxu0 0.0
    %5123 = vmatprep.subr.mxu0 0.0
    %5124 = vmatpush2.xpose.msra.mxu0 0.0
    %5125 = vmatprep.subr.mxu0 0.0
    %5126 = vmatpush2.xpose.msra.mxu0 0.0
    %5127 = vmatprep.subr.mxu0 0.0
    %5128 = vmatpush2.xpose.msra.mxu0 0.0
    %5129 = vmatprep.subr.mxu0 0.0
    %5130 = vmatpush2.xpose.msra.mxu0 0.0
    %5131 = vmatprep.subr.mxu0 0.0
    %5132 = vmatpush2.xpose.msra.mxu0 0.0
    %5133 = vmatprep.subr.mxu0 0.0
    %5134 = vmatpush2.xpose.msra.mxu0 0.0
    %5135 = vmatprep.subr.mxu0 0.0
    %5136 = vmatpush2.xpose.msra.mxu0 0.0
    %5137 = vmatprep.subr.mxu0 0.0
    %5138 = vmatpush2.xpose.msra.mxu0 0.0
    %5139 = vmatprep.subr.mxu0 0.0
    %5140 = vmatpush2.xpose.msra.mxu0 0.0
    %5141 = vmatprep.subr.mxu0 0.0
    %5142 = vmatpush2.xpose.msra.mxu0 0.0
    %5143 = vmatprep.subr.mxu0 0.0
    %5144 = vmatpush2.xpose.msra.mxu0 0.0
    %5145 = vmatprep.subr.mxu0 0.0
    %5146 = vmatpush2.xpose.msra.mxu0 0.0
    %5147 = vmatprep.subr.mxu0 0.0
    %5148 = vmatpush2.xpose.msra.mxu0 0.0
    %5149 = vmatprep.subr.mxu0 0.0
    %5150 = vmatpush2.xpose.msra.mxu0 0.0
    %5151 = vmatprep.mubr.f32.mxu0 0.0
    %5152 = vmatmul.mubr.f32.gmra.mxu0 %v5083
    %v5153 = vpop.f32.mrf.mxu0
    %v5154 = vadd.f32 0.0, %v5153
    %v5155 = vpop.f32.mrf.mxu0
    %5156 = vdwg.mxu0
    %v5157 = vsel %vm931, %v4608, -inf
    %5158 = vmax.xlane.f32.xlu0 %v5157
    %v5159 = vpop.xlane.xlu0 %5158
    %v5160 = vsel %vm931, %v4686, -inf
    %5161 = vmax.xlane.f32.xlu0 %v5160
    %v5162 = vpop.xlane.xlu0 %5161
    %v5163 = vsel %vm931, %v4764, -inf
    %5164 = vmax.xlane.f32.xlu0 %v5163
    %v5165 = vpop.xlane.xlu0 %5164
    %v5166 = vsel %vm931, %v4842, -inf
    %5167 = vmax.xlane.f32.xlu0 %v5166
    %v5168 = vpop.xlane.xlu0 %5167
    %v5169 = vsel %vm931, %v4920, -inf
    %5170 = vmax.xlane.f32.xlu0 %v5169
    %v5171 = vpop.xlane.xlu0 %5170
    %v5172 = vsel %vm931, %v4998, -inf
    %5173 = vmax.xlane.f32.xlu0 %v5172
    %v5174 = vpop.xlane.xlu0 %5173
    %v5175 = vsel %vm931, %v5076, -inf
    %5176 = vmax.xlane.f32.xlu0 %v5175
    %v5177 = vpop.xlane.xlu0 %5176
    %v5178 = vsel %vm931, %v5154, -inf
    %5179 = vmax.xlane.f32.xlu0 %v5178
    %v5180 = vpop.xlane.xlu0 %5179
    %v5181 = vsub.f32 %v4608, %v5159
    %v5182 = vsub.f32 %v4686, %v5162
    %v5183 = vsub.f32 %v4764, %v5165
    %v5184 = vsub.f32 %v4842, %v5168
    %v5185 = vsub.f32 %v4920, %v5171
    %v5186 = vsub.f32 %v4998, %v5174
    %v5187 = vsub.f32 %v5076, %v5177
    %v5188 = vsub.f32 %v5154, %v5180
    %v5189 = vmul.f32 %v5181, 1.442695
    %v5190 = vpow.pop %v5189
    %v5191 = vmul.f32 %v5182, 1.442695
    %v5192 = vpow.pop %v5191
    %v5193 = vmul.f32 %v5183, 1.442695
    %v5194 = vpow.pop %v5193
    %v5195 = vmul.f32 %v5184, 1.442695
    %v5196 = vpow.pop %v5195
    %v5197 = vmul.f32 %v5185, 1.442695
    %v5198 = vpow.pop %v5197
    %v5199 = vmul.f32 %v5186, 1.442695
    %v5200 = vpow.pop %v5199
    %v5201 = vmul.f32 %v5187, 1.442695
    %v5202 = vpow.pop %v5201
    %v5203 = vmul.f32 %v5188, 1.442695
    %v5204 = vpow.pop %v5203
    %v5205 = vsel %vm931, %v5190, 0.0
    %5206 = vadd.xlane.f32.xlu0 %v5205
    %v5207 = vpop.xlane.xlu0 %5206
    %v5208 = vsel %vm931, %v5192, 0.0
    %5209 = vadd.xlane.f32.xlu0 %v5208
    %v5210 = vpop.xlane.xlu0 %5209
    %v5211 = vsel %vm931, %v5194, 0.0
    %5212 = vadd.xlane.f32.xlu0 %v5211
    %v5213 = vpop.xlane.xlu0 %5212
    %v5214 = vsel %vm931, %v5196, 0.0
    %5215 = vadd.xlane.f32.xlu0 %v5214
    %v5216 = vpop.xlane.xlu0 %5215
    %v5217 = vsel %vm931, %v5198, 0.0
    %5218 = vadd.xlane.f32.xlu0 %v5217
    %v5219 = vpop.xlane.xlu0 %5218
    %v5220 = vsel %vm931, %v5200, 0.0
    %5221 = vadd.xlane.f32.xlu0 %v5220
    %v5222 = vpop.xlane.xlu0 %5221
    %v5223 = vsel %vm931, %v5202, 0.0
    %5224 = vadd.xlane.f32.xlu0 %v5223
    %v5225 = vpop.xlane.xlu0 %5224
    %v5226 = vsel %vm931, %v5204, 0.0
    %5227 = vadd.xlane.f32.xlu0 %v5226
    %v5228 = vpop.xlane.xlu0 %5227
    %v5229 = vrcp.pop %v5207
    %v5230 = vrcp.pop %v5210
    %v5231 = vrcp.pop %v5213
    %v5232 = vrcp.pop %v5216
    %v5233 = vrcp.pop %v5219
    %v5234 = vrcp.pop %v5222
    %v5235 = vrcp.pop %v5225
    %v5236 = vrcp.pop %v5228
    %v5237 = vmul.f32 %v5190, %v5229
    %v5238 = vmul.f32 %v5192, %v5230
    %v5239 = vmul.f32 %v5194, %v5231
    %v5240 = vmul.f32 %v5196, %v5232
    %v5241 = vmul.f32 %v5198, %v5233
    %v5242 = vmul.f32 %v5200, %v5234
    %v5243 = vmul.f32 %v5202, %v5235
    %v5244 = vmul.f32 %v5204, %v5236
    %5245 = vrot.lane.b32.xlu0 %v3151, 88
    %v5246 = vpop.permute.xlu0 %5245
    %v5248 = vsel %vm1022, %v5237, 0
    %v5250 = vsel %vm1026, %v5246, 0
    %5252 = vmatprep.subr.mxu0 0.0
    %5253 = vmatpush1.msra.mxu0 0.0
    %5254 = vmatprep.subr.mxu0 0.0
    %5255 = vmatpush1.msra.mxu0 0.0
    %5256 = vmatprep.subr.mxu0 0.0
    %5257 = vmatpush1.msra.mxu0 0.0
    %5258 = vmatprep.subr.mxu0 0.0
    %5259 = vmatpush1.msra.mxu0 0.0
    %5260 = vmatprep.subr.mxu0 0.0
    %5261 = vmatpush1.msra.mxu0 0.0
    %5262 = vmatprep.subr.mxu0 0.0
    %5263 = vmatpush1.msra.mxu0 0.0
    %5264 = vmatprep.subr.mxu0 0.0
    %5265 = vmatpush1.msra.mxu0 0.0
    %5266 = vmatprep.subr.mxu0 0.0
    %5267 = vmatpush1.msra.mxu0 0.0
    %5268 = vmatprep.subr.mxu0 0.0
    %5269 = vmatpush1.msra.mxu0 0.0
    %5270 = vmatprep.subr.mxu0 0.0
    %5271 = vmatpush1.msra.mxu0 0.0
    %5272 = vmatprep.subr.mxu0 0.0
    %5273 = vmatpush1.msra.mxu0 0.0
    %5274 = vmatprep.subr.mxu0 0.0
    %5275 = vmatpush1.msra.mxu0 0.0
    %5276 = vmatprep.subr.mxu0 0.0
    %5277 = vmatpush1.msra.mxu0 0.0
    %5278 = vmatprep.subr.mxu0 0.0
    %5279 = vmatpush1.msra.mxu0 0.0
    %5280 = vmatprep.subr.mxu0 0.0
    %5281 = vmatpush1.msra.mxu0 0.0
    %5282 = vmatprep.subr.mxu0 0.0
    %5283 = vmatpush1.msra.mxu0 %v5250
    %5284 = vmatprep.subr.mxu0 0.0
    %5285 = vmatpush2.msra.mxu0 0.0
    %5286 = vmatprep.subr.mxu0 0.0
    %5287 = vmatpush2.msra.mxu0 0.0
    %5288 = vmatprep.subr.mxu0 0.0
    %5289 = vmatpush2.msra.mxu0 0.0
    %5290 = vmatprep.subr.mxu0 0.0
    %5291 = vmatpush2.msra.mxu0 0.0
    %5292 = vmatprep.subr.mxu0 0.0
    %5293 = vmatpush2.msra.mxu0 0.0
    %5294 = vmatprep.subr.mxu0 0.0
    %5295 = vmatpush2.msra.mxu0 0.0
    %5296 = vmatprep.subr.mxu0 0.0
    %5297 = vmatpush2.msra.mxu0 0.0
    %5298 = vmatprep.subr.mxu0 0.0
    %5299 = vmatpush2.msra.mxu0 0.0
    %5300 = vmatprep.subr.mxu0 0.0
    %5301 = vmatpush2.msra.mxu0 0.0
    %5302 = vmatprep.subr.mxu0 0.0
    %5303 = vmatpush2.msra.mxu0 0.0
    %5304 = vmatprep.subr.mxu0 0.0
    %5305 = vmatpush2.msra.mxu0 0.0
    %5306 = vmatprep.subr.mxu0 0.0
    %5307 = vmatpush2.msra.mxu0 0.0
    %5308 = vmatprep.subr.mxu0 0.0
    %5309 = vmatpush2.msra.mxu0 0.0
    %5310 = vmatprep.subr.mxu0 0.0
    %5311 = vmatpush2.msra.mxu0 0.0
    %5312 = vmatprep.subr.mxu0 0.0
    %5313 = vmatpush2.msra.mxu0 0.0
    %5314 = vmatprep.subr.mxu0 0.0
    %5315 = vmatpush2.msra.mxu0 0.0
    %5316 = vmatprep.mubr.f32.mxu0 0.0
    %5317 = vmatmul.mubr.f32.gmra.mxu0 %v5248
    %v5318 = vpop.f32.mrf.mxu0
    %v5319 = vadd.f32 0.0, %v5318
    %v5320 = vpop.f32.mrf.mxu0
    %5321 = vdwg.mxu0
    %5322 = vrot.lane.b32.xlu0 %v3173, 88
    %v5323 = vpop.permute.xlu0 %5322
    %v5325 = vsel %vm1022, %v5238, 0
    %v5327 = vsel %vm1026, %v5323, 0
    %5329 = vmatprep.subr.mxu0 0.0
    %5330 = vmatpush1.msra.mxu0 0.0
    %5331 = vmatprep.subr.mxu0 0.0
    %5332 = vmatpush1.msra.mxu0 0.0
    %5333 = vmatprep.subr.mxu0 0.0
    %5334 = vmatpush1.msra.mxu0 0.0
    %5335 = vmatprep.subr.mxu0 0.0
    %5336 = vmatpush1.msra.mxu0 0.0
    %5337 = vmatprep.subr.mxu0 0.0
    %5338 = vmatpush1.msra.mxu0 0.0
    %5339 = vmatprep.subr.mxu0 0.0
    %5340 = vmatpush1.msra.mxu0 0.0
    %5341 = vmatprep.subr.mxu0 0.0
    %5342 = vmatpush1.msra.mxu0 0.0
    %5343 = vmatprep.subr.mxu0 0.0
    %5344 = vmatpush1.msra.mxu0 0.0
    %5345 = vmatprep.subr.mxu0 0.0
    %5346 = vmatpush1.msra.mxu0 0.0
    %5347 = vmatprep.subr.mxu0 0.0
    %5348 = vmatpush1.msra.mxu0 0.0
    %5349 = vmatprep.subr.mxu0 0.0
    %5350 = vmatpush1.msra.mxu0 0.0
    %5351 = vmatprep.subr.mxu0 0.0
    %5352 = vmatpush1.msra.mxu0 0.0
    %5353 = vmatprep.subr.mxu0 0.0
    %5354 = vmatpush1.msra.mxu0 0.0
    %5355 = vmatprep.subr.mxu0 0.0
    %5356 = vmatpush1.msra.mxu0 0.0
    %5357 = vmatprep.subr.mxu0 0.0
    %5358 = vmatpush1.msra.mxu0 0.0
    %5359 = vmatprep.subr.mxu0 0.0
    %5360 = vmatpush1.msra.mxu0 %v5327
    %5361 = vmatprep.subr.mxu0 0.0
    %5362 = vmatpush2.msra.mxu0 0.0
    %5363 = vmatprep.subr.mxu0 0.0
    %5364 = vmatpush2.msra.mxu0 0.0
    %5365 = vmatprep.subr.mxu0 0.0
    %5366 = vmatpush2.msra.mxu0 0.0
    %5367 = vmatprep.subr.mxu0 0.0
    %5368 = vmatpush2.msra.mxu0 0.0
    %5369 = vmatprep.subr.mxu0 0.0
    %5370 = vmatpush2.msra.mxu0 0.0
    %5371 = vmatprep.subr.mxu0 0.0
    %5372 = vmatpush2.msra.mxu0 0.0
    %5373 = vmatprep.subr.mxu0 0.0
    %5374 = vmatpush2.msra.mxu0 0.0
    %5375 = vmatprep.subr.mxu0 0.0
    %5376 = vmatpush2.msra.mxu0 0.0
    %5377 = vmatprep.subr.mxu0 0.0
    %5378 = vmatpush2.msra.mxu0 0.0
    %5379 = vmatprep.subr.mxu0 0.0
    %5380 = vmatpush2.msra.mxu0 0.0
    %5381 = vmatprep.subr.mxu0 0.0
    %5382 = vmatpush2.msra.mxu0 0.0
    %5383 = vmatprep.subr.mxu0 0.0
    %5384 = vmatpush2.msra.mxu0 0.0
    %5385 = vmatprep.subr.mxu0 0.0
    %5386 = vmatpush2.msra.mxu0 0.0
    %5387 = vmatprep.subr.mxu0 0.0
    %5388 = vmatpush2.msra.mxu0 0.0
    %5389 = vmatprep.subr.mxu0 0.0
    %5390 = vmatpush2.msra.mxu0 0.0
    %5391 = vmatprep.subr.mxu0 0.0
    %5392 = vmatpush2.msra.mxu0 0.0
    %5393 = vmatprep.mubr.f32.mxu0 0.0
    %5394 = vmatmul.mubr.f32.gmra.mxu0 %v5325
    %v5395 = vpop.f32.mrf.mxu0
    %v5396 = vadd.f32 0.0, %v5395
    %v5397 = vpop.f32.mrf.mxu0
    %5398 = vdwg.mxu0
    %5399 = vrot.lane.b32.xlu0 %v3156, 88
    %v5400 = vpop.permute.xlu0 %5399
    %v5402 = vsel %vm1022, %v5239, 0
    %v5404 = vsel %vm1026, %v5400, 0
    %5406 = vmatprep.subr.mxu0 0.0
    %5407 = vmatpush1.msra.mxu0 0.0
    %5408 = vmatprep.subr.mxu0 0.0
    %5409 = vmatpush1.msra.mxu0 0.0
    %5410 = vmatprep.subr.mxu0 0.0
    %5411 = vmatpush1.msra.mxu0 0.0
    %5412 = vmatprep.subr.mxu0 0.0
    %5413 = vmatpush1.msra.mxu0 0.0
    %5414 = vmatprep.subr.mxu0 0.0
    %5415 = vmatpush1.msra.mxu0 0.0
    %5416 = vmatprep.subr.mxu0 0.0
    %5417 = vmatpush1.msra.mxu0 0.0
    %5418 = vmatprep.subr.mxu0 0.0
    %5419 = vmatpush1.msra.mxu0 0.0
    %5420 = vmatprep.subr.mxu0 0.0
    %5421 = vmatpush1.msra.mxu0 0.0
    %5422 = vmatprep.subr.mxu0 0.0
    %5423 = vmatpush1.msra.mxu0 0.0
    %5424 = vmatprep.subr.mxu0 0.0
    %5425 = vmatpush1.msra.mxu0 0.0
    %5426 = vmatprep.subr.mxu0 0.0
    %5427 = vmatpush1.msra.mxu0 0.0
    %5428 = vmatprep.subr.mxu0 0.0
    %5429 = vmatpush1.msra.mxu0 0.0
    %5430 = vmatprep.subr.mxu0 0.0
    %5431 = vmatpush1.msra.mxu0 0.0
    %5432 = vmatprep.subr.mxu0 0.0
    %5433 = vmatpush1.msra.mxu0 0.0
    %5434 = vmatprep.subr.mxu0 0.0
    %5435 = vmatpush1.msra.mxu0 0.0
    %5436 = vmatprep.subr.mxu0 0.0
    %5437 = vmatpush1.msra.mxu0 %v5404
    %5438 = vmatprep.subr.mxu0 0.0
    %5439 = vmatpush2.msra.mxu0 0.0
    %5440 = vmatprep.subr.mxu0 0.0
    %5441 = vmatpush2.msra.mxu0 0.0
    %5442 = vmatprep.subr.mxu0 0.0
    %5443 = vmatpush2.msra.mxu0 0.0
    %5444 = vmatprep.subr.mxu0 0.0
    %5445 = vmatpush2.msra.mxu0 0.0
    %5446 = vmatprep.subr.mxu0 0.0
    %5447 = vmatpush2.msra.mxu0 0.0
    %5448 = vmatprep.subr.mxu0 0.0
    %5449 = vmatpush2.msra.mxu0 0.0
    %5450 = vmatprep.subr.mxu0 0.0
    %5451 = vmatpush2.msra.mxu0 0.0
    %5452 = vmatprep.subr.mxu0 0.0
    %5453 = vmatpush2.msra.mxu0 0.0
    %5454 = vmatprep.subr.mxu0 0.0
    %5455 = vmatpush2.msra.mxu0 0.0
    %5456 = vmatprep.subr.mxu0 0.0
    %5457 = vmatpush2.msra.mxu0 0.0
    %5458 = vmatprep.subr.mxu0 0.0
    %5459 = vmatpush2.msra.mxu0 0.0
    %5460 = vmatprep.subr.mxu0 0.0
    %5461 = vmatpush2.msra.mxu0 0.0
    %5462 = vmatprep.subr.mxu0 0.0
    %5463 = vmatpush2.msra.mxu0 0.0
    %5464 = vmatprep.subr.mxu0 0.0
    %5465 = vmatpush2.msra.mxu0 0.0
    %5466 = vmatprep.subr.mxu0 0.0
    %5467 = vmatpush2.msra.mxu0 0.0
    %5468 = vmatprep.subr.mxu0 0.0
    %5469 = vmatpush2.msra.mxu0 0.0
    %5470 = vmatprep.mubr.f32.mxu0 0.0
    %5471 = vmatmul.mubr.f32.gmra.mxu0 %v5402
    %v5472 = vpop.f32.mrf.mxu0
    %v5473 = vadd.f32 0.0, %v5472
    %v5474 = vpop.f32.mrf.mxu0
    %5475 = vdwg.mxu0
    %5476 = vrot.lane.b32.xlu0 %v3174, 88
    %v5477 = vpop.permute.xlu0 %5476
    %v5479 = vsel %vm1022, %v5240, 0
    %v5481 = vsel %vm1026, %v5477, 0
    %5483 = vmatprep.subr.mxu0 0.0
    %5484 = vmatpush1.msra.mxu0 0.0
    %5485 = vmatprep.subr.mxu0 0.0
    %5486 = vmatpush1.msra.mxu0 0.0
    %5487 = vmatprep.subr.mxu0 0.0
    %5488 = vmatpush1.msra.mxu0 0.0
    %5489 = vmatprep.subr.mxu0 0.0
    %5490 = vmatpush1.msra.mxu0 0.0
    %5491 = vmatprep.subr.mxu0 0.0
    %5492 = vmatpush1.msra.mxu0 0.0
    %5493 = vmatprep.subr.mxu0 0.0
    %5494 = vmatpush1.msra.mxu0 0.0
    %5495 = vmatprep.subr.mxu0 0.0
    %5496 = vmatpush1.msra.mxu0 0.0
    %5497 = vmatprep.subr.mxu0 0.0
    %5498 = vmatpush1.msra.mxu0 0.0
    %5499 = vmatprep.subr.mxu0 0.0
    %5500 = vmatpush1.msra.mxu0 0.0
    %5501 = vmatprep.subr.mxu0 0.0
    %5502 = vmatpush1.msra.mxu0 0.0
    %5503 = vmatprep.subr.mxu0 0.0
    %5504 = vmatpush1.msra.mxu0 0.0
    %5505 = vmatprep.subr.mxu0 0.0
    %5506 = vmatpush1.msra.mxu0 0.0
    %5507 = vmatprep.subr.mxu0 0.0
    %5508 = vmatpush1.msra.mxu0 0.0
    %5509 = vmatprep.subr.mxu0 0.0
    %5510 = vmatpush1.msra.mxu0 0.0
    %5511 = vmatprep.subr.mxu0 0.0
    %5512 = vmatpush1.msra.mxu0 0.0
    %5513 = vmatprep.subr.mxu0 0.0
    %5514 = vmatpush1.msra.mxu0 %v5481
    %5515 = vmatprep.subr.mxu0 0.0
    %5516 = vmatpush2.msra.mxu0 0.0
    %5517 = vmatprep.subr.mxu0 0.0
    %5518 = vmatpush2.msra.mxu0 0.0
    %5519 = vmatprep.subr.mxu0 0.0
    %5520 = vmatpush2.msra.mxu0 0.0
    %5521 = vmatprep.subr.mxu0 0.0
    %5522 = vmatpush2.msra.mxu0 0.0
    %5523 = vmatprep.subr.mxu0 0.0
    %5524 = vmatpush2.msra.mxu0 0.0
    %5525 = vmatprep.subr.mxu0 0.0
    %5526 = vmatpush2.msra.mxu0 0.0
    %5527 = vmatprep.subr.mxu0 0.0
    %5528 = vmatpush2.msra.mxu0 0.0
    %5529 = vmatprep.subr.mxu0 0.0
    %5530 = vmatpush2.msra.mxu0 0.0
    %5531 = vmatprep.subr.mxu0 0.0
    %5532 = vmatpush2.msra.mxu0 0.0
    %5533 = vmatprep.subr.mxu0 0.0
    %5534 = vmatpush2.msra.mxu0 0.0
    %5535 = vmatprep.subr.mxu0 0.0
    %5536 = vmatpush2.msra.mxu0 0.0
    %5537 = vmatprep.subr.mxu0 0.0
    %5538 = vmatpush2.msra.mxu0 0.0
    %5539 = vmatprep.subr.mxu0 0.0
    %5540 = vmatpush2.msra.mxu0 0.0
    %5541 = vmatprep.subr.mxu0 0.0
    %5542 = vmatpush2.msra.mxu0 0.0
    %5543 = vmatprep.subr.mxu0 0.0
    %5544 = vmatpush2.msra.mxu0 0.0
    %5545 = vmatprep.subr.mxu0 0.0
    %5546 = vmatpush2.msra.mxu0 0.0
    %5547 = vmatprep.mubr.f32.mxu0 0.0
    %5548 = vmatmul.mubr.f32.gmra.mxu0 %v5479
    %v5549 = vpop.f32.mrf.mxu0
    %v5550 = vadd.f32 0.0, %v5549
    %v5551 = vpop.f32.mrf.mxu0
    %5552 = vdwg.mxu0
    %5553 = vrot.lane.b32.xlu0 %v3161, 88
    %v5554 = vpop.permute.xlu0 %5553
    %v5556 = vsel %vm1022, %v5241, 0
    %v5558 = vsel %vm1026, %v5554, 0
    %5560 = vmatprep.subr.mxu0 0.0
    %5561 = vmatpush1.msra.mxu0 0.0
    %5562 = vmatprep.subr.mxu0 0.0
    %5563 = vmatpush1.msra.mxu0 0.0
    %5564 = vmatprep.subr.mxu0 0.0
    %5565 = vmatpush1.msra.mxu0 0.0
    %5566 = vmatprep.subr.mxu0 0.0
    %5567 = vmatpush1.msra.mxu0 0.0
    %5568 = vmatprep.subr.mxu0 0.0
    %5569 = vmatpush1.msra.mxu0 0.0
    %5570 = vmatprep.subr.mxu0 0.0
    %5571 = vmatpush1.msra.mxu0 0.0
    %5572 = vmatprep.subr.mxu0 0.0
    %5573 = vmatpush1.msra.mxu0 0.0
    %5574 = vmatprep.subr.mxu0 0.0
    %5575 = vmatpush1.msra.mxu0 0.0
    %5576 = vmatprep.subr.mxu0 0.0
    %5577 = vmatpush1.msra.mxu0 0.0
    %5578 = vmatprep.subr.mxu0 0.0
    %5579 = vmatpush1.msra.mxu0 0.0
    %5580 = vmatprep.subr.mxu0 0.0
    %5581 = vmatpush1.msra.mxu0 0.0
    %5582 = vmatprep.subr.mxu0 0.0
    %5583 = vmatpush1.msra.mxu0 0.0
    %5584 = vmatprep.subr.mxu0 0.0
    %5585 = vmatpush1.msra.mxu0 0.0
    %5586 = vmatprep.subr.mxu0 0.0
    %5587 = vmatpush1.msra.mxu0 0.0
    %5588 = vmatprep.subr.mxu0 0.0
    %5589 = vmatpush1.msra.mxu0 0.0
    %5590 = vmatprep.subr.mxu0 0.0
    %5591 = vmatpush1.msra.mxu0 %v5558
    %5592 = vmatprep.subr.mxu0 0.0
    %5593 = vmatpush2.msra.mxu0 0.0
    %5594 = vmatprep.subr.mxu0 0.0
    %5595 = vmatpush2.msra.mxu0 0.0
    %5596 = vmatprep.subr.mxu0 0.0
    %5597 = vmatpush2.msra.mxu0 0.0
    %5598 = vmatprep.subr.mxu0 0.0
    %5599 = vmatpush2.msra.mxu0 0.0
    %5600 = vmatprep.subr.mxu0 0.0
    %5601 = vmatpush2.msra.mxu0 0.0
    %5602 = vmatprep.subr.mxu0 0.0
    %5603 = vmatpush2.msra.mxu0 0.0
    %5604 = vmatprep.subr.mxu0 0.0
    %5605 = vmatpush2.msra.mxu0 0.0
    %5606 = vmatprep.subr.mxu0 0.0
    %5607 = vmatpush2.msra.mxu0 0.0
    %5608 = vmatprep.subr.mxu0 0.0
    %5609 = vmatpush2.msra.mxu0 0.0
    %5610 = vmatprep.subr.mxu0 0.0
    %5611 = vmatpush2.msra.mxu0 0.0
    %5612 = vmatprep.subr.mxu0 0.0
    %5613 = vmatpush2.msra.mxu0 0.0
    %5614 = vmatprep.subr.mxu0 0.0
    %5615 = vmatpush2.msra.mxu0 0.0
    %5616 = vmatprep.subr.mxu0 0.0
    %5617 = vmatpush2.msra.mxu0 0.0
    %5618 = vmatprep.subr.mxu0 0.0
    %5619 = vmatpush2.msra.mxu0 0.0
    %5620 = vmatprep.subr.mxu0 0.0
    %5621 = vmatpush2.msra.mxu0 0.0
    %5622 = vmatprep.subr.mxu0 0.0
    %5623 = vmatpush2.msra.mxu0 0.0
    %5624 = vmatprep.mubr.f32.mxu0 0.0
    %5625 = vmatmul.mubr.f32.gmra.mxu0 %v5556
    %v5626 = vpop.f32.mrf.mxu0
    %v5627 = vadd.f32 0.0, %v5626
    %v5628 = vpop.f32.mrf.mxu0
    %5629 = vdwg.mxu0
    %5630 = vrot.lane.b32.xlu0 %v3175, 88
    %v5631 = vpop.permute.xlu0 %5630
    %v5633 = vsel %vm1022, %v5242, 0
    %v5635 = vsel %vm1026, %v5631, 0
    %5637 = vmatprep.subr.mxu0 0.0
    %5638 = vmatpush1.msra.mxu0 0.0
    %5639 = vmatprep.subr.mxu0 0.0
    %5640 = vmatpush1.msra.mxu0 0.0
    %5641 = vmatprep.subr.mxu0 0.0
    %5642 = vmatpush1.msra.mxu0 0.0
    %5643 = vmatprep.subr.mxu0 0.0
    %5644 = vmatpush1.msra.mxu0 0.0
    %5645 = vmatprep.subr.mxu0 0.0
    %5646 = vmatpush1.msra.mxu0 0.0
    %5647 = vmatprep.subr.mxu0 0.0
    %5648 = vmatpush1.msra.mxu0 0.0
    %5649 = vmatprep.subr.mxu0 0.0
    %5650 = vmatpush1.msra.mxu0 0.0
    %5651 = vmatprep.subr.mxu0 0.0
    %5652 = vmatpush1.msra.mxu0 0.0
    %5653 = vmatprep.subr.mxu0 0.0
    %5654 = vmatpush1.msra.mxu0 0.0
    %5655 = vmatprep.subr.mxu0 0.0
    %5656 = vmatpush1.msra.mxu0 0.0
    %5657 = vmatprep.subr.mxu0 0.0
    %5658 = vmatpush1.msra.mxu0 0.0
    %5659 = vmatprep.subr.mxu0 0.0
    %5660 = vmatpush1.msra.mxu0 0.0
    %5661 = vmatprep.subr.mxu0 0.0
    %5662 = vmatpush1.msra.mxu0 0.0
    %5663 = vmatprep.subr.mxu0 0.0
    %5664 = vmatpush1.msra.mxu0 0.0
    %5665 = vmatprep.subr.mxu0 0.0
    %5666 = vmatpush1.msra.mxu0 0.0
    %5667 = vmatprep.subr.mxu0 0.0
    %5668 = vmatpush1.msra.mxu0 %v5635
    %5669 = vmatprep.subr.mxu0 0.0
    %5670 = vmatpush2.msra.mxu0 0.0
    %5671 = vmatprep.subr.mxu0 0.0
    %5672 = vmatpush2.msra.mxu0 0.0
    %5673 = vmatprep.subr.mxu0 0.0
    %5674 = vmatpush2.msra.mxu0 0.0
    %5675 = vmatprep.subr.mxu0 0.0
    %5676 = vmatpush2.msra.mxu0 0.0
    %5677 = vmatprep.subr.mxu0 0.0
    %5678 = vmatpush2.msra.mxu0 0.0
    %5679 = vmatprep.subr.mxu0 0.0
    %5680 = vmatpush2.msra.mxu0 0.0
    %5681 = vmatprep.subr.mxu0 0.0
    %5682 = vmatpush2.msra.mxu0 0.0
    %5683 = vmatprep.subr.mxu0 0.0
    %5684 = vmatpush2.msra.mxu0 0.0
    %5685 = vmatprep.subr.mxu0 0.0
    %5686 = vmatpush2.msra.mxu0 0.0
    %5687 = vmatprep.subr.mxu0 0.0
    %5688 = vmatpush2.msra.mxu0 0.0
    %5689 = vmatprep.subr.mxu0 0.0
    %5690 = vmatpush2.msra.mxu0 0.0
    %5691 = vmatprep.subr.mxu0 0.0
    %5692 = vmatpush2.msra.mxu0 0.0
    %5693 = vmatprep.subr.mxu0 0.0
    %5694 = vmatpush2.msra.mxu0 0.0
    %5695 = vmatprep.subr.mxu0 0.0
    %5696 = vmatpush2.msra.mxu0 0.0
    %5697 = vmatprep.subr.mxu0 0.0
    %5698 = vmatpush2.msra.mxu0 0.0
    %5699 = vmatprep.subr.mxu0 0.0
    %5700 = vmatpush2.msra.mxu0 0.0
    %5701 = vmatprep.mubr.f32.mxu0 0.0
    %5702 = vmatmul.mubr.f32.gmra.mxu0 %v5633
    %v5703 = vpop.f32.mrf.mxu0
    %v5704 = vadd.f32 0.0, %v5703
    %v5705 = vpop.f32.mrf.mxu0
    %5706 = vdwg.mxu0
    %5707 = vrot.lane.b32.xlu0 %v3166, 88
    %v5708 = vpop.permute.xlu0 %5707
    %v5710 = vsel %vm1022, %v5243, 0
    %v5712 = vsel %vm1026, %v5708, 0
    %5714 = vmatprep.subr.mxu0 0.0
    %5715 = vmatpush1.msra.mxu0 0.0
    %5716 = vmatprep.subr.mxu0 0.0
    %5717 = vmatpush1.msra.mxu0 0.0
    %5718 = vmatprep.subr.mxu0 0.0
    %5719 = vmatpush1.msra.mxu0 0.0
    %5720 = vmatprep.subr.mxu0 0.0
    %5721 = vmatpush1.msra.mxu0 0.0
    %5722 = vmatprep.subr.mxu0 0.0
    %5723 = vmatpush1.msra.mxu0 0.0
    %5724 = vmatprep.subr.mxu0 0.0
    %5725 = vmatpush1.msra.mxu0 0.0
    %5726 = vmatprep.subr.mxu0 0.0
    %5727 = vmatpush1.msra.mxu0 0.0
    %5728 = vmatprep.subr.mxu0 0.0
    %5729 = vmatpush1.msra.mxu0 0.0
    %5730 = vmatprep.subr.mxu0 0.0
    %5731 = vmatpush1.msra.mxu0 0.0
    %5732 = vmatprep.subr.mxu0 0.0
    %5733 = vmatpush1.msra.mxu0 0.0
    %5734 = vmatprep.subr.mxu0 0.0
    %5735 = vmatpush1.msra.mxu0 0.0
    %5736 = vmatprep.subr.mxu0 0.0
    %5737 = vmatpush1.msra.mxu0 0.0
    %5738 = vmatprep.subr.mxu0 0.0
    %5739 = vmatpush1.msra.mxu0 0.0
    %5740 = vmatprep.subr.mxu0 0.0
    %5741 = vmatpush1.msra.mxu0 0.0
    %5742 = vmatprep.subr.mxu0 0.0
    %5743 = vmatpush1.msra.mxu0 0.0
    %5744 = vmatprep.subr.mxu0 0.0
    %5745 = vmatpush1.msra.mxu0 %v5712
    %5746 = vmatprep.subr.mxu0 0.0
    %5747 = vmatpush2.msra.mxu0 0.0
    %5748 = vmatprep.subr.mxu0 0.0
    %5749 = vmatpush2.msra.mxu0 0.0
    %5750 = vmatprep.subr.mxu0 0.0
    %5751 = vmatpush2.msra.mxu0 0.0
    %5752 = vmatprep.subr.mxu0 0.0
    %5753 = vmatpush2.msra.mxu0 0.0
    %5754 = vmatprep.subr.mxu0 0.0
    %5755 = vmatpush2.msra.mxu0 0.0
    %5756 = vmatprep.subr.mxu0 0.0
    %5757 = vmatpush2.msra.mxu0 0.0
    %5758 = vmatprep.subr.mxu0 0.0
    %5759 = vmatpush2.msra.mxu0 0.0
    %5760 = vmatprep.subr.mxu0 0.0
    %5761 = vmatpush2.msra.mxu0 0.0
    %5762 = vmatprep.subr.mxu0 0.0
    %5763 = vmatpush2.msra.mxu0 0.0
    %5764 = vmatprep.subr.mxu0 0.0
    %5765 = vmatpush2.msra.mxu0 0.0
    %5766 = vmatprep.subr.mxu0 0.0
    %5767 = vmatpush2.msra.mxu0 0.0
    %5768 = vmatprep.subr.mxu0 0.0
    %5769 = vmatpush2.msra.mxu0 0.0
    %5770 = vmatprep.subr.mxu0 0.0
    %5771 = vmatpush2.msra.mxu0 0.0
    %5772 = vmatprep.subr.mxu0 0.0
    %5773 = vmatpush2.msra.mxu0 0.0
    %5774 = vmatprep.subr.mxu0 0.0
    %5775 = vmatpush2.msra.mxu0 0.0
    %5776 = vmatprep.subr.mxu0 0.0
    %5777 = vmatpush2.msra.mxu0 0.0
    %5778 = vmatprep.mubr.f32.mxu0 0.0
    %5779 = vmatmul.mubr.f32.gmra.mxu0 %v5710
    %v5780 = vpop.f32.mrf.mxu0
    %v5781 = vadd.f32 0.0, %v5780
    %v5782 = vpop.f32.mrf.mxu0
    %5783 = vdwg.mxu0
    %5784 = vrot.lane.b32.xlu0 %v3176, 88
    %v5785 = vpop.permute.xlu0 %5784
    %v5787 = vsel %vm1022, %v5244, 0
    %v5789 = vsel %vm1026, %v5785, 0
    %5791 = vmatprep.subr.mxu0 0.0
    %5792 = vmatpush1.msra.mxu0 0.0
    %5793 = vmatprep.subr.mxu0 0.0
    %5794 = vmatpush1.msra.mxu0 0.0
    %5795 = vmatprep.subr.mxu0 0.0
    %5796 = vmatpush1.msra.mxu0 0.0
    %5797 = vmatprep.subr.mxu0 0.0
    %5798 = vmatpush1.msra.mxu0 0.0
    %5799 = vmatprep.subr.mxu0 0.0
    %5800 = vmatpush1.msra.mxu0 0.0
    %5801 = vmatprep.subr.mxu0 0.0
    %5802 = vmatpush1.msra.mxu0 0.0
    %5803 = vmatprep.subr.mxu0 0.0
    %5804 = vmatpush1.msra.mxu0 0.0
    %5805 = vmatprep.subr.mxu0 0.0
    %5806 = vmatpush1.msra.mxu0 0.0
    %5807 = vmatprep.subr.mxu0 0.0
    %5808 = vmatpush1.msra.mxu0 0.0
    %5809 = vmatprep.subr.mxu0 0.0
    %5810 = vmatpush1.msra.mxu0 0.0
    %5811 = vmatprep.subr.mxu0 0.0
    %5812 = vmatpush1.msra.mxu0 0.0
    %5813 = vmatprep.subr.mxu0 0.0
    %5814 = vmatpush1.msra.mxu0 0.0
    %5815 = vmatprep.subr.mxu0 0.0
    %5816 = vmatpush1.msra.mxu0 0.0
    %5817 = vmatprep.subr.mxu0 0.0
    %5818 = vmatpush1.msra.mxu0 0.0
    %5819 = vmatprep.subr.mxu0 0.0
    %5820 = vmatpush1.msra.mxu0 0.0
    %5821 = vmatprep.subr.mxu0 0.0
    %5822 = vmatpush1.msra.mxu0 %v5789
    %5823 = vmatprep.subr.mxu0 0.0
    %5824 = vmatpush2.msra.mxu0 0.0
    %5825 = vmatprep.subr.mxu0 0.0
    %5826 = vmatpush2.msra.mxu0 0.0
    %5827 = vmatprep.subr.mxu0 0.0
    %5828 = vmatpush2.msra.mxu0 0.0
    %5829 = vmatprep.subr.mxu0 0.0
    %5830 = vmatpush2.msra.mxu0 0.0
    %5831 = vmatprep.subr.mxu0 0.0
    %5832 = vmatpush2.msra.mxu0 0.0
    %5833 = vmatprep.subr.mxu0 0.0
    %5834 = vmatpush2.msra.mxu0 0.0
    %5835 = vmatprep.subr.mxu0 0.0
    %5836 = vmatpush2.msra.mxu0 0.0
    %5837 = vmatprep.subr.mxu0 0.0
    %5838 = vmatpush2.msra.mxu0 0.0
    %5839 = vmatprep.subr.mxu0 0.0
    %5840 = vmatpush2.msra.mxu0 0.0
    %5841 = vmatprep.subr.mxu0 0.0
    %5842 = vmatpush2.msra.mxu0 0.0
    %5843 = vmatprep.subr.mxu0 0.0
    %5844 = vmatpush2.msra.mxu0 0.0
    %5845 = vmatprep.subr.mxu0 0.0
    %5846 = vmatpush2.msra.mxu0 0.0
    %5847 = vmatprep.subr.mxu0 0.0
    %5848 = vmatpush2.msra.mxu0 0.0
    %5849 = vmatprep.subr.mxu0 0.0
    %5850 = vmatpush2.msra.mxu0 0.0
    %5851 = vmatprep.subr.mxu0 0.0
    %5852 = vmatpush2.msra.mxu0 0.0
    %5853 = vmatprep.subr.mxu0 0.0
    %5854 = vmatpush2.msra.mxu0 0.0
    %5855 = vmatprep.mubr.f32.mxu0 0.0
    %5856 = vmatmul.mubr.f32.gmra.mxu0 %v5787
    %v5857 = vpop.f32.mrf.mxu0
    %v5858 = vadd.f32 0.0, %v5857
    %v5859 = vpop.f32.mrf.mxu0
    %5860 = vdwg.mxu0
    %5869 = vrot.lane.b32.xlu0 %v5319, 48
    %v5870 = vpop.permute.xlu0 %5869
    %5871 = vrot.lane.b32.xlu0 %v5396, 48
    %v5872 = vpop.permute.xlu0 %5871
    %5873 = vrot.lane.b32.xlu0 %v5473, 48
    %v5874 = vpop.permute.xlu0 %5873
    %5875 = vrot.lane.b32.xlu0 %v5550, 48
    %v5876 = vpop.permute.xlu0 %5875
    %5877 = vrot.lane.b32.xlu0 %v5627, 48
    %v5878 = vpop.permute.xlu0 %5877
    %5879 = vrot.lane.b32.xlu0 %v5704, 48
    %v5880 = vpop.permute.xlu0 %5879
    %5881 = vrot.lane.b32.xlu0 %v5781, 48
    %v5882 = vpop.permute.xlu0 %5881
    %5883 = vrot.lane.b32.xlu0 %v5858, 48
    %v5884 = vpop.permute.xlu0 %5883
    %v5893 = vadd.f32 %v4525, %v5870
    %v5894 = vadd.f32 %v4526, %v5872
    %v5895 = vadd.f32 %v4527, %v5874
    %v5896 = vadd.f32 %v4528, %v5876
    %v5897 = vadd.f32 %v4529, %v5878
    %v5898 = vadd.f32 %v4530, %v5880
    %v5899 = vadd.f32 %v4531, %v5882
    %v5900 = vadd.f32 %v4532, %v5884
    %v5901 = vmax.f32 %v5893, 0.0
    %v5902 = vmax.f32 %v5894, 0.0
    %v5903 = vmax.f32 %v5895, 0.0
    %v5904 = vmax.f32 %v5896, 0.0
    %v5905 = vmax.f32 %v5897, 0.0
    %v5906 = vmax.f32 %v5898, 0.0
    %v5907 = vmax.f32 %v5899, 0.0
    %v5908 = vmax.f32 %v5900, 0.0
    %v5909 = vld [vmem:[%s2] sm:$0x1]
    %v5910 = vld [vmem:[%s2 + $0x1] sm:$0x1]
    %v5911 = vld [vmem:[%s2 + $0x2] sm:$0x1]
    %v5912 = vld [vmem:[%s2 + $0x3] sm:$0x1]
    %v5913 = vld [vmem:[%s2 + $0x4] sm:$0x1]
    %v5914 = vld [vmem:[%s2 + $0x5] sm:$0x1]
    %v5915 = vld [vmem:[%s2 + $0x6] sm:$0x1]
    %v5916 = vld [vmem:[%s2 + $0x7] sm:$0x1]
    %v5917 = vld [vmem:[%s4] sm:$0x7]
    %v5918 = vld [vmem:[%s5] sm:$0xff]
    %v5919 = vlaneseq
    %v5920 = vshrl.u32 %v5919, 7
    %v5921 = vsub.s32 0, %v5920
    %v5922 = vrot.slane %v190, %v5921
    %v5923 = vlaneseq
    %v5924 = vshrl.u32 %v5923, 7
    %v5925 = vsub.s32 0, %v5924
    %v5926 = vrot.slane %v212, %v5925
    %v5927 = vlaneseq
    %v5928 = vshrl.u32 %v5927, 7
    %v5929 = vsub.s32 0, %v5928
    %v5930 = vrot.slane %v195, %v5929
    %v5931 = vlaneseq
    %v5932 = vshrl.u32 %v5931, 7
    %v5933 = vsub.s32 0, %v5932
    %v5934 = vrot.slane %v213, %v5933
    %v5935 = vlaneseq
    %v5936 = vshrl.u32 %v5935, 7
    %v5937 = vsub.s32 0, %v5936
    %v5938 = vrot.slane %v200, %v5937
    %v5939 = vlaneseq
    %v5940 = vshrl.u32 %v5939, 7
    %v5941 = vsub.s32 0, %v5940
    %v5942 = vrot.slane %v214, %v5941
    %v5943 = vlaneseq
    %v5944 = vshrl.u32 %v5943, 7
    %v5945 = vsub.s32 0, %v5944
    %v5946 = vrot.slane %v205, %v5945
    %v5947 = vlaneseq
    %v5948 = vshrl.u32 %v5947, 7
    %v5949 = vsub.s32 0, %v5948
    %v5950 = vrot.slane %v215, %v5949
    %vm5951 = vcmask 1041409
    %v5952 = vsel %vm5951, %v5926, %v5922
    %vm5953 = vcmask 1042434
    %v5954 = vsel %vm5953, %v5930, %v5952
    %vm5955 = vcmask 1043459
    %v5956 = vsel %vm5955, %v5934, %v5954
    %vm5957 = vcmask 1044484
    %v5958 = vsel %vm5957, %v5938, %v5956
    %vm5959 = vcmask 1045509
    %v5960 = vsel %vm5959, %v5942, %v5958
    %vm5961 = vcmask 1046534
    %v5962 = vsel %vm5961, %v5946, %v5960
    %vm5963 = vcmask 1047559
    %v5964 = vsel %vm5963, %v5950, %v5962
    %v5965 = vsel %vm217, %v5964, 0
    %5967 = vmatprep.subr.mxu0 0.0
    %5968 = vmatpush1.msra.mxu0 0.0
    %5969 = vmatprep.subr.mxu0 0.0
    %5970 = vmatpush1.msra.mxu0 0.0
    %5971 = vmatprep.subr.mxu0 0.0
    %5972 = vmatpush1.msra.mxu0 0.0
    %5973 = vmatprep.subr.mxu0 0.0
    %5974 = vmatpush1.msra.mxu0 0.0
    %5975 = vmatprep.subr.mxu0 0.0
    %5976 = vmatpush1.msra.mxu0 0.0
    %5977 = vmatprep.subr.mxu0 0.0
    %5978 = vmatpush1.msra.mxu0 0.0
    %5979 = vmatprep.subr.mxu0 0.0
    %5980 = vmatpush1.msra.mxu0 0.0
    %5981 = vmatprep.subr.mxu0 0.0
    %5982 = vmatpush1.msra.mxu0 0.0
    %5983 = vmatprep.subr.mxu0 0.0
    %5984 = vmatpush1.msra.mxu0 0.0
    %5985 = vmatprep.subr.mxu0 0.0
    %5986 = vmatpush1.msra.mxu0 0.0
    %5987 = vmatprep.subr.mxu0 0.0
    %5988 = vmatpush1.msra.mxu0 0.0
    %5989 = vmatprep.subr.mxu0 0.0
    %5990 = vmatpush1.msra.mxu0 0.0
    %5991 = vmatprep.subr.mxu0 0.0
    %5992 = vmatpush1.msra.mxu0 0.0
    %5993 = vmatprep.subr.mxu0 0.0
    %5994 = vmatpush1.msra.mxu0 0.0
    %5995 = vmatprep.subr.mxu0 0.0
    %5996 = vmatpush1.msra.mxu0 0.0
    %5997 = vmatprep.subr.mxu0 0.0
    %5998 = vmatpush1.msra.mxu0 %v5918
    %5999 = vmatprep.subr.mxu0 0.0
    %6000 = vmatpush2.msra.mxu0 0.0
    %6001 = vmatprep.subr.mxu0 0.0
    %6002 = vmatpush2.msra.mxu0 0.0
    %6003 = vmatprep.subr.mxu0 0.0
    %6004 = vmatpush2.msra.mxu0 0.0
    %6005 = vmatprep.subr.mxu0 0.0
    %6006 = vmatpush2.msra.mxu0 0.0
    %6007 = vmatprep.subr.mxu0 0.0
    %6008 = vmatpush2.msra.mxu0 0.0
    %6009 = vmatprep.subr.mxu0 0.0
    %6010 = vmatpush2.msra.mxu0 0.0
    %6011 = vmatprep.subr.mxu0 0.0
    %6012 = vmatpush2.msra.mxu0 0.0
    %6013 = vmatprep.subr.mxu0 0.0
    %6014 = vmatpush2.msra.mxu0 0.0
    %6015 = vmatprep.subr.mxu0 0.0
    %6016 = vmatpush2.msra.mxu0 0.0
    %6017 = vmatprep.subr.mxu0 0.0
    %6018 = vmatpush2.msra.mxu0 0.0
    %6019 = vmatprep.subr.mxu0 0.0
    %6020 = vmatpush2.msra.mxu0 0.0
    %6021 = vmatprep.subr.mxu0 0.0
    %6022 = vmatpush2.msra.mxu0 0.0
    %6023 = vmatprep.subr.mxu0 0.0
    %6024 = vmatpush2.msra.mxu0 0.0
    %6025 = vmatprep.subr.mxu0 0.0
    %6026 = vmatpush2.msra.mxu0 0.0
    %6027 = vmatprep.subr.mxu0 0.0
    %6028 = vmatpush2.msra.mxu0 0.0
    %6029 = vmatprep.subr.mxu0 0.0
    %6030 = vmatpush2.msra.mxu0 0.0
    %6031 = vmatprep.mubr.f32.mxu0 0.0
    %6032 = vmatmul.mubr.f32.gmra.mxu0 %v5965
    %v6033 = vpop.f32.mrf.mxu0
    %v6034 = vadd.f32 0.0, %v6033
    %v6035 = vpop.f32.mrf.mxu0
    %6036 = vdwg.mxu0
    %v6045 = vcombine.low %v5909, %v5910
    %v6046 = vcombine.low %v5911, %v5912
    %v6047 = vcombine.low %v5913, %v5914
    %v6048 = vcombine.low %v5915, %v5916
    %v6050 = vunpack.c.l.s4 1966171168
    %v6051 = vunpack.c.0.s8 %v6050
    %v6052 = vlaneseq
    %v6053 = vshrl.u32 %v6052, 7
    %v6054 = vsub.s32 %v6051, %v6053
    %v6055 = vrot.slane %v6045, %v6054
    %v6057 = vunpack.c.l.s4 1966171168
    %v6058 = vunpack.c.0.s8 %v6057
    %v6059 = vlaneseq
    %v6060 = vshrl.u32 %v6059, 7
    %v6061 = vsub.s32 %v6058, %v6060
    %v6062 = vrot.slane %v6046, %v6061
    %v6064 = vunpack.c.l.s4 1966171168
    %v6065 = vunpack.c.0.s8 %v6064
    %v6066 = vlaneseq
    %v6067 = vshrl.u32 %v6066, 7
    %v6068 = vsub.s32 %v6065, %v6067
    %v6069 = vrot.slane %v6047, %v6068
    %v6071 = vunpack.c.l.s4 1966171168
    %v6072 = vunpack.c.0.s8 %v6071
    %v6073 = vlaneseq
    %v6074 = vshrl.u32 %v6073, 7
    %v6075 = vsub.s32 %v6072, %v6074
    %v6076 = vrot.slane %v6048, %v6075
    %v6077 = vcombine.low %v6055, %v6062
    %v6078 = vcombine.low %v6069, %v6076
    %v6080 = vunpack.c.l.s4 1966171168
    %v6081 = vunpack.c.0.s8 %v6080
    %v6082 = vlaneseq
    %v6083 = vshrl.u32 %v6082, 7
    %v6084 = vsub.s32 %v6081, %v6083
    %v6085 = vrot.slane %v6077, %v6084
    %v6087 = vunpack.c.l.s4 1966171168
    %v6088 = vunpack.c.0.s8 %v6087
    %v6089 = vlaneseq
    %v6090 = vshrl.u32 %v6089, 7
    %v6091 = vsub.s32 %v6088, %v6090
    %v6092 = vrot.slane %v6078, %v6091
    %v6093 = vcombine.low %v6085, %v6092
    %vm6094 = vcmask 23552
    %v6095 = vsel %vm6094, %v6093, 0
    %vm6097 = vcmask 1042432
    %v6099 = vsel %vm6097, %v5917, 0
    %6101 = vmatprep.subr.mxu0 0.0
    %6102 = vmatpush1.msra.mxu0 0.0
    %6103 = vmatprep.subr.mxu0 0.0
    %6104 = vmatpush1.msra.mxu0 0.0
    %6105 = vmatprep.subr.mxu0 0.0
    %6106 = vmatpush1.msra.mxu0 0.0
    %6107 = vmatprep.subr.mxu0 0.0
    %6108 = vmatpush1.msra.mxu0 0.0
    %6109 = vmatprep.subr.mxu0 0.0
    %6110 = vmatpush1.msra.mxu0 0.0
    %6111 = vmatprep.subr.mxu0 0.0
    %6112 = vmatpush1.msra.mxu0 0.0
    %6113 = vmatprep.subr.mxu0 0.0
    %6114 = vmatpush1.msra.mxu0 0.0
    %6115 = vmatprep.subr.mxu0 0.0
    %6116 = vmatpush1.msra.mxu0 0.0
    %6117 = vmatprep.subr.mxu0 0.0
    %6118 = vmatpush1.msra.mxu0 0.0
    %6119 = vmatprep.subr.mxu0 0.0
    %6120 = vmatpush1.msra.mxu0 0.0
    %6121 = vmatprep.subr.mxu0 0.0
    %6122 = vmatpush1.msra.mxu0 0.0
    %6123 = vmatprep.subr.mxu0 0.0
    %6124 = vmatpush1.msra.mxu0 0.0
    %6125 = vmatprep.subr.mxu0 0.0
    %6126 = vmatpush1.msra.mxu0 0.0
    %6127 = vmatprep.subr.mxu0 0.0
    %6128 = vmatpush1.msra.mxu0 0.0
    %6129 = vmatprep.subr.mxu0 0.0
    %6130 = vmatpush1.msra.mxu0 0.0
    %6131 = vmatprep.subr.mxu0 0.0
    %6132 = vmatpush1.msra.mxu0 %v6099
    %6133 = vmatprep.subr.mxu0 0.0
    %6134 = vmatpush2.msra.mxu0 0.0
    %6135 = vmatprep.subr.mxu0 0.0
    %6136 = vmatpush2.msra.mxu0 0.0
    %6137 = vmatprep.subr.mxu0 0.0
    %6138 = vmatpush2.msra.mxu0 0.0
    %6139 = vmatprep.subr.mxu0 0.0
    %6140 = vmatpush2.msra.mxu0 0.0
    %6141 = vmatprep.subr.mxu0 0.0
    %6142 = vmatpush2.msra.mxu0 0.0
    %6143 = vmatprep.subr.mxu0 0.0
    %6144 = vmatpush2.msra.mxu0 0.0
    %6145 = vmatprep.subr.mxu0 0.0
    %6146 = vmatpush2.msra.mxu0 0.0
    %6147 = vmatprep.subr.mxu0 0.0
    %6148 = vmatpush2.msra.mxu0 0.0
    %6149 = vmatprep.subr.mxu0 0.0
    %6150 = vmatpush2.msra.mxu0 0.0
    %6151 = vmatprep.subr.mxu0 0.0
    %6152 = vmatpush2.msra.mxu0 0.0
    %6153 = vmatprep.subr.mxu0 0.0
    %6154 = vmatpush2.msra.mxu0 0.0
    %6155 = vmatprep.subr.mxu0 0.0
    %6156 = vmatpush2.msra.mxu0 0.0
    %6157 = vmatprep.subr.mxu0 0.0
    %6158 = vmatpush2.msra.mxu0 0.0
    %6159 = vmatprep.subr.mxu0 0.0
    %6160 = vmatpush2.msra.mxu0 0.0
    %6161 = vmatprep.subr.mxu0 0.0
    %6162 = vmatpush2.msra.mxu0 0.0
    %6163 = vmatprep.subr.mxu0 0.0
    %6164 = vmatpush2.msra.mxu0 0.0
    %6165 = vmatprep.mubr.f32.mxu0 0.0
    %6166 = vmatmul.mubr.f32.gmra.mxu0 %v6095
    %v6167 = vpop.f32.mrf.mxu0
    %v6168 = vadd.f32 %v6034, %v6167
    %v6169 = vpop.f32.mrf.mxu0
    %6170 = vdwg.mxu0
    %v6172 = vcombine.high %v6168, %v6168
    %v6174 = vunpack.c.l.s4 1966171168
    %v6175 = vunpack.c.0.s8 %v6174
    %v6176 = vlaneseq
    %v6177 = vshrl.u32 %v6176, 7
    %v6178 = vsub.s32 %v6175, %v6177
    %v6179 = vrot.slane %v6168, %v6178
    %v6181 = vunpack.c.l.s4 1966171168
    %v6182 = vunpack.c.0.s8 %v6181
    %v6183 = vlaneseq
    %v6184 = vshrl.u32 %v6183, 7
    %v6185 = vsub.s32 %v6182, %v6184
    %v6186 = vrot.slane %v6172, %v6185
    %v6187 = vcombine.high %v6179, %v6179
    %v6188 = vcombine.high %v6186, %v6186
    %v6190 = vunpack.c.l.s4 1966171168
    %v6191 = vunpack.c.0.s8 %v6190
    %v6192 = vlaneseq
    %v6193 = vshrl.u32 %v6192, 7
    %v6194 = vsub.s32 %v6191, %v6193
    %v6195 = vrot.slane %v6179, %v6194
    %v6197 = vunpack.c.l.s4 1966171168
    %v6198 = vunpack.c.0.s8 %v6197
    %v6199 = vlaneseq
    %v6200 = vshrl.u32 %v6199, 7
    %v6201 = vsub.s32 %v6198, %v6200
    %v6202 = vrot.slane %v6186, %v6201
    %v6204 = vunpack.c.l.s4 1966171168
    %v6205 = vunpack.c.0.s8 %v6204
    %v6206 = vlaneseq
    %v6207 = vshrl.u32 %v6206, 7
    %v6208 = vsub.s32 %v6205, %v6207
    %v6209 = vrot.slane %v6187, %v6208
    %v6211 = vunpack.c.l.s4 1966171168
    %v6212 = vunpack.c.0.s8 %v6211
    %v6213 = vlaneseq
    %v6214 = vshrl.u32 %v6213, 7
    %v6215 = vsub.s32 %v6212, %v6214
    %v6216 = vrot.slane %v6188, %v6215
    %v6217 = vcombine.high %v6195, %v6195
    %v6218 = vcombine.high %v6202, %v6202
    %v6219 = vcombine.high %v6209, %v6209
    %v6220 = vcombine.high %v6216, %v6216
    %s6229 = scalar_lea.vmem %s5, 8
    %v6230 = vld [vmem:[%s6229] sm:$0xff]
    %v6231 = vlaneseq
    %v6232 = vshrl.u32 %v6231, 7
    %v6233 = vsub.s32 1, %v6232
    %v6234 = vrot.slane %v190, %v6233
    %v6235 = vlaneseq
    %v6236 = vshrl.u32 %v6235, 7
    %v6237 = vsub.s32 1, %v6236
    %v6238 = vrot.slane %v212, %v6237
    %v6239 = vlaneseq
    %v6240 = vshrl.u32 %v6239, 7
    %v6241 = vsub.s32 1, %v6240
    %v6242 = vrot.slane %v195, %v6241
    %v6243 = vlaneseq
    %v6244 = vshrl.u32 %v6243, 7
    %v6245 = vsub.s32 1, %v6244
    %v6246 = vrot.slane %v213, %v6245
    %v6247 = vlaneseq
    %v6248 = vshrl.u32 %v6247, 7
    %v6249 = vsub.s32 1, %v6248
    %v6250 = vrot.slane %v200, %v6249
    %v6251 = vlaneseq
    %v6252 = vshrl.u32 %v6251, 7
    %v6253 = vsub.s32 1, %v6252
    %v6254 = vrot.slane %v214, %v6253
    %v6255 = vlaneseq
    %v6256 = vshrl.u32 %v6255, 7
    %v6257 = vsub.s32 1, %v6256
    %v6258 = vrot.slane %v205, %v6257
    %v6259 = vlaneseq
    %v6260 = vshrl.u32 %v6259, 7
    %v6261 = vsub.s32 1, %v6260
    %v6262 = vrot.slane %v215, %v6261
    %v6263 = vsel %vm5951, %v6238, %v6234
    %v6264 = vsel %vm5953, %v6242, %v6263
    %v6265 = vsel %vm5955, %v6246, %v6264
    %v6266 = vsel %vm5957, %v6250, %v6265
    %v6267 = vsel %vm5959, %v6254, %v6266
    %v6268 = vsel %vm5961, %v6258, %v6267
    %v6269 = vsel %vm5963, %v6262, %v6268
    %v6270 = vsel %vm217, %v6269, 0
    %6272 = vmatprep.subr.mxu0 0.0
    %6273 = vmatpush1.msra.mxu0 0.0
    %6274 = vmatprep.subr.mxu0 0.0
    %6275 = vmatpush1.msra.mxu0 0.0
    %6276 = vmatprep.subr.mxu0 0.0
    %6277 = vmatpush1.msra.mxu0 0.0
    %6278 = vmatprep.subr.mxu0 0.0
    %6279 = vmatpush1.msra.mxu0 0.0
    %6280 = vmatprep.subr.mxu0 0.0
    %6281 = vmatpush1.msra.mxu0 0.0
    %6282 = vmatprep.subr.mxu0 0.0
    %6283 = vmatpush1.msra.mxu0 0.0
    %6284 = vmatprep.subr.mxu0 0.0
    %6285 = vmatpush1.msra.mxu0 0.0
    %6286 = vmatprep.subr.mxu0 0.0
    %6287 = vmatpush1.msra.mxu0 0.0
    %6288 = vmatprep.subr.mxu0 0.0
    %6289 = vmatpush1.msra.mxu0 0.0
    %6290 = vmatprep.subr.mxu0 0.0
    %6291 = vmatpush1.msra.mxu0 0.0
    %6292 = vmatprep.subr.mxu0 0.0
    %6293 = vmatpush1.msra.mxu0 0.0
    %6294 = vmatprep.subr.mxu0 0.0
    %6295 = vmatpush1.msra.mxu0 0.0
    %6296 = vmatprep.subr.mxu0 0.0
    %6297 = vmatpush1.msra.mxu0 0.0
    %6298 = vmatprep.subr.mxu0 0.0
    %6299 = vmatpush1.msra.mxu0 0.0
    %6300 = vmatprep.subr.mxu0 0.0
    %6301 = vmatpush1.msra.mxu0 0.0
    %6302 = vmatprep.subr.mxu0 0.0
    %6303 = vmatpush1.msra.mxu0 %v6230
    %6304 = vmatprep.subr.mxu0 0.0
    %6305 = vmatpush2.msra.mxu0 0.0
    %6306 = vmatprep.subr.mxu0 0.0
    %6307 = vmatpush2.msra.mxu0 0.0
    %6308 = vmatprep.subr.mxu0 0.0
    %6309 = vmatpush2.msra.mxu0 0.0
    %6310 = vmatprep.subr.mxu0 0.0
    %6311 = vmatpush2.msra.mxu0 0.0
    %6312 = vmatprep.subr.mxu0 0.0
    %6313 = vmatpush2.msra.mxu0 0.0
    %6314 = vmatprep.subr.mxu0 0.0
    %6315 = vmatpush2.msra.mxu0 0.0
    %6316 = vmatprep.subr.mxu0 0.0
    %6317 = vmatpush2.msra.mxu0 0.0
    %6318 = vmatprep.subr.mxu0 0.0
    %6319 = vmatpush2.msra.mxu0 0.0
    %6320 = vmatprep.subr.mxu0 0.0
    %6321 = vmatpush2.msra.mxu0 0.0
    %6322 = vmatprep.subr.mxu0 0.0
    %6323 = vmatpush2.msra.mxu0 0.0
    %6324 = vmatprep.subr.mxu0 0.0
    %6325 = vmatpush2.msra.mxu0 0.0
    %6326 = vmatprep.subr.mxu0 0.0
    %6327 = vmatpush2.msra.mxu0 0.0
    %6328 = vmatprep.subr.mxu0 0.0
    %6329 = vmatpush2.msra.mxu0 0.0
    %6330 = vmatprep.subr.mxu0 0.0
    %6331 = vmatpush2.msra.mxu0 0.0
    %6332 = vmatprep.subr.mxu0 0.0
    %6333 = vmatpush2.msra.mxu0 0.0
    %6334 = vmatprep.subr.mxu0 0.0
    %6335 = vmatpush2.msra.mxu0 0.0
    %6336 = vmatprep.mubr.f32.mxu0 0.0
    %6337 = vmatmul.mubr.f32.gmra.mxu0 %v6270
    %v6338 = vpop.f32.mrf.mxu0
    %v6339 = vadd.f32 0.0, %v6338
    %v6340 = vpop.f32.mrf.mxu0
    %6341 = vdwg.mxu0
    %v6343 = vcombine.high %v6339, %v6339
    %v6345 = vunpack.c.l.s4 1966171168
    %v6346 = vunpack.c.0.s8 %v6345
    %v6347 = vlaneseq
    %v6348 = vshrl.u32 %v6347, 7
    %v6349 = vsub.s32 %v6346, %v6348
    %v6350 = vrot.slane %v6339, %v6349
    %v6352 = vunpack.c.l.s4 1966171168
    %v6353 = vunpack.c.0.s8 %v6352
    %v6354 = vlaneseq
    %v6355 = vshrl.u32 %v6354, 7
    %v6356 = vsub.s32 %v6353, %v6355
    %v6357 = vrot.slane %v6343, %v6356
    %v6358 = vcombine.high %v6350, %v6350
    %v6359 = vcombine.high %v6357, %v6357
    %v6361 = vunpack.c.l.s4 1966171168
    %v6362 = vunpack.c.0.s8 %v6361
    %v6363 = vlaneseq
    %v6364 = vshrl.u32 %v6363, 7
    %v6365 = vsub.s32 %v6362, %v6364
    %v6366 = vrot.slane %v6350, %v6365
    %v6368 = vunpack.c.l.s4 1966171168
    %v6369 = vunpack.c.0.s8 %v6368
    %v6370 = vlaneseq
    %v6371 = vshrl.u32 %v6370, 7
    %v6372 = vsub.s32 %v6369, %v6371
    %v6373 = vrot.slane %v6357, %v6372
    %v6375 = vunpack.c.l.s4 1966171168
    %v6376 = vunpack.c.0.s8 %v6375
    %v6377 = vlaneseq
    %v6378 = vshrl.u32 %v6377, 7
    %v6379 = vsub.s32 %v6376, %v6378
    %v6380 = vrot.slane %v6358, %v6379
    %v6382 = vunpack.c.l.s4 1966171168
    %v6383 = vunpack.c.0.s8 %v6382
    %v6384 = vlaneseq
    %v6385 = vshrl.u32 %v6384, 7
    %v6386 = vsub.s32 %v6383, %v6385
    %v6387 = vrot.slane %v6359, %v6386
    %v6388 = vcombine.high %v6366, %v6366
    %v6389 = vcombine.high %v6373, %v6373
    %v6390 = vcombine.high %v6380, %v6380
    %v6391 = vcombine.high %v6387, %v6387
    %v6400 = vadd.f32 %v6195, %v6366
    %v6401 = vadd.f32 %v6209, %v6380
    %v6402 = vadd.f32 %v6217, %v6388
    %v6403 = vadd.f32 %v6219, %v6390
    %v6404 = vadd.f32 %v6202, %v6373
    %v6405 = vadd.f32 %v6216, %v6387
    %v6406 = vadd.f32 %v6218, %v6389
    %v6407 = vadd.f32 %v6220, %v6391
    %s6408 = scalar_lea.vmem %s5, 16
    %v6409 = vld [vmem:[%s6408] sm:$0xff]
    %v6410 = vlaneseq
    %v6411 = vshrl.u32 %v6410, 7
    %v6412 = vsub.s32 2, %v6411
    %v6413 = vrot.slane %v190, %v6412
    %v6414 = vlaneseq
    %v6415 = vshrl.u32 %v6414, 7
    %v6416 = vsub.s32 2, %v6415
    %v6417 = vrot.slane %v212, %v6416
    %v6418 = vlaneseq
    %v6419 = vshrl.u32 %v6418, 7
    %v6420 = vsub.s32 2, %v6419
    %v6421 = vrot.slane %v195, %v6420
    %v6422 = vlaneseq
    %v6423 = vshrl.u32 %v6422, 7
    %v6424 = vsub.s32 2, %v6423
    %v6425 = vrot.slane %v213, %v6424
    %v6426 = vlaneseq
    %v6427 = vshrl.u32 %v6426, 7
    %v6428 = vsub.s32 2, %v6427
    %v6429 = vrot.slane %v200, %v6428
    %v6430 = vlaneseq
    %v6431 = vshrl.u32 %v6430, 7
    %v6432 = vsub.s32 2, %v6431
    %v6433 = vrot.slane %v214, %v6432
    %v6434 = vlaneseq
    %v6435 = vshrl.u32 %v6434, 7
    %v6436 = vsub.s32 2, %v6435
    %v6437 = vrot.slane %v205, %v6436
    %v6438 = vlaneseq
    %v6439 = vshrl.u32 %v6438, 7
    %v6440 = vsub.s32 2, %v6439
    %v6441 = vrot.slane %v215, %v6440
    %v6442 = vsel %vm5951, %v6417, %v6413
    %v6443 = vsel %vm5953, %v6421, %v6442
    %v6444 = vsel %vm5955, %v6425, %v6443
    %v6445 = vsel %vm5957, %v6429, %v6444
    %v6446 = vsel %vm5959, %v6433, %v6445
    %v6447 = vsel %vm5961, %v6437, %v6446
    %v6448 = vsel %vm5963, %v6441, %v6447
    %v6449 = vsel %vm217, %v6448, 0
    %6451 = vmatprep.subr.mxu0 0.0
    %6452 = vmatpush1.msra.mxu0 0.0
    %6453 = vmatprep.subr.mxu0 0.0
    %6454 = vmatpush1.msra.mxu0 0.0
    %6455 = vmatprep.subr.mxu0 0.0
    %6456 = vmatpush1.msra.mxu0 0.0
    %6457 = vmatprep.subr.mxu0 0.0
    %6458 = vmatpush1.msra.mxu0 0.0
    %6459 = vmatprep.subr.mxu0 0.0
    %6460 = vmatpush1.msra.mxu0 0.0
    %6461 = vmatprep.subr.mxu0 0.0
    %6462 = vmatpush1.msra.mxu0 0.0
    %6463 = vmatprep.subr.mxu0 0.0
    %6464 = vmatpush1.msra.mxu0 0.0
    %6465 = vmatprep.subr.mxu0 0.0
    %6466 = vmatpush1.msra.mxu0 0.0
    %6467 = vmatprep.subr.mxu0 0.0
    %6468 = vmatpush1.msra.mxu0 0.0
    %6469 = vmatprep.subr.mxu0 0.0
    %6470 = vmatpush1.msra.mxu0 0.0
    %6471 = vmatprep.subr.mxu0 0.0
    %6472 = vmatpush1.msra.mxu0 0.0
    %6473 = vmatprep.subr.mxu0 0.0
    %6474 = vmatpush1.msra.mxu0 0.0
    %6475 = vmatprep.subr.mxu0 0.0
    %6476 = vmatpush1.msra.mxu0 0.0
    %6477 = vmatprep.subr.mxu0 0.0
    %6478 = vmatpush1.msra.mxu0 0.0
    %6479 = vmatprep.subr.mxu0 0.0
    %6480 = vmatpush1.msra.mxu0 0.0
    %6481 = vmatprep.subr.mxu0 0.0
    %6482 = vmatpush1.msra.mxu0 %v6409
    %6483 = vmatprep.subr.mxu0 0.0
    %6484 = vmatpush2.msra.mxu0 0.0
    %6485 = vmatprep.subr.mxu0 0.0
    %6486 = vmatpush2.msra.mxu0 0.0
    %6487 = vmatprep.subr.mxu0 0.0
    %6488 = vmatpush2.msra.mxu0 0.0
    %6489 = vmatprep.subr.mxu0 0.0
    %6490 = vmatpush2.msra.mxu0 0.0
    %6491 = vmatprep.subr.mxu0 0.0
    %6492 = vmatpush2.msra.mxu0 0.0
    %6493 = vmatprep.subr.mxu0 0.0
    %6494 = vmatpush2.msra.mxu0 0.0
    %6495 = vmatprep.subr.mxu0 0.0
    %6496 = vmatpush2.msra.mxu0 0.0
    %6497 = vmatprep.subr.mxu0 0.0
    %6498 = vmatpush2.msra.mxu0 0.0
    %6499 = vmatprep.subr.mxu0 0.0
    %6500 = vmatpush2.msra.mxu0 0.0
    %6501 = vmatprep.subr.mxu0 0.0
    %6502 = vmatpush2.msra.mxu0 0.0
    %6503 = vmatprep.subr.mxu0 0.0
    %6504 = vmatpush2.msra.mxu0 0.0
    %6505 = vmatprep.subr.mxu0 0.0
    %6506 = vmatpush2.msra.mxu0 0.0
    %6507 = vmatprep.subr.mxu0 0.0
    %6508 = vmatpush2.msra.mxu0 0.0
    %6509 = vmatprep.subr.mxu0 0.0
    %6510 = vmatpush2.msra.mxu0 0.0
    %6511 = vmatprep.subr.mxu0 0.0
    %6512 = vmatpush2.msra.mxu0 0.0
    %6513 = vmatprep.subr.mxu0 0.0
    %6514 = vmatpush2.msra.mxu0 0.0
    %6515 = vmatprep.mubr.f32.mxu0 0.0
    %6516 = vmatmul.mubr.f32.gmra.mxu0 %v6449
    %v6517 = vpop.f32.mrf.mxu0
    %v6518 = vadd.f32 0.0, %v6517
    %v6519 = vpop.f32.mrf.mxu0
    %6520 = vdwg.mxu0
    %v6522 = vcombine.high %v6518, %v6518
    %v6524 = vunpack.c.l.s4 1966171168
    %v6525 = vunpack.c.0.s8 %v6524
    %v6526 = vlaneseq
    %v6527 = vshrl.u32 %v6526, 7
    %v6528 = vsub.s32 %v6525, %v6527
    %v6529 = vrot.slane %v6518, %v6528
    %v6531 = vunpack.c.l.s4 1966171168
    %v6532 = vunpack.c.0.s8 %v6531
    %v6533 = vlaneseq
    %v6534 = vshrl.u32 %v6533, 7
    %v6535 = vsub.s32 %v6532, %v6534
    %v6536 = vrot.slane %v6522, %v6535
    %v6537 = vcombine.high %v6529, %v6529
    %v6538 = vcombine.high %v6536, %v6536
    %v6540 = vunpack.c.l.s4 1966171168
    %v6541 = vunpack.c.0.s8 %v6540
    %v6542 = vlaneseq
    %v6543 = vshrl.u32 %v6542, 7
    %v6544 = vsub.s32 %v6541, %v6543
    %v6545 = vrot.slane %v6529, %v6544
    %v6547 = vunpack.c.l.s4 1966171168
    %v6548 = vunpack.c.0.s8 %v6547
    %v6549 = vlaneseq
    %v6550 = vshrl.u32 %v6549, 7
    %v6551 = vsub.s32 %v6548, %v6550
    %v6552 = vrot.slane %v6536, %v6551
    %v6554 = vunpack.c.l.s4 1966171168
    %v6555 = vunpack.c.0.s8 %v6554
    %v6556 = vlaneseq
    %v6557 = vshrl.u32 %v6556, 7
    %v6558 = vsub.s32 %v6555, %v6557
    %v6559 = vrot.slane %v6537, %v6558
    %v6561 = vunpack.c.l.s4 1966171168
    %v6562 = vunpack.c.0.s8 %v6561
    %v6563 = vlaneseq
    %v6564 = vshrl.u32 %v6563, 7
    %v6565 = vsub.s32 %v6562, %v6564
    %v6566 = vrot.slane %v6538, %v6565
    %v6567 = vcombine.high %v6545, %v6545
    %v6568 = vcombine.high %v6552, %v6552
    %v6569 = vcombine.high %v6559, %v6559
    %v6570 = vcombine.high %v6566, %v6566
    %v6579 = vadd.f32 %v6400, %v6545
    %v6580 = vadd.f32 %v6401, %v6559
    %v6581 = vadd.f32 %v6402, %v6567
    %v6582 = vadd.f32 %v6403, %v6569
    %v6583 = vadd.f32 %v6404, %v6552
    %v6584 = vadd.f32 %v6405, %v6566
    %v6585 = vadd.f32 %v6406, %v6568
    %v6586 = vadd.f32 %v6407, %v6570
    %s6587 = scalar_lea.vmem %s5, 24
    %v6588 = vld [vmem:[%s6587] sm:$0xff]
    %v6589 = vlaneseq
    %v6590 = vshrl.u32 %v6589, 7
    %v6591 = vsub.s32 3, %v6590
    %v6592 = vrot.slane %v190, %v6591
    %v6593 = vlaneseq
    %v6594 = vshrl.u32 %v6593, 7
    %v6595 = vsub.s32 3, %v6594
    %v6596 = vrot.slane %v212, %v6595
    %v6597 = vlaneseq
    %v6598 = vshrl.u32 %v6597, 7
    %v6599 = vsub.s32 3, %v6598
    %v6600 = vrot.slane %v195, %v6599
    %v6601 = vlaneseq
    %v6602 = vshrl.u32 %v6601, 7
    %v6603 = vsub.s32 3, %v6602
    %v6604 = vrot.slane %v213, %v6603
    %v6605 = vlaneseq
    %v6606 = vshrl.u32 %v6605, 7
    %v6607 = vsub.s32 3, %v6606
    %v6608 = vrot.slane %v200, %v6607
    %v6609 = vlaneseq
    %v6610 = vshrl.u32 %v6609, 7
    %v6611 = vsub.s32 3, %v6610
    %v6612 = vrot.slane %v214, %v6611
    %v6613 = vlaneseq
    %v6614 = vshrl.u32 %v6613, 7
    %v6615 = vsub.s32 3, %v6614
    %v6616 = vrot.slane %v205, %v6615
    %v6617 = vlaneseq
    %v6618 = vshrl.u32 %v6617, 7
    %v6619 = vsub.s32 3, %v6618
    %v6620 = vrot.slane %v215, %v6619
    %v6621 = vsel %vm5951, %v6596, %v6592
    %v6622 = vsel %vm5953, %v6600, %v6621
    %v6623 = vsel %vm5955, %v6604, %v6622
    %v6624 = vsel %vm5957, %v6608, %v6623
    %v6625 = vsel %vm5959, %v6612, %v6624
    %v6626 = vsel %vm5961, %v6616, %v6625
    %v6627 = vsel %vm5963, %v6620, %v6626
    %v6628 = vsel %vm217, %v6627, 0
    %6630 = vmatprep.subr.mxu0 0.0
    %6631 = vmatpush1.msra.mxu0 0.0
    %6632 = vmatprep.subr.mxu0 0.0
    %6633 = vmatpush1.msra.mxu0 0.0
    %6634 = vmatprep.subr.mxu0 0.0
    %6635 = vmatpush1.msra.mxu0 0.0
    %6636 = vmatprep.subr.mxu0 0.0
    %6637 = vmatpush1.msra.mxu0 0.0
    %6638 = vmatprep.subr.mxu0 0.0
    %6639 = vmatpush1.msra.mxu0 0.0
    %6640 = vmatprep.subr.mxu0 0.0
    %6641 = vmatpush1.msra.mxu0 0.0
    %6642 = vmatprep.subr.mxu0 0.0
    %6643 = vmatpush1.msra.mxu0 0.0
    %6644 = vmatprep.subr.mxu0 0.0
    %6645 = vmatpush1.msra.mxu0 0.0
    %6646 = vmatprep.subr.mxu0 0.0
    %6647 = vmatpush1.msra.mxu0 0.0
    %6648 = vmatprep.subr.mxu0 0.0
    %6649 = vmatpush1.msra.mxu0 0.0
    %6650 = vmatprep.subr.mxu0 0.0
    %6651 = vmatpush1.msra.mxu0 0.0
    %6652 = vmatprep.subr.mxu0 0.0
    %6653 = vmatpush1.msra.mxu0 0.0
    %6654 = vmatprep.subr.mxu0 0.0
    %6655 = vmatpush1.msra.mxu0 0.0
    %6656 = vmatprep.subr.mxu0 0.0
    %6657 = vmatpush1.msra.mxu0 0.0
    %6658 = vmatprep.subr.mxu0 0.0
    %6659 = vmatpush1.msra.mxu0 0.0
    %6660 = vmatprep.subr.mxu0 0.0
    %6661 = vmatpush1.msra.mxu0 %v6588
    %6662 = vmatprep.subr.mxu0 0.0
    %6663 = vmatpush2.msra.mxu0 0.0
    %6664 = vmatprep.subr.mxu0 0.0
    %6665 = vmatpush2.msra.mxu0 0.0
    %6666 = vmatprep.subr.mxu0 0.0
    %6667 = vmatpush2.msra.mxu0 0.0
    %6668 = vmatprep.subr.mxu0 0.0
    %6669 = vmatpush2.msra.mxu0 0.0
    %6670 = vmatprep.subr.mxu0 0.0
    %6671 = vmatpush2.msra.mxu0 0.0
    %6672 = vmatprep.subr.mxu0 0.0
    %6673 = vmatpush2.msra.mxu0 0.0
    %6674 = vmatprep.subr.mxu0 0.0
    %6675 = vmatpush2.msra.mxu0 0.0
    %6676 = vmatprep.subr.mxu0 0.0
    %6677 = vmatpush2.msra.mxu0 0.0
    %6678 = vmatprep.subr.mxu0 0.0
    %6679 = vmatpush2.msra.mxu0 0.0
    %6680 = vmatprep.subr.mxu0 0.0
    %6681 = vmatpush2.msra.mxu0 0.0
    %6682 = vmatprep.subr.mxu0 0.0
    %6683 = vmatpush2.msra.mxu0 0.0
    %6684 = vmatprep.subr.mxu0 0.0
    %6685 = vmatpush2.msra.mxu0 0.0
    %6686 = vmatprep.subr.mxu0 0.0
    %6687 = vmatpush2.msra.mxu0 0.0
    %6688 = vmatprep.subr.mxu0 0.0
    %6689 = vmatpush2.msra.mxu0 0.0
    %6690 = vmatprep.subr.mxu0 0.0
    %6691 = vmatpush2.msra.mxu0 0.0
    %6692 = vmatprep.subr.mxu0 0.0
    %6693 = vmatpush2.msra.mxu0 0.0
    %6694 = vmatprep.mubr.f32.mxu0 0.0
    %6695 = vmatmul.mubr.f32.gmra.mxu0 %v6628
    %v6696 = vpop.f32.mrf.mxu0
    %v6697 = vadd.f32 0.0, %v6696
    %v6698 = vpop.f32.mrf.mxu0
    %6699 = vdwg.mxu0
    %v6701 = vcombine.high %v6697, %v6697
    %v6703 = vunpack.c.l.s4 1966171168
    %v6704 = vunpack.c.0.s8 %v6703
    %v6705 = vlaneseq
    %v6706 = vshrl.u32 %v6705, 7
    %v6707 = vsub.s32 %v6704, %v6706
    %v6708 = vrot.slane %v6697, %v6707
    %v6710 = vunpack.c.l.s4 1966171168
    %v6711 = vunpack.c.0.s8 %v6710
    %v6712 = vlaneseq
    %v6713 = vshrl.u32 %v6712, 7
    %v6714 = vsub.s32 %v6711, %v6713
    %v6715 = vrot.slane %v6701, %v6714
    %v6716 = vcombine.high %v6708, %v6708
    %v6717 = vcombine.high %v6715, %v6715
    %v6719 = vunpack.c.l.s4 1966171168
    %v6720 = vunpack.c.0.s8 %v6719
    %v6721 = vlaneseq
    %v6722 = vshrl.u32 %v6721, 7
    %v6723 = vsub.s32 %v6720, %v6722
    %v6724 = vrot.slane %v6708, %v6723
    %v6726 = vunpack.c.l.s4 1966171168
    %v6727 = vunpack.c.0.s8 %v6726
    %v6728 = vlaneseq
    %v6729 = vshrl.u32 %v6728, 7
    %v6730 = vsub.s32 %v6727, %v6729
    %v6731 = vrot.slane %v6715, %v6730
    %v6733 = vunpack.c.l.s4 1966171168
    %v6734 = vunpack.c.0.s8 %v6733
    %v6735 = vlaneseq
    %v6736 = vshrl.u32 %v6735, 7
    %v6737 = vsub.s32 %v6734, %v6736
    %v6738 = vrot.slane %v6716, %v6737
    %v6740 = vunpack.c.l.s4 1966171168
    %v6741 = vunpack.c.0.s8 %v6740
    %v6742 = vlaneseq
    %v6743 = vshrl.u32 %v6742, 7
    %v6744 = vsub.s32 %v6741, %v6743
    %v6745 = vrot.slane %v6717, %v6744
    %v6746 = vcombine.high %v6724, %v6724
    %v6747 = vcombine.high %v6731, %v6731
    %v6748 = vcombine.high %v6738, %v6738
    %v6749 = vcombine.high %v6745, %v6745
    %v6758 = vadd.f32 %v6579, %v6724
    %v6759 = vadd.f32 %v6580, %v6738
    %v6760 = vadd.f32 %v6581, %v6746
    %v6761 = vadd.f32 %v6582, %v6748
    %v6762 = vadd.f32 %v6583, %v6731
    %v6763 = vadd.f32 %v6584, %v6745
    %v6764 = vadd.f32 %v6585, %v6747
    %v6765 = vadd.f32 %v6586, %v6749
    %v6766 = vld [vmem:[%s6] sm:$0x1]
    %v6767 = vadd.f32 %v6758, %v6766
    %v6768 = vadd.f32 %v6759, %v6766
    %v6769 = vadd.f32 %v6760, %v6766
    %v6770 = vadd.f32 %v6761, %v6766
    %v6771 = vadd.f32 %v6762, %v6766
    %v6772 = vadd.f32 %v6763, %v6766
    %v6773 = vadd.f32 %v6764, %v6766
    %v6774 = vadd.f32 %v6765, %v6766
    %v6775 = vmax.f32 %v6767, 0.0
    %v6776 = vmax.f32 %v6768, 0.0
    %v6777 = vmax.f32 %v6769, 0.0
    %v6778 = vmax.f32 %v6770, 0.0
    %v6779 = vmax.f32 %v6771, 0.0
    %v6780 = vmax.f32 %v6772, 0.0
    %v6781 = vmax.f32 %v6773, 0.0
    %v6782 = vmax.f32 %v6774, 0.0
    %v6783 = vld [vmem:[%s7] sm:$0xff]
    %v6784 = vld [vmem:[%s7 + $0x8] sm:$0xff]
    %v6785 = vld [vmem:[%s7 + $0x10] sm:$0xff]
    %v6786 = vld [vmem:[%s7 + $0x18] sm:$0xff]
    %v6787 = vld [vmem:[%s8] sm:$0x1]
    %v6796 = vcombine.low %v6775, %v6776
    %v6797 = vcombine.low %v6777, %v6778
    %v6798 = vcombine.low %v6779, %v6780
    %v6799 = vcombine.low %v6781, %v6782
    %v6801 = vunpack.c.l.s4 1966171168
    %v6802 = vunpack.c.0.s8 %v6801
    %v6803 = vlaneseq
    %v6804 = vshrl.u32 %v6803, 7
    %v6805 = vsub.s32 %v6802, %v6804
    %v6806 = vrot.slane %v6796, %v6805
    %v6808 = vunpack.c.l.s4 1966171168
    %v6809 = vunpack.c.0.s8 %v6808
    %v6810 = vlaneseq
    %v6811 = vshrl.u32 %v6810, 7
    %v6812 = vsub.s32 %v6809, %v6811
    %v6813 = vrot.slane %v6797, %v6812
    %v6815 = vunpack.c.l.s4 1966171168
    %v6816 = vunpack.c.0.s8 %v6815
    %v6817 = vlaneseq
    %v6818 = vshrl.u32 %v6817, 7
    %v6819 = vsub.s32 %v6816, %v6818
    %v6820 = vrot.slane %v6798, %v6819
    %v6822 = vunpack.c.l.s4 1966171168
    %v6823 = vunpack.c.0.s8 %v6822
    %v6824 = vlaneseq
    %v6825 = vshrl.u32 %v6824, 7
    %v6826 = vsub.s32 %v6823, %v6825
    %v6827 = vrot.slane %v6799, %v6826
    %v6828 = vcombine.low %v6806, %v6813
    %v6829 = vcombine.low %v6820, %v6827
    %v6831 = vunpack.c.l.s4 1966171168
    %v6832 = vunpack.c.0.s8 %v6831
    %v6833 = vlaneseq
    %v6834 = vshrl.u32 %v6833, 7
    %v6835 = vsub.s32 %v6832, %v6834
    %v6836 = vrot.slane %v6828, %v6835
    %v6838 = vunpack.c.l.s4 1966171168
    %v6839 = vunpack.c.0.s8 %v6838
    %v6840 = vlaneseq
    %v6841 = vshrl.u32 %v6840, 7
    %v6842 = vsub.s32 %v6839, %v6841
    %v6843 = vrot.slane %v6829, %v6842
    %v6844 = vcombine.low %v6836, %v6843
    %v6846 = vcombine.low %v6787, %v6787
    %v6848 = vunpack.c.l.s4 1966171168
    %v6849 = vunpack.c.0.s8 %v6848
    %v6850 = vlaneseq
    %v6851 = vshrl.u32 %v6850, 7
    %v6852 = vsub.s32 %v6849, %v6851
    %v6853 = vrot.slane %v6846, %v6852
    %v6854 = vcombine.low %v6853, %v6853
    %v6856 = vunpack.c.l.s4 1966171168
    %v6857 = vunpack.c.0.s8 %v6856
    %v6858 = vlaneseq
    %v6859 = vshrl.u32 %v6858, 7
    %v6860 = vsub.s32 %v6857, %v6859
    %v6861 = vrot.slane %v6854, %v6860
    %v6862 = vcombine.low %v6861, %v6861
    %vm6864 = vcmask 261120
    %v6865 = vsel %vm6864, %v6844, 0
    %6867 = vmatprep.subr.mxu0 0.0
    %6868 = vmatpush1.msra.mxu0 0.0
    %6869 = vmatprep.subr.mxu0 0.0
    %6870 = vmatpush1.msra.mxu0 0.0
    %6871 = vmatprep.subr.mxu0 0.0
    %6872 = vmatpush1.msra.mxu0 0.0
    %6873 = vmatprep.subr.mxu0 0.0
    %6874 = vmatpush1.msra.mxu0 0.0
    %6875 = vmatprep.subr.mxu0 0.0
    %6876 = vmatpush1.msra.mxu0 0.0
    %6877 = vmatprep.subr.mxu0 0.0
    %6878 = vmatpush1.msra.mxu0 0.0
    %6879 = vmatprep.subr.mxu0 0.0
    %6880 = vmatpush1.msra.mxu0 0.0
    %6881 = vmatprep.subr.mxu0 0.0
    %6882 = vmatpush1.msra.mxu0 0.0
    %6883 = vmatprep.subr.mxu0 0.0
    %6884 = vmatpush1.msra.mxu0 0.0
    %6885 = vmatprep.subr.mxu0 0.0
    %6886 = vmatpush1.msra.mxu0 0.0
    %6887 = vmatprep.subr.mxu0 0.0
    %6888 = vmatpush1.msra.mxu0 0.0
    %6889 = vmatprep.subr.mxu0 0.0
    %6890 = vmatpush1.msra.mxu0 0.0
    %6891 = vmatprep.subr.mxu0 0.0
    %6892 = vmatpush1.msra.mxu0 %v6786
    %6893 = vmatprep.subr.mxu0 0.0
    %6894 = vmatpush1.msra.mxu0 %v6785
    %6895 = vmatprep.subr.mxu0 0.0
    %6896 = vmatpush1.msra.mxu0 %v6784
    %6897 = vmatprep.subr.mxu0 0.0
    %6898 = vmatpush1.msra.mxu0 %v6783
    %6899 = vmatprep.subr.mxu0 0.0
    %6900 = vmatpush2.msra.mxu0 0.0
    %6901 = vmatprep.subr.mxu0 0.0
    %6902 = vmatpush2.msra.mxu0 0.0
    %6903 = vmatprep.subr.mxu0 0.0
    %6904 = vmatpush2.msra.mxu0 0.0
    %6905 = vmatprep.subr.mxu0 0.0
    %6906 = vmatpush2.msra.mxu0 0.0
    %6907 = vmatprep.subr.mxu0 0.0
    %6908 = vmatpush2.msra.mxu0 0.0
    %6909 = vmatprep.subr.mxu0 0.0
    %6910 = vmatpush2.msra.mxu0 0.0
    %6911 = vmatprep.subr.mxu0 0.0
    %6912 = vmatpush2.msra.mxu0 0.0
    %6913 = vmatprep.subr.mxu0 0.0
    %6914 = vmatpush2.msra.mxu0 0.0
    %6915 = vmatprep.subr.mxu0 0.0
    %6916 = vmatpush2.msra.mxu0 0.0
    %6917 = vmatprep.subr.mxu0 0.0
    %6918 = vmatpush2.msra.mxu0 0.0
    %6919 = vmatprep.subr.mxu0 0.0
    %6920 = vmatpush2.msra.mxu0 0.0
    %6921 = vmatprep.subr.mxu0 0.0
    %6922 = vmatpush2.msra.mxu0 0.0
    %6923 = vmatprep.subr.mxu0 0.0
    %6924 = vmatpush2.msra.mxu0 0.0
    %6925 = vmatprep.subr.mxu0 0.0
    %6926 = vmatpush2.msra.mxu0 0.0
    %6927 = vmatprep.subr.mxu0 0.0
    %6928 = vmatpush2.msra.mxu0 0.0
    %6929 = vmatprep.subr.mxu0 0.0
    %6930 = vmatpush2.msra.mxu0 0.0
    %6931 = vmatprep.mubr.f32.mxu0 0.0
    %6932 = vmatmul.mubr.f32.gmra.mxu0 %v6865
    %v6933 = vpop.f32.mrf.mxu0
    %v6934 = vadd.f32 %v6862, %v6933
    %v6935 = vpop.f32.mrf.mxu0
    %6936 = vdwg.mxu0
    %v6938 = vcombine.high %v6934, %v6934
    %v6940 = vunpack.c.l.s4 1966171168
    %v6941 = vunpack.c.0.s8 %v6940
    %v6942 = vlaneseq
    %v6943 = vshrl.u32 %v6942, 7
    %v6944 = vsub.s32 %v6941, %v6943
    %v6945 = vrot.slane %v6934, %v6944
    %v6947 = vunpack.c.l.s4 1966171168
    %v6948 = vunpack.c.0.s8 %v6947
    %v6949 = vlaneseq
    %v6950 = vshrl.u32 %v6949, 7
    %v6951 = vsub.s32 %v6948, %v6950
    %v6952 = vrot.slane %v6938, %v6951
    %v6953 = vcombine.high %v6945, %v6945
    %v6954 = vcombine.high %v6952, %v6952
    %v6956 = vunpack.c.l.s4 1966171168
    %v6957 = vunpack.c.0.s8 %v6956
    %v6958 = vlaneseq
    %v6959 = vshrl.u32 %v6958, 7
    %v6960 = vsub.s32 %v6957, %v6959
    %v6961 = vrot.slane %v6945, %v6960
    %v6963 = vunpack.c.l.s4 1966171168
    %v6964 = vunpack.c.0.s8 %v6963
    %v6965 = vlaneseq
    %v6966 = vshrl.u32 %v6965, 7
    %v6967 = vsub.s32 %v6964, %v6966
    %v6968 = vrot.slane %v6952, %v6967
    %v6970 = vunpack.c.l.s4 1966171168
    %v6971 = vunpack.c.0.s8 %v6970
    %v6972 = vlaneseq
    %v6973 = vshrl.u32 %v6972, 7
    %v6974 = vsub.s32 %v6971, %v6973
    %v6975 = vrot.slane %v6953, %v6974
    %v6977 = vunpack.c.l.s4 1966171168
    %v6978 = vunpack.c.0.s8 %v6977
    %v6979 = vlaneseq
    %v6980 = vshrl.u32 %v6979, 7
    %v6981 = vsub.s32 %v6978, %v6980
    %v6982 = vrot.slane %v6954, %v6981
    %v6983 = vcombine.high %v6961, %v6961
    %v6984 = vcombine.high %v6968, %v6968
    %v6985 = vcombine.high %v6975, %v6975
    %v6986 = vcombine.high %v6982, %v6982
    %v6995 = vmax.f32 %v6961, 0.0
    %v6996 = vmax.f32 %v6975, 0.0
    %v6997 = vmax.f32 %v6983, 0.0
    %v6998 = vmax.f32 %v6985, 0.0
    %v6999 = vmax.f32 %v6968, 0.0
    %v7000 = vmax.f32 %v6982, 0.0
    %v7001 = vmax.f32 %v6984, 0.0
    %v7002 = vmax.f32 %v6986, 0.0
    %v7003 = vld [vmem:[%s10] sm:$0xff]
    %v7004 = vld [vmem:[%s10 + $0x8] sm:$0xff]
    %v7005 = vld [vmem:[%s9] sm:$0xff]
    %v7014 = vlaneseq
    %v7015 = vshrl.u32 %v7014, 7
    %v7016 = vsub.s32 0, %v7015
    %v7017 = vrot.slane %v5901, %v7016
    %v7018 = vlaneseq
    %v7019 = vshrl.u32 %v7018, 7
    %v7020 = vsub.s32 0, %v7019
    %v7021 = vrot.slane %v5902, %v7020
    %v7022 = vlaneseq
    %v7023 = vshrl.u32 %v7022, 7
    %v7024 = vsub.s32 0, %v7023
    %v7025 = vrot.slane %v5903, %v7024
    %v7026 = vlaneseq
    %v7027 = vshrl.u32 %v7026, 7
    %v7028 = vsub.s32 0, %v7027
    %v7029 = vrot.slane %v5904, %v7028
    %v7030 = vlaneseq
    %v7031 = vshrl.u32 %v7030, 7
    %v7032 = vsub.s32 0, %v7031
    %v7033 = vrot.slane %v5905, %v7032
    %v7034 = vlaneseq
    %v7035 = vshrl.u32 %v7034, 7
    %v7036 = vsub.s32 0, %v7035
    %v7037 = vrot.slane %v5906, %v7036
    %v7038 = vlaneseq
    %v7039 = vshrl.u32 %v7038, 7
    %v7040 = vsub.s32 0, %v7039
    %v7041 = vrot.slane %v5907, %v7040
    %v7042 = vlaneseq
    %v7043 = vshrl.u32 %v7042, 7
    %v7044 = vsub.s32 0, %v7043
    %v7045 = vrot.slane %v5908, %v7044
    %v7046 = vsel %vm5951, %v7021, %v7017
    %v7047 = vsel %vm5953, %v7025, %v7046
    %v7048 = vsel %vm5955, %v7029, %v7047
    %v7049 = vsel %vm5957, %v7033, %v7048
    %v7050 = vsel %vm5959, %v7037, %v7049
    %v7051 = vsel %vm5961, %v7041, %v7050
    %v7052 = vsel %vm5963, %v7045, %v7051
    %7053 = vrot.lane.b32.xlu0 %v7052, 80
    %v7054 = vpop.permute.xlu0 %7053
    %v7055 = vsel %vm217, %v7054, 0
    %7057 = vmatprep.subr.mxu0 0.0
    %7058 = vmatpush1.msra.mxu0 0.0
    %7059 = vmatprep.subr.mxu0 0.0
    %7060 = vmatpush1.msra.mxu0 0.0
    %7061 = vmatprep.subr.mxu0 0.0
    %7062 = vmatpush1.msra.mxu0 0.0
    %7063 = vmatprep.subr.mxu0 0.0
    %7064 = vmatpush1.msra.mxu0 0.0
    %7065 = vmatprep.subr.mxu0 0.0
    %7066 = vmatpush1.msra.mxu0 0.0
    %7067 = vmatprep.subr.mxu0 0.0
    %7068 = vmatpush1.msra.mxu0 0.0
    %7069 = vmatprep.subr.mxu0 0.0
    %7070 = vmatpush1.msra.mxu0 0.0
    %7071 = vmatprep.subr.mxu0 0.0
    %7072 = vmatpush1.msra.mxu0 0.0
    %7073 = vmatprep.subr.mxu0 0.0
    %7074 = vmatpush1.msra.mxu0 0.0
    %7075 = vmatprep.subr.mxu0 0.0
    %7076 = vmatpush1.msra.mxu0 0.0
    %7077 = vmatprep.subr.mxu0 0.0
    %7078 = vmatpush1.msra.mxu0 0.0
    %7079 = vmatprep.subr.mxu0 0.0
    %7080 = vmatpush1.msra.mxu0 0.0
    %7081 = vmatprep.subr.mxu0 0.0
    %7082 = vmatpush1.msra.mxu0 0.0
    %7083 = vmatprep.subr.mxu0 0.0
    %7084 = vmatpush1.msra.mxu0 0.0
    %7085 = vmatprep.subr.mxu0 0.0
    %7086 = vmatpush1.msra.mxu0 0.0
    %7087 = vmatprep.subr.mxu0 0.0
    %7088 = vmatpush1.msra.mxu0 %v7005
    %7089 = vmatprep.subr.mxu0 0.0
    %7090 = vmatpush2.msra.mxu0 0.0
    %7091 = vmatprep.subr.mxu0 0.0
    %7092 = vmatpush2.msra.mxu0 0.0
    %7093 = vmatprep.subr.mxu0 0.0
    %7094 = vmatpush2.msra.mxu0 0.0
    %7095 = vmatprep.subr.mxu0 0.0
    %7096 = vmatpush2.msra.mxu0 0.0
    %7097 = vmatprep.subr.mxu0 0.0
    %7098 = vmatpush2.msra.mxu0 0.0
    %7099 = vmatprep.subr.mxu0 0.0
    %7100 = vmatpush2.msra.mxu0 0.0
    %7101 = vmatprep.subr.mxu0 0.0
    %7102 = vmatpush2.msra.mxu0 0.0
    %7103 = vmatprep.subr.mxu0 0.0
    %7104 = vmatpush2.msra.mxu0 0.0
    %7105 = vmatprep.subr.mxu0 0.0
    %7106 = vmatpush2.msra.mxu0 0.0
    %7107 = vmatprep.subr.mxu0 0.0
    %7108 = vmatpush2.msra.mxu0 0.0
    %7109 = vmatprep.subr.mxu0 0.0
    %7110 = vmatpush2.msra.mxu0 0.0
    %7111 = vmatprep.subr.mxu0 0.0
    %7112 = vmatpush2.msra.mxu0 0.0
    %7113 = vmatprep.subr.mxu0 0.0
    %7114 = vmatpush2.msra.mxu0 0.0
    %7115 = vmatprep.subr.mxu0 0.0
    %7116 = vmatpush2.msra.mxu0 0.0
    %7117 = vmatprep.subr.mxu0 0.0
    %7118 = vmatpush2.msra.mxu0 0.0
    %7119 = vmatprep.subr.mxu0 0.0
    %7120 = vmatpush2.msra.mxu0 0.0
    %7121 = vmatprep.mubr.f32.mxu0 0.0
    %7122 = vmatmul.mubr.f32.gmra.mxu0 %v7055
    %v7123 = vpop.f32.mrf.mxu0
    %v7124 = vadd.f32 0.0, %v7123
    %v7125 = vpop.f32.mrf.mxu0
    %7126 = vdwg.mxu0
    %v7135 = vcombine.low %v6995, %v6996
    %v7136 = vcombine.low %v6997, %v6998
    %v7137 = vcombine.low %v6999, %v7000
    %v7138 = vcombine.low %v7001, %v7002
    %v7140 = vunpack.c.l.s4 1966171168
    %v7141 = vunpack.c.0.s8 %v7140
    %v7142 = vlaneseq
    %v7143 = vshrl.u32 %v7142, 7
    %v7144 = vsub.s32 %v7141, %v7143
    %v7145 = vrot.slane %v7135, %v7144
    %v7147 = vunpack.c.l.s4 1966171168
    %v7148 = vunpack.c.0.s8 %v7147
    %v7149 = vlaneseq
    %v7150 = vshrl.u32 %v7149, 7
    %v7151 = vsub.s32 %v7148, %v7150
    %v7152 = vrot.slane %v7136, %v7151
    %v7154 = vunpack.c.l.s4 1966171168
    %v7155 = vunpack.c.0.s8 %v7154
    %v7156 = vlaneseq
    %v7157 = vshrl.u32 %v7156, 7
    %v7158 = vsub.s32 %v7155, %v7157
    %v7159 = vrot.slane %v7137, %v7158
    %v7161 = vunpack.c.l.s4 1966171168
    %v7162 = vunpack.c.0.s8 %v7161
    %v7163 = vlaneseq
    %v7164 = vshrl.u32 %v7163, 7
    %v7165 = vsub.s32 %v7162, %v7164
    %v7166 = vrot.slane %v7138, %v7165
    %v7167 = vcombine.low %v7145, %v7152
    %v7168 = vcombine.low %v7159, %v7166
    %v7170 = vunpack.c.l.s4 1966171168
    %v7171 = vunpack.c.0.s8 %v7170
    %v7172 = vlaneseq
    %v7173 = vshrl.u32 %v7172, 7
    %v7174 = vsub.s32 %v7171, %v7173
    %v7175 = vrot.slane %v7167, %v7174
    %v7177 = vunpack.c.l.s4 1966171168
    %v7178 = vunpack.c.0.s8 %v7177
    %v7179 = vlaneseq
    %v7180 = vshrl.u32 %v7179, 7
    %v7181 = vsub.s32 %v7178, %v7180
    %v7182 = vrot.slane %v7168, %v7181
    %v7183 = vcombine.low %v7175, %v7182
    %vm7184 = vcmask 130048
    %v7185 = vsel %vm7184, %v7183, 0
    %7187 = vmatprep.subr.mxu0 0.0
    %7188 = vmatpush1.msra.mxu0 0.0
    %7189 = vmatprep.subr.mxu0 0.0
    %7190 = vmatpush1.msra.mxu0 0.0
    %7191 = vmatprep.subr.mxu0 0.0
    %7192 = vmatpush1.msra.mxu0 0.0
    %7193 = vmatprep.subr.mxu0 0.0
    %7194 = vmatpush1.msra.mxu0 0.0
    %7195 = vmatprep.subr.mxu0 0.0
    %7196 = vmatpush1.msra.mxu0 0.0
    %7197 = vmatprep.subr.mxu0 0.0
    %7198 = vmatpush1.msra.mxu0 0.0
    %7199 = vmatprep.subr.mxu0 0.0
    %7200 = vmatpush1.msra.mxu0 0.0
    %7201 = vmatprep.subr.mxu0 0.0
    %7202 = vmatpush1.msra.mxu0 0.0
    %7203 = vmatprep.subr.mxu0 0.0
    %7204 = vmatpush1.msra.mxu0 0.0
    %7205 = vmatprep.subr.mxu0 0.0
    %7206 = vmatpush1.msra.mxu0 0.0
    %7207 = vmatprep.subr.mxu0 0.0
    %7208 = vmatpush1.msra.mxu0 0.0
    %7209 = vmatprep.subr.mxu0 0.0
    %7210 = vmatpush1.msra.mxu0 0.0
    %7211 = vmatprep.subr.mxu0 0.0
    %7212 = vmatpush1.msra.mxu0 0.0
    %7213 = vmatprep.subr.mxu0 0.0
    %7214 = vmatpush1.msra.mxu0 0.0
    %7215 = vmatprep.subr.mxu0 0.0
    %7216 = vmatpush1.msra.mxu0 %v7004
    %7217 = vmatprep.subr.mxu0 0.0
    %7218 = vmatpush1.msra.mxu0 %v7003
    %7219 = vmatprep.subr.mxu0 0.0
    %7220 = vmatpush2.msra.mxu0 0.0
    %7221 = vmatprep.subr.mxu0 0.0
    %7222 = vmatpush2.msra.mxu0 0.0
    %7223 = vmatprep.subr.mxu0 0.0
    %7224 = vmatpush2.msra.mxu0 0.0
    %7225 = vmatprep.subr.mxu0 0.0
    %7226 = vmatpush2.msra.mxu0 0.0
    %7227 = vmatprep.subr.mxu0 0.0
    %7228 = vmatpush2.msra.mxu0 0.0
    %7229 = vmatprep.subr.mxu0 0.0
    %7230 = vmatpush2.msra.mxu0 0.0
    %7231 = vmatprep.subr.mxu0 0.0
    %7232 = vmatpush2.msra.mxu0 0.0
    %7233 = vmatprep.subr.mxu0 0.0
    %7234 = vmatpush2.msra.mxu0 0.0
    %7235 = vmatprep.subr.mxu0 0.0
    %7236 = vmatpush2.msra.mxu0 0.0
    %7237 = vmatprep.subr.mxu0 0.0
    %7238 = vmatpush2.msra.mxu0 0.0
    %7239 = vmatprep.subr.mxu0 0.0
    %7240 = vmatpush2.msra.mxu0 0.0
    %7241 = vmatprep.subr.mxu0 0.0
    %7242 = vmatpush2.msra.mxu0 0.0
    %7243 = vmatprep.subr.mxu0 0.0
    %7244 = vmatpush2.msra.mxu0 0.0
    %7245 = vmatprep.subr.mxu0 0.0
    %7246 = vmatpush2.msra.mxu0 0.0
    %7247 = vmatprep.subr.mxu0 0.0
    %7248 = vmatpush2.msra.mxu0 0.0
    %7249 = vmatprep.subr.mxu0 0.0
    %7250 = vmatpush2.msra.mxu0 0.0
    %7251 = vmatprep.mubr.f32.mxu0 0.0
    %7252 = vmatmul.mubr.f32.gmra.mxu0 %v7185
    %v7253 = vpop.f32.mrf.mxu0
    %v7254 = vadd.f32 %v7124, %v7253
    %v7255 = vpop.f32.mrf.mxu0
    %7256 = vdwg.mxu0
    %v7258 = vcombine.high %v7254, %v7254
    %v7260 = vunpack.c.l.s4 1966171168
    %v7261 = vunpack.c.0.s8 %v7260
    %v7262 = vlaneseq
    %v7263 = vshrl.u32 %v7262, 7
    %v7264 = vsub.s32 %v7261, %v7263
    %v7265 = vrot.slane %v7254, %v7264
    %v7267 = vunpack.c.l.s4 1966171168
    %v7268 = vunpack.c.0.s8 %v7267
    %v7269 = vlaneseq
    %v7270 = vshrl.u32 %v7269, 7
    %v7271 = vsub.s32 %v7268, %v7270
    %v7272 = vrot.slane %v7258, %v7271
    %v7273 = vcombine.high %v7265, %v7265
    %v7274 = vcombine.high %v7272, %v7272
    %v7276 = vunpack.c.l.s4 1966171168
    %v7277 = vunpack.c.0.s8 %v7276
    %v7278 = vlaneseq
    %v7279 = vshrl.u32 %v7278, 7
    %v7280 = vsub.s32 %v7277, %v7279
    %v7281 = vrot.slane %v7265, %v7280
    %v7283 = vunpack.c.l.s4 1966171168
    %v7284 = vunpack.c.0.s8 %v7283
    %v7285 = vlaneseq
    %v7286 = vshrl.u32 %v7285, 7
    %v7287 = vsub.s32 %v7284, %v7286
    %v7288 = vrot.slane %v7272, %v7287
    %v7290 = vunpack.c.l.s4 1966171168
    %v7291 = vunpack.c.0.s8 %v7290
    %v7292 = vlaneseq
    %v7293 = vshrl.u32 %v7292, 7
    %v7294 = vsub.s32 %v7291, %v7293
    %v7295 = vrot.slane %v7273, %v7294
    %v7297 = vunpack.c.l.s4 1966171168
    %v7298 = vunpack.c.0.s8 %v7297
    %v7299 = vlaneseq
    %v7300 = vshrl.u32 %v7299, 7
    %v7301 = vsub.s32 %v7298, %v7300
    %v7302 = vrot.slane %v7274, %v7301
    %v7303 = vcombine.high %v7281, %v7281
    %v7304 = vcombine.high %v7288, %v7288
    %v7305 = vcombine.high %v7295, %v7295
    %v7306 = vcombine.high %v7302, %v7302
    %s7315 = scalar_lea.vmem %s9, 8
    %v7316 = vld [vmem:[%s7315] sm:$0xff]
    %v7317 = vlaneseq
    %v7318 = vshrl.u32 %v7317, 7
    %v7319 = vsub.s32 1, %v7318
    %v7320 = vrot.slane %v5901, %v7319
    %v7321 = vlaneseq
    %v7322 = vshrl.u32 %v7321, 7
    %v7323 = vsub.s32 1, %v7322
    %v7324 = vrot.slane %v5902, %v7323
    %v7325 = vlaneseq
    %v7326 = vshrl.u32 %v7325, 7
    %v7327 = vsub.s32 1, %v7326
    %v7328 = vrot.slane %v5903, %v7327
    %v7329 = vlaneseq
    %v7330 = vshrl.u32 %v7329, 7
    %v7331 = vsub.s32 1, %v7330
    %v7332 = vrot.slane %v5904, %v7331
    %v7333 = vlaneseq
    %v7334 = vshrl.u32 %v7333, 7
    %v7335 = vsub.s32 1, %v7334
    %v7336 = vrot.slane %v5905, %v7335
    %v7337 = vlaneseq
    %v7338 = vshrl.u32 %v7337, 7
    %v7339 = vsub.s32 1, %v7338
    %v7340 = vrot.slane %v5906, %v7339
    %v7341 = vlaneseq
    %v7342 = vshrl.u32 %v7341, 7
    %v7343 = vsub.s32 1, %v7342
    %v7344 = vrot.slane %v5907, %v7343
    %v7345 = vlaneseq
    %v7346 = vshrl.u32 %v7345, 7
    %v7347 = vsub.s32 1, %v7346
    %v7348 = vrot.slane %v5908, %v7347
    %v7349 = vsel %vm5951, %v7324, %v7320
    %v7350 = vsel %vm5953, %v7328, %v7349
    %v7351 = vsel %vm5955, %v7332, %v7350
    %v7352 = vsel %vm5957, %v7336, %v7351
    %v7353 = vsel %vm5959, %v7340, %v7352
    %v7354 = vsel %vm5961, %v7344, %v7353
    %v7355 = vsel %vm5963, %v7348, %v7354
    %7356 = vrot.lane.b32.xlu0 %v7355, 80
    %v7357 = vpop.permute.xlu0 %7356
    %v7358 = vsel %vm217, %v7357, 0
    %7360 = vmatprep.subr.mxu0 0.0
    %7361 = vmatpush1.msra.mxu0 0.0
    %7362 = vmatprep.subr.mxu0 0.0
    %7363 = vmatpush1.msra.mxu0 0.0
    %7364 = vmatprep.subr.mxu0 0.0
    %7365 = vmatpush1.msra.mxu0 0.0
    %7366 = vmatprep.subr.mxu0 0.0
    %7367 = vmatpush1.msra.mxu0 0.0
    %7368 = vmatprep.subr.mxu0 0.0
    %7369 = vmatpush1.msra.mxu0 0.0
    %7370 = vmatprep.subr.mxu0 0.0
    %7371 = vmatpush1.msra.mxu0 0.0
    %7372 = vmatprep.subr.mxu0 0.0
    %7373 = vmatpush1.msra.mxu0 0.0
    %7374 = vmatprep.subr.mxu0 0.0
    %7375 = vmatpush1.msra.mxu0 0.0
    %7376 = vmatprep.subr.mxu0 0.0
    %7377 = vmatpush1.msra.mxu0 0.0
    %7378 = vmatprep.subr.mxu0 0.0
    %7379 = vmatpush1.msra.mxu0 0.0
    %7380 = vmatprep.subr.mxu0 0.0
    %7381 = vmatpush1.msra.mxu0 0.0
    %7382 = vmatprep.subr.mxu0 0.0
    %7383 = vmatpush1.msra.mxu0 0.0
    %7384 = vmatprep.subr.mxu0 0.0
    %7385 = vmatpush1.msra.mxu0 0.0
    %7386 = vmatprep.subr.mxu0 0.0
    %7387 = vmatpush1.msra.mxu0 0.0
    %7388 = vmatprep.subr.mxu0 0.0
    %7389 = vmatpush1.msra.mxu0 0.0
    %7390 = vmatprep.subr.mxu0 0.0
    %7391 = vmatpush1.msra.mxu0 %v7316
    %7392 = vmatprep.subr.mxu0 0.0
    %7393 = vmatpush2.msra.mxu0 0.0
    %7394 = vmatprep.subr.mxu0 0.0
    %7395 = vmatpush2.msra.mxu0 0.0
    %7396 = vmatprep.subr.mxu0 0.0
    %7397 = vmatpush2.msra.mxu0 0.0
    %7398 = vmatprep.subr.mxu0 0.0
    %7399 = vmatpush2.msra.mxu0 0.0
    %7400 = vmatprep.subr.mxu0 0.0
    %7401 = vmatpush2.msra.mxu0 0.0
    %7402 = vmatprep.subr.mxu0 0.0
    %7403 = vmatpush2.msra.mxu0 0.0
    %7404 = vmatprep.subr.mxu0 0.0
    %7405 = vmatpush2.msra.mxu0 0.0
    %7406 = vmatprep.subr.mxu0 0.0
    %7407 = vmatpush2.msra.mxu0 0.0
    %7408 = vmatprep.subr.mxu0 0.0
    %7409 = vmatpush2.msra.mxu0 0.0
    %7410 = vmatprep.subr.mxu0 0.0
    %7411 = vmatpush2.msra.mxu0 0.0
    %7412 = vmatprep.subr.mxu0 0.0
    %7413 = vmatpush2.msra.mxu0 0.0
    %7414 = vmatprep.subr.mxu0 0.0
    %7415 = vmatpush2.msra.mxu0 0.0
    %7416 = vmatprep.subr.mxu0 0.0
    %7417 = vmatpush2.msra.mxu0 0.0
    %7418 = vmatprep.subr.mxu0 0.0
    %7419 = vmatpush2.msra.mxu0 0.0
    %7420 = vmatprep.subr.mxu0 0.0
    %7421 = vmatpush2.msra.mxu0 0.0
    %7422 = vmatprep.subr.mxu0 0.0
    %7423 = vmatpush2.msra.mxu0 0.0
    %7424 = vmatprep.mubr.f32.mxu0 0.0
    %7425 = vmatmul.mubr.f32.gmra.mxu0 %v7358
    %v7426 = vpop.f32.mrf.mxu0
    %v7427 = vadd.f32 0.0, %v7426
    %v7428 = vpop.f32.mrf.mxu0
    %7429 = vdwg.mxu0
    %v7431 = vcombine.high %v7427, %v7427
    %v7433 = vunpack.c.l.s4 1966171168
    %v7434 = vunpack.c.0.s8 %v7433
    %v7435 = vlaneseq
    %v7436 = vshrl.u32 %v7435, 7
    %v7437 = vsub.s32 %v7434, %v7436
    %v7438 = vrot.slane %v7427, %v7437
    %v7440 = vunpack.c.l.s4 1966171168
    %v7441 = vunpack.c.0.s8 %v7440
    %v7442 = vlaneseq
    %v7443 = vshrl.u32 %v7442, 7
    %v7444 = vsub.s32 %v7441, %v7443
    %v7445 = vrot.slane %v7431, %v7444
    %v7446 = vcombine.high %v7438, %v7438
    %v7447 = vcombine.high %v7445, %v7445
    %v7449 = vunpack.c.l.s4 1966171168
    %v7450 = vunpack.c.0.s8 %v7449
    %v7451 = vlaneseq
    %v7452 = vshrl.u32 %v7451, 7
    %v7453 = vsub.s32 %v7450, %v7452
    %v7454 = vrot.slane %v7438, %v7453
    %v7456 = vunpack.c.l.s4 1966171168
    %v7457 = vunpack.c.0.s8 %v7456
    %v7458 = vlaneseq
    %v7459 = vshrl.u32 %v7458, 7
    %v7460 = vsub.s32 %v7457, %v7459
    %v7461 = vrot.slane %v7445, %v7460
    %v7463 = vunpack.c.l.s4 1966171168
    %v7464 = vunpack.c.0.s8 %v7463
    %v7465 = vlaneseq
    %v7466 = vshrl.u32 %v7465, 7
    %v7467 = vsub.s32 %v7464, %v7466
    %v7468 = vrot.slane %v7446, %v7467
    %v7470 = vunpack.c.l.s4 1966171168
    %v7471 = vunpack.c.0.s8 %v7470
    %v7472 = vlaneseq
    %v7473 = vshrl.u32 %v7472, 7
    %v7474 = vsub.s32 %v7471, %v7473
    %v7475 = vrot.slane %v7447, %v7474
    %v7476 = vcombine.high %v7454, %v7454
    %v7477 = vcombine.high %v7461, %v7461
    %v7478 = vcombine.high %v7468, %v7468
    %v7479 = vcombine.high %v7475, %v7475
    %v7488 = vadd.f32 %v7281, %v7454
    %v7489 = vadd.f32 %v7295, %v7468
    %v7490 = vadd.f32 %v7303, %v7476
    %v7491 = vadd.f32 %v7305, %v7478
    %v7492 = vadd.f32 %v7288, %v7461
    %v7493 = vadd.f32 %v7302, %v7475
    %v7494 = vadd.f32 %v7304, %v7477
    %v7495 = vadd.f32 %v7306, %v7479
    %s7496 = scalar_lea.vmem %s9, 16
    %v7497 = vld [vmem:[%s7496] sm:$0xff]
    %v7498 = vlaneseq
    %v7499 = vshrl.u32 %v7498, 7
    %v7500 = vsub.s32 2, %v7499
    %v7501 = vrot.slane %v5901, %v7500
    %v7502 = vlaneseq
    %v7503 = vshrl.u32 %v7502, 7
    %v7504 = vsub.s32 2, %v7503
    %v7505 = vrot.slane %v5902, %v7504
    %v7506 = vlaneseq
    %v7507 = vshrl.u32 %v7506, 7
    %v7508 = vsub.s32 2, %v7507
    %v7509 = vrot.slane %v5903, %v7508
    %v7510 = vlaneseq
    %v7511 = vshrl.u32 %v7510, 7
    %v7512 = vsub.s32 2, %v7511
    %v7513 = vrot.slane %v5904, %v7512
    %v7514 = vlaneseq
    %v7515 = vshrl.u32 %v7514, 7
    %v7516 = vsub.s32 2, %v7515
    %v7517 = vrot.slane %v5905, %v7516
    %v7518 = vlaneseq
    %v7519 = vshrl.u32 %v7518, 7
    %v7520 = vsub.s32 2, %v7519
    %v7521 = vrot.slane %v5906, %v7520
    %v7522 = vlaneseq
    %v7523 = vshrl.u32 %v7522, 7
    %v7524 = vsub.s32 2, %v7523
    %v7525 = vrot.slane %v5907, %v7524
    %v7526 = vlaneseq
    %v7527 = vshrl.u32 %v7526, 7
    %v7528 = vsub.s32 2, %v7527
    %v7529 = vrot.slane %v5908, %v7528
    %v7530 = vsel %vm5951, %v7505, %v7501
    %v7531 = vsel %vm5953, %v7509, %v7530
    %v7532 = vsel %vm5955, %v7513, %v7531
    %v7533 = vsel %vm5957, %v7517, %v7532
    %v7534 = vsel %vm5959, %v7521, %v7533
    %v7535 = vsel %vm5961, %v7525, %v7534
    %v7536 = vsel %vm5963, %v7529, %v7535
    %7537 = vrot.lane.b32.xlu0 %v7536, 80
    %v7538 = vpop.permute.xlu0 %7537
    %v7539 = vsel %vm217, %v7538, 0
    %7541 = vmatprep.subr.mxu0 0.0
    %7542 = vmatpush1.msra.mxu0 0.0
    %7543 = vmatprep.subr.mxu0 0.0
    %7544 = vmatpush1.msra.mxu0 0.0
    %7545 = vmatprep.subr.mxu0 0.0
    %7546 = vmatpush1.msra.mxu0 0.0
    %7547 = vmatprep.subr.mxu0 0.0
    %7548 = vmatpush1.msra.mxu0 0.0
    %7549 = vmatprep.subr.mxu0 0.0
    %7550 = vmatpush1.msra.mxu0 0.0
    %7551 = vmatprep.subr.mxu0 0.0
    %7552 = vmatpush1.msra.mxu0 0.0
    %7553 = vmatprep.subr.mxu0 0.0
    %7554 = vmatpush1.msra.mxu0 0.0
    %7555 = vmatprep.subr.mxu0 0.0
    %7556 = vmatpush1.msra.mxu0 0.0
    %7557 = vmatprep.subr.mxu0 0.0
    %7558 = vmatpush1.msra.mxu0 0.0
    %7559 = vmatprep.subr.mxu0 0.0
    %7560 = vmatpush1.msra.mxu0 0.0
    %7561 = vmatprep.subr.mxu0 0.0
    %7562 = vmatpush1.msra.mxu0 0.0
    %7563 = vmatprep.subr.mxu0 0.0
    %7564 = vmatpush1.msra.mxu0 0.0
    %7565 = vmatprep.subr.mxu0 0.0
    %7566 = vmatpush1.msra.mxu0 0.0
    %7567 = vmatprep.subr.mxu0 0.0
    %7568 = vmatpush1.msra.mxu0 0.0
    %7569 = vmatprep.subr.mxu0 0.0
    %7570 = vmatpush1.msra.mxu0 0.0
    %7571 = vmatprep.subr.mxu0 0.0
    %7572 = vmatpush1.msra.mxu0 %v7497
    %7573 = vmatprep.subr.mxu0 0.0
    %7574 = vmatpush2.msra.mxu0 0.0
    %7575 = vmatprep.subr.mxu0 0.0
    %7576 = vmatpush2.msra.mxu0 0.0
    %7577 = vmatprep.subr.mxu0 0.0
    %7578 = vmatpush2.msra.mxu0 0.0
    %7579 = vmatprep.subr.mxu0 0.0
    %7580 = vmatpush2.msra.mxu0 0.0
    %7581 = vmatprep.subr.mxu0 0.0
    %7582 = vmatpush2.msra.mxu0 0.0
    %7583 = vmatprep.subr.mxu0 0.0
    %7584 = vmatpush2.msra.mxu0 0.0
    %7585 = vmatprep.subr.mxu0 0.0
    %7586 = vmatpush2.msra.mxu0 0.0
    %7587 = vmatprep.subr.mxu0 0.0
    %7588 = vmatpush2.msra.mxu0 0.0
    %7589 = vmatprep.subr.mxu0 0.0
    %7590 = vmatpush2.msra.mxu0 0.0
    %7591 = vmatprep.subr.mxu0 0.0
    %7592 = vmatpush2.msra.mxu0 0.0
    %7593 = vmatprep.subr.mxu0 0.0
    %7594 = vmatpush2.msra.mxu0 0.0
    %7595 = vmatprep.subr.mxu0 0.0
    %7596 = vmatpush2.msra.mxu0 0.0
    %7597 = vmatprep.subr.mxu0 0.0
    %7598 = vmatpush2.msra.mxu0 0.0
    %7599 = vmatprep.subr.mxu0 0.0
    %7600 = vmatpush2.msra.mxu0 0.0
    %7601 = vmatprep.subr.mxu0 0.0
    %7602 = vmatpush2.msra.mxu0 0.0
    %7603 = vmatprep.subr.mxu0 0.0
    %7604 = vmatpush2.msra.mxu0 0.0
    %7605 = vmatprep.mubr.f32.mxu0 0.0
    %7606 = vmatmul.mubr.f32.gmra.mxu0 %v7539
    %v7607 = vpop.f32.mrf.mxu0
    %v7608 = vadd.f32 0.0, %v7607
    %v7609 = vpop.f32.mrf.mxu0
    %7610 = vdwg.mxu0
    %v7612 = vcombine.high %v7608, %v7608
    %v7614 = vunpack.c.l.s4 1966171168
    %v7615 = vunpack.c.0.s8 %v7614
    %v7616 = vlaneseq
    %v7617 = vshrl.u32 %v7616, 7
    %v7618 = vsub.s32 %v7615, %v7617
    %v7619 = vrot.slane %v7608, %v7618
    %v7621 = vunpack.c.l.s4 1966171168
    %v7622 = vunpack.c.0.s8 %v7621
    %v7623 = vlaneseq
    %v7624 = vshrl.u32 %v7623, 7
    %v7625 = vsub.s32 %v7622, %v7624
    %v7626 = vrot.slane %v7612, %v7625
    %v7627 = vcombine.high %v7619, %v7619
    %v7628 = vcombine.high %v7626, %v7626
    %v7630 = vunpack.c.l.s4 1966171168
    %v7631 = vunpack.c.0.s8 %v7630
    %v7632 = vlaneseq
    %v7633 = vshrl.u32 %v7632, 7
    %v7634 = vsub.s32 %v7631, %v7633
    %v7635 = vrot.slane %v7619, %v7634
    %v7637 = vunpack.c.l.s4 1966171168
    %v7638 = vunpack.c.0.s8 %v7637
    %v7639 = vlaneseq
    %v7640 = vshrl.u32 %v7639, 7
    %v7641 = vsub.s32 %v7638, %v7640
    %v7642 = vrot.slane %v7626, %v7641
    %v7644 = vunpack.c.l.s4 1966171168
    %v7645 = vunpack.c.0.s8 %v7644
    %v7646 = vlaneseq
    %v7647 = vshrl.u32 %v7646, 7
    %v7648 = vsub.s32 %v7645, %v7647
    %v7649 = vrot.slane %v7627, %v7648
    %v7651 = vunpack.c.l.s4 1966171168
    %v7652 = vunpack.c.0.s8 %v7651
    %v7653 = vlaneseq
    %v7654 = vshrl.u32 %v7653, 7
    %v7655 = vsub.s32 %v7652, %v7654
    %v7656 = vrot.slane %v7628, %v7655
    %v7657 = vcombine.high %v7635, %v7635
    %v7658 = vcombine.high %v7642, %v7642
    %v7659 = vcombine.high %v7649, %v7649
    %v7660 = vcombine.high %v7656, %v7656
    %v7669 = vadd.f32 %v7488, %v7635
    %v7670 = vadd.f32 %v7489, %v7649
    %v7671 = vadd.f32 %v7490, %v7657
    %v7672 = vadd.f32 %v7491, %v7659
    %v7673 = vadd.f32 %v7492, %v7642
    %v7674 = vadd.f32 %v7493, %v7656
    %v7675 = vadd.f32 %v7494, %v7658
    %v7676 = vadd.f32 %v7495, %v7660
    %s7677 = scalar_lea.vmem %s9, 24
    %v7678 = vld [vmem:[%s7677] sm:$0xff]
    %v7679 = vlaneseq
    %v7680 = vshrl.u32 %v7679, 7
    %v7681 = vsub.s32 3, %v7680
    %v7682 = vrot.slane %v5901, %v7681
    %v7683 = vlaneseq
    %v7684 = vshrl.u32 %v7683, 7
    %v7685 = vsub.s32 3, %v7684
    %v7686 = vrot.slane %v5902, %v7685
    %v7687 = vlaneseq
    %v7688 = vshrl.u32 %v7687, 7
    %v7689 = vsub.s32 3, %v7688
    %v7690 = vrot.slane %v5903, %v7689
    %v7691 = vlaneseq
    %v7692 = vshrl.u32 %v7691, 7
    %v7693 = vsub.s32 3, %v7692
    %v7694 = vrot.slane %v5904, %v7693
    %v7695 = vlaneseq
    %v7696 = vshrl.u32 %v7695, 7
    %v7697 = vsub.s32 3, %v7696
    %v7698 = vrot.slane %v5905, %v7697
    %v7699 = vlaneseq
    %v7700 = vshrl.u32 %v7699, 7
    %v7701 = vsub.s32 3, %v7700
    %v7702 = vrot.slane %v5906, %v7701
    %v7703 = vlaneseq
    %v7704 = vshrl.u32 %v7703, 7
    %v7705 = vsub.s32 3, %v7704
    %v7706 = vrot.slane %v5907, %v7705
    %v7707 = vlaneseq
    %v7708 = vshrl.u32 %v7707, 7
    %v7709 = vsub.s32 3, %v7708
    %v7710 = vrot.slane %v5908, %v7709
    %v7711 = vsel %vm5951, %v7686, %v7682
    %v7712 = vsel %vm5953, %v7690, %v7711
    %v7713 = vsel %vm5955, %v7694, %v7712
    %v7714 = vsel %vm5957, %v7698, %v7713
    %v7715 = vsel %vm5959, %v7702, %v7714
    %v7716 = vsel %vm5961, %v7706, %v7715
    %v7717 = vsel %vm5963, %v7710, %v7716
    %7718 = vrot.lane.b32.xlu0 %v7717, 80
    %v7719 = vpop.permute.xlu0 %7718
    %v7720 = vsel %vm217, %v7719, 0
    %7722 = vmatprep.subr.mxu0 0.0
    %7723 = vmatpush1.msra.mxu0 0.0
    %7724 = vmatprep.subr.mxu0 0.0
    %7725 = vmatpush1.msra.mxu0 0.0
    %7726 = vmatprep.subr.mxu0 0.0
    %7727 = vmatpush1.msra.mxu0 0.0
    %7728 = vmatprep.subr.mxu0 0.0
    %7729 = vmatpush1.msra.mxu0 0.0
    %7730 = vmatprep.subr.mxu0 0.0
    %7731 = vmatpush1.msra.mxu0 0.0
    %7732 = vmatprep.subr.mxu0 0.0
    %7733 = vmatpush1.msra.mxu0 0.0
    %7734 = vmatprep.subr.mxu0 0.0
    %7735 = vmatpush1.msra.mxu0 0.0
    %7736 = vmatprep.subr.mxu0 0.0
    %7737 = vmatpush1.msra.mxu0 0.0
    %7738 = vmatprep.subr.mxu0 0.0
    %7739 = vmatpush1.msra.mxu0 0.0
    %7740 = vmatprep.subr.mxu0 0.0
    %7741 = vmatpush1.msra.mxu0 0.0
    %7742 = vmatprep.subr.mxu0 0.0
    %7743 = vmatpush1.msra.mxu0 0.0
    %7744 = vmatprep.subr.mxu0 0.0
    %7745 = vmatpush1.msra.mxu0 0.0
    %7746 = vmatprep.subr.mxu0 0.0
    %7747 = vmatpush1.msra.mxu0 0.0
    %7748 = vmatprep.subr.mxu0 0.0
    %7749 = vmatpush1.msra.mxu0 0.0
    %7750 = vmatprep.subr.mxu0 0.0
    %7751 = vmatpush1.msra.mxu0 0.0
    %7752 = vmatprep.subr.mxu0 0.0
    %7753 = vmatpush1.msra.mxu0 %v7678
    %7754 = vmatprep.subr.mxu0 0.0
    %7755 = vmatpush2.msra.mxu0 0.0
    %7756 = vmatprep.subr.mxu0 0.0
    %7757 = vmatpush2.msra.mxu0 0.0
    %7758 = vmatprep.subr.mxu0 0.0
    %7759 = vmatpush2.msra.mxu0 0.0
    %7760 = vmatprep.subr.mxu0 0.0
    %7761 = vmatpush2.msra.mxu0 0.0
    %7762 = vmatprep.subr.mxu0 0.0
    %7763 = vmatpush2.msra.mxu0 0.0
    %7764 = vmatprep.subr.mxu0 0.0
    %7765 = vmatpush2.msra.mxu0 0.0
    %7766 = vmatprep.subr.mxu0 0.0
    %7767 = vmatpush2.msra.mxu0 0.0
    %7768 = vmatprep.subr.mxu0 0.0
    %7769 = vmatpush2.msra.mxu0 0.0
    %7770 = vmatprep.subr.mxu0 0.0
    %7771 = vmatpush2.msra.mxu0 0.0
    %7772 = vmatprep.subr.mxu0 0.0
    %7773 = vmatpush2.msra.mxu0 0.0
    %7774 = vmatprep.subr.mxu0 0.0
    %7775 = vmatpush2.msra.mxu0 0.0
    %7776 = vmatprep.subr.mxu0 0.0
    %7777 = vmatpush2.msra.mxu0 0.0
    %7778 = vmatprep.subr.mxu0 0.0
    %7779 = vmatpush2.msra.mxu0 0.0
    %7780 = vmatprep.subr.mxu0 0.0
    %7781 = vmatpush2.msra.mxu0 0.0
    %7782 = vmatprep.subr.mxu0 0.0
    %7783 = vmatpush2.msra.mxu0 0.0
    %7784 = vmatprep.subr.mxu0 0.0
    %7785 = vmatpush2.msra.mxu0 0.0
    %7786 = vmatprep.mubr.f32.mxu0 0.0
    %7787 = vmatmul.mubr.f32.gmra.mxu0 %v7720
    %v7788 = vpop.f32.mrf.mxu0
    %v7789 = vadd.f32 0.0, %v7788
    %v7790 = vpop.f32.mrf.mxu0
    %7791 = vdwg.mxu0
    %v7793 = vcombine.high %v7789, %v7789
    %v7795 = vunpack.c.l.s4 1966171168
    %v7796 = vunpack.c.0.s8 %v7795
    %v7797 = vlaneseq
    %v7798 = vshrl.u32 %v7797, 7
    %v7799 = vsub.s32 %v7796, %v7798
    %v7800 = vrot.slane %v7789, %v7799
    %v7802 = vunpack.c.l.s4 1966171168
    %v7803 = vunpack.c.0.s8 %v7802
    %v7804 = vlaneseq
    %v7805 = vshrl.u32 %v7804, 7
    %v7806 = vsub.s32 %v7803, %v7805
    %v7807 = vrot.slane %v7793, %v7806
    %v7808 = vcombine.high %v7800, %v7800
    %v7809 = vcombine.high %v7807, %v7807
    %v7811 = vunpack.c.l.s4 1966171168
    %v7812 = vunpack.c.0.s8 %v7811
    %v7813 = vlaneseq
    %v7814 = vshrl.u32 %v7813, 7
    %v7815 = vsub.s32 %v7812, %v7814
    %v7816 = vrot.slane %v7800, %v7815
    %v7818 = vunpack.c.l.s4 1966171168
    %v7819 = vunpack.c.0.s8 %v7818
    %v7820 = vlaneseq
    %v7821 = vshrl.u32 %v7820, 7
    %v7822 = vsub.s32 %v7819, %v7821
    %v7823 = vrot.slane %v7807, %v7822
    %v7825 = vunpack.c.l.s4 1966171168
    %v7826 = vunpack.c.0.s8 %v7825
    %v7827 = vlaneseq
    %v7828 = vshrl.u32 %v7827, 7
    %v7829 = vsub.s32 %v7826, %v7828
    %v7830 = vrot.slane %v7808, %v7829
    %v7832 = vunpack.c.l.s4 1966171168
    %v7833 = vunpack.c.0.s8 %v7832
    %v7834 = vlaneseq
    %v7835 = vshrl.u32 %v7834, 7
    %v7836 = vsub.s32 %v7833, %v7835
    %v7837 = vrot.slane %v7809, %v7836
    %v7838 = vcombine.high %v7816, %v7816
    %v7839 = vcombine.high %v7823, %v7823
    %v7840 = vcombine.high %v7830, %v7830
    %v7841 = vcombine.high %v7837, %v7837
    %v7850 = vadd.f32 %v7669, %v7816
    %v7851 = vadd.f32 %v7670, %v7830
    %v7852 = vadd.f32 %v7671, %v7838
    %v7853 = vadd.f32 %v7672, %v7840
    %v7854 = vadd.f32 %v7673, %v7823
    %v7855 = vadd.f32 %v7674, %v7837
    %v7856 = vadd.f32 %v7675, %v7839
    %v7857 = vadd.f32 %v7676, %v7841
    %v7858 = vxor.u32 %v7850, 2147483648
    %v7859 = vxor.u32 %v7851, 2147483648
    %v7860 = vxor.u32 %v7852, 2147483648
    %v7861 = vxor.u32 %v7853, 2147483648
    %v7862 = vxor.u32 %v7854, 2147483648
    %v7863 = vxor.u32 %v7855, 2147483648
    %v7864 = vxor.u32 %v7856, 2147483648
    %v7865 = vxor.u32 %v7857, 2147483648
    %v7866 = vmul.f32 %v7858, 1.442695
    %v7867 = vpow.pop %v7866
    %v7868 = vmul.f32 %v7859, 1.442695
    %v7869 = vpow.pop %v7868
    %v7870 = vmul.f32 %v7860, 1.442695
    %v7871 = vpow.pop %v7870
    %v7872 = vmul.f32 %v7861, 1.442695
    %v7873 = vpow.pop %v7872
    %v7874 = vmul.f32 %v7862, 1.442695
    %v7875 = vpow.pop %v7874
    %v7876 = vmul.f32 %v7863, 1.442695
    %v7877 = vpow.pop %v7876
    %v7878 = vmul.f32 %v7864, 1.442695
    %v7879 = vpow.pop %v7878
    %v7880 = vmul.f32 %v7865, 1.442695
    %v7881 = vpow.pop %v7880
    %v7882 = vadd.f32 %v7867, 1.0
    %v7883 = vadd.f32 %v7869, 1.0
    %v7884 = vadd.f32 %v7871, 1.0
    %v7885 = vadd.f32 %v7873, 1.0
    %v7886 = vadd.f32 %v7875, 1.0
    %v7887 = vadd.f32 %v7877, 1.0
    %v7888 = vadd.f32 %v7879, 1.0
    %v7889 = vadd.f32 %v7881, 1.0
    %v7890 = vrcp.pop %v7882
    %v7891 = vmul.f32 1.0, %v7890
    %v7892 = vrcp.pop %v7883
    %v7893 = vmul.f32 1.0, %v7892
    %v7894 = vrcp.pop %v7884
    %v7895 = vmul.f32 1.0, %v7894
    %v7896 = vrcp.pop %v7885
    %v7897 = vmul.f32 1.0, %v7896
    %v7898 = vrcp.pop %v7886
    %v7899 = vmul.f32 1.0, %v7898
    %v7900 = vrcp.pop %v7887
    %v7901 = vmul.f32 1.0, %v7900
    %v7902 = vrcp.pop %v7888
    %v7903 = vmul.f32 1.0, %v7902
    %v7904 = vrcp.pop %v7889
    %v7905 = vmul.f32 1.0, %v7904
    %7906 = vst [vmem:[#allocation2] sm:$0x1] %v7891
    %7907 = vst [vmem:[#allocation2 + $0x1] sm:$0x1] %v7893
    %7908 = vst [vmem:[#allocation2 + $0x2] sm:$0x1] %v7895
    %7909 = vst [vmem:[#allocation2 + $0x3] sm:$0x1] %v7897
    %7910 = vst [vmem:[#allocation2 + $0x4] sm:$0x1] %v7899
    %7911 = vst [vmem:[#allocation2 + $0x5] sm:$0x1] %v7901
    %7912 = vst [vmem:[#allocation2 + $0x6] sm:$0x1] %v7903
    %7913 = vst [vmem:[#allocation2 + $0x7] sm:$0x1] %v7905
    // Predicated region
    $region46: #{tpu_custom_call.1} parent=1 // pred_check
      _
    $region47: #{tpu_custom_call.1} parent=1 // pred_check_branch
      %7915 = sbr.rel (0) target = $region49
    $region48: #{tpu_custom_call.1} parent=1 // pred_region
      %s7917 = ssub.s32 128, 128
      %7918 = vsyncadd [#allocation3], %s7917
      %s7919 = sshll.u32 [#allocation2], 4
      %s7920 = int_to_ptr.vmem [resolvable:$true] %s7919
      %7925 = dma.vmem_to_hbm [thread:$0]  %s7920, 128, %s11, [#allocation3], 16, 16, 1
    $region49: #{tpu_custom_call.1} parent=1 // pred_fallthru
      _
    // Predicated region
    $region50: #{tpu_custom_call.1} parent=1 // pred_check
      _
    $region51: #{tpu_custom_call.1} parent=1 // pred_check_branch
      %7927 = sbr.rel (0) target = $region53
    $region52: #{tpu_custom_call.1} parent=1 // pred_region
      %7928 = dma.done [#allocation3], 128
    $region53: #{tpu_custom_call.1} parent=1 // pred_fallthru
      _
    %7929 = vsyncpa [#allocation3], 1

</llo_original>
